<compile_context>
chip_gen: v7x
topology: tpu7x:2x2x1
jax: 0.10.0
libtpu: 0.0.40
codegen_flags: <defaults>
</compile_context>

<pallas_src>
import functools

import jax
import jax.numpy as jnp
from jax.experimental import pallas as pl
from jax.experimental.pallas import tpu as pltpu


# ----------------------------- in-kernel helpers ------------------------------

def _im2col(x, masks, W_img, HW, step=1):
    """(9*Cin, HW) bf16 im2col slab for a 3x3 'same' conv.

    x: (Cin, HW) f32, channels on sublanes / pixels on lanes.
    masks: (9, HW) f32 per-tap validity (1.0 = in bounds), precomputed on host.
    step > 1 gives dilation (used for the conv on the 2x-pooled grid which is
    kept sparse at full resolution).
    """
    cols = []
    tap = 0
    for dy in (-1, 0, 1):
        for dx in (-1, 0, 1):
            s = (dy * W_img + dx) * step
            if s == 0:
                col = x
            else:
                shifted = pltpu.roll(x, shift=(-s) % HW, axis=1)
                # f32 mask-multiply (portable to v5e; bf16 select only helps v6e/v7x)
                col = shifted * masks[tap:tap + 1, :]
            cols.append(col.astype(jnp.bfloat16))
            tap += 1
    return jnp.concatenate(cols, axis=0)                    # (9*Cin, HW) bf16


def _mm(w_ref, rhs_bf16):
    """(Cout, K) bf16 weight Ref  @  (K, HW) bf16 value -> (Cout, HW) f32."""
    return jnp.dot(w_ref[...], rhs_bf16, preferred_element_type=jnp.float32)


def _log_softmax_rows(y):
    """log_softmax over the channel (sublane) axis of a (C, HW) tile."""
    m = jnp.max(y, axis=0, keepdims=True)
    z = y - m
    return z - jnp.log(jnp.sum(jnp.exp(z), axis=0, keepdims=True))


# ------------------------------ fused StarRNN ---------------------------------

def _star_rnn_kernel(*refs, n_layers, ntime, H, W, hidden):
    n_in = 2 + 4 * n_layers + 2
    in_refs = refs[:n_in]
    hcat_ref, l2_ref, last_ref = refs[n_in:n_in + 3]
    h_scr = refs[n_in + 3]

    x_ref, mask_ref = in_refs[0], in_refs[1]
    w_heads_ref, b_heads_ref = in_refs[-2], in_refs[-1]

    HW = H * W
    t = pl.program_id(1)
    masks = mask_ref[...]                                   # (9, HW) f32

    @pl.when(t == 0)
    def _init():
        h_scr[...] = jnp.zeros_like(h_scr)

    # whole time series is VMEM-resident per batch; slice this step's bands
    off = pl.multiple_of(t * HW, HW)
    x_in = x_ref[0, :, pl.ds(off, HW)]                      # (bands, HW) f32

    for l in range(n_layers):
        w_xc_ref, w_h_ref, gb_ref, cb_ref = in_refs[2 + 4 * l:2 + 4 * (l + 1)]
        h_prev = h_scr[l]                                   # (hidden, HW) f32
        # TODO(synk): upstream StarRNN cell definition is not provided; the
        #   standard STAR cell h = tanh(h + sig(Kg*[x,h]+b)*(tanh(Kc*x+b)-h))
        #   is used as a stand-in (gate conv split into x / h parts).
        # One shared x-slab feeds both the gate-x conv and the candidate conv
        # (weights fused along Cout -> single matmul, then row-split).
        xc = _mm(w_xc_ref, _im2col(x_in, masks, W, HW))     # (2*hidden, HW)
        gh = _mm(w_h_ref, _im2col(h_prev, masks, W, HW))    # (hidden, HW)
        gate = jax.nn.sigmoid(xc[:hidden] + gh + gb_ref[...])
        cand = jnp.tanh(xc[hidden:] + cb_ref[...])
        h_new = jnp.tanh(h_prev + gate * (cand - h_prev))
        h_scr[l] = h_new
        x_in = h_new

    @pl.when(t == ntime - 1)
    def _emit():
        h_cat = jnp.concatenate([h_scr[n_layers - 2], h_scr[n_layers - 1]],
                                axis=0)                     # (2*hidden, HW)
        hcat_ref[0] = h_cat
        # both heads fused into one matmul (w_l2 zero-padded over h_pen rows)
        logits = _mm(w_heads_ref, h_cat.astype(jnp.bfloat16)) + b_heads_ref[...]
        l2_ref[0] = _log_softmax_rows(logits[:3])
        last_ref[0] = _log_softmax_rows(logits[3:])


def star_rnn_forward(x_t, masks, layer_params, w_heads, b_heads, *,
                     B, ntime, H, W, hidden, n_layers, n_last):
    HW = H * W
    bands = x_t.shape[1]

    def cmap(ndim):
        return lambda b, t: (0,) * ndim

    inputs = [x_t, masks]
    in_specs = [pl.BlockSpec((1, bands, ntime * HW), lambda b, t: (b, 0, 0)),
                pl.BlockSpec(masks.shape, cmap(2))]
    for lp in layer_params:
        for arr in lp:
            inputs.append(arr)
            in_specs.append(pl.BlockSpec(arr.shape, cmap(arr.ndim)))
    for arr in (w_heads, b_heads):
        inputs.append(arr)
        in_specs.append(pl.BlockSpec(arr.shape, cmap(arr.ndim)))

    out_shape = (jax.ShapeDtypeStruct((B, 2 * hidden, HW), jnp.float32),
                 jax.ShapeDtypeStruct((B, 3, HW), jnp.float32),
                 jax.ShapeDtypeStruct((B, n_last, HW), jnp.float32))
    out_specs = (pl.BlockSpec((1, 2 * hidden, HW), lambda b, t: (b, 0, 0)),
                 pl.BlockSpec((1, 3, HW), lambda b, t: (b, 0, 0)),
                 pl.BlockSpec((1, n_last, HW), lambda b, t: (b, 0, 0)))

    kern = functools.partial(_star_rnn_kernel, n_layers=n_layers, ntime=ntime,
                             H=H, W=W, hidden=hidden)
    return pl.pallas_call(
        kern,
        out_shape=out_shape,
        grid=(B, ntime),
        in_specs=in_specs,
        out_specs=out_specs,
        scratch_shapes=[pltpu.VMEM((n_layers, hidden, HW), jnp.float32)],
        compiler_params=pltpu.CompilerParams(
            dimension_semantics=("parallel", "arbitrary"),
            vmem_limit_bytes=32 * 1024 * 1024),   # modest, fits v7x's 64 MiB too
    )(*inputs)


# ------------------ fused UNet (stand-in) + CropTypeFinal --------------------

def _spatial_kernel(hcat_ref, last_ref, mfull_ref, mhalf_ref, odd_ref,
                    we1_ref, be1_ref, we2_ref, be2_ref, wd1_ref, bd1_ref,
                    whd_ref, bhd_ref,
                    wc1h_ref, wc1u_ref, bc1_ref, ws1_ref, bs1_ref,
                    ws2_ref, bs2_ref, wf_ref, bf_ref,
                    heads_ref, ct_ref, *, H, W):
    HW = H * W
    m_full = mfull_ref[...]
    m_half = mhalf_ref[...]
    hcat = hcat_ref[0]                                      # (2h, HW) f32

    # -- UNet encoder level 1: 3x3 conv (+ folded BN) + ReLU -------------------
    e1 = jnp.maximum(_mm(we1_ref, _im2col(hcat, m_full, W, HW))
                     + be1_ref[...], 0.0)                   # (f, HW)

    # -- 2x2 max pool, kept sparse on the full-res lane grid -------------------
    # Only the even-row/even-col anchors are ever read downstream.
    mh = jnp.maximum(e1, pltpu.roll(e1, shift=HW - 1, axis=1))
    p1 = jnp.maximum(mh, pltpu.roll(mh, shift=HW - W, axis=1))

    # -- encoder level 2 on the pooled grid: dilation-2 taps -------------------
    e2 = jnp.maximum(_mm(we2_ref, _im2col(p1, m_half, W, HW, step=2))
                     + be2_ref[...], 0.0)                   # (2f, HW) sparse

    # -- nearest-neighbour 2x upsample: copy each anchor over its 2x2 block ----
    odd = odd_ref[...]
    col_odd = odd[0:1, :] > 0.5
    row_odd = odd[1:2, :] > 0.5
    a = jnp.where(col_odd, pltpu.roll(e2, shift=1, axis=1), e2)
    up = jnp.where(row_odd, pltpu.roll(a, shift=W, axis=1), a)   # (2f, HW)

    # -- decoder conv + fused dist/edge/mask 1x1 heads --------------------------
    dec_in = jnp.concatenate([e1, up], axis=0)              # (3f, HW)
    d1 = jnp.maximum(_mm(wd1_ref, _im2col(dec_in, m_full, W, HW))
                     + bd1_ref[...], 0.0)
    heads = _mm(whd_ref, d1.astype(jnp.bfloat16)) + bhd_ref[...]   # (5, HW)
    heads_ref[0] = heads

    # -- CropTypeFinal (1x1 -> 3x3 -> 3x3+BN, residual, ReLU, 1x1, + star) -----
    # first 1x1 split into K=2h and K=5 pieces (no 69-channel concat needed)
    out1 = jnp.maximum(_mm(wc1h_ref, hcat.astype(jnp.bfloat16))
                       + _mm(wc1u_ref, heads.astype(jnp.bfloat16))
                       + bc1_ref[...], 0.0)                 # (hidden, HW)
    s1 = jnp.maximum(_mm(ws1_ref, _im2col(out1, m_full, W, HW))
                     + bs1_ref[...], 0.0)
    s2 = _mm(ws2_ref, _im2col(s1, m_full, W, HW)) + bs2_ref[...]
    res = jnp.maximum(s2 + out1, 0.0)
    fin = _mm(wf_ref, res.astype(jnp.bfloat16)) + bf_ref[...]      # (nc, HW)
    ct_ref[0] = fin + last_ref[0]


def spatial_forward(hcat, last, consts, weights, *, H, W, n_last):
    B = hcat.shape[0]
    HW = H * W

    def cmap(ndim):
        return lambda b: (0,) * ndim

    args = [hcat, last] + list(consts) + list(weights)
    in_specs = [pl.BlockSpec((1, hcat.shape[1], HW), lambda b: (b, 0, 0)),
                pl.BlockSpec((1, n_last, HW), lambda b: (b, 0, 0))]
    for arr in list(consts) + list(weights):
        in_specs.append(pl.BlockSpec(arr.shape, cmap(arr.ndim)))

    out_shape = (jax.ShapeDtypeStruct((B, 5, HW), jnp.float32),
                 jax.ShapeDtypeStruct((B, n_last, HW), jnp.float32))
    out_specs = (pl.BlockSpec((1, 5, HW), lambda b: (b, 0, 0)),
                 pl.BlockSpec((1, n_last, HW), lambda b: (b, 0, 0)))

    kern = functools.partial(_spatial_kernel, H=H, W=W)
    return pl.pallas_call(
        kern, out_shape=out_shape, grid=(B,),
        in_specs=in_specs, out_specs=out_specs,
        compiler_params=pltpu.CompilerParams(
            dimension_semantics=("parallel",),
            vmem_limit_bytes=32 * 1024 * 1024),
    )(*args)


# ----------------------------- host-side constants ----------------------------

def _tap_masks(H, W, step=1):
    """(9, H*W) validity masks for 3x3 taps.  step==2: validity on the pooled
    (H/2, W/2) grid evaluated at every full-res pixel (anchors are what's read)."""
    HW = H * W
    p = jnp.arange(HW)
    r, c = p // W, p % W
    if step == 1:
        rr, cc, Hl, Wl = r, c, H, W
    else:
        rr, cc, Hl, Wl = r // 2, c // 2, H // 2, W // 2
    rows = []
    for dy in (-1, 0, 1):
        for dx in (-1, 0, 1):
            ok = ((rr + dy >= 0) & (rr + dy <= Hl - 1) &
                  (cc + dx >= 0) & (cc + dx <= Wl - 1))
            rows.append(ok.astype(jnp.float32))
    return jnp.stack(rows, axis=0)


def _odd_masks(H, W):
    HW = H * W
    p = jnp.arange(HW)
    r, c = p // W, p % W
    return jnp.stack([(c % 2).astype(jnp.float32),
                      (r % 2).astype(jnp.float32)], axis=0)     # (2, HW)


# ----------------------------- weight re-layouts ------------------------------

def _t3(w, scale=None):
    """(3,3,cin,cout) [* cout-scale] -> (cout, 9*cin) bf16, tap-major rows."""
    if scale is not None:
        w = w * scale
    kh, kw, cin, cout = w.shape
    return jnp.transpose(w.reshape(kh * kw, cin, cout), (2, 0, 1)).reshape(
        cout, kh * kw * cin).astype(jnp.bfloat16)


def _t1(w, scale=None):
    """(cin, cout) [* cout-scale] -> (cout, cin) bf16."""
    if scale is not None:
        w = w * scale
    return jnp.transpose(w).astype(jnp.bfloat16)


def _bcol(b):
    return b.reshape(-1, 1).astype(jnp.float32)


# ---------------------------- parameter creation -----------------------------

def _rnorm(key, shape, scale=0.1):
    return scale * jax.random.normal(key, shape, dtype=jnp.float32)


def init_params(key, *, bands, hidden, n_layers, filters, num_classes):
    ks = iter(jax.random.split(key, 64))
    p = {}

    # StarRNN (ConvSTAR) — per layer: gate conv on [x, h], candidate conv on x.
    rnn = []
    in_dim = bands
    for _ in range(n_layers):
        rnn.append(dict(
            gate_w=_rnorm(next(ks), (3, 3, in_dim + hidden, hidden)),
            gate_b=_rnorm(next(ks), (hidden,)),
            cand_w=_rnorm(next(ks), (3, 3, in_dim, hidden)),
            cand_b=_rnorm(next(ks), (hidden,)),
        ))
        in_dim = hidden
    p['rnn'] = rnn
    p['rnn_l2_w'] = _rnorm(next(ks), (hidden, 3))
    p['rnn_l2_b'] = _rnorm(next(ks), (3,))
    p['rnn_last_w'] = _rnorm(next(ks), (2 * hidden, num_classes))
    p['rnn_last_b'] = _rnorm(next(ks), (num_classes,))

    # mask model (simplified UNet3Psi; heads: dist=1, edge=2, mask=2)
    base_in = 2 * hidden
    p['u_e1_w'] = _rnorm(next(ks), (3, 3, base_in, filters))
    p['u_e1_s'] = 1.0 + _rnorm(next(ks), (filters,)); p['u_e1_t'] = _rnorm(next(ks), (filters,))
    p['u_e2_w'] = _rnorm(next(ks), (3, 3, filters, 2 * filters))
    p['u_e2_s'] = 1.0 + _rnorm(next(ks), (2 * filters,)); p['u_e2_t'] = _rnorm(next(ks), (2 * filters,))
    p['u_d1_w'] = _rnorm(next(ks), (3, 3, 3 * filters, filters))
    p['u_d1_s'] = 1.0 + _rnorm(next(ks), (filters,)); p['u_d1_t'] = _rnorm(next(ks), (filters,))
    p['u_dist_w'] = _rnorm(next(ks), (filters, 1)); p['u_dist_b'] = _rnorm(next(ks), (1,))
    p['u_edge_w'] = _rnorm(next(ks), (filters, 2)); p['u_edge_b'] = _rnorm(next(ks), (2,))
    p['u_mask_w'] = _rnorm(next(ks), (filters, 2)); p['u_mask_b'] = _rnorm(next(ks), (2,))

    # CropTypeFinal(in = 2*hidden + 1 + 2 + 2, out = hidden, classes = num_classes)
    ct_in = base_in + 1 + 2 + 2
    p['ct_c1_w'] = _rnorm(next(ks), (ct_in, hidden))
    p['ct_c1_s'] = 1.0 + _rnorm(next(ks), (hidden,)); p['ct_c1_t'] = _rnorm(next(ks), (hidden,))
    p['ct_s1_w'] = _rnorm(next(ks), (3, 3, hidden, hidden))
    p['ct_s1_s'] = 1.0 + _rnorm(next(ks), (hidden,)); p['ct_s1_t'] = _rnorm(next(ks), (hidden,))
    p['ct_s2_w'] = _rnorm(next(ks), (3, 3, hidden, hidden))
    p['ct_s2_s'] = 1.0 + _rnorm(next(ks), (hidden,)); p['ct_s2_t'] = _rnorm(next(ks), (hidden,))
    p['ct_fin_w'] = _rnorm(next(ks), (hidden, num_classes))
    p['ct_fin_b'] = _rnorm(next(ks), (num_classes,))
    return p


# ------------------------------- forward pass ---------------------------------

def cultionet_forward(params, x_graph, *, batch_size, height, width,
                      bands, ntime, hidden, n_layers, filters, num_classes):
    B, H, W = batch_size, height, width
    HW = H * W
    M = B * HW
    assert n_layers >= 2 and H % 2 == 0 and W % 2 == 0
    # TODO(synk): if batch_size == 1 the "parallel" batch axis gives only one
    #   unit of work; split HW into >=2 row blocks to keep v7x's 2nd core busy.

    masks_full = _tap_masks(H, W, step=1)
    masks_half = _tap_masks(H, W, step=2)
    odd = _odd_masks(H, W)

    # ---- StarRNN params: fused gate-x/candidate weights, transposed layout ---
    rnn_layers = []
    in_dim = bands
    for l in range(n_layers):
        lp = params['rnn'][l]
        w_xc = jnp.concatenate([_t3(lp['gate_w'][:, :, :in_dim, :]),
                                _t3(lp['cand_w'])], axis=0)     # (2*hidden, 9*in)
        w_h = _t3(lp['gate_w'][:, :, in_dim:, :])               # (hidden, 9*hidden)
        rnn_layers.append((w_xc, w_h, _bcol(lp['gate_b']), _bcol(lp['cand_b'])))
        in_dim = hidden

    # fused RNN heads: rows 0:3 = [0 | w_l2^T] (h_top only), rows 3: = w_last^T
    w_l2_t = jnp.concatenate([jnp.zeros((3, hidden), jnp.float32),
                              jnp.transpose(params['rnn_l2_w'])], axis=1)
    w_heads = jnp.concatenate([w_l2_t, jnp.transpose(params['rnn_last_w'])],
                              axis=0).astype(jnp.bfloat16)
    b_heads = jnp.concatenate([params['rnn_l2_b'],
                               params['rnn_last_b']]).reshape(-1, 1)

    # ---- time stream: (B*H*W, bands*ntime) -> (B, bands, ntime*H*W) ----------
    x5 = x_graph.reshape(B, HW, bands, ntime)
    x_t = jnp.transpose(x5, (0, 2, 3, 1)).reshape(B, bands, ntime * HW)

    # ---- StarRNN: full recurrence + both log-softmax heads, one pallas_call --
    h_cat, l2, last = star_rnn_forward(
        x_t, masks_full, rnn_layers, w_heads, b_heads,
        B=B, ntime=ntime, H=H, W=W, hidden=hidden, n_layers=n_layers,
        n_last=num_classes)

    # ---- fused UNet stand-in + CropTypeFinal, one pallas_call -----------------
    # TODO(synk): UNet3Psi definition not provided upstream; a 2-level UNet
    #   with the same dist/edge/mask head channel counts is used instead.
    p = params
    unet_ct_weights = (
        _t3(p['u_e1_w'], p['u_e1_s']), _bcol(p['u_e1_t']),
        _t3(p['u_e2_w'], p['u_e2_s']), _bcol(p['u_e2_t']),
        _t3(p['u_d1_w'], p['u_d1_s']), _bcol(p['u_d1_t']),
        jnp.concatenate([_t1(p['u_dist_w']), _t1(p['u_edge_w']),
                         _t1(p['u_mask_w'])], axis=0),              # (5, f)
        jnp.concatenate([p['u_dist_b'], p['u_edge_b'],
                         p['u_mask_b']]).reshape(-1, 1),
        _t1(p['ct_c1_w'][:2 * hidden, :], p['ct_c1_s']),            # (h, 2h)
        _t1(p['ct_c1_w'][2 * hidden:, :], p['ct_c1_s']),            # (h, 5)
        _bcol(p['ct_c1_t']),
        _t3(p['ct_s1_w'], p['ct_s1_s']), _bcol(p['ct_s1_t']),
        _t3(p['ct_s2_w'], p['ct_s2_s']), _bcol(p['ct_s2_t']),
        _t1(p['ct_fin_w']), _bcol(p['ct_fin_b']),
    )
    heads, crop_type = spatial_forward(
        h_cat, last, (masks_full, masks_half, odd), unet_ct_weights,
        H=H, W=W, n_last=num_classes)

    def cg(x):    # ConvToGraph: (B, C, HW) -> (B*HW, C)
        return jnp.transpose(x, (0, 2, 1)).reshape(M, x.shape[1])

    return {
        'dist': cg(heads[:, 0:1, :]),
        'edge': cg(heads[:, 1:3, :]),
        'crop': cg(heads[:, 3:5, :]),
        'crop_star': cg(l2),
        'crop_type_star': cg(last),
        'crop_type': cg(crop_type),
    }


# ----------------------------------- main --------------------------------------

if __name__ == "__main__":
    B, H, W = 2, 16, 16
    bands, ntime = 4, 8           # ds_features = 32, ds_time_features = 8
    hidden, n_layers = 32, 2      # star_rnn_hidden_dim, star_rnn_n_layers
    filters = 16
    num_classes = 3               # > 2 -> crop_type branch is exercised
    ds_features = bands * ntime
    M = B * H * W

    key = jax.random.PRNGKey(0)
    kx, kp = jax.random.split(key)
    x_graph = jax.random.normal(kx, (M, ds_features), dtype=jnp.float32)  # data.x
    params = init_params(kp, bands=bands, hidden=hidden, n_layers=n_layers,
                         filters=filters, num_classes=num_classes)

    fwd = jax.jit(functools.partial(
        cultionet_forward, batch_size=B, height=H, width=W,
        bands=bands, ntime=ntime, hidden=hidden, n_layers=n_layers,
        filters=filters, num_classes=num_classes))

    out = fwd(params, x_graph)
    out = jax.tree_util.tree_map(jax.block_until_ready, out)

    assert out['dist'].shape == (M, 1)
    assert out['edge'].shape == (M, 2)
    assert out['crop'].shape == (M, 2)
    assert out['crop_star'].shape == (M, 3)
    assert out['crop_type_star'].shape == (M, num_classes)
    assert out['crop_type'].shape == (M, num_classes)
    assert all(bool(jnp.isfinite(v).all()) for v in out.values())

    print("KERNEL_OK")
</pallas_src>

<mosaic_0001>
module attributes {stable_mosaic.version = 11 : i64} {
  func.func @_star_rnn_kernel(%arg0: i32, %arg1: i32, %arg2: memref<1x4x2048xf32, #tpu.memory_space<vmem>>, %arg3: memref<9x256xf32, #tpu.memory_space<vmem>>, %arg4: memref<64x36xbf16, #tpu.memory_space<vmem>>, %arg5: memref<32x288xbf16, #tpu.memory_space<vmem>>, %arg6: memref<32x1xf32, #tpu.memory_space<vmem>>, %arg7: memref<32x1xf32, #tpu.memory_space<vmem>>, %arg8: memref<64x288xbf16, #tpu.memory_space<vmem>>, %arg9: memref<32x288xbf16, #tpu.memory_space<vmem>>, %arg10: memref<32x1xf32, #tpu.memory_space<vmem>>, %arg11: memref<32x1xf32, #tpu.memory_space<vmem>>, %arg12: memref<6x64xbf16, #tpu.memory_space<vmem>>, %arg13: memref<6x1xf32, #tpu.memory_space<vmem>>, %arg14: memref<1x64x256xf32, #tpu.memory_space<vmem>>, %arg15: memref<1x3x256xf32, #tpu.memory_space<vmem>>, %arg16: memref<1x3x256xf32, #tpu.memory_space<vmem>>, %arg17: memref<2x32x256xf32, #tpu.memory_space<vmem>>) attributes {dimension_semantics = [#tpu.dimension_semantics<parallel>, #tpu.dimension_semantics<arbitrary>], iteration_bounds = array<i64: 2, 8>, scalar_prefetch = 0 : i64, scratch_operands = 1 : i64, tpu.core_type = #tpu.core_type<tc>, window_params = [{transform_indices = @transform_0, window_bounds = array<i64: 1, 4, 2048>}, {pipeline_mode = #tpu.pipeline_mode<synchronous>, transform_indices = @transform_1, window_bounds = array<i64: 9, 256>}, {pipeline_mode = #tpu.pipeline_mode<synchronous>, transform_indices = @transform_2, window_bounds = array<i64: 64, 36>}, {pipeline_mode = #tpu.pipeline_mode<synchronous>, transform_indices = @transform_3, window_bounds = array<i64: 32, 288>}, {pipeline_mode = #tpu.pipeline_mode<synchronous>, transform_indices = @transform_4, window_bounds = array<i64: 32, 1>}, {pipeline_mode = #tpu.pipeline_mode<synchronous>, transform_indices = @transform_5, window_bounds = array<i64: 32, 1>}, {pipeline_mode = #tpu.pipeline_mode<synchronous>, transform_indices = @transform_6, window_bounds = array<i64: 64, 288>}, {pipeline_mode = #tpu.pipeline_mode<synchronous>, transform_indices = @transform_7, window_bounds = array<i64: 32, 288>}, {pipeline_mode = #tpu.pipeline_mode<synchronous>, transform_indices = @transform_8, window_bounds = array<i64: 32, 1>}, {pipeline_mode = #tpu.pipeline_mode<synchronous>, transform_indices = @transform_9, window_bounds = array<i64: 32, 1>}, {pipeline_mode = #tpu.pipeline_mode<synchronous>, transform_indices = @transform_10, window_bounds = array<i64: 6, 64>}, {pipeline_mode = #tpu.pipeline_mode<synchronous>, transform_indices = @transform_11, window_bounds = array<i64: 6, 1>}, {transform_indices = @transform_12, window_bounds = array<i64: 1, 64, 256>}, {transform_indices = @transform_13, window_bounds = array<i64: 1, 3, 256>}, {transform_indices = @transform_14, window_bounds = array<i64: 1, 3, 256>}]} {
    %c0 = arith.constant 0 : index
    %c0_0 = arith.constant 0 : index
    %0 = vector.load %arg3[%c0, %c0_0] : memref<9x256xf32, #tpu.memory_space<vmem>>, vector<9x256xf32>
    %c0_i32 = arith.constant 0 : i32
    %1 = arith.cmpi eq, %arg1, %c0_i32 : i32
    %2 = arith.extui %1 : i1 to i32
    %c0_i32_1 = arith.constant 0 : i32
    %3 = arith.cmpi ne, %2, %c0_i32_1 : i32
    scf.if %3 {
      %cst_61 = arith.constant 0.000000e+00 : f32
      %236 = vector.broadcast %cst_61 : f32 to vector<2x32x256xf32>
      %c0_62 = arith.constant 0 : index
      %c0_63 = arith.constant 0 : index
      %c0_64 = arith.constant 0 : index
      %237 = vector.load %arg17[%c0_62, %c0_63, %c0_64] : memref<2x32x256xf32, #tpu.memory_space<vmem>>, vector<2x32x256xf32>
      tpu.vector_store %arg17[%c0_62, %c0_63, %c0_64], %236 {strides = array<i32>} : memref<2x32x256xf32, #tpu.memory_space<vmem>>, vector<2x32x256xf32>,
    } else {
    }
    %c256_i32 = arith.constant 256 : i32
    %4 = arith.muli %arg1, %c256_i32 : i32
    %5 = tpu.assume_multiple %4, 256 : i32
    %c0_2 = arith.constant 0 : index
    %c0_3 = arith.constant 0 : index
    %6 = arith.index_cast %5 : i32 to index
    %7 = vector.load %arg2[%c0_2, %c0_3, %6] : memref<1x4x2048xf32, #tpu.memory_space<vmem>>, vector<1x4x256xf32>
    %8 = vector.shape_cast %7 : vector<1x4x256xf32> to vector<4x256xf32>
    %c0_4 = arith.constant 0 : index
    %c0_5 = arith.constant 0 : index
    %c0_6 = arith.constant 0 : index
    %9 = vector.load %arg17[%c0_4, %c0_5, %c0_6] : memref<2x32x256xf32, #tpu.memory_space<vmem>>, vector<1x32x256xf32>
    %10 = vector.shape_cast %9 : vector<1x32x256xf32> to vector<32x256xf32>
    %c17_i32 = arith.constant 17 : i32
    %11 = tpu.dynamic_rotate %8 by %c17_i32 dim 1 : vector<4x256xf32>, i32 -> vector<4x256xf32>
    %12 = vector.extract_strided_slice %0 {offsets = [0, 0], sizes = [1, 256], strides = [1, 1]} : vector<9x256xf32> to vector<1x256xf32>
    %13 = vector.broadcast %12 : vector<1x256xf32> to vector<4x256xf32>
    %14 = arith.mulf %11, %13 : vector<4x256xf32>
    %15 = arith.truncf %14 : vector<4x256xf32> to vector<4x256xbf16>
    %c16_i32 = arith.constant 16 : i32
    %16 = tpu.dynamic_rotate %8 by %c16_i32 dim 1 : vector<4x256xf32>, i32 -> vector<4x256xf32>
    %17 = vector.extract_strided_slice %0 {offsets = [1, 0], sizes = [1, 256], strides = [1, 1]} : vector<9x256xf32> to vector<1x256xf32>
    %18 = vector.broadcast %17 : vector<1x256xf32> to vector<4x256xf32>
    %19 = arith.mulf %16, %18 : vector<4x256xf32>
    %20 = arith.truncf %19 : vector<4x256xf32> to vector<4x256xbf16>
    %c15_i32 = arith.constant 15 : i32
    %21 = tpu.dynamic_rotate %8 by %c15_i32 dim 1 : vector<4x256xf32>, i32 -> vector<4x256xf32>
    %22 = vector.extract_strided_slice %0 {offsets = [2, 0], sizes = [1, 256], strides = [1, 1]} : vector<9x256xf32> to vector<1x256xf32>
    %23 = vector.broadcast %22 : vector<1x256xf32> to vector<4x256xf32>
    %24 = arith.mulf %21, %23 : vector<4x256xf32>
    %25 = arith.truncf %24 : vector<4x256xf32> to vector<4x256xbf16>
    %c1_i32 = arith.constant 1 : i32
    %26 = tpu.dynamic_rotate %8 by %c1_i32 dim 1 : vector<4x256xf32>, i32 -> vector<4x256xf32>
    %27 = vector.extract_strided_slice %0 {offsets = [3, 0], sizes = [1, 256], strides = [1, 1]} : vector<9x256xf32> to vector<1x256xf32>
    %28 = vector.broadcast %27 : vector<1x256xf32> to vector<4x256xf32>
    %29 = arith.mulf %26, %28 : vector<4x256xf32>
    %30 = arith.truncf %29 : vector<4x256xf32> to vector<4x256xbf16>
    %31 = arith.truncf %8 : vector<4x256xf32> to vector<4x256xbf16>
    %c255_i32 = arith.constant 255 : i32
    %32 = tpu.dynamic_rotate %8 by %c255_i32 dim 1 : vector<4x256xf32>, i32 -> vector<4x256xf32>
    %33 = vector.extract_strided_slice %0 {offsets = [5, 0], sizes = [1, 256], strides = [1, 1]} : vector<9x256xf32> to vector<1x256xf32>
    %34 = vector.broadcast %33 : vector<1x256xf32> to vector<4x256xf32>
    %35 = arith.mulf %32, %34 : vector<4x256xf32>
    %36 = arith.truncf %35 : vector<4x256xf32> to vector<4x256xbf16>
    %c241_i32 = arith.constant 241 : i32
    %37 = tpu.dynamic_rotate %8 by %c241_i32 dim 1 : vector<4x256xf32>, i32 -> vector<4x256xf32>
    %38 = vector.extract_strided_slice %0 {offsets = [6, 0], sizes = [1, 256], strides = [1, 1]} : vector<9x256xf32> to vector<1x256xf32>
    %39 = vector.broadcast %38 : vector<1x256xf32> to vector<4x256xf32>
    %40 = arith.mulf %37, %39 : vector<4x256xf32>
    %41 = arith.truncf %40 : vector<4x256xf32> to vector<4x256xbf16>
    %c240_i32 = arith.constant 240 : i32
    %42 = tpu.dynamic_rotate %8 by %c240_i32 dim 1 : vector<4x256xf32>, i32 -> vector<4x256xf32>
    %43 = vector.extract_strided_slice %0 {offsets = [7, 0], sizes = [1, 256], strides = [1, 1]} : vector<9x256xf32> to vector<1x256xf32>
    %44 = vector.broadcast %43 : vector<1x256xf32> to vector<4x256xf32>
    %45 = arith.mulf %42, %44 : vector<4x256xf32>
    %46 = arith.truncf %45 : vector<4x256xf32> to vector<4x256xbf16>
    %c239_i32 = arith.constant 239 : i32
    %47 = tpu.dynamic_rotate %8 by %c239_i32 dim 1 : vector<4x256xf32>, i32 -> vector<4x256xf32>
    %48 = vector.extract_strided_slice %0 {offsets = [8, 0], sizes = [1, 256], strides = [1, 1]} : vector<9x256xf32> to vector<1x256xf32>
    %49 = vector.broadcast %48 : vector<1x256xf32> to vector<4x256xf32>
    %50 = arith.mulf %47, %49 : vector<4x256xf32>
    %51 = arith.truncf %50 : vector<4x256xf32> to vector<4x256xbf16>
    %52 = tpu.concatenate %15, %20, %25, %30, %31, %36, %41, %46, %51 in 0 : vector<4x256xbf16>, vector<4x256xbf16>, vector<4x256xbf16>, vector<4x256xbf16>, vector<4x256xbf16>, vector<4x256xbf16>, vector<4x256xbf16>, vector<4x256xbf16>, vector<4x256xbf16> -> vector<36x256xbf16>
    %c0_7 = arith.constant 0 : index
    %c0_8 = arith.constant 0 : index
    %53 = vector.load %arg4[%c0_7, %c0_8] : memref<64x36xbf16, #tpu.memory_space<vmem>>, vector<64x36xbf16>
    %cst = arith.constant dense<0.000000e+00> : vector<64x256xf32>
    %54 = tpu.matmul %53, %52, %cst {dimension_numbers = #tpu.dot_dimension_numbers<[1], [0], [0], [1], [0, 0, 1, 1], [], []>} : vector<64x36xbf16>, vector<36x256xbf16>, vector<64x256xf32> -> vector<64x256xf32>
    %c17_i32_9 = arith.constant 17 : i32
    %55 = tpu.dynamic_rotate %10 by %c17_i32_9 dim 1 : vector<32x256xf32>, i32 -> vector<32x256xf32>
    %56 = vector.extract_strided_slice %0 {offsets = [0, 0], sizes = [1, 256], strides = [1, 1]} : vector<9x256xf32> to vector<1x256xf32>
    %57 = vector.broadcast %56 : vector<1x256xf32> to vector<32x256xf32>
    %58 = arith.mulf %55, %57 : vector<32x256xf32>
    %59 = arith.truncf %58 : vector<32x256xf32> to vector<32x256xbf16>
    %c16_i32_10 = arith.constant 16 : i32
    %60 = tpu.dynamic_rotate %10 by %c16_i32_10 dim 1 : vector<32x256xf32>, i32 -> vector<32x256xf32>
    %61 = vector.extract_strided_slice %0 {offsets = [1, 0], sizes = [1, 256], strides = [1, 1]} : vector<9x256xf32> to vector<1x256xf32>
    %62 = vector.broadcast %61 : vector<1x256xf32> to vector<32x256xf32>
    %63 = arith.mulf %60, %62 : vector<32x256xf32>
    %64 = arith.truncf %63 : vector<32x256xf32> to vector<32x256xbf16>
    %c15_i32_11 = arith.constant 15 : i32
    %65 = tpu.dynamic_rotate %10 by %c15_i32_11 dim 1 : vector<32x256xf32>, i32 -> vector<32x256xf32>
    %66 = vector.extract_strided_slice %0 {offsets = [2, 0], sizes = [1, 256], strides = [1, 1]} : vector<9x256xf32> to vector<1x256xf32>
    %67 = vector.broadcast %66 : vector<1x256xf32> to vector<32x256xf32>
    %68 = arith.mulf %65, %67 : vector<32x256xf32>
    %69 = arith.truncf %68 : vector<32x256xf32> to vector<32x256xbf16>
    %c1_i32_12 = arith.constant 1 : i32
    %70 = tpu.dynamic_rotate %10 by %c1_i32_12 dim 1 : vector<32x256xf32>, i32 -> vector<32x256xf32>
    %71 = vector.extract_strided_slice %0 {offsets = [3, 0], sizes = [1, 256], strides = [1, 1]} : vector<9x256xf32> to vector<1x256xf32>
    %72 = vector.broadcast %71 : vector<1x256xf32> to vector<32x256xf32>
    %73 = arith.mulf %70, %72 : vector<32x256xf32>
    %74 = arith.truncf %73 : vector<32x256xf32> to vector<32x256xbf16>
    %75 = arith.truncf %10 : vector<32x256xf32> to vector<32x256xbf16>
    %c255_i32_13 = arith.constant 255 : i32
    %76 = tpu.dynamic_rotate %10 by %c255_i32_13 dim 1 : vector<32x256xf32>, i32 -> vector<32x256xf32>
    %77 = vector.extract_strided_slice %0 {offsets = [5, 0], sizes = [1, 256], strides = [1, 1]} : vector<9x256xf32> to vector<1x256xf32>
    %78 = vector.broadcast %77 : vector<1x256xf32> to vector<32x256xf32>
    %79 = arith.mulf %76, %78 : vector<32x256xf32>
    %80 = arith.truncf %79 : vector<32x256xf32> to vector<32x256xbf16>
    %c241_i32_14 = arith.constant 241 : i32
    %81 = tpu.dynamic_rotate %10 by %c241_i32_14 dim 1 : vector<32x256xf32>, i32 -> vector<32x256xf32>
    %82 = vector.extract_strided_slice %0 {offsets = [6, 0], sizes = [1, 256], strides = [1, 1]} : vector<9x256xf32> to vector<1x256xf32>
    %83 = vector.broadcast %82 : vector<1x256xf32> to vector<32x256xf32>
    %84 = arith.mulf %81, %83 : vector<32x256xf32>
    %85 = arith.truncf %84 : vector<32x256xf32> to vector<32x256xbf16>
    %c240_i32_15 = arith.constant 240 : i32
    %86 = tpu.dynamic_rotate %10 by %c240_i32_15 dim 1 : vector<32x256xf32>, i32 -> vector<32x256xf32>
    %87 = vector.extract_strided_slice %0 {offsets = [7, 0], sizes = [1, 256], strides = [1, 1]} : vector<9x256xf32> to vector<1x256xf32>
    %88 = vector.broadcast %87 : vector<1x256xf32> to vector<32x256xf32>
    %89 = arith.mulf %86, %88 : vector<32x256xf32>
    %90 = arith.truncf %89 : vector<32x256xf32> to vector<32x256xbf16>
    %c239_i32_16 = arith.constant 239 : i32
    %91 = tpu.dynamic_rotate %10 by %c239_i32_16 dim 1 : vector<32x256xf32>, i32 -> vector<32x256xf32>
    %92 = vector.extract_strided_slice %0 {offsets = [8, 0], sizes = [1, 256], strides = [1, 1]} : vector<9x256xf32> to vector<1x256xf32>
    %93 = vector.broadcast %92 : vector<1x256xf32> to vector<32x256xf32>
    %94 = arith.mulf %91, %93 : vector<32x256xf32>
    %95 = arith.truncf %94 : vector<32x256xf32> to vector<32x256xbf16>
    %96 = tpu.concatenate %59, %64, %69, %74, %75, %80, %85, %90, %95 in 0 : vector<32x256xbf16>, vector<32x256xbf16>, vector<32x256xbf16>, vector<32x256xbf16>, vector<32x256xbf16>, vector<32x256xbf16>, vector<32x256xbf16>, vector<32x256xbf16>, vector<32x256xbf16> -> vector<288x256xbf16>
    %c0_17 = arith.constant 0 : index
    %c0_18 = arith.constant 0 : index
    %97 = vector.load %arg5[%c0_17, %c0_18] : memref<32x288xbf16, #tpu.memory_space<vmem>>, vector<32x288xbf16>
    %cst_19 = arith.constant dense<0.000000e+00> : vector<32x256xf32>
    %98 = tpu.matmul %97, %96, %cst_19 {dimension_numbers = #tpu.dot_dimension_numbers<[1], [0], [0], [1], [0, 0, 1, 1], [], []>} : vector<32x288xbf16>, vector<288x256xbf16>, vector<32x256xf32> -> vector<32x256xf32>
    %99 = vector.extract_strided_slice %54 {offsets = [0, 0], sizes = [32, 256], strides = [1, 1]} : vector<64x256xf32> to vector<32x256xf32>
    %100 = arith.addf %99, %98 : vector<32x256xf32>
    %c0_20 = arith.constant 0 : index
    %c0_21 = arith.constant 0 : index
    %101 = vector.load %arg6[%c0_20, %c0_21] : memref<32x1xf32, #tpu.memory_space<vmem>>, vector<32x1xf32>
    %102 = vector.broadcast %101 : vector<32x1xf32> to vector<32x256xf32>
    %103 = arith.addf %100, %102 : vector<32x256xf32>
    %104 = arith.negf %103 : vector<32x256xf32>
    %105 = math.exp %104 : vector<32x256xf32>
    %cst_22 = arith.constant 1.000000e+00 : f32
    %106 = vector.broadcast %cst_22 : f32 to vector<32x256xf32>
    %107 = arith.addf %106, %105 : vector<32x256xf32>
    %108 = arith.divf %106, %107 : vector<32x256xf32>
    %109 = vector.extract_strided_slice %54 {offsets = [32, 0], sizes = [32, 256], strides = [1, 1]} : vector<64x256xf32> to vector<32x256xf32>
    %c0_23 = arith.constant 0 : index
    %c0_24 = arith.constant 0 : index
    %110 = vector.load %arg7[%c0_23, %c0_24] : memref<32x1xf32, #tpu.memory_space<vmem>>, vector<32x1xf32>
    %111 = vector.broadcast %110 : vector<32x1xf32> to vector<32x256xf32>
    %112 = arith.addf %109, %111 : vector<32x256xf32>
    %113 = math.tanh %112 : vector<32x256xf32>
    %114 = arith.subf %113, %10 : vector<32x256xf32>
    %115 = arith.mulf %108, %114 : vector<32x256xf32>
    %116 = arith.addf %10, %115 : vector<32x256xf32>
    %117 = math.tanh %116 : vector<32x256xf32>
    %c0_25 = arith.constant 0 : index
    %c0_26 = arith.constant 0 : index
    %c0_27 = arith.constant 0 : index
    %118 = vector.load %arg17[%c0_25, %c0_26, %c0_27] : memref<2x32x256xf32, #tpu.memory_space<vmem>>, vector<1x32x256xf32>
    %119 = vector.shape_cast %118 : vector<1x32x256xf32> to vector<32x256xf32>
    %120 = vector.shape_cast %117 : vector<32x256xf32> to vector<1x32x256xf32>
    tpu.vector_store %arg17[%c0_25, %c0_26, %c0_27], %120 {strides = array<i32>} : memref<2x32x256xf32, #tpu.memory_space<vmem>>, vector<1x32x256xf32>,
    %c1 = arith.constant 1 : index
    %c0_28 = arith.constant 0 : index
    %c0_29 = arith.constant 0 : index
    %121 = vector.load %arg17[%c1, %c0_28, %c0_29] : memref<2x32x256xf32, #tpu.memory_space<vmem>>, vector<1x32x256xf32>
    %122 = vector.shape_cast %121 : vector<1x32x256xf32> to vector<32x256xf32>
    %c17_i32_30 = arith.constant 17 : i32
    %123 = tpu.dynamic_rotate %117 by %c17_i32_30 dim 1 : vector<32x256xf32>, i32 -> vector<32x256xf32>
    %124 = vector.extract_strided_slice %0 {offsets = [0, 0], sizes = [1, 256], strides = [1, 1]} : vector<9x256xf32> to vector<1x256xf32>
    %125 = vector.broadcast %124 : vector<1x256xf32> to vector<32x256xf32>
    %126 = arith.mulf %123, %125 : vector<32x256xf32>
    %127 = arith.truncf %126 : vector<32x256xf32> to vector<32x256xbf16>
    %c16_i32_31 = arith.constant 16 : i32
    %128 = tpu.dynamic_rotate %117 by %c16_i32_31 dim 1 : vector<32x256xf32>, i32 -> vector<32x256xf32>
    %129 = vector.extract_strided_slice %0 {offsets = [1, 0], sizes = [1, 256], strides = [1, 1]} : vector<9x256xf32> to vector<1x256xf32>
    %130 = vector.broadcast %129 : vector<1x256xf32> to vector<32x256xf32>
    %131 = arith.mulf %128, %130 : vector<32x256xf32>
    %132 = arith.truncf %131 : vector<32x256xf32> to vector<32x256xbf16>
    %c15_i32_32 = arith.constant 15 : i32
    %133 = tpu.dynamic_rotate %117 by %c15_i32_32 dim 1 : vector<32x256xf32>, i32 -> vector<32x256xf32>
    %134 = vector.extract_strided_slice %0 {offsets = [2, 0], sizes = [1, 256], strides = [1, 1]} : vector<9x256xf32> to vector<1x256xf32>
    %135 = vector.broadcast %134 : vector<1x256xf32> to vector<32x256xf32>
    %136 = arith.mulf %133, %135 : vector<32x256xf32>
    %137 = arith.truncf %136 : vector<32x256xf32> to vector<32x256xbf16>
    %c1_i32_33 = arith.constant 1 : i32
    %138 = tpu.dynamic_rotate %117 by %c1_i32_33 dim 1 : vector<32x256xf32>, i32 -> vector<32x256xf32>
    %139 = vector.extract_strided_slice %0 {offsets = [3, 0], sizes = [1, 256], strides = [1, 1]} : vector<9x256xf32> to vector<1x256xf32>
    %140 = vector.broadcast %139 : vector<1x256xf32> to vector<32x256xf32>
    %141 = arith.mulf %138, %140 : vector<32x256xf32>
    %142 = arith.truncf %141 : vector<32x256xf32> to vector<32x256xbf16>
    %143 = arith.truncf %117 : vector<32x256xf32> to vector<32x256xbf16>
    %c255_i32_34 = arith.constant 255 : i32
    %144 = tpu.dynamic_rotate %117 by %c255_i32_34 dim 1 : vector<32x256xf32>, i32 -> vector<32x256xf32>
    %145 = vector.extract_strided_slice %0 {offsets = [5, 0], sizes = [1, 256], strides = [1, 1]} : vector<9x256xf32> to vector<1x256xf32>
    %146 = vector.broadcast %145 : vector<1x256xf32> to vector<32x256xf32>
    %147 = arith.mulf %144, %146 : vector<32x256xf32>
    %148 = arith.truncf %147 : vector<32x256xf32> to vector<32x256xbf16>
    %c241_i32_35 = arith.constant 241 : i32
    %149 = tpu.dynamic_rotate %117 by %c241_i32_35 dim 1 : vector<32x256xf32>, i32 -> vector<32x256xf32>
    %150 = vector.extract_strided_slice %0 {offsets = [6, 0], sizes = [1, 256], strides = [1, 1]} : vector<9x256xf32> to vector<1x256xf32>
    %151 = vector.broadcast %150 : vector<1x256xf32> to vector<32x256xf32>
    %152 = arith.mulf %149, %151 : vector<32x256xf32>
    %153 = arith.truncf %152 : vector<32x256xf32> to vector<32x256xbf16>
    %c240_i32_36 = arith.constant 240 : i32
    %154 = tpu.dynamic_rotate %117 by %c240_i32_36 dim 1 : vector<32x256xf32>, i32 -> vector<32x256xf32>
    %155 = vector.extract_strided_slice %0 {offsets = [7, 0], sizes = [1, 256], strides = [1, 1]} : vector<9x256xf32> to vector<1x256xf32>
    %156 = vector.broadcast %155 : vector<1x256xf32> to vector<32x256xf32>
    %157 = arith.mulf %154, %156 : vector<32x256xf32>
    %158 = arith.truncf %157 : vector<32x256xf32> to vector<32x256xbf16>
    %c239_i32_37 = arith.constant 239 : i32
    %159 = tpu.dynamic_rotate %117 by %c239_i32_37 dim 1 : vector<32x256xf32>, i32 -> vector<32x256xf32>
    %160 = vector.extract_strided_slice %0 {offsets = [8, 0], sizes = [1, 256], strides = [1, 1]} : vector<9x256xf32> to vector<1x256xf32>
    %161 = vector.broadcast %160 : vector<1x256xf32> to vector<32x256xf32>
    %162 = arith.mulf %159, %161 : vector<32x256xf32>
    %163 = arith.truncf %162 : vector<32x256xf32> to vector<32x256xbf16>
    %164 = tpu.concatenate %127, %132, %137, %142, %143, %148, %153, %158, %163 in 0 : vector<32x256xbf16>, vector<32x256xbf16>, vector<32x256xbf16>, vector<32x256xbf16>, vector<32x256xbf16>, vector<32x256xbf16>, vector<32x256xbf16>, vector<32x256xbf16>, vector<32x256xbf16> -> vector<288x256xbf16>
    %c0_38 = arith.constant 0 : index
    %c0_39 = arith.constant 0 : index
    %165 = vector.load %arg8[%c0_38, %c0_39] : memref<64x288xbf16, #tpu.memory_space<vmem>>, vector<64x288xbf16>
    %cst_40 = arith.constant dense<0.000000e+00> : vector<64x256xf32>
    %166 = tpu.matmul %165, %164, %cst_40 {dimension_numbers = #tpu.dot_dimension_numbers<[1], [0], [0], [1], [0, 0, 1, 1], [], []>} : vector<64x288xbf16>, vector<288x256xbf16>, vector<64x256xf32> -> vector<64x256xf32>
    %c17_i32_41 = arith.constant 17 : i32
    %167 = tpu.dynamic_rotate %122 by %c17_i32_41 dim 1 : vector<32x256xf32>, i32 -> vector<32x256xf32>
    %168 = vector.extract_strided_slice %0 {offsets = [0, 0], sizes = [1, 256], strides = [1, 1]} : vector<9x256xf32> to vector<1x256xf32>
    %169 = vector.broadcast %168 : vector<1x256xf32> to vector<32x256xf32>
    %170 = arith.mulf %167, %169 : vector<32x256xf32>
    %171 = arith.truncf %170 : vector<32x256xf32> to vector<32x256xbf16>
    %c16_i32_42 = arith.constant 16 : i32
    %172 = tpu.dynamic_rotate %122 by %c16_i32_42 dim 1 : vector<32x256xf32>, i32 -> vector<32x256xf32>
    %173 = vector.extract_strided_slice %0 {offsets = [1, 0], sizes = [1, 256], strides = [1, 1]} : vector<9x256xf32> to vector<1x256xf32>
    %174 = vector.broadcast %173 : vector<1x256xf32> to vector<32x256xf32>
    %175 = arith.mulf %172, %174 : vector<32x256xf32>
    %176 = arith.truncf %175 : vector<32x256xf32> to vector<32x256xbf16>
    %c15_i32_43 = arith.constant 15 : i32
    %177 = tpu.dynamic_rotate %122 by %c15_i32_43 dim 1 : vector<32x256xf32>, i32 -> vector<32x256xf32>
    %178 = vector.extract_strided_slice %0 {offsets = [2, 0], sizes = [1, 256], strides = [1, 1]} : vector<9x256xf32> to vector<1x256xf32>
    %179 = vector.broadcast %178 : vector<1x256xf32> to vector<32x256xf32>
    %180 = arith.mulf %177, %179 : vector<32x256xf32>
    %181 = arith.truncf %180 : vector<32x256xf32> to vector<32x256xbf16>
    %c1_i32_44 = arith.constant 1 : i32
    %182 = tpu.dynamic_rotate %122 by %c1_i32_44 dim 1 : vector<32x256xf32>, i32 -> vector<32x256xf32>
    %183 = vector.extract_strided_slice %0 {offsets = [3, 0], sizes = [1, 256], strides = [1, 1]} : vector<9x256xf32> to vector<1x256xf32>
    %184 = vector.broadcast %183 : vector<1x256xf32> to vector<32x256xf32>
    %185 = arith.mulf %182, %184 : vector<32x256xf32>
    %186 = arith.truncf %185 : vector<32x256xf32> to vector<32x256xbf16>
    %187 = arith.truncf %122 : vector<32x256xf32> to vector<32x256xbf16>
    %c255_i32_45 = arith.constant 255 : i32
    %188 = tpu.dynamic_rotate %122 by %c255_i32_45 dim 1 : vector<32x256xf32>, i32 -> vector<32x256xf32>
    %189 = vector.extract_strided_slice %0 {offsets = [5, 0], sizes = [1, 256], strides = [1, 1]} : vector<9x256xf32> to vector<1x256xf32>
    %190 = vector.broadcast %189 : vector<1x256xf32> to vector<32x256xf32>
    %191 = arith.mulf %188, %190 : vector<32x256xf32>
    %192 = arith.truncf %191 : vector<32x256xf32> to vector<32x256xbf16>
    %c241_i32_46 = arith.constant 241 : i32
    %193 = tpu.dynamic_rotate %122 by %c241_i32_46 dim 1 : vector<32x256xf32>, i32 -> vector<32x256xf32>
    %194 = vector.extract_strided_slice %0 {offsets = [6, 0], sizes = [1, 256], strides = [1, 1]} : vector<9x256xf32> to vector<1x256xf32>
    %195 = vector.broadcast %194 : vector<1x256xf32> to vector<32x256xf32>
    %196 = arith.mulf %193, %195 : vector<32x256xf32>
    %197 = arith.truncf %196 : vector<32x256xf32> to vector<32x256xbf16>
    %c240_i32_47 = arith.constant 240 : i32
    %198 = tpu.dynamic_rotate %122 by %c240_i32_47 dim 1 : vector<32x256xf32>, i32 -> vector<32x256xf32>
    %199 = vector.extract_strided_slice %0 {offsets = [7, 0], sizes = [1, 256], strides = [1, 1]} : vector<9x256xf32> to vector<1x256xf32>
    %200 = vector.broadcast %199 : vector<1x256xf32> to vector<32x256xf32>
    %201 = arith.mulf %198, %200 : vector<32x256xf32>
    %202 = arith.truncf %201 : vector<32x256xf32> to vector<32x256xbf16>
    %c239_i32_48 = arith.constant 239 : i32
    %203 = tpu.dynamic_rotate %122 by %c239_i32_48 dim 1 : vector<32x256xf32>, i32 -> vector<32x256xf32>
    %204 = vector.extract_strided_slice %0 {offsets = [8, 0], sizes = [1, 256], strides = [1, 1]} : vector<9x256xf32> to vector<1x256xf32>
    %205 = vector.broadcast %204 : vector<1x256xf32> to vector<32x256xf32>
    %206 = arith.mulf %203, %205 : vector<32x256xf32>
    %207 = arith.truncf %206 : vector<32x256xf32> to vector<32x256xbf16>
    %208 = tpu.concatenate %171, %176, %181, %186, %187, %192, %197, %202, %207 in 0 : vector<32x256xbf16>, vector<32x256xbf16>, vector<32x256xbf16>, vector<32x256xbf16>, vector<32x256xbf16>, vector<32x256xbf16>, vector<32x256xbf16>, vector<32x256xbf16>, vector<32x256xbf16> -> vector<288x256xbf16>
    %c0_49 = arith.constant 0 : index
    %c0_50 = arith.constant 0 : index
    %209 = vector.load %arg9[%c0_49, %c0_50] : memref<32x288xbf16, #tpu.memory_space<vmem>>, vector<32x288xbf16>
    %cst_51 = arith.constant dense<0.000000e+00> : vector<32x256xf32>
    %210 = tpu.matmul %209, %208, %cst_51 {dimension_numbers = #tpu.dot_dimension_numbers<[1], [0], [0], [1], [0, 0, 1, 1], [], []>} : vector<32x288xbf16>, vector<288x256xbf16>, vector<32x256xf32> -> vector<32x256xf32>
    %211 = vector.extract_strided_slice %166 {offsets = [0, 0], sizes = [32, 256], strides = [1, 1]} : vector<64x256xf32> to vector<32x256xf32>
    %212 = arith.addf %211, %210 : vector<32x256xf32>
    %c0_52 = arith.constant 0 : index
    %c0_53 = arith.constant 0 : index
    %213 = vector.load %arg10[%c0_52, %c0_53] : memref<32x1xf32, #tpu.memory_space<vmem>>, vector<32x1xf32>
    %214 = vector.broadcast %213 : vector<32x1xf32> to vector<32x256xf32>
    %215 = arith.addf %212, %214 : vector<32x256xf32>
    %216 = arith.negf %215 : vector<32x256xf32>
    %217 = math.exp %216 : vector<32x256xf32>
    %cst_54 = arith.constant 1.000000e+00 : f32
    %218 = vector.broadcast %cst_54 : f32 to vector<32x256xf32>
    %219 = arith.addf %218, %217 : vector<32x256xf32>
    %220 = arith.divf %218, %219 : vector<32x256xf32>
    %221 = vector.extract_strided_slice %166 {offsets = [32, 0], sizes = [32, 256], strides = [1, 1]} : vector<64x256xf32> to vector<32x256xf32>
    %c0_55 = arith.constant 0 : index
    %c0_56 = arith.constant 0 : index
    %222 = vector.load %arg11[%c0_55, %c0_56] : memref<32x1xf32, #tpu.memory_space<vmem>>, vector<32x1xf32>
    %223 = vector.broadcast %222 : vector<32x1xf32> to vector<32x256xf32>
    %224 = arith.addf %221, %223 : vector<32x256xf32>
    %225 = math.tanh %224 : vector<32x256xf32>
    %226 = arith.subf %225, %122 : vector<32x256xf32>
    %227 = arith.mulf %220, %226 : vector<32x256xf32>
    %228 = arith.addf %122, %227 : vector<32x256xf32>
    %229 = math.tanh %228 : vector<32x256xf32>
    %c1_57 = arith.constant 1 : index
    %c0_58 = arith.constant 0 : index
    %c0_59 = arith.constant 0 : index
    %230 = vector.load %arg17[%c1_57, %c0_58, %c0_59] : memref<2x32x256xf32, #tpu.memory_space<vmem>>, vector<1x32x256xf32>
    %231 = vector.shape_cast %230 : vector<1x32x256xf32> to vector<32x256xf32>
    %232 = vector.shape_cast %229 : vector<32x256xf32> to vector<1x32x256xf32>
    tpu.vector_store %arg17[%c1_57, %c0_58, %c0_59], %232 {strides = array<i32>} : memref<2x32x256xf32, #tpu.memory_space<vmem>>, vector<1x32x256xf32>,
    %c7_i32 = arith.constant 7 : i32
    %233 = arith.cmpi eq, %arg1, %c7_i32 : i32
    %234 = arith.extui %233 : i1 to i32
    %c0_i32_60 = arith.constant 0 : i32
    %235 = arith.cmpi ne, %234, %c0_i32_60 : i32
    scf.if %235 {
      %c0_61 = arith.constant 0 : index
      %c0_62 = arith.constant 0 : index
      %c0_63 = arith.constant 0 : index
      %236 = vector.load %arg17[%c0_61, %c0_62, %c0_63] : memref<2x32x256xf32, #tpu.memory_space<vmem>>, vector<1x32x256xf32>
      %237 = vector.shape_cast %236 : vector<1x32x256xf32> to vector<32x256xf32>
      %c1_64 = arith.constant 1 : index
      %c0_65 = arith.constant 0 : index
      %c0_66 = arith.constant 0 : index
      %238 = vector.load %arg17[%c1_64, %c0_65, %c0_66] : memref<2x32x256xf32, #tpu.memory_space<vmem>>, vector<1x32x256xf32>
      %239 = vector.shape_cast %238 : vector<1x32x256xf32> to vector<32x256xf32>
      %240 = tpu.concatenate %237, %239 in 0 : vector<32x256xf32>, vector<32x256xf32> -> vector<64x256xf32>
      %c0_67 = arith.constant 0 : index
      %c0_68 = arith.constant 0 : index
      %c0_69 = arith.constant 0 : index
      %241 = vector.load %arg14[%c0_67, %c0_68, %c0_69] : memref<1x64x256xf32, #tpu.memory_space<vmem>>, vector<1x64x256xf32>
      %242 = vector.shape_cast %241 : vector<1x64x256xf32> to vector<64x256xf32>
      %243 = vector.shape_cast %240 : vector<64x256xf32> to vector<1x64x256xf32>
      tpu.vector_store %arg14[%c0_67, %c0_68, %c0_69], %243 {strides = array<i32>} : memref<1x64x256xf32, #tpu.memory_space<vmem>>, vector<1x64x256xf32>,
      %244 = arith.truncf %240 : vector<64x256xf32> to vector<64x256xbf16>
      %c0_70 = arith.constant 0 : index
      %c0_71 = arith.constant 0 : index
      %245 = vector.load %arg12[%c0_70, %c0_71] : memref<6x64xbf16, #tpu.memory_space<vmem>>, vector<6x64xbf16>
      %cst_72 = arith.constant dense<0.000000e+00> : vector<6x256xf32>
      %246 = tpu.matmul %245, %244, %cst_72 {dimension_numbers = #tpu.dot_dimension_numbers<[1], [0], [0], [1], [0, 0, 1, 1], [], []>} : vector<6x64xbf16>, vector<64x256xbf16>, vector<6x256xf32> -> vector<6x256xf32>
      %c0_73 = arith.constant 0 : index
      %c0_74 = arith.constant 0 : index
      %247 = vector.load %arg13[%c0_73, %c0_74] : memref<6x1xf32, #tpu.memory_space<vmem>>, vector<6x1xf32>
      %248 = vector.broadcast %247 : vector<6x1xf32> to vector<6x256xf32>
      %249 = arith.addf %246, %248 : vector<6x256xf32>
      %250 = vector.extract_strided_slice %249 {offsets = [0, 0], sizes = [3, 256], strides = [1, 1]} : vector<6x256xf32> to vector<3x256xf32>
      %cst_75 = arith.constant dense<0xFF800000> : vector<256xf32>
      %251 = vector.multi_reduction <maximumf>, %250, %cst_75 [0] : vector<3x256xf32> to vector<256xf32>
      %252 = vector.shape_cast %251 : vector<256xf32> to vector<1x256xf32>
      %253 = vector.broadcast %252 : vector<1x256xf32> to vector<3x256xf32>
      %254 = arith.subf %250, %253 : vector<3x256xf32>
      %255 = math.exp %254 : vector<3x256xf32>
      %cst_76 = arith.constant dense<0.000000e+00> : vector<256xf32>
      %256 = vector.multi_reduction <add>, %255, %cst_76 [0] : vector<3x256xf32> to vector<256xf32>
      %257 = vector.shape_cast %256 : vector<256xf32> to vector<1x256xf32>
      %258 = math.log %257 : vector<1x256xf32>
      %259 = vector.broadcast %258 : vector<1x256xf32> to vector<3x256xf32>
      %260 = arith.subf %254, %259 : vector<3x256xf32>
      %c0_77 = arith.constant 0 : index
      %c0_78 = arith.constant 0 : index
      %c0_79 = arith.constant 0 : index
      %261 = vector.load %arg15[%c0_77, %c0_78, %c0_79] : memref<1x3x256xf32, #tpu.memory_space<vmem>>, vector<1x3x256xf32>
      %262 = vector.shape_cast %261 : vector<1x3x256xf32> to vector<3x256xf32>
      %263 = vector.shape_cast %260 : vector<3x256xf32> to vector<1x3x256xf32>
      tpu.vector_store %arg15[%c0_77, %c0_78, %c0_79], %263 {strides = array<i32>} : memref<1x3x256xf32, #tpu.memory_space<vmem>>, vector<1x3x256xf32>,
      %264 = vector.extract_strided_slice %249 {offsets = [3, 0], sizes = [3, 256], strides = [1, 1]} : vector<6x256xf32> to vector<3x256xf32>
      %cst_80 = arith.constant dense<0xFF800000> : vector<256xf32>
      %265 = vector.multi_reduction <maximumf>, %264, %cst_80 [0] : vector<3x256xf32> to vector<256xf32>
      %266 = vector.shape_cast %265 : vector<256xf32> to vector<1x256xf32>
      %267 = vector.broadcast %266 : vector<1x256xf32> to vector<3x256xf32>
      %268 = arith.subf %264, %267 : vector<3x256xf32>
      %269 = math.exp %268 : vector<3x256xf32>
      %cst_81 = arith.constant dense<0.000000e+00> : vector<256xf32>
      %270 = vector.multi_reduction <add>, %269, %cst_81 [0] : vector<3x256xf32> to vector<256xf32>
      %271 = vector.shape_cast %270 : vector<256xf32> to vector<1x256xf32>
      %272 = math.log %271 : vector<1x256xf32>
      %273 = vector.broadcast %272 : vector<1x256xf32> to vector<3x256xf32>
      %274 = arith.subf %268, %273 : vector<3x256xf32>
      %c0_82 = arith.constant 0 : index
      %c0_83 = arith.constant 0 : index
      %c0_84 = arith.constant 0 : index
      %275 = vector.load %arg16[%c0_82, %c0_83, %c0_84] : memref<1x3x256xf32, #tpu.memory_space<vmem>>, vector<1x3x256xf32>
      %276 = vector.shape_cast %275 : vector<1x3x256xf32> to vector<3x256xf32>
      %277 = vector.shape_cast %274 : vector<3x256xf32> to vector<1x3x256xf32>
      tpu.vector_store %arg16[%c0_82, %c0_83, %c0_84], %277 {strides = array<i32>} : memref<1x3x256xf32, #tpu.memory_space<vmem>>, vector<1x3x256xf32>,
    } else {
    }
    return
  }
  func.func @transform_0(%arg0: i32, %arg1: i32) -> (i32, i32, i32) {
    %c0_i32 = arith.constant 0 : i32
    %c0_i32_0 = arith.constant 0 : i32
    %c0_i32_1 = arith.constant 0 : i32
    return %arg0, %c0_i32, %c0_i32_0 : i32, i32, i32
  }
  func.func @transform_1(%arg0: i32, %arg1: i32) -> (i32, i32) {
    %c0_i32 = arith.constant 0 : i32
    %c0_i32_0 = arith.constant 0 : i32
    %c0_i32_1 = arith.constant 0 : i32
    return %c0_i32, %c0_i32_0 : i32, i32
  }
  func.func @transform_2(%arg0: i32, %arg1: i32) -> (i32, i32) {
    %c0_i32 = arith.constant 0 : i32
    %c0_i32_0 = arith.constant 0 : i32
    %c0_i32_1 = arith.constant 0 : i32
    return %c0_i32, %c0_i32_0 : i32, i32
  }
  func.func @transform_3(%arg0: i32, %arg1: i32) -> (i32, i32) {
    %c0_i32 = arith.constant 0 : i32
    %c0_i32_0 = arith.constant 0 : i32
    %c0_i32_1 = arith.constant 0 : i32
    return %c0_i32, %c0_i32_0 : i32, i32
  }
  func.func @transform_4(%arg0: i32, %arg1: i32) -> (i32, i32) {
    %c0_i32 = arith.constant 0 : i32
    %c0_i32_0 = arith.constant 0 : i32
    %c0_i32_1 = arith.constant 0 : i32
    return %c0_i32, %c0_i32_0 : i32, i32
  }
  func.func @transform_5(%arg0: i32, %arg1: i32) -> (i32, i32) {
    %c0_i32 = arith.constant 0 : i32
    %c0_i32_0 = arith.constant 0 : i32
    %c0_i32_1 = arith.constant 0 : i32
    return %c0_i32, %c0_i32_0 : i32, i32
  }
  func.func @transform_6(%arg0: i32, %arg1: i32) -> (i32, i32) {
    %c0_i32 = arith.constant 0 : i32
    %c0_i32_0 = arith.constant 0 : i32
    %c0_i32_1 = arith.constant 0 : i32
    return %c0_i32, %c0_i32_0 : i32, i32
  }
  func.func @transform_7(%arg0: i32, %arg1: i32) -> (i32, i32) {
    %c0_i32 = arith.constant 0 : i32
    %c0_i32_0 = arith.constant 0 : i32
    %c0_i32_1 = arith.constant 0 : i32
    return %c0_i32, %c0_i32_0 : i32, i32
  }
  func.func @transform_8(%arg0: i32, %arg1: i32) -> (i32, i32) {
    %c0_i32 = arith.constant 0 : i32
    %c0_i32_0 = arith.constant 0 : i32
    %c0_i32_1 = arith.constant 0 : i32
    return %c0_i32, %c0_i32_0 : i32, i32
  }
  func.func @transform_9(%arg0: i32, %arg1: i32) -> (i32, i32) {
    %c0_i32 = arith.constant 0 : i32
    %c0_i32_0 = arith.constant 0 : i32
    %c0_i32_1 = arith.constant 0 : i32
    return %c0_i32, %c0_i32_0 : i32, i32
  }
  func.func @transform_10(%arg0: i32, %arg1: i32) -> (i32, i32) {
    %c0_i32 = arith.constant 0 : i32
    %c0_i32_0 = arith.constant 0 : i32
    %c0_i32_1 = arith.constant 0 : i32
    return %c0_i32, %c0_i32_0 : i32, i32
  }
  func.func @transform_11(%arg0: i32, %arg1: i32) -> (i32, i32) {
    %c0_i32 = arith.constant 0 : i32
    %c0_i32_0 = arith.constant 0 : i32
    %c0_i32_1 = arith.constant 0 : i32
    return %c0_i32, %c0_i32_0 : i32, i32
  }
  func.func @transform_12(%arg0: i32, %arg1: i32) -> (i32, i32, i32) {
    %c0_i32 = arith.constant 0 : i32
    %c0_i32_0 = arith.constant 0 : i32
    %c0_i32_1 = arith.constant 0 : i32
    return %arg0, %c0_i32, %c0_i32_0 : i32, i32, i32
  }
  func.func @transform_13(%arg0: i32, %arg1: i32) -> (i32, i32, i32) {
    %c0_i32 = arith.constant 0 : i32
    %c0_i32_0 = arith.constant 0 : i32
    %c0_i32_1 = arith.constant 0 : i32
    return %arg0, %c0_i32, %c0_i32_0 : i32, i32, i32
  }
  func.func @transform_14(%arg0: i32, %arg1: i32) -> (i32, i32, i32) {
    %c0_i32 = arith.constant 0 : i32
    %c0_i32_0 = arith.constant 0 : i32
    %c0_i32_1 = arith.constant 0 : i32
    return %arg0, %c0_i32, %c0_i32_0 : i32, i32, i32
  }
}

module attributes {stable_mosaic.version = 11 : i64} {
  func.func @_spatial_kernel(%arg0: i32, %arg1: memref<1x64x256xf32, #tpu.memory_space<vmem>>, %arg2: memref<1x3x256xf32, #tpu.memory_space<vmem>>, %arg3: memref<9x256xf32, #tpu.memory_space<vmem>>, %arg4: memref<9x256xf32, #tpu.memory_space<vmem>>, %arg5: memref<2x256xf32, #tpu.memory_space<vmem>>, %arg6: memref<16x576xbf16, #tpu.memory_space<vmem>>, %arg7: memref<16x1xf32, #tpu.memory_space<vmem>>, %arg8: memref<32x144xbf16, #tpu.memory_space<vmem>>, %arg9: memref<32x1xf32, #tpu.memory_space<vmem>>, %arg10: memref<16x432xbf16, #tpu.memory_space<vmem>>, %arg11: memref<16x1xf32, #tpu.memory_space<vmem>>, %arg12: memref<5x16xbf16, #tpu.memory_space<vmem>>, %arg13: memref<5x1xf32, #tpu.memory_space<vmem>>, %arg14: memref<32x64xbf16, #tpu.memory_space<vmem>>, %arg15: memref<32x5xbf16, #tpu.memory_space<vmem>>, %arg16: memref<32x1xf32, #tpu.memory_space<vmem>>, %arg17: memref<32x288xbf16, #tpu.memory_space<vmem>>, %arg18: memref<32x1xf32, #tpu.memory_space<vmem>>, %arg19: memref<32x288xbf16, #tpu.memory_space<vmem>>, %arg20: memref<32x1xf32, #tpu.memory_space<vmem>>, %arg21: memref<3x32xbf16, #tpu.memory_space<vmem>>, %arg22: memref<3x1xf32, #tpu.memory_space<vmem>>, %arg23: memref<1x5x256xf32, #tpu.memory_space<vmem>>, %arg24: memref<1x3x256xf32, #tpu.memory_space<vmem>>) attributes {dimension_semantics = [#tpu.dimension_semantics<parallel>], iteration_bounds = array<i64: 2>, scalar_prefetch = 0 : i64, scratch_operands = 0 : i64, tpu.core_type = #tpu.core_type<tc>, window_params = [{transform_indices = @transform_0, window_bounds = array<i64: 1, 64, 256>}, {transform_indices = @transform_1, window_bounds = array<i64: 1, 3, 256>}, {pipeline_mode = #tpu.pipeline_mode<synchronous>, transform_indices = @transform_2, window_bounds = array<i64: 9, 256>}, {pipeline_mode = #tpu.pipeline_mode<synchronous>, transform_indices = @transform_3, window_bounds = array<i64: 9, 256>}, {pipeline_mode = #tpu.pipeline_mode<synchronous>, transform_indices = @transform_4, window_bounds = array<i64: 2, 256>}, {pipeline_mode = #tpu.pipeline_mode<synchronous>, transform_indices = @transform_5, window_bounds = array<i64: 16, 576>}, {pipeline_mode = #tpu.pipeline_mode<synchronous>, transform_indices = @transform_6, window_bounds = array<i64: 16, 1>}, {pipeline_mode = #tpu.pipeline_mode<synchronous>, transform_indices = @transform_7, window_bounds = array<i64: 32, 144>}, {pipeline_mode = #tpu.pipeline_mode<synchronous>, transform_indices = @transform_8, window_bounds = array<i64: 32, 1>}, {pipeline_mode = #tpu.pipeline_mode<synchronous>, transform_indices = @transform_9, window_bounds = array<i64: 16, 432>}, {pipeline_mode = #tpu.pipeline_mode<synchronous>, transform_indices = @transform_10, window_bounds = array<i64: 16, 1>}, {pipeline_mode = #tpu.pipeline_mode<synchronous>, transform_indices = @transform_11, window_bounds = array<i64: 5, 16>}, {pipeline_mode = #tpu.pipeline_mode<synchronous>, transform_indices = @transform_12, window_bounds = array<i64: 5, 1>}, {pipeline_mode = #tpu.pipeline_mode<synchronous>, transform_indices = @transform_13, window_bounds = array<i64: 32, 64>}, {pipeline_mode = #tpu.pipeline_mode<synchronous>, transform_indices = @transform_14, window_bounds = array<i64: 32, 5>}, {pipeline_mode = #tpu.pipeline_mode<synchronous>, transform_indices = @transform_15, window_bounds = array<i64: 32, 1>}, {pipeline_mode = #tpu.pipeline_mode<synchronous>, transform_indices = @transform_16, window_bounds = array<i64: 32, 288>}, {pipeline_mode = #tpu.pipeline_mode<synchronous>, transform_indices = @transform_17, window_bounds = array<i64: 32, 1>}, {pipeline_mode = #tpu.pipeline_mode<synchronous>, transform_indices = @transform_18, window_bounds = array<i64: 32, 288>}, {pipeline_mode = #tpu.pipeline_mode<synchronous>, transform_indices = @transform_19, window_bounds = array<i64: 32, 1>}, {pipeline_mode = #tpu.pipeline_mode<synchronous>, transform_indices = @transform_20, window_bounds = array<i64: 3, 32>}, {pipeline_mode = #tpu.pipeline_mode<synchronous>, transform_indices = @transform_21, window_bounds = array<i64: 3, 1>}, {transform_indices = @transform_22, window_bounds = array<i64: 1, 5, 256>}, {transform_indices = @transform_23, window_bounds = array<i64: 1, 3, 256>}]} {
    %c0 = arith.constant 0 : index
    %c0_0 = arith.constant 0 : index
    %0 = vector.load %arg3[%c0, %c0_0] : memref<9x256xf32, #tpu.memory_space<vmem>>, vector<9x256xf32>
    %c0_1 = arith.constant 0 : index
    %c0_2 = arith.constant 0 : index
    %1 = vector.load %arg4[%c0_1, %c0_2] : memref<9x256xf32, #tpu.memory_space<vmem>>, vector<9x256xf32>
    %c0_3 = arith.constant 0 : index
    %c0_4 = arith.constant 0 : index
    %c0_5 = arith.constant 0 : index
    %2 = vector.load %arg1[%c0_3, %c0_4, %c0_5] : memref<1x64x256xf32, #tpu.memory_space<vmem>>, vector<1x64x256xf32>
    %3 = vector.shape_cast %2 : vector<1x64x256xf32> to vector<64x256xf32>
    %c17_i32 = arith.constant 17 : i32
    %4 = tpu.dynamic_rotate %3 by %c17_i32 dim 1 : vector<64x256xf32>, i32 -> vector<64x256xf32>
    %5 = vector.extract_strided_slice %0 {offsets = [0, 0], sizes = [1, 256], strides = [1, 1]} : vector<9x256xf32> to vector<1x256xf32>
    %6 = vector.broadcast %5 : vector<1x256xf32> to vector<64x256xf32>
    %7 = arith.mulf %4, %6 : vector<64x256xf32>
    %8 = arith.truncf %7 : vector<64x256xf32> to vector<64x256xbf16>
    %c16_i32 = arith.constant 16 : i32
    %9 = tpu.dynamic_rotate %3 by %c16_i32 dim 1 : vector<64x256xf32>, i32 -> vector<64x256xf32>
    %10 = vector.extract_strided_slice %0 {offsets = [1, 0], sizes = [1, 256], strides = [1, 1]} : vector<9x256xf32> to vector<1x256xf32>
    %11 = vector.broadcast %10 : vector<1x256xf32> to vector<64x256xf32>
    %12 = arith.mulf %9, %11 : vector<64x256xf32>
    %13 = arith.truncf %12 : vector<64x256xf32> to vector<64x256xbf16>
    %c15_i32 = arith.constant 15 : i32
    %14 = tpu.dynamic_rotate %3 by %c15_i32 dim 1 : vector<64x256xf32>, i32 -> vector<64x256xf32>
    %15 = vector.extract_strided_slice %0 {offsets = [2, 0], sizes = [1, 256], strides = [1, 1]} : vector<9x256xf32> to vector<1x256xf32>
    %16 = vector.broadcast %15 : vector<1x256xf32> to vector<64x256xf32>
    %17 = arith.mulf %14, %16 : vector<64x256xf32>
    %18 = arith.truncf %17 : vector<64x256xf32> to vector<64x256xbf16>
    %c1_i32 = arith.constant 1 : i32
    %19 = tpu.dynamic_rotate %3 by %c1_i32 dim 1 : vector<64x256xf32>, i32 -> vector<64x256xf32>
    %20 = vector.extract_strided_slice %0 {offsets = [3, 0], sizes = [1, 256], strides = [1, 1]} : vector<9x256xf32> to vector<1x256xf32>
    %21 = vector.broadcast %20 : vector<1x256xf32> to vector<64x256xf32>
    %22 = arith.mulf %19, %21 : vector<64x256xf32>
    %23 = arith.truncf %22 : vector<64x256xf32> to vector<64x256xbf16>
    %24 = arith.truncf %3 : vector<64x256xf32> to vector<64x256xbf16>
    %c255_i32 = arith.constant 255 : i32
    %25 = tpu.dynamic_rotate %3 by %c255_i32 dim 1 : vector<64x256xf32>, i32 -> vector<64x256xf32>
    %26 = vector.extract_strided_slice %0 {offsets = [5, 0], sizes = [1, 256], strides = [1, 1]} : vector<9x256xf32> to vector<1x256xf32>
    %27 = vector.broadcast %26 : vector<1x256xf32> to vector<64x256xf32>
    %28 = arith.mulf %25, %27 : vector<64x256xf32>
    %29 = arith.truncf %28 : vector<64x256xf32> to vector<64x256xbf16>
    %c241_i32 = arith.constant 241 : i32
    %30 = tpu.dynamic_rotate %3 by %c241_i32 dim 1 : vector<64x256xf32>, i32 -> vector<64x256xf32>
    %31 = vector.extract_strided_slice %0 {offsets = [6, 0], sizes = [1, 256], strides = [1, 1]} : vector<9x256xf32> to vector<1x256xf32>
    %32 = vector.broadcast %31 : vector<1x256xf32> to vector<64x256xf32>
    %33 = arith.mulf %30, %32 : vector<64x256xf32>
    %34 = arith.truncf %33 : vector<64x256xf32> to vector<64x256xbf16>
    %c240_i32 = arith.constant 240 : i32
    %35 = tpu.dynamic_rotate %3 by %c240_i32 dim 1 : vector<64x256xf32>, i32 -> vector<64x256xf32>
    %36 = vector.extract_strided_slice %0 {offsets = [7, 0], sizes = [1, 256], strides = [1, 1]} : vector<9x256xf32> to vector<1x256xf32>
    %37 = vector.broadcast %36 : vector<1x256xf32> to vector<64x256xf32>
    %38 = arith.mulf %35, %37 : vector<64x256xf32>
    %39 = arith.truncf %38 : vector<64x256xf32> to vector<64x256xbf16>
    %c239_i32 = arith.constant 239 : i32
    %40 = tpu.dynamic_rotate %3 by %c239_i32 dim 1 : vector<64x256xf32>, i32 -> vector<64x256xf32>
    %41 = vector.extract_strided_slice %0 {offsets = [8, 0], sizes = [1, 256], strides = [1, 1]} : vector<9x256xf32> to vector<1x256xf32>
    %42 = vector.broadcast %41 : vector<1x256xf32> to vector<64x256xf32>
    %43 = arith.mulf %40, %42 : vector<64x256xf32>
    %44 = arith.truncf %43 : vector<64x256xf32> to vector<64x256xbf16>
    %45 = tpu.concatenate %8, %13, %18, %23, %24, %29, %34, %39, %44 in 0 : vector<64x256xbf16>, vector<64x256xbf16>, vector<64x256xbf16>, vector<64x256xbf16>, vector<64x256xbf16>, vector<64x256xbf16>, vector<64x256xbf16>, vector<64x256xbf16>, vector<64x256xbf16> -> vector<576x256xbf16>
    %c0_6 = arith.constant 0 : index
    %c0_7 = arith.constant 0 : index
    %46 = vector.load %arg6[%c0_6, %c0_7] : memref<16x576xbf16, #tpu.memory_space<vmem>>, vector<16x576xbf16>
    %cst = arith.constant dense<0.000000e+00> : vector<16x256xf32>
    %47 = tpu.matmul %46, %45, %cst {dimension_numbers = #tpu.dot_dimension_numbers<[1], [0], [0], [1], [0, 0, 1, 1], [], []>} : vector<16x576xbf16>, vector<576x256xbf16>, vector<16x256xf32> -> vector<16x256xf32>
    %c0_8 = arith.constant 0 : index
    %c0_9 = arith.constant 0 : index
    %48 = vector.load %arg7[%c0_8, %c0_9] : memref<16x1xf32, #tpu.memory_space<vmem>>, vector<16x1xf32>
    %49 = vector.broadcast %48 : vector<16x1xf32> to vector<16x256xf32>
    %50 = arith.addf %47, %49 : vector<16x256xf32>
    %cst_10 = arith.constant 0.000000e+00 : f32
    %51 = vector.broadcast %cst_10 : f32 to vector<16x256xf32>
    %52 = arith.maximumf %50, %51 : vector<16x256xf32>
    %c255_i32_11 = arith.constant 255 : i32
    %53 = tpu.dynamic_rotate %52 by %c255_i32_11 dim 1 : vector<16x256xf32>, i32 -> vector<16x256xf32>
    %54 = arith.maximumf %52, %53 : vector<16x256xf32>
    %c240_i32_12 = arith.constant 240 : i32
    %55 = tpu.dynamic_rotate %54 by %c240_i32_12 dim 1 : vector<16x256xf32>, i32 -> vector<16x256xf32>
    %56 = arith.maximumf %54, %55 : vector<16x256xf32>
    %c34_i32 = arith.constant 34 : i32
    %57 = tpu.dynamic_rotate %56 by %c34_i32 dim 1 : vector<16x256xf32>, i32 -> vector<16x256xf32>
    %58 = vector.extract_strided_slice %1 {offsets = [0, 0], sizes = [1, 256], strides = [1, 1]} : vector<9x256xf32> to vector<1x256xf32>
    %59 = vector.broadcast %58 : vector<1x256xf32> to vector<16x256xf32>
    %60 = arith.mulf %57, %59 : vector<16x256xf32>
    %61 = arith.truncf %60 : vector<16x256xf32> to vector<16x256xbf16>
    %c32_i32 = arith.constant 32 : i32
    %62 = tpu.dynamic_rotate %56 by %c32_i32 dim 1 : vector<16x256xf32>, i32 -> vector<16x256xf32>
    %63 = vector.extract_strided_slice %1 {offsets = [1, 0], sizes = [1, 256], strides = [1, 1]} : vector<9x256xf32> to vector<1x256xf32>
    %64 = vector.broadcast %63 : vector<1x256xf32> to vector<16x256xf32>
    %65 = arith.mulf %62, %64 : vector<16x256xf32>
    %66 = arith.truncf %65 : vector<16x256xf32> to vector<16x256xbf16>
    %c30_i32 = arith.constant 30 : i32
    %67 = tpu.dynamic_rotate %56 by %c30_i32 dim 1 : vector<16x256xf32>, i32 -> vector<16x256xf32>
    %68 = vector.extract_strided_slice %1 {offsets = [2, 0], sizes = [1, 256], strides = [1, 1]} : vector<9x256xf32> to vector<1x256xf32>
    %69 = vector.broadcast %68 : vector<1x256xf32> to vector<16x256xf32>
    %70 = arith.mulf %67, %69 : vector<16x256xf32>
    %71 = arith.truncf %70 : vector<16x256xf32> to vector<16x256xbf16>
    %c2_i32 = arith.constant 2 : i32
    %72 = tpu.dynamic_rotate %56 by %c2_i32 dim 1 : vector<16x256xf32>, i32 -> vector<16x256xf32>
    %73 = vector.extract_strided_slice %1 {offsets = [3, 0], sizes = [1, 256], strides = [1, 1]} : vector<9x256xf32> to vector<1x256xf32>
    %74 = vector.broadcast %73 : vector<1x256xf32> to vector<16x256xf32>
    %75 = arith.mulf %72, %74 : vector<16x256xf32>
    %76 = arith.truncf %75 : vector<16x256xf32> to vector<16x256xbf16>
    %77 = arith.truncf %56 : vector<16x256xf32> to vector<16x256xbf16>
    %c254_i32 = arith.constant 254 : i32
    %78 = tpu.dynamic_rotate %56 by %c254_i32 dim 1 : vector<16x256xf32>, i32 -> vector<16x256xf32>
    %79 = vector.extract_strided_slice %1 {offsets = [5, 0], sizes = [1, 256], strides = [1, 1]} : vector<9x256xf32> to vector<1x256xf32>
    %80 = vector.broadcast %79 : vector<1x256xf32> to vector<16x256xf32>
    %81 = arith.mulf %78, %80 : vector<16x256xf32>
    %82 = arith.truncf %81 : vector<16x256xf32> to vector<16x256xbf16>
    %c226_i32 = arith.constant 226 : i32
    %83 = tpu.dynamic_rotate %56 by %c226_i32 dim 1 : vector<16x256xf32>, i32 -> vector<16x256xf32>
    %84 = vector.extract_strided_slice %1 {offsets = [6, 0], sizes = [1, 256], strides = [1, 1]} : vector<9x256xf32> to vector<1x256xf32>
    %85 = vector.broadcast %84 : vector<1x256xf32> to vector<16x256xf32>
    %86 = arith.mulf %83, %85 : vector<16x256xf32>
    %87 = arith.truncf %86 : vector<16x256xf32> to vector<16x256xbf16>
    %c224_i32 = arith.constant 224 : i32
    %88 = tpu.dynamic_rotate %56 by %c224_i32 dim 1 : vector<16x256xf32>, i32 -> vector<16x256xf32>
    %89 = vector.extract_strided_slice %1 {offsets = [7, 0], sizes = [1, 256], strides = [1, 1]} : vector<9x256xf32> to vector<1x256xf32>
    %90 = vector.broadcast %89 : vector<1x256xf32> to vector<16x256xf32>
    %91 = arith.mulf %88, %90 : vector<16x256xf32>
    %92 = arith.truncf %91 : vector<16x256xf32> to vector<16x256xbf16>
    %c222_i32 = arith.constant 222 : i32
    %93 = tpu.dynamic_rotate %56 by %c222_i32 dim 1 : vector<16x256xf32>, i32 -> vector<16x256xf32>
    %94 = vector.extract_strided_slice %1 {offsets = [8, 0], sizes = [1, 256], strides = [1, 1]} : vector<9x256xf32> to vector<1x256xf32>
    %95 = vector.broadcast %94 : vector<1x256xf32> to vector<16x256xf32>
    %96 = arith.mulf %93, %95 : vector<16x256xf32>
    %97 = arith.truncf %96 : vector<16x256xf32> to vector<16x256xbf16>
    %98 = tpu.concatenate %61, %66, %71, %76, %77, %82, %87, %92, %97 in 0 : vector<16x256xbf16>, vector<16x256xbf16>, vector<16x256xbf16>, vector<16x256xbf16>, vector<16x256xbf16>, vector<16x256xbf16>, vector<16x256xbf16>, vector<16x256xbf16>, vector<16x256xbf16> -> vector<144x256xbf16>
    %c0_13 = arith.constant 0 : index
    %c0_14 = arith.constant 0 : index
    %99 = vector.load %arg8[%c0_13, %c0_14] : memref<32x144xbf16, #tpu.memory_space<vmem>>, vector<32x144xbf16>
    %cst_15 = arith.constant dense<0.000000e+00> : vector<32x256xf32>
    %100 = tpu.matmul %99, %98, %cst_15 {dimension_numbers = #tpu.dot_dimension_numbers<[1], [0], [0], [1], [0, 0, 1, 1], [], []>} : vector<32x144xbf16>, vector<144x256xbf16>, vector<32x256xf32> -> vector<32x256xf32>
    %c0_16 = arith.constant 0 : index
    %c0_17 = arith.constant 0 : index
    %101 = vector.load %arg9[%c0_16, %c0_17] : memref<32x1xf32, #tpu.memory_space<vmem>>, vector<32x1xf32>
    %102 = vector.broadcast %101 : vector<32x1xf32> to vector<32x256xf32>
    %103 = arith.addf %100, %102 : vector<32x256xf32>
    %cst_18 = arith.constant 0.000000e+00 : f32
    %104 = vector.broadcast %cst_18 : f32 to vector<32x256xf32>
    %105 = arith.maximumf %103, %104 : vector<32x256xf32>
    %c0_19 = arith.constant 0 : index
    %c0_20 = arith.constant 0 : index
    %106 = vector.load %arg5[%c0_19, %c0_20] : memref<2x256xf32, #tpu.memory_space<vmem>>, vector<2x256xf32>
    %107 = vector.extract_strided_slice %106 {offsets = [0, 0], sizes = [1, 256], strides = [1, 1]} : vector<2x256xf32> to vector<1x256xf32>
    %cst_21 = arith.constant 5.000000e-01 : f32
    %108 = vector.broadcast %cst_21 : f32 to vector<1x256xf32>
    %109 = arith.cmpf ogt, %107, %108 : vector<1x256xf32>
    %110 = vector.extract_strided_slice %106 {offsets = [1, 0], sizes = [1, 256], strides = [1, 1]} : vector<2x256xf32> to vector<1x256xf32>
    %cst_22 = arith.constant 5.000000e-01 : f32
    %111 = vector.broadcast %cst_22 : f32 to vector<1x256xf32>
    %112 = arith.cmpf ogt, %110, %111 : vector<1x256xf32>
    %c1_i32_23 = arith.constant 1 : i32
    %113 = tpu.dynamic_rotate %105 by %c1_i32_23 dim 1 : vector<32x256xf32>, i32 -> vector<32x256xf32>
    %114 = vector.shape_cast %109 : vector<1x256xi1> to vector<1x256xi1>
    %115 = vector.broadcast %114 : vector<1x256xi1> to vector<32x256xi1>
    %116 = arith.select %115, %113, %105 : vector<32x256xi1>, vector<32x256xf32>
    %c16_i32_24 = arith.constant 16 : i32
    %117 = tpu.dynamic_rotate %116 by %c16_i32_24 dim 1 : vector<32x256xf32>, i32 -> vector<32x256xf32>
    %118 = vector.shape_cast %112 : vector<1x256xi1> to vector<1x256xi1>
    %119 = vector.broadcast %118 : vector<1x256xi1> to vector<32x256xi1>
    %120 = arith.select %119, %117, %116 : vector<32x256xi1>, vector<32x256xf32>
    %121 = tpu.concatenate %52, %120 in 0 : vector<16x256xf32>, vector<32x256xf32> -> vector<48x256xf32>
    %c17_i32_25 = arith.constant 17 : i32
    %122 = tpu.dynamic_rotate %121 by %c17_i32_25 dim 1 : vector<48x256xf32>, i32 -> vector<48x256xf32>
    %123 = vector.extract_strided_slice %0 {offsets = [0, 0], sizes = [1, 256], strides = [1, 1]} : vector<9x256xf32> to vector<1x256xf32>
    %124 = vector.broadcast %123 : vector<1x256xf32> to vector<48x256xf32>
    %125 = arith.mulf %122, %124 : vector<48x256xf32>
    %126 = arith.truncf %125 : vector<48x256xf32> to vector<48x256xbf16>
    %c16_i32_26 = arith.constant 16 : i32
    %127 = tpu.dynamic_rotate %121 by %c16_i32_26 dim 1 : vector<48x256xf32>, i32 -> vector<48x256xf32>
    %128 = vector.extract_strided_slice %0 {offsets = [1, 0], sizes = [1, 256], strides = [1, 1]} : vector<9x256xf32> to vector<1x256xf32>
    %129 = vector.broadcast %128 : vector<1x256xf32> to vector<48x256xf32>
    %130 = arith.mulf %127, %129 : vector<48x256xf32>
    %131 = arith.truncf %130 : vector<48x256xf32> to vector<48x256xbf16>
    %c15_i32_27 = arith.constant 15 : i32
    %132 = tpu.dynamic_rotate %121 by %c15_i32_27 dim 1 : vector<48x256xf32>, i32 -> vector<48x256xf32>
    %133 = vector.extract_strided_slice %0 {offsets = [2, 0], sizes = [1, 256], strides = [1, 1]} : vector<9x256xf32> to vector<1x256xf32>
    %134 = vector.broadcast %133 : vector<1x256xf32> to vector<48x256xf32>
    %135 = arith.mulf %132, %134 : vector<48x256xf32>
    %136 = arith.truncf %135 : vector<48x256xf32> to vector<48x256xbf16>
    %c1_i32_28 = arith.constant 1 : i32
    %137 = tpu.dynamic_rotate %121 by %c1_i32_28 dim 1 : vector<48x256xf32>, i32 -> vector<48x256xf32>
    %138 = vector.extract_strided_slice %0 {offsets = [3, 0], sizes = [1, 256], strides = [1, 1]} : vector<9x256xf32> to vector<1x256xf32>
    %139 = vector.broadcast %138 : vector<1x256xf32> to vector<48x256xf32>
    %140 = arith.mulf %137, %139 : vector<48x256xf32>
    %141 = arith.truncf %140 : vector<48x256xf32> to vector<48x256xbf16>
    %142 = arith.truncf %121 : vector<48x256xf32> to vector<48x256xbf16>
    %c255_i32_29 = arith.constant 255 : i32
    %143 = tpu.dynamic_rotate %121 by %c255_i32_29 dim 1 : vector<48x256xf32>, i32 -> vector<48x256xf32>
    %144 = vector.extract_strided_slice %0 {offsets = [5, 0], sizes = [1, 256], strides = [1, 1]} : vector<9x256xf32> to vector<1x256xf32>
    %145 = vector.broadcast %144 : vector<1x256xf32> to vector<48x256xf32>
    %146 = arith.mulf %143, %145 : vector<48x256xf32>
    %147 = arith.truncf %146 : vector<48x256xf32> to vector<48x256xbf16>
    %c241_i32_30 = arith.constant 241 : i32
    %148 = tpu.dynamic_rotate %121 by %c241_i32_30 dim 1 : vector<48x256xf32>, i32 -> vector<48x256xf32>
    %149 = vector.extract_strided_slice %0 {offsets = [6, 0], sizes = [1, 256], strides = [1, 1]} : vector<9x256xf32> to vector<1x256xf32>
    %150 = vector.broadcast %149 : vector<1x256xf32> to vector<48x256xf32>
    %151 = arith.mulf %148, %150 : vector<48x256xf32>
    %152 = arith.truncf %151 : vector<48x256xf32> to vector<48x256xbf16>
    %c240_i32_31 = arith.constant 240 : i32
    %153 = tpu.dynamic_rotate %121 by %c240_i32_31 dim 1 : vector<48x256xf32>, i32 -> vector<48x256xf32>
    %154 = vector.extract_strided_slice %0 {offsets = [7, 0], sizes = [1, 256], strides = [1, 1]} : vector<9x256xf32> to vector<1x256xf32>
    %155 = vector.broadcast %154 : vector<1x256xf32> to vector<48x256xf32>
    %156 = arith.mulf %153, %155 : vector<48x256xf32>
    %157 = arith.truncf %156 : vector<48x256xf32> to vector<48x256xbf16>
    %c239_i32_32 = arith.constant 239 : i32
    %158 = tpu.dynamic_rotate %121 by %c239_i32_32 dim 1 : vector<48x256xf32>, i32 -> vector<48x256xf32>
    %159 = vector.extract_strided_slice %0 {offsets = [8, 0], sizes = [1, 256], strides = [1, 1]} : vector<9x256xf32> to vector<1x256xf32>
    %160 = vector.broadcast %159 : vector<1x256xf32> to vector<48x256xf32>
    %161 = arith.mulf %158, %160 : vector<48x256xf32>
    %162 = arith.truncf %161 : vector<48x256xf32> to vector<48x256xbf16>
    %163 = tpu.concatenate %126, %131, %136, %141, %142, %147, %152, %157, %162 in 0 : vector<48x256xbf16>, vector<48x256xbf16>, vector<48x256xbf16>, vector<48x256xbf16>, vector<48x256xbf16>, vector<48x256xbf16>, vector<48x256xbf16>, vector<48x256xbf16>, vector<48x256xbf16> -> vector<432x256xbf16>
    %c0_33 = arith.constant 0 : index
    %c0_34 = arith.constant 0 : index
    %164 = vector.load %arg10[%c0_33, %c0_34] : memref<16x432xbf16, #tpu.memory_space<vmem>>, vector<16x432xbf16>
    %cst_35 = arith.constant dense<0.000000e+00> : vector<16x256xf32>
    %165 = tpu.matmul %164, %163, %cst_35 {dimension_numbers = #tpu.dot_dimension_numbers<[1], [0], [0], [1], [0, 0, 1, 1], [], []>} : vector<16x432xbf16>, vector<432x256xbf16>, vector<16x256xf32> -> vector<16x256xf32>
    %c0_36 = arith.constant 0 : index
    %c0_37 = arith.constant 0 : index
    %166 = vector.load %arg11[%c0_36, %c0_37] : memref<16x1xf32, #tpu.memory_space<vmem>>, vector<16x1xf32>
    %167 = vector.broadcast %166 : vector<16x1xf32> to vector<16x256xf32>
    %168 = arith.addf %165, %167 : vector<16x256xf32>
    %cst_38 = arith.constant 0.000000e+00 : f32
    %169 = vector.broadcast %cst_38 : f32 to vector<16x256xf32>
    %170 = arith.maximumf %168, %169 : vector<16x256xf32>
    %171 = arith.truncf %170 : vector<16x256xf32> to vector<16x256xbf16>
    %c0_39 = arith.constant 0 : index
    %c0_40 = arith.constant 0 : index
    %172 = vector.load %arg12[%c0_39, %c0_40] : memref<5x16xbf16, #tpu.memory_space<vmem>>, vector<5x16xbf16>
    %cst_41 = arith.constant dense<0.000000e+00> : vector<5x256xf32>
    %173 = tpu.matmul %172, %171, %cst_41 {dimension_numbers = #tpu.dot_dimension_numbers<[1], [0], [0], [1], [0, 0, 1, 1], [], []>} : vector<5x16xbf16>, vector<16x256xbf16>, vector<5x256xf32> -> vector<5x256xf32>
    %c0_42 = arith.constant 0 : index
    %c0_43 = arith.constant 0 : index
    %174 = vector.load %arg13[%c0_42, %c0_43] : memref<5x1xf32, #tpu.memory_space<vmem>>, vector<5x1xf32>
    %175 = vector.broadcast %174 : vector<5x1xf32> to vector<5x256xf32>
    %176 = arith.addf %173, %175 : vector<5x256xf32>
    %c0_44 = arith.constant 0 : index
    %c0_45 = arith.constant 0 : index
    %c0_46 = arith.constant 0 : index
    %177 = vector.load %arg23[%c0_44, %c0_45, %c0_46] : memref<1x5x256xf32, #tpu.memory_space<vmem>>, vector<1x5x256xf32>
    %178 = vector.shape_cast %177 : vector<1x5x256xf32> to vector<5x256xf32>
    %179 = vector.shape_cast %176 : vector<5x256xf32> to vector<1x5x256xf32>
    tpu.vector_store %arg23[%c0_44, %c0_45, %c0_46], %179 {strides = array<i32>} : memref<1x5x256xf32, #tpu.memory_space<vmem>>, vector<1x5x256xf32>,
    %180 = arith.truncf %3 : vector<64x256xf32> to vector<64x256xbf16>
    %c0_47 = arith.constant 0 : index
    %c0_48 = arith.constant 0 : index
    %181 = vector.load %arg14[%c0_47, %c0_48] : memref<32x64xbf16, #tpu.memory_space<vmem>>, vector<32x64xbf16>
    %cst_49 = arith.constant dense<0.000000e+00> : vector<32x256xf32>
    %182 = tpu.matmul %181, %180, %cst_49 {dimension_numbers = #tpu.dot_dimension_numbers<[1], [0], [0], [1], [0, 0, 1, 1], [], []>} : vector<32x64xbf16>, vector<64x256xbf16>, vector<32x256xf32> -> vector<32x256xf32>
    %183 = arith.truncf %176 : vector<5x256xf32> to vector<5x256xbf16>
    %c0_50 = arith.constant 0 : index
    %c0_51 = arith.constant 0 : index
    %184 = vector.load %arg15[%c0_50, %c0_51] : memref<32x5xbf16, #tpu.memory_space<vmem>>, vector<32x5xbf16>
    %cst_52 = arith.constant dense<0.000000e+00> : vector<32x256xf32>
    %185 = tpu.matmul %184, %183, %cst_52 {dimension_numbers = #tpu.dot_dimension_numbers<[1], [0], [0], [1], [0, 0, 1, 1], [], []>} : vector<32x5xbf16>, vector<5x256xbf16>, vector<32x256xf32> -> vector<32x256xf32>
    %186 = arith.addf %182, %185 : vector<32x256xf32>
    %c0_53 = arith.constant 0 : index
    %c0_54 = arith.constant 0 : index
    %187 = vector.load %arg16[%c0_53, %c0_54] : memref<32x1xf32, #tpu.memory_space<vmem>>, vector<32x1xf32>
    %188 = vector.broadcast %187 : vector<32x1xf32> to vector<32x256xf32>
    %189 = arith.addf %186, %188 : vector<32x256xf32>
    %cst_55 = arith.constant 0.000000e+00 : f32
    %190 = vector.broadcast %cst_55 : f32 to vector<32x256xf32>
    %191 = arith.maximumf %189, %190 : vector<32x256xf32>
    %c17_i32_56 = arith.constant 17 : i32
    %192 = tpu.dynamic_rotate %191 by %c17_i32_56 dim 1 : vector<32x256xf32>, i32 -> vector<32x256xf32>
    %193 = vector.extract_strided_slice %0 {offsets = [0, 0], sizes = [1, 256], strides = [1, 1]} : vector<9x256xf32> to vector<1x256xf32>
    %194 = vector.broadcast %193 : vector<1x256xf32> to vector<32x256xf32>
    %195 = arith.mulf %192, %194 : vector<32x256xf32>
    %196 = arith.truncf %195 : vector<32x256xf32> to vector<32x256xbf16>
    %c16_i32_57 = arith.constant 16 : i32
    %197 = tpu.dynamic_rotate %191 by %c16_i32_57 dim 1 : vector<32x256xf32>, i32 -> vector<32x256xf32>
    %198 = vector.extract_strided_slice %0 {offsets = [1, 0], sizes = [1, 256], strides = [1, 1]} : vector<9x256xf32> to vector<1x256xf32>
    %199 = vector.broadcast %198 : vector<1x256xf32> to vector<32x256xf32>
    %200 = arith.mulf %197, %199 : vector<32x256xf32>
    %201 = arith.truncf %200 : vector<32x256xf32> to vector<32x256xbf16>
    %c15_i32_58 = arith.constant 15 : i32
    %202 = tpu.dynamic_rotate %191 by %c15_i32_58 dim 1 : vector<32x256xf32>, i32 -> vector<32x256xf32>
    %203 = vector.extract_strided_slice %0 {offsets = [2, 0], sizes = [1, 256], strides = [1, 1]} : vector<9x256xf32> to vector<1x256xf32>
    %204 = vector.broadcast %203 : vector<1x256xf32> to vector<32x256xf32>
    %205 = arith.mulf %202, %204 : vector<32x256xf32>
    %206 = arith.truncf %205 : vector<32x256xf32> to vector<32x256xbf16>
    %c1_i32_59 = arith.constant 1 : i32
    %207 = tpu.dynamic_rotate %191 by %c1_i32_59 dim 1 : vector<32x256xf32>, i32 -> vector<32x256xf32>
    %208 = vector.extract_strided_slice %0 {offsets = [3, 0], sizes = [1, 256], strides = [1, 1]} : vector<9x256xf32> to vector<1x256xf32>
    %209 = vector.broadcast %208 : vector<1x256xf32> to vector<32x256xf32>
    %210 = arith.mulf %207, %209 : vector<32x256xf32>
    %211 = arith.truncf %210 : vector<32x256xf32> to vector<32x256xbf16>
    %212 = arith.truncf %191 : vector<32x256xf32> to vector<32x256xbf16>
    %c255_i32_60 = arith.constant 255 : i32
    %213 = tpu.dynamic_rotate %191 by %c255_i32_60 dim 1 : vector<32x256xf32>, i32 -> vector<32x256xf32>
    %214 = vector.extract_strided_slice %0 {offsets = [5, 0], sizes = [1, 256], strides = [1, 1]} : vector<9x256xf32> to vector<1x256xf32>
    %215 = vector.broadcast %214 : vector<1x256xf32> to vector<32x256xf32>
    %216 = arith.mulf %213, %215 : vector<32x256xf32>
    %217 = arith.truncf %216 : vector<32x256xf32> to vector<32x256xbf16>
    %c241_i32_61 = arith.constant 241 : i32
    %218 = tpu.dynamic_rotate %191 by %c241_i32_61 dim 1 : vector<32x256xf32>, i32 -> vector<32x256xf32>
    %219 = vector.extract_strided_slice %0 {offsets = [6, 0], sizes = [1, 256], strides = [1, 1]} : vector<9x256xf32> to vector<1x256xf32>
    %220 = vector.broadcast %219 : vector<1x256xf32> to vector<32x256xf32>
    %221 = arith.mulf %218, %220 : vector<32x256xf32>
    %222 = arith.truncf %221 : vector<32x256xf32> to vector<32x256xbf16>
    %c240_i32_62 = arith.constant 240 : i32
    %223 = tpu.dynamic_rotate %191 by %c240_i32_62 dim 1 : vector<32x256xf32>, i32 -> vector<32x256xf32>
    %224 = vector.extract_strided_slice %0 {offsets = [7, 0], sizes = [1, 256], strides = [1, 1]} : vector<9x256xf32> to vector<1x256xf32>
    %225 = vector.broadcast %224 : vector<1x256xf32> to vector<32x256xf32>
    %226 = arith.mulf %223, %225 : vector<32x256xf32>
    %227 = arith.truncf %226 : vector<32x256xf32> to vector<32x256xbf16>
    %c239_i32_63 = arith.constant 239 : i32
    %228 = tpu.dynamic_rotate %191 by %c239_i32_63 dim 1 : vector<32x256xf32>, i32 -> vector<32x256xf32>
    %229 = vector.extract_strided_slice %0 {offsets = [8, 0], sizes = [1, 256], strides = [1, 1]} : vector<9x256xf32> to vector<1x256xf32>
    %230 = vector.broadcast %229 : vector<1x256xf32> to vector<32x256xf32>
    %231 = arith.mulf %228, %230 : vector<32x256xf32>
    %232 = arith.truncf %231 : vector<32x256xf32> to vector<32x256xbf16>
    %233 = tpu.concatenate %196, %201, %206, %211, %212, %217, %222, %227, %232 in 0 : vector<32x256xbf16>, vector<32x256xbf16>, vector<32x256xbf16>, vector<32x256xbf16>, vector<32x256xbf16>, vector<32x256xbf16>, vector<32x256xbf16>, vector<32x256xbf16>, vector<32x256xbf16> -> vector<288x256xbf16>
    %c0_64 = arith.constant 0 : index
    %c0_65 = arith.constant 0 : index
    %234 = vector.load %arg17[%c0_64, %c0_65] : memref<32x288xbf16, #tpu.memory_space<vmem>>, vector<32x288xbf16>
    %cst_66 = arith.constant dense<0.000000e+00> : vector<32x256xf32>
    %235 = tpu.matmul %234, %233, %cst_66 {dimension_numbers = #tpu.dot_dimension_numbers<[1], [0], [0], [1], [0, 0, 1, 1], [], []>} : vector<32x288xbf16>, vector<288x256xbf16>, vector<32x256xf32> -> vector<32x256xf32>
    %c0_67 = arith.constant 0 : index
    %c0_68 = arith.constant 0 : index
    %236 = vector.load %arg18[%c0_67, %c0_68] : memref<32x1xf32, #tpu.memory_space<vmem>>, vector<32x1xf32>
    %237 = vector.broadcast %236 : vector<32x1xf32> to vector<32x256xf32>
    %238 = arith.addf %235, %237 : vector<32x256xf32>
    %cst_69 = arith.constant 0.000000e+00 : f32
    %239 = vector.broadcast %cst_69 : f32 to vector<32x256xf32>
    %240 = arith.maximumf %238, %239 : vector<32x256xf32>
    %c17_i32_70 = arith.constant 17 : i32
    %241 = tpu.dynamic_rotate %240 by %c17_i32_70 dim 1 : vector<32x256xf32>, i32 -> vector<32x256xf32>
    %242 = vector.extract_strided_slice %0 {offsets = [0, 0], sizes = [1, 256], strides = [1, 1]} : vector<9x256xf32> to vector<1x256xf32>
    %243 = vector.broadcast %242 : vector<1x256xf32> to vector<32x256xf32>
    %244 = arith.mulf %241, %243 : vector<32x256xf32>
    %245 = arith.truncf %244 : vector<32x256xf32> to vector<32x256xbf16>
    %c16_i32_71 = arith.constant 16 : i32
    %246 = tpu.dynamic_rotate %240 by %c16_i32_71 dim 1 : vector<32x256xf32>, i32 -> vector<32x256xf32>
    %247 = vector.extract_strided_slice %0 {offsets = [1, 0], sizes = [1, 256], strides = [1, 1]} : vector<9x256xf32> to vector<1x256xf32>
    %248 = vector.broadcast %247 : vector<1x256xf32> to vector<32x256xf32>
    %249 = arith.mulf %246, %248 : vector<32x256xf32>
    %250 = arith.truncf %249 : vector<32x256xf32> to vector<32x256xbf16>
    %c15_i32_72 = arith.constant 15 : i32
    %251 = tpu.dynamic_rotate %240 by %c15_i32_72 dim 1 : vector<32x256xf32>, i32 -> vector<32x256xf32>
    %252 = vector.extract_strided_slice %0 {offsets = [2, 0], sizes = [1, 256], strides = [1, 1]} : vector<9x256xf32> to vector<1x256xf32>
    %253 = vector.broadcast %252 : vector<1x256xf32> to vector<32x256xf32>
    %254 = arith.mulf %251, %253 : vector<32x256xf32>
    %255 = arith.truncf %254 : vector<32x256xf32> to vector<32x256xbf16>
    %c1_i32_73 = arith.constant 1 : i32
    %256 = tpu.dynamic_rotate %240 by %c1_i32_73 dim 1 : vector<32x256xf32>, i32 -> vector<32x256xf32>
    %257 = vector.extract_strided_slice %0 {offsets = [3, 0], sizes = [1, 256], strides = [1, 1]} : vector<9x256xf32> to vector<1x256xf32>
    %258 = vector.broadcast %257 : vector<1x256xf32> to vector<32x256xf32>
    %259 = arith.mulf %256, %258 : vector<32x256xf32>
    %260 = arith.truncf %259 : vector<32x256xf32> to vector<32x256xbf16>
    %261 = arith.truncf %240 : vector<32x256xf32> to vector<32x256xbf16>
    %c255_i32_74 = arith.constant 255 : i32
    %262 = tpu.dynamic_rotate %240 by %c255_i32_74 dim 1 : vector<32x256xf32>, i32 -> vector<32x256xf32>
    %263 = vector.extract_strided_slice %0 {offsets = [5, 0], sizes = [1, 256], strides = [1, 1]} : vector<9x256xf32> to vector<1x256xf32>
    %264 = vector.broadcast %263 : vector<1x256xf32> to vector<32x256xf32>
    %265 = arith.mulf %262, %264 : vector<32x256xf32>
    %266 = arith.truncf %265 : vector<32x256xf32> to vector<32x256xbf16>
    %c241_i32_75 = arith.constant 241 : i32
    %267 = tpu.dynamic_rotate %240 by %c241_i32_75 dim 1 : vector<32x256xf32>, i32 -> vector<32x256xf32>
    %268 = vector.extract_strided_slice %0 {offsets = [6, 0], sizes = [1, 256], strides = [1, 1]} : vector<9x256xf32> to vector<1x256xf32>
    %269 = vector.broadcast %268 : vector<1x256xf32> to vector<32x256xf32>
    %270 = arith.mulf %267, %269 : vector<32x256xf32>
    %271 = arith.truncf %270 : vector<32x256xf32> to vector<32x256xbf16>
    %c240_i32_76 = arith.constant 240 : i32
    %272 = tpu.dynamic_rotate %240 by %c240_i32_76 dim 1 : vector<32x256xf32>, i32 -> vector<32x256xf32>
    %273 = vector.extract_strided_slice %0 {offsets = [7, 0], sizes = [1, 256], strides = [1, 1]} : vector<9x256xf32> to vector<1x256xf32>
    %274 = vector.broadcast %273 : vector<1x256xf32> to vector<32x256xf32>
    %275 = arith.mulf %272, %274 : vector<32x256xf32>
    %276 = arith.truncf %275 : vector<32x256xf32> to vector<32x256xbf16>
    %c239_i32_77 = arith.constant 239 : i32
    %277 = tpu.dynamic_rotate %240 by %c239_i32_77 dim 1 : vector<32x256xf32>, i32 -> vector<32x256xf32>
    %278 = vector.extract_strided_slice %0 {offsets = [8, 0], sizes = [1, 256], strides = [1, 1]} : vector<9x256xf32> to vector<1x256xf32>
    %279 = vector.broadcast %278 : vector<1x256xf32> to vector<32x256xf32>
    %280 = arith.mulf %277, %279 : vector<32x256xf32>
    %281 = arith.truncf %280 : vector<32x256xf32> to vector<32x256xbf16>
    %282 = tpu.concatenate %245, %250, %255, %260, %261, %266, %271, %276, %281 in 0 : vector<32x256xbf16>, vector<32x256xbf16>, vector<32x256xbf16>, vector<32x256xbf16>, vector<32x256xbf16>, vector<32x256xbf16>, vector<32x256xbf16>, vector<32x256xbf16>, vector<32x256xbf16> -> vector<288x256xbf16>
    %c0_78 = arith.constant 0 : index
    %c0_79 = arith.constant 0 : index
    %283 = vector.load %arg19[%c0_78, %c0_79] : memref<32x288xbf16, #tpu.memory_space<vmem>>, vector<32x288xbf16>
    %cst_80 = arith.constant dense<0.000000e+00> : vector<32x256xf32>
    %284 = tpu.matmul %283, %282, %cst_80 {dimension_numbers = #tpu.dot_dimension_numbers<[1], [0], [0], [1], [0, 0, 1, 1], [], []>} : vector<32x288xbf16>, vector<288x256xbf16>, vector<32x256xf32> -> vector<32x256xf32>
    %c0_81 = arith.constant 0 : index
    %c0_82 = arith.constant 0 : index
    %285 = vector.load %arg20[%c0_81, %c0_82] : memref<32x1xf32, #tpu.memory_space<vmem>>, vector<32x1xf32>
    %286 = vector.broadcast %285 : vector<32x1xf32> to vector<32x256xf32>
    %287 = arith.addf %284, %286 : vector<32x256xf32>
    %288 = arith.addf %287, %191 : vector<32x256xf32>
    %cst_83 = arith.constant 0.000000e+00 : f32
    %289 = vector.broadcast %cst_83 : f32 to vector<32x256xf32>
    %290 = arith.maximumf %288, %289 : vector<32x256xf32>
    %291 = arith.truncf %290 : vector<32x256xf32> to vector<32x256xbf16>
    %c0_84 = arith.constant 0 : index
    %c0_85 = arith.constant 0 : index
    %292 = vector.load %arg21[%c0_84, %c0_85] : memref<3x32xbf16, #tpu.memory_space<vmem>>, vector<3x32xbf16>
    %cst_86 = arith.constant dense<0.000000e+00> : vector<3x256xf32>
    %293 = tpu.matmul %292, %291, %cst_86 {dimension_numbers = #tpu.dot_dimension_numbers<[1], [0], [0], [1], [0, 0, 1, 1], [], []>} : vector<3x32xbf16>, vector<32x256xbf16>, vector<3x256xf32> -> vector<3x256xf32>
    %c0_87 = arith.constant 0 : index
    %c0_88 = arith.constant 0 : index
    %294 = vector.load %arg22[%c0_87, %c0_88] : memref<3x1xf32, #tpu.memory_space<vmem>>, vector<3x1xf32>
    %295 = vector.broadcast %294 : vector<3x1xf32> to vector<3x256xf32>
    %296 = arith.addf %293, %295 : vector<3x256xf32>
    %c0_89 = arith.constant 0 : index
    %c0_90 = arith.constant 0 : index
    %c0_91 = arith.constant 0 : index
    %297 = vector.load %arg2[%c0_89, %c0_90, %c0_91] : memref<1x3x256xf32, #tpu.memory_space<vmem>>, vector<1x3x256xf32>
    %298 = vector.shape_cast %297 : vector<1x3x256xf32> to vector<3x256xf32>
    %299 = arith.addf %296, %298 : vector<3x256xf32>
    %c0_92 = arith.constant 0 : index
    %c0_93 = arith.constant 0 : index
    %c0_94 = arith.constant 0 : index
    %300 = vector.load %arg24[%c0_92, %c0_93, %c0_94] : memref<1x3x256xf32, #tpu.memory_space<vmem>>, vector<1x3x256xf32>
    %301 = vector.shape_cast %300 : vector<1x3x256xf32> to vector<3x256xf32>
    %302 = vector.shape_cast %299 : vector<3x256xf32> to vector<1x3x256xf32>
    tpu.vector_store %arg24[%c0_92, %c0_93, %c0_94], %302 {strides = array<i32>} : memref<1x3x256xf32, #tpu.memory_space<vmem>>, vector<1x3x256xf32>,
    return
  }
  func.func @transform_0(%arg0: i32) -> (i32, i32, i32) {
    %c0_i32 = arith.constant 0 : i32
    %c0_i32_0 = arith.constant 0 : i32
    %c0_i32_1 = arith.constant 0 : i32
    return %arg0, %c0_i32, %c0_i32_0 : i32, i32, i32
  }
  func.func @transform_1(%arg0: i32) -> (i32, i32, i32) {
    %c0_i32 = arith.constant 0 : i32
    %c0_i32_0 = arith.constant 0 : i32
    %c0_i32_1 = arith.constant 0 : i32
    return %arg0, %c0_i32, %c0_i32_0 : i32, i32, i32
  }
  func.func @transform_2(%arg0: i32) -> (i32, i32) {
    %c0_i32 = arith.constant 0 : i32
    %c0_i32_0 = arith.constant 0 : i32
    %c0_i32_1 = arith.constant 0 : i32
    return %c0_i32, %c0_i32_0 : i32, i32
  }
  func.func @transform_3(%arg0: i32) -> (i32, i32) {
    %c0_i32 = arith.constant 0 : i32
    %c0_i32_0 = arith.constant 0 : i32
    %c0_i32_1 = arith.constant 0 : i32
    return %c0_i32, %c0_i32_0 : i32, i32
  }
  func.func @transform_4(%arg0: i32) -> (i32, i32) {
    %c0_i32 = arith.constant 0 : i32
    %c0_i32_0 = arith.constant 0 : i32
    %c0_i32_1 = arith.constant 0 : i32
    return %c0_i32, %c0_i32_0 : i32, i32
  }
  func.func @transform_5(%arg0: i32) -> (i32, i32) {
    %c0_i32 = arith.constant 0 : i32
    %c0_i32_0 = arith.constant 0 : i32
    %c0_i32_1 = arith.constant 0 : i32
    return %c0_i32, %c0_i32_0 : i32, i32
  }
  func.func @transform_6(%arg0: i32) -> (i32, i32) {
    %c0_i32 = arith.constant 0 : i32
    %c0_i32_0 = arith.constant 0 : i32
    %c0_i32_1 = arith.constant 0 : i32
    return %c0_i32, %c0_i32_0 : i32, i32
  }
  func.func @transform_7(%arg0: i32) -> (i32, i32) {
    %c0_i32 = arith.constant 0 : i32
    %c0_i32_0 = arith.constant 0 : i32
    %c0_i32_1 = arith.constant 0 : i32
    return %c0_i32, %c0_i32_0 : i32, i32
  }
  func.func @transform_8(%arg0: i32) -> (i32, i32) {
    %c0_i32 = arith.constant 0 : i32
    %c0_i32_0 = arith.constant 0 : i32
    %c0_i32_1 = arith.constant 0 : i32
    return %c0_i32, %c0_i32_0 : i32, i32
  }
  func.func @transform_9(%arg0: i32) -> (i32, i32) {
    %c0_i32 = arith.constant 0 : i32
    %c0_i32_0 = arith.constant 0 : i32
    %c0_i32_1 = arith.constant 0 : i32
    return %c0_i32, %c0_i32_0 : i32, i32
  }
  func.func @transform_10(%arg0: i32) -> (i32, i32) {
    %c0_i32 = arith.constant 0 : i32
    %c0_i32_0 = arith.constant 0 : i32
    %c0_i32_1 = arith.constant 0 : i32
    return %c0_i32, %c0_i32_0 : i32, i32
  }
  func.func @transform_11(%arg0: i32) -> (i32, i32) {
    %c0_i32 = arith.constant 0 : i32
    %c0_i32_0 = arith.constant 0 : i32
    %c0_i32_1 = arith.constant 0 : i32
    return %c0_i32, %c0_i32_0 : i32, i32
  }
  func.func @transform_12(%arg0: i32) -> (i32, i32) {
    %c0_i32 = arith.constant 0 : i32
    %c0_i32_0 = arith.constant 0 : i32
    %c0_i32_1 = arith.constant 0 : i32
    return %c0_i32, %c0_i32_0 : i32, i32
  }
  func.func @transform_13(%arg0: i32) -> (i32, i32) {
    %c0_i32 = arith.constant 0 : i32
    %c0_i32_0 = arith.constant 0 : i32
    %c0_i32_1 = arith.constant 0 : i32
    return %c0_i32, %c0_i32_0 : i32, i32
  }
  func.func @transform_14(%arg0: i32) -> (i32, i32) {
    %c0_i32 = arith.constant 0 : i32
    %c0_i32_0 = arith.constant 0 : i32
    %c0_i32_1 = arith.constant 0 : i32
    return %c0_i32, %c0_i32_0 : i32, i32
  }
  func.func @transform_15(%arg0: i32) -> (i32, i32) {
    %c0_i32 = arith.constant 0 : i32
    %c0_i32_0 = arith.constant 0 : i32
    %c0_i32_1 = arith.constant 0 : i32
    return %c0_i32, %c0_i32_0 : i32, i32
  }
  func.func @transform_16(%arg0: i32) -> (i32, i32) {
    %c0_i32 = arith.constant 0 : i32
    %c0_i32_0 = arith.constant 0 : i32
    %c0_i32_1 = arith.constant 0 : i32
    return %c0_i32, %c0_i32_0 : i32, i32
  }
  func.func @transform_17(%arg0: i32) -> (i32, i32) {
    %c0_i32 = arith.constant 0 : i32
    %c0_i32_0 = arith.constant 0 : i32
    %c0_i32_1 = arith.constant 0 : i32
    return %c0_i32, %c0_i32_0 : i32, i32
  }
  func.func @transform_18(%arg0: i32) -> (i32, i32) {
    %c0_i32 = arith.constant 0 : i32
    %c0_i32_0 = arith.constant 0 : i32
    %c0_i32_1 = arith.constant 0 : i32
    return %c0_i32, %c0_i32_0 : i32, i32
  }
  func.func @transform_19(%arg0: i32) -> (i32, i32) {
    %c0_i32 = arith.constant 0 : i32
    %c0_i32_0 = arith.constant 0 : i32
    %c0_i32_1 = arith.constant 0 : i32
    return %c0_i32, %c0_i32_0 : i32, i32
  }
  func.func @transform_20(%arg0: i32) -> (i32, i32) {
    %c0_i32 = arith.constant 0 : i32
    %c0_i32_0 = arith.constant 0 : i32
    %c0_i32_1 = arith.constant 0 : i32
    return %c0_i32, %c0_i32_0 : i32, i32
  }
  func.func @transform_21(%arg0: i32) -> (i32, i32) {
    %c0_i32 = arith.constant 0 : i32
    %c0_i32_0 = arith.constant 0 : i32
    %c0_i32_1 = arith.constant 0 : i32
    return %c0_i32, %c0_i32_0 : i32, i32
  }
  func.func @transform_22(%arg0: i32) -> (i32, i32, i32) {
    %c0_i32 = arith.constant 0 : i32
    %c0_i32_0 = arith.constant 0 : i32
    %c0_i32_1 = arith.constant 0 : i32
    return %arg0, %c0_i32, %c0_i32_0 : i32, i32, i32
  }
  func.func @transform_23(%arg0: i32) -> (i32, i32, i32) {
    %c0_i32 = arith.constant 0 : i32
    %c0_i32_0 = arith.constant 0 : i32
    %c0_i32_1 = arith.constant 0 : i32
    return %arg0, %c0_i32, %c0_i32_0 : i32, i32, i32
  }
}

</mosaic_0001>

<llo_original>
// kernel: cultionet_forward.2
$region0: #{cultionet_forward.2}
  #allocation0 [shape = 'u32[]', space=smem, size = 0x4, offset = 0x4, fixed_abs, tag = 'smem constant byte address 0x4 - core index']
  #allocation1 [shape = 'u32[144,128]{1,0:T(1,128)}', space=vmem, size = 0x12000, scoped, tag = 'internal scratch']
  #allocation2 [shape = 'f32[2,32,256]{2,1,0:T(8,128)}', space=vmem, size = 0x10000, scoped, tag = 'scratch operand']
  %s0 = inlined_call_operand.vmem [shape: f32[2,4,2048], index: 0, kind: input, shape index: {}]
  %s1 = inlined_call_operand.vmem [shape: f32[9,256], index: 1, kind: input, shape index: {}]
  %s2 = inlined_call_operand.vmem [shape: bf16[64,36], index: 2, kind: input, shape index: {}]
  %s3 = inlined_call_operand.vmem [shape: bf16[32,288], index: 3, kind: input, shape index: {}]
  %s4 = inlined_call_operand.vmem [shape: f32[32,1], index: 4, kind: input, shape index: {}]
  %s5 = inlined_call_operand.vmem [shape: f32[32,1], index: 5, kind: input, shape index: {}]
  %s6 = inlined_call_operand.vmem [shape: bf16[64,288], index: 6, kind: input, shape index: {}]
  %s7 = inlined_call_operand.vmem [shape: bf16[32,288], index: 7, kind: input, shape index: {}]
  %s8 = inlined_call_operand.vmem [shape: f32[32,1], index: 8, kind: input, shape index: {}]
  %s9 = inlined_call_operand.vmem [shape: f32[32,1], index: 9, kind: input, shape index: {}]
  %s10 = inlined_call_operand.vmem [shape: bf16[6,64], index: 10, kind: input, shape index: {}]
  %s11 = inlined_call_operand.vmem [shape: f32[6,1], index: 11, kind: input, shape index: {}]
  %s12 = inlined_call_operand.vmem [shape: f32[2,64,256], index: 12, kind: output, shape index: {0}]
  %s13 = inlined_call_operand.hbm [shape: f32[2,3,256], index: 13, kind: output, shape index: {1}]
  %s14 = inlined_call_operand.vmem [shape: f32[2,3,256], index: 14, kind: output, shape index: {2}]
  %15 = xla_tuple %s12, %s13, %s14
  %s16 = sld [smem:[#allocation0]]
  $region105: #{cultionet_forward.2} parent=0
    _
  %s18 = ssub.s32 1, %s16
  %s19 = scalar_select 0, %s18, %s16
  $region1: #{cultionet_forward.2} parent=0
    #allocation3 [shape = 'u8[8192]{0}', space=vmem, size = 0x2000, scoped, tag = 'output window, operand 1']
    #allocation4 [shape = 's32[2]{0}', space=sflag, size = 0x8, scoped, tag = 'scoped memory for cultionet_forward.2']
    %20 = vsyncpa [#allocation4], 0
    %s21 = scalar_lea.sflag [#allocation4], 1
    %22 = vsyncpa %s21, 0
    loop: start=0, step=1, limit=18
    $region2: #{cultionet_forward.2} parent=1 // loop_pre_header
      _
    $region3: #{cultionet_forward.2} parent=1 // loop_header
      %s24 = sphi 0, %s28
      %p25 = scmp.ge.s32.totalorder %s24, 18
      %s31 = sphi 0, %s43
      %s32 = sphi 0, %s39
      %s33 = sphi 0, %s31
      %s34 = sphi 0, %s32
      %s35 = sphi 0, %s33
      %s36 = sphi 0, %s34
      %s46 = sphi 0, %s48
      %s49 = sphi 0, %s46
      %s50 = sphi 0, %s49
      %s66 = sphi 0, %s50
      %s70 = sphi 0, %s70
      %s72 = sphi 0, %s70
      %s73 = sphi 0, %s72
      %s87 = sphi 0, %s73
      %s91 = sphi 0, %s91
      %s93 = sphi 0, %s91
      %s94 = sphi 0, %s93
      %s108 = sphi 0, %s94
      %s112 = sphi 0, %s112
      %s114 = sphi 0, %s112
      %s115 = sphi 0, %s114
      %s129 = sphi 0, %s115
      %s133 = sphi 0, %s133
      %s135 = sphi 0, %s133
      %s136 = sphi 0, %s135
      %s150 = sphi 0, %s136
      %s154 = sphi 0, %s154
      %s156 = sphi 0, %s154
      %s157 = sphi 0, %s156
      %s171 = sphi 0, %s157
      %s175 = sphi 0, %s175
      %s177 = sphi 0, %s175
      %s178 = sphi 0, %s177
      %s192 = sphi 0, %s178
      %s196 = sphi 0, %s196
      %s198 = sphi 0, %s196
      %s199 = sphi 0, %s198
      %s213 = sphi 0, %s199
      %s217 = sphi 0, %s217
      %s219 = sphi 0, %s217
      %s220 = sphi 0, %s219
      %s234 = sphi 0, %s220
      %s238 = sphi 0, %s238
      %s240 = sphi 0, %s238
      %s241 = sphi 0, %s240
      %s255 = sphi 0, %s241
      %s259 = sphi 0, %s259
      %s261 = sphi 0, %s259
      %s262 = sphi 0, %s261
      %s276 = sphi 0, %s262
      %s280 = sphi 0, %s280
      %s282 = sphi 0, %s280
      %s283 = sphi 0, %s282
      %s297 = sphi 0, %s283
      %s303 = sphi 0, %s305
      %s306 = sphi 0, %s303
      %s307 = sphi 0, %s306
      %s323 = sphi 0, %s307
      %s329 = sphi 0, %s331
      %s332 = sphi 0, %s329
      %s333 = sphi 0, %s332
      %s349 = sphi 0, %s333
      %s355 = sphi 0, %s357
      %s358 = sphi 0, %s355
      %s359 = sphi 0, %s358
      %s375 = sphi 0, %s359
    $region4: #{cultionet_forward.2} parent=1 // loop_header_branch
      %27 = sbr.rel (%p25) target = $region8
    $region5: #{cultionet_forward.2} parent=1 // loop_body
      %s29 = ssub.s32 %s24, 1
      %s30 = ssub.s32 %s24, 2
      %s37 = sadd.s32 1, %s32
      %p38 = scmp.ge.s32.totalorder %s37, 8
      %s39 = scalar_select %p38, 0, %s37
      %s40 = sadd.s32 1, %s31
      %s41 = scalar_select %p38, %s40, %s31
      %p42 = scmp.ge.s32.totalorder %s41, 2
      %s43 = scalar_select %p42, 0, %s41
      %s44 = ssub.s32 %s31, %s43
      %p45 = scmp.eq.s32.totalorder %s44, 0
      %s47 = sadd.s32 %s46, 1
      %s48 = scalar_select %p45, %s46, %s47
      %p51 = pneg %p45
      %p52 = scmp.eq.s32.totalorder %s24, 15
      %p53 = por %p51, %p52
      %p54 = scmp.ne.s32.totalorder %s46, %s49
      %p55 = scmp.eq.s32.totalorder %s24, 0
      %p56 = por %p54, %p55
      %p57 = scmp.ne.s32.totalorder %s46, %s49
      %p58 = scmp.eq.s32.totalorder %s29, 15
      %p59 = por %p57, %p58
      %p60 = scmp.ne.s32.totalorder %s49, %s50
      %p61 = scmp.eq.s32.totalorder %s29, 0
      %p62 = por %p60, %p61
      %p63 = scmp.ne.s32.totalorder %s49, %s50
      %p64 = scmp.eq.s32.totalorder %s30, 15
      %p65 = por %p63, %p64
      %p67 = scmp.ne.s32.totalorder %s50, %s66
      %p68 = scmp.eq.s32.totalorder %s30, 0
      %p69 = por %p67, %p68
      %s71 = sadd.s32 %s70, 1
      %p74 = scmp.eq.s32.totalorder %s24, 15
      %p75 = scmp.ne.s32.totalorder %s70, %s72
      %p76 = scmp.eq.s32.totalorder %s24, 0
      %p77 = por %p75, %p76
      %p78 = scmp.ne.s32.totalorder %s70, %s72
      %p79 = scmp.eq.s32.totalorder %s29, 15
      %p80 = por %p78, %p79
      %p81 = scmp.ne.s32.totalorder %s72, %s73
      %p82 = scmp.eq.s32.totalorder %s29, 0
      %p83 = por %p81, %p82
      %p84 = scmp.ne.s32.totalorder %s72, %s73
      %p85 = scmp.eq.s32.totalorder %s30, 15
      %p86 = por %p84, %p85
      %p88 = scmp.ne.s32.totalorder %s73, %s87
      %p89 = scmp.eq.s32.totalorder %s30, 0
      %p90 = por %p88, %p89
      %s92 = sadd.s32 %s91, 1
      %p95 = scmp.eq.s32.totalorder %s24, 15
      %p96 = scmp.ne.s32.totalorder %s91, %s93
      %p97 = scmp.eq.s32.totalorder %s24, 0
      %p98 = por %p96, %p97
      %p99 = scmp.ne.s32.totalorder %s91, %s93
      %p100 = scmp.eq.s32.totalorder %s29, 15
      %p101 = por %p99, %p100
      %p102 = scmp.ne.s32.totalorder %s93, %s94
      %p103 = scmp.eq.s32.totalorder %s29, 0
      %p104 = por %p102, %p103
      %p105 = scmp.ne.s32.totalorder %s93, %s94
      %p106 = scmp.eq.s32.totalorder %s30, 15
      %p107 = por %p105, %p106
      %p109 = scmp.ne.s32.totalorder %s94, %s108
      %p110 = scmp.eq.s32.totalorder %s30, 0
      %p111 = por %p109, %p110
      %s113 = sadd.s32 %s112, 1
      %p116 = scmp.eq.s32.totalorder %s24, 15
      %p117 = scmp.ne.s32.totalorder %s112, %s114
      %p118 = scmp.eq.s32.totalorder %s24, 0
      %p119 = por %p117, %p118
      %p120 = scmp.ne.s32.totalorder %s112, %s114
      %p121 = scmp.eq.s32.totalorder %s29, 15
      %p122 = por %p120, %p121
      %p123 = scmp.ne.s32.totalorder %s114, %s115
      %p124 = scmp.eq.s32.totalorder %s29, 0
      %p125 = por %p123, %p124
      %p126 = scmp.ne.s32.totalorder %s114, %s115
      %p127 = scmp.eq.s32.totalorder %s30, 15
      %p128 = por %p126, %p127
      %p130 = scmp.ne.s32.totalorder %s115, %s129
      %p131 = scmp.eq.s32.totalorder %s30, 0
      %p132 = por %p130, %p131
      %s134 = sadd.s32 %s133, 1
      %p137 = scmp.eq.s32.totalorder %s24, 15
      %p138 = scmp.ne.s32.totalorder %s133, %s135
      %p139 = scmp.eq.s32.totalorder %s24, 0
      %p140 = por %p138, %p139
      %p141 = scmp.ne.s32.totalorder %s133, %s135
      %p142 = scmp.eq.s32.totalorder %s29, 15
      %p143 = por %p141, %p142
      %p144 = scmp.ne.s32.totalorder %s135, %s136
      %p145 = scmp.eq.s32.totalorder %s29, 0
      %p146 = por %p144, %p145
      %p147 = scmp.ne.s32.totalorder %s135, %s136
      %p148 = scmp.eq.s32.totalorder %s30, 15
      %p149 = por %p147, %p148
      %p151 = scmp.ne.s32.totalorder %s136, %s150
      %p152 = scmp.eq.s32.totalorder %s30, 0
      %p153 = por %p151, %p152
      %s155 = sadd.s32 %s154, 1
      %p158 = scmp.eq.s32.totalorder %s24, 15
      %p159 = scmp.ne.s32.totalorder %s154, %s156
      %p160 = scmp.eq.s32.totalorder %s24, 0
      %p161 = por %p159, %p160
      %p162 = scmp.ne.s32.totalorder %s154, %s156
      %p163 = scmp.eq.s32.totalorder %s29, 15
      %p164 = por %p162, %p163
      %p165 = scmp.ne.s32.totalorder %s156, %s157
      %p166 = scmp.eq.s32.totalorder %s29, 0
      %p167 = por %p165, %p166
      %p168 = scmp.ne.s32.totalorder %s156, %s157
      %p169 = scmp.eq.s32.totalorder %s30, 15
      %p170 = por %p168, %p169
      %p172 = scmp.ne.s32.totalorder %s157, %s171
      %p173 = scmp.eq.s32.totalorder %s30, 0
      %p174 = por %p172, %p173
      %s176 = sadd.s32 %s175, 1
      %p179 = scmp.eq.s32.totalorder %s24, 15
      %p180 = scmp.ne.s32.totalorder %s175, %s177
      %p181 = scmp.eq.s32.totalorder %s24, 0
      %p182 = por %p180, %p181
      %p183 = scmp.ne.s32.totalorder %s175, %s177
      %p184 = scmp.eq.s32.totalorder %s29, 15
      %p185 = por %p183, %p184
      %p186 = scmp.ne.s32.totalorder %s177, %s178
      %p187 = scmp.eq.s32.totalorder %s29, 0
      %p188 = por %p186, %p187
      %p189 = scmp.ne.s32.totalorder %s177, %s178
      %p190 = scmp.eq.s32.totalorder %s30, 15
      %p191 = por %p189, %p190
      %p193 = scmp.ne.s32.totalorder %s178, %s192
      %p194 = scmp.eq.s32.totalorder %s30, 0
      %p195 = por %p193, %p194
      %s197 = sadd.s32 %s196, 1
      %p200 = scmp.eq.s32.totalorder %s24, 15
      %p201 = scmp.ne.s32.totalorder %s196, %s198
      %p202 = scmp.eq.s32.totalorder %s24, 0
      %p203 = por %p201, %p202
      %p204 = scmp.ne.s32.totalorder %s196, %s198
      %p205 = scmp.eq.s32.totalorder %s29, 15
      %p206 = por %p204, %p205
      %p207 = scmp.ne.s32.totalorder %s198, %s199
      %p208 = scmp.eq.s32.totalorder %s29, 0
      %p209 = por %p207, %p208
      %p210 = scmp.ne.s32.totalorder %s198, %s199
      %p211 = scmp.eq.s32.totalorder %s30, 15
      %p212 = por %p210, %p211
      %p214 = scmp.ne.s32.totalorder %s199, %s213
      %p215 = scmp.eq.s32.totalorder %s30, 0
      %p216 = por %p214, %p215
      %s218 = sadd.s32 %s217, 1
      %p221 = scmp.eq.s32.totalorder %s24, 15
      %p222 = scmp.ne.s32.totalorder %s217, %s219
      %p223 = scmp.eq.s32.totalorder %s24, 0
      %p224 = por %p222, %p223
      %p225 = scmp.ne.s32.totalorder %s217, %s219
      %p226 = scmp.eq.s32.totalorder %s29, 15
      %p227 = por %p225, %p226
      %p228 = scmp.ne.s32.totalorder %s219, %s220
      %p229 = scmp.eq.s32.totalorder %s29, 0
      %p230 = por %p228, %p229
      %p231 = scmp.ne.s32.totalorder %s219, %s220
      %p232 = scmp.eq.s32.totalorder %s30, 15
      %p233 = por %p231, %p232
      %p235 = scmp.ne.s32.totalorder %s220, %s234
      %p236 = scmp.eq.s32.totalorder %s30, 0
      %p237 = por %p235, %p236
      %s239 = sadd.s32 %s238, 1
      %p242 = scmp.eq.s32.totalorder %s24, 15
      %p243 = scmp.ne.s32.totalorder %s238, %s240
      %p244 = scmp.eq.s32.totalorder %s24, 0
      %p245 = por %p243, %p244
      %p246 = scmp.ne.s32.totalorder %s238, %s240
      %p247 = scmp.eq.s32.totalorder %s29, 15
      %p248 = por %p246, %p247
      %p249 = scmp.ne.s32.totalorder %s240, %s241
      %p250 = scmp.eq.s32.totalorder %s29, 0
      %p251 = por %p249, %p250
      %p252 = scmp.ne.s32.totalorder %s240, %s241
      %p253 = scmp.eq.s32.totalorder %s30, 15
      %p254 = por %p252, %p253
      %p256 = scmp.ne.s32.totalorder %s241, %s255
      %p257 = scmp.eq.s32.totalorder %s30, 0
      %p258 = por %p256, %p257
      %s260 = sadd.s32 %s259, 1
      %p263 = scmp.eq.s32.totalorder %s24, 15
      %p264 = scmp.ne.s32.totalorder %s259, %s261
      %p265 = scmp.eq.s32.totalorder %s24, 0
      %p266 = por %p264, %p265
      %p267 = scmp.ne.s32.totalorder %s259, %s261
      %p268 = scmp.eq.s32.totalorder %s29, 15
      %p269 = por %p267, %p268
      %p270 = scmp.ne.s32.totalorder %s261, %s262
      %p271 = scmp.eq.s32.totalorder %s29, 0
      %p272 = por %p270, %p271
      %p273 = scmp.ne.s32.totalorder %s261, %s262
      %p274 = scmp.eq.s32.totalorder %s30, 15
      %p275 = por %p273, %p274
      %p277 = scmp.ne.s32.totalorder %s262, %s276
      %p278 = scmp.eq.s32.totalorder %s30, 0
      %p279 = por %p277, %p278
      %s281 = sadd.s32 %s280, 1
      %p284 = scmp.eq.s32.totalorder %s24, 15
      %p285 = scmp.ne.s32.totalorder %s280, %s282
      %p286 = scmp.eq.s32.totalorder %s24, 0
      %p287 = por %p285, %p286
      %p288 = scmp.ne.s32.totalorder %s280, %s282
      %p289 = scmp.eq.s32.totalorder %s29, 15
      %p290 = por %p288, %p289
      %p291 = scmp.ne.s32.totalorder %s282, %s283
      %p292 = scmp.eq.s32.totalorder %s29, 0
      %p293 = por %p291, %p292
      %p294 = scmp.ne.s32.totalorder %s282, %s283
      %p295 = scmp.eq.s32.totalorder %s30, 15
      %p296 = por %p294, %p295
      %p298 = scmp.ne.s32.totalorder %s283, %s297
      %p299 = scmp.eq.s32.totalorder %s30, 0
      %p300 = por %p298, %p299
      %s301 = ssub.s32 %s31, %s43
      %p302 = scmp.eq.s32.totalorder %s301, 0
      %s304 = sadd.s32 %s303, 1
      %s305 = scalar_select %p302, %s303, %s304
      %p308 = pneg %p302
      %p309 = scmp.eq.s32.totalorder %s24, 15
      %p310 = por %p308, %p309
      %p311 = scmp.ne.s32.totalorder %s303, %s306
      %p312 = scmp.eq.s32.totalorder %s24, 0
      %p313 = por %p311, %p312
      %p314 = scmp.ne.s32.totalorder %s303, %s306
      %p315 = scmp.eq.s32.totalorder %s29, 15
      %p316 = por %p314, %p315
      %p317 = scmp.ne.s32.totalorder %s306, %s307
      %p318 = scmp.eq.s32.totalorder %s29, 0
      %p319 = por %p317, %p318
      %p320 = scmp.ne.s32.totalorder %s306, %s307
      %p321 = scmp.eq.s32.totalorder %s30, 15
      %p322 = por %p320, %p321
      %p324 = scmp.ne.s32.totalorder %s307, %s323
      %p325 = scmp.eq.s32.totalorder %s30, 0
      %p326 = por %p324, %p325
      %s327 = ssub.s32 %s31, %s43
      %p328 = scmp.eq.s32.totalorder %s327, 0
      %s330 = sadd.s32 %s329, 1
      %s331 = scalar_select %p328, %s329, %s330
      %p334 = pneg %p328
      %p335 = scmp.eq.s32.totalorder %s24, 15
      %p336 = por %p334, %p335
      %p337 = scmp.ne.s32.totalorder %s329, %s332
      %p338 = scmp.eq.s32.totalorder %s24, 0
      %p339 = por %p337, %p338
      %p340 = scmp.ne.s32.totalorder %s329, %s332
      %p341 = scmp.eq.s32.totalorder %s29, 15
      %p342 = por %p340, %p341
      %p343 = scmp.ne.s32.totalorder %s332, %s333
      %p344 = scmp.eq.s32.totalorder %s29, 0
      %p345 = por %p343, %p344
      %p346 = scmp.ne.s32.totalorder %s332, %s333
      %p347 = scmp.eq.s32.totalorder %s30, 15
      %p348 = por %p346, %p347
      %p350 = scmp.ne.s32.totalorder %s333, %s349
      %p351 = scmp.eq.s32.totalorder %s30, 0
      %p352 = por %p350, %p351
      %s353 = ssub.s32 %s31, %s43
      %p354 = scmp.eq.s32.totalorder %s353, 0
      %s356 = sadd.s32 %s355, 1
      %s357 = scalar_select %p354, %s355, %s356
      %p360 = pneg %p354
      %p361 = scmp.eq.s32.totalorder %s24, 15
      %p362 = por %p360, %p361
      %p363 = scmp.ne.s32.totalorder %s355, %s358
      %p364 = scmp.eq.s32.totalorder %s24, 0
      %p365 = por %p363, %p364
      %p366 = scmp.ne.s32.totalorder %s355, %s358
      %p367 = scmp.eq.s32.totalorder %s29, 15
      %p368 = por %p366, %p367
      %p369 = scmp.ne.s32.totalorder %s358, %s359
      %p370 = scmp.eq.s32.totalorder %s29, 0
      %p371 = por %p369, %p370
      %p372 = scmp.ne.s32.totalorder %s358, %s359
      %p373 = scmp.eq.s32.totalorder %s30, 15
      %p374 = por %p372, %p373
      %p376 = scmp.ne.s32.totalorder %s359, %s375
      %p377 = scmp.eq.s32.totalorder %s30, 0
      %p378 = por %p376, %p377
      %p379 = scmp.le.s32.totalorder 1, %s24
      %p380 = scmp.lt.s32.totalorder %s24, 17
      %p381 = pnand %p379, %p380
      %p382 = pneg %p381
      // Predicated region
      $region9: #{cultionet_forward.2} parent=5 // pred_check
        _
      $region10: #{cultionet_forward.2} parent=5 // pred_check_branch
        %384 = sbr.rel (%p381) target = $region12
      $region11: #{cultionet_forward.2} parent=5 // pred_region
        %s385 = ssub.s32 %s24, 1
        // Predicated region
        $region13: #{cultionet_forward.2} parent=11 // pred_check
          %p386 = pneg %p83
        $region14: #{cultionet_forward.2} parent=11 // pred_check_branch
          %388 = sbr.rel (%p386) target = $region16
        $region15: #{cultionet_forward.2} parent=11 // pred_region
          _
        $region16: #{cultionet_forward.2} parent=11 // pred_fallthru
          _
        // Predicated region
        $region17: #{cultionet_forward.2} parent=11 // pred_check
          %p389 = pneg %p104
        $region18: #{cultionet_forward.2} parent=11 // pred_check_branch
          %391 = sbr.rel (%p389) target = $region20
        $region19: #{cultionet_forward.2} parent=11 // pred_region
          _
        $region20: #{cultionet_forward.2} parent=11 // pred_fallthru
          _
        // Predicated region
        $region21: #{cultionet_forward.2} parent=11 // pred_check
          %p392 = pneg %p125
        $region22: #{cultionet_forward.2} parent=11 // pred_check_branch
          %394 = sbr.rel (%p392) target = $region24
        $region23: #{cultionet_forward.2} parent=11 // pred_region
          _
        $region24: #{cultionet_forward.2} parent=11 // pred_fallthru
          _
        // Predicated region
        $region25: #{cultionet_forward.2} parent=11 // pred_check
          %p395 = pneg %p146
        $region26: #{cultionet_forward.2} parent=11 // pred_check_branch
          %397 = sbr.rel (%p395) target = $region28
        $region27: #{cultionet_forward.2} parent=11 // pred_region
          _
        $region28: #{cultionet_forward.2} parent=11 // pred_fallthru
          _
        // Predicated region
        $region29: #{cultionet_forward.2} parent=11 // pred_check
          %p398 = pneg %p167
        $region30: #{cultionet_forward.2} parent=11 // pred_check_branch
          %400 = sbr.rel (%p398) target = $region32
        $region31: #{cultionet_forward.2} parent=11 // pred_region
          _
        $region32: #{cultionet_forward.2} parent=11 // pred_fallthru
          _
        // Predicated region
        $region33: #{cultionet_forward.2} parent=11 // pred_check
          %p401 = pneg %p188
        $region34: #{cultionet_forward.2} parent=11 // pred_check_branch
          %403 = sbr.rel (%p401) target = $region36
        $region35: #{cultionet_forward.2} parent=11 // pred_region
          _
        $region36: #{cultionet_forward.2} parent=11 // pred_fallthru
          _
        // Predicated region
        $region37: #{cultionet_forward.2} parent=11 // pred_check
          %p404 = pneg %p209
        $region38: #{cultionet_forward.2} parent=11 // pred_check_branch
          %406 = sbr.rel (%p404) target = $region40
        $region39: #{cultionet_forward.2} parent=11 // pred_region
          _
        $region40: #{cultionet_forward.2} parent=11 // pred_fallthru
          _
        // Predicated region
        $region41: #{cultionet_forward.2} parent=11 // pred_check
          %p407 = pneg %p230
        $region42: #{cultionet_forward.2} parent=11 // pred_check_branch
          %409 = sbr.rel (%p407) target = $region44
        $region43: #{cultionet_forward.2} parent=11 // pred_region
          _
        $region44: #{cultionet_forward.2} parent=11 // pred_fallthru
          _
        // Predicated region
        $region45: #{cultionet_forward.2} parent=11 // pred_check
          %p410 = pneg %p251
        $region46: #{cultionet_forward.2} parent=11 // pred_check_branch
          %412 = sbr.rel (%p410) target = $region48
        $region47: #{cultionet_forward.2} parent=11 // pred_region
          _
        $region48: #{cultionet_forward.2} parent=11 // pred_fallthru
          _
        // Predicated region
        $region49: #{cultionet_forward.2} parent=11 // pred_check
          %p413 = pneg %p272
        $region50: #{cultionet_forward.2} parent=11 // pred_check_branch
          %415 = sbr.rel (%p413) target = $region52
        $region51: #{cultionet_forward.2} parent=11 // pred_region
          _
        $region52: #{cultionet_forward.2} parent=11 // pred_fallthru
          _
        // Predicated region
        $region53: #{cultionet_forward.2} parent=11 // pred_check
          %p416 = pneg %p293
        $region54: #{cultionet_forward.2} parent=11 // pred_check_branch
          %418 = sbr.rel (%p416) target = $region56
        $region55: #{cultionet_forward.2} parent=11 // pred_region
          _
        $region56: #{cultionet_forward.2} parent=11 // pred_fallthru
          _
      $region12: #{cultionet_forward.2} parent=5 // pred_fallthru
        _
      %p419 = scmp.lt.s32.totalorder %s24, 16
      // Predicated region
      $region57: #{cultionet_forward.2} parent=5 // pred_check
        %p420 = pneg %p419
      $region58: #{cultionet_forward.2} parent=5 // pred_check_branch
        %422 = sbr.rel (%p420) target = $region60
      $region59: #{cultionet_forward.2} parent=5 // pred_region
        // Predicated region
        $region61: #{cultionet_forward.2} parent=59 // pred_check
          %p423 = pneg %p56
        $region62: #{cultionet_forward.2} parent=59 // pred_check_branch
          %425 = sbr.rel (%p423) target = $region64
        $region63: #{cultionet_forward.2} parent=59 // pred_region
          %p426 = scmp.lt.s32.totalorder %s31, 1
          %s427 = scalar_select %p426, %s31, 1
          %s428 = smul.addr %s427, 16
          %s429 = smul.addr %s428, 4
          %s430 = scalar_lea.vmem %s0, %s429
        $region64: #{cultionet_forward.2} parent=59 // pred_fallthru
          _
      $region60: #{cultionet_forward.2} parent=5 // pred_fallthru
        _
      %p431 = scmp.le.s32.totalorder 1, %s24
      %p432 = scmp.lt.s32.totalorder %s24, 17
      %p433 = pnand %p431, %p432
      %p434 = pneg %p433
      // Predicated region
      $region65: #{cultionet_forward.2} parent=5 // pred_check
        _
      $region66: #{cultionet_forward.2} parent=5 // pred_check_branch
        %436 = sbr.rel (%p433) target = $region68
      $region67: #{cultionet_forward.2} parent=5 // pred_region
        %s437 = ssub.s32 %s24, 1
        %p438 = scmp.lt.s32.totalorder %s33, 1
        %s439 = scalar_select %p438, %s33, 1
        %s440 = smul.addr %s439, 16
        %s441 = smul.addr %s440, 4
        %s442 = scalar_lea.vmem %s0, %s441
        %p443 = pneg %p62
        %p444 = pneg %p59
        %p445 = pneg %p83
        %p446 = pneg %p80
        %p447 = pneg %p104
        %p448 = pneg %p101
        %p449 = pneg %p125
        %p450 = pneg %p122
        %p451 = pneg %p146
        %p452 = pneg %p143
        %p453 = pneg %p167
        %p454 = pneg %p164
        %p455 = pneg %p188
        %p456 = pneg %p185
        %p457 = pneg %p209
        %p458 = pneg %p206
        %p459 = pneg %p230
        %p460 = pneg %p227
        %p461 = pneg %p251
        %p462 = pneg %p248
        %p463 = pneg %p272
        %p464 = pneg %p269
        %p465 = pneg %p293
        %p466 = pneg %p290
        %p467 = pneg %p319
        %p468 = pneg %p316
        %p469 = scmp.lt.s32.totalorder %s33, 1
        %s470 = scalar_select %p469, %s33, 1
        %s471 = smul.addr %s470, 16
        %s472 = smul.addr %s471, 8
        %s473 = scalar_lea.vmem %s12, %s472
        %p474 = pneg %p345
        %p475 = pneg %p342
        %s476 = sand.u32 %s332, 1
        %s477 = scalar_lea.sflag [#allocation4], %s476
        %s478 = sand.u32 %s332, 1
        %s479 = smul.addr %s478, 8
        %s480 = scalar_lea.vmem [#allocation3], %s479
        %p481 = pneg %p371
        %p482 = pneg %p368
        %p483 = scmp.lt.s32.totalorder %s33, 1
        %s484 = scalar_select %p483, %s33, 1
        %s485 = smul.addr %s484, 2
        %s486 = smul.addr %s485, 4
        %s487 = scalar_lea.vmem %s14, %s486
        %p488 = scmp.lt.s32.totalorder %s33, 1
        %s489 = scalar_select %p488, %s33, 1
        %s490 = smul.addr %s489, 16
        %s491 = smul.addr %s490, 4
        %s492 = scalar_lea.vmem %s0, %s491
        %p493 = scmp.lt.s32.totalorder %s33, 1
        %s494 = scalar_select %p493, %s33, 1
        %s495 = smul.addr %s494, 16
        %s496 = smul.addr %s495, 8
        %s497 = scalar_lea.vmem %s12, %s496
        %p498 = scmp.lt.s32.totalorder %s33, 1
        %s499 = scalar_select %p498, %s33, 1
        %s500 = smul.addr %s499, 2
        %s501 = smul.addr %s500, 4
        %s502 = scalar_lea.vmem %s14, %s501
        %v504 = vld [vmem:[%s1] sm:$0xff]
        %v505 = vld [vmem:[%s1 + $0x8] sm:$0xff]
        %v506 = vld [vmem:[%s1 + $0x10] sm:$0x1]
        %v507 = vld [vmem:[%s1 + $0x18] sm:$0x1]
        %p508 = scmp.eq.s32.totalorder %s34, 0
        // Predicated region
        $region69: #{cultionet_forward.2} parent=67 // pred_check
          %p509 = pneg %p508
        $region70: #{cultionet_forward.2} parent=67 // pred_check_branch
          %511 = sbr.rel (%p509) target = $region72
        $region71: #{cultionet_forward.2} parent=67 // pred_region
          %512 = vst [vmem:[#allocation2] sm:$0xff] 0.0
          %513 = vst [vmem:[#allocation2 + $0x8] sm:$0xff] 0.0
          %514 = vst [vmem:[#allocation2 + $0x10] sm:$0xff] 0.0
          %515 = vst [vmem:[#allocation2 + $0x18] sm:$0xff] 0.0
          %516 = vst [vmem:[#allocation2 + $0x20] sm:$0xff] 0.0
          %517 = vst [vmem:[#allocation2 + $0x28] sm:$0xff] 0.0
          %518 = vst [vmem:[#allocation2 + $0x30] sm:$0xff] 0.0
          %519 = vst [vmem:[#allocation2 + $0x38] sm:$0xff] 0.0
          %520 = vst [vmem:[#allocation2 + $0x40] sm:$0xff] 0.0
          %521 = vst [vmem:[#allocation2 + $0x48] sm:$0xff] 0.0
          %522 = vst [vmem:[#allocation2 + $0x50] sm:$0xff] 0.0
          %523 = vst [vmem:[#allocation2 + $0x58] sm:$0xff] 0.0
          %524 = vst [vmem:[#allocation2 + $0x60] sm:$0xff] 0.0
          %525 = vst [vmem:[#allocation2 + $0x68] sm:$0xff] 0.0
          %526 = vst [vmem:[#allocation2 + $0x70] sm:$0xff] 0.0
          %527 = vst [vmem:[#allocation2 + $0x78] sm:$0xff] 0.0
        $region72: #{cultionet_forward.2} parent=67 // pred_fallthru
          _
        %s528 = smul.u32 %s34, 256
        %s529 = sshra.s32 %s528, 7
        %s530 = sand.u32 %s528, 127
        %s531 = smul.addr %s529, 4
        %s532 = scalar_lea.vmem %s492, %s531
        %v533 = vld [vmem:[%s532] sm:$0xff]
        %v534 = vld [vmem:[#allocation2] sm:$0xff]
        %v535 = vld [vmem:[#allocation2 + $0x8] sm:$0xff]
        %v536 = vld [vmem:[#allocation2 + $0x10] sm:$0xff]
        %v537 = vld [vmem:[#allocation2 + $0x18] sm:$0xff]
        %v538 = vld [vmem:[#allocation2 + $0x20] sm:$0xff]
        %v539 = vld [vmem:[#allocation2 + $0x28] sm:$0xff]
        %v540 = vld [vmem:[#allocation2 + $0x30] sm:$0xff]
        %v541 = vld [vmem:[#allocation2 + $0x38] sm:$0xff]
        %v543 = vcombine.high %v533, %v533
        %545 = vrot.lane.b32.xlu0 %v533, 17
        %v546 = vpop.permute.xlu0 %545
        %547 = vrot.lane.b32.xlu0 %v543, 17
        %v548 = vpop.permute.xlu0 %547
        %v549 = vlaneseq
        %v550 = vand.u32 %v549, 127
        %vm551 = vcmp.lt.s32.totalorder %v550, 17
        %v552 = vsel %vm551, %v546, %v548
        %v553 = vsel %vm551, %v548, %v546
        %v554 = vlaneseq
        %v555 = vshrl.u32 %v554, 7
        %v556 = vsub.s32 0, %v555
        %v557 = vrot.slane %v504, %v556
        %v558 = vlaneseq
        %v559 = vshrl.u32 %v558, 7
        %v560 = vsub.s32 0, %v559
        %v561 = vrot.slane %v505, %v560
        %v562 = vmul.f32 %v553, %v557
        %v563 = vmul.f32 %v552, %v561
        %v564 = vpack.c.bf16 %v562, %v562
        %v565 = vpack.c.bf16 %v563, %v563
        %566 = vrot.lane.b32.xlu0 %v533, 16
        %v567 = vpop.permute.xlu0 %566
        %568 = vrot.lane.b32.xlu0 %v543, 16
        %v569 = vpop.permute.xlu0 %568
        %vm570 = vcmp.lt.s32.totalorder %v550, 16
        %v571 = vsel %vm570, %v567, %v569
        %v572 = vsel %vm570, %v569, %v567
        %v573 = vlaneseq
        %v574 = vshrl.u32 %v573, 7
        %v575 = vsub.s32 1, %v574
        %v576 = vrot.slane %v504, %v575
        %v577 = vlaneseq
        %v578 = vshrl.u32 %v577, 7
        %v579 = vsub.s32 1, %v578
        %v580 = vrot.slane %v505, %v579
        %v581 = vmul.f32 %v572, %v576
        %v582 = vmul.f32 %v571, %v580
        %v583 = vpack.c.bf16 %v581, %v581
        %v584 = vpack.c.bf16 %v582, %v582
        %585 = vrot.lane.b32.xlu0 %v533, 15
        %v586 = vpop.permute.xlu0 %585
        %587 = vrot.lane.b32.xlu0 %v543, 15
        %v588 = vpop.permute.xlu0 %587
        %vm589 = vcmp.lt.s32.totalorder %v550, 15
        %v590 = vsel %vm589, %v586, %v588
        %v591 = vsel %vm589, %v588, %v586
        %v592 = vlaneseq
        %v593 = vshrl.u32 %v592, 7
        %v594 = vsub.s32 2, %v593
        %v595 = vrot.slane %v504, %v594
        %v596 = vlaneseq
        %v597 = vshrl.u32 %v596, 7
        %v598 = vsub.s32 2, %v597
        %v599 = vrot.slane %v505, %v598
        %v600 = vmul.f32 %v591, %v595
        %v601 = vmul.f32 %v590, %v599
        %v602 = vpack.c.bf16 %v600, %v600
        %v603 = vpack.c.bf16 %v601, %v601
        %604 = vrot.lane.b32.xlu0 %v533, 1
        %v605 = vpop.permute.xlu0 %604
        %606 = vrot.lane.b32.xlu0 %v543, 1
        %v607 = vpop.permute.xlu0 %606
        %vm608 = vcmp.lt.s32.totalorder %v550, 1
        %v609 = vsel %vm608, %v605, %v607
        %v610 = vsel %vm608, %v607, %v605
        %v611 = vlaneseq
        %v612 = vshrl.u32 %v611, 7
        %v613 = vsub.s32 3, %v612
        %v614 = vrot.slane %v504, %v613
        %v615 = vlaneseq
        %v616 = vshrl.u32 %v615, 7
        %v617 = vsub.s32 3, %v616
        %v618 = vrot.slane %v505, %v617
        %v619 = vmul.f32 %v610, %v614
        %v620 = vmul.f32 %v609, %v618
        %v621 = vpack.c.bf16 %v619, %v619
        %v622 = vpack.c.bf16 %v620, %v620
        %v623 = vpack.c.bf16 %v533, %v533
        %v624 = vpack.c.bf16 %v543, %v543
        %625 = vrot.lane.b32.xlu0 %v533, 127
        %v626 = vpop.permute.xlu0 %625
        %627 = vrot.lane.b32.xlu0 %v543, 127
        %v628 = vpop.permute.xlu0 %627
        %vm629 = vcmp.lt.s32.totalorder %v550, 127
        %v630 = vsel %vm629, %v626, %v628
        %v631 = vsel %vm629, %v628, %v626
        %v632 = vlaneseq
        %v633 = vshrl.u32 %v632, 7
        %v634 = vsub.s32 5, %v633
        %v635 = vrot.slane %v504, %v634
        %v636 = vlaneseq
        %v637 = vshrl.u32 %v636, 7
        %v638 = vsub.s32 5, %v637
        %v639 = vrot.slane %v505, %v638
        %v640 = vmul.f32 %v630, %v635
        %v641 = vmul.f32 %v631, %v639
        %v642 = vpack.c.bf16 %v640, %v640
        %v643 = vpack.c.bf16 %v641, %v641
        %644 = vrot.lane.b32.xlu0 %v533, 113
        %v645 = vpop.permute.xlu0 %644
        %646 = vrot.lane.b32.xlu0 %v543, 113
        %v647 = vpop.permute.xlu0 %646
        %vm648 = vcmp.lt.s32.totalorder %v550, 113
        %v649 = vsel %vm648, %v645, %v647
        %v650 = vsel %vm648, %v647, %v645
        %v651 = vlaneseq
        %v652 = vshrl.u32 %v651, 7
        %v653 = vsub.s32 6, %v652
        %v654 = vrot.slane %v504, %v653
        %v655 = vlaneseq
        %v656 = vshrl.u32 %v655, 7
        %v657 = vsub.s32 6, %v656
        %v658 = vrot.slane %v505, %v657
        %v659 = vmul.f32 %v649, %v654
        %v660 = vmul.f32 %v650, %v658
        %v661 = vpack.c.bf16 %v659, %v659
        %v662 = vpack.c.bf16 %v660, %v660
        %663 = vrot.lane.b32.xlu0 %v533, 112
        %v664 = vpop.permute.xlu0 %663
        %665 = vrot.lane.b32.xlu0 %v543, 112
        %v666 = vpop.permute.xlu0 %665
        %vm667 = vcmp.lt.s32.totalorder %v550, 112
        %v668 = vsel %vm667, %v664, %v666
        %v669 = vsel %vm667, %v666, %v664
        %v670 = vlaneseq
        %v671 = vshrl.u32 %v670, 7
        %v672 = vsub.s32 7, %v671
        %v673 = vrot.slane %v504, %v672
        %v674 = vlaneseq
        %v675 = vshrl.u32 %v674, 7
        %v676 = vsub.s32 7, %v675
        %v677 = vrot.slane %v505, %v676
        %v678 = vmul.f32 %v668, %v673
        %v679 = vmul.f32 %v669, %v677
        %v680 = vpack.c.bf16 %v678, %v678
        %v681 = vpack.c.bf16 %v679, %v679
        %682 = vrot.lane.b32.xlu0 %v533, 111
        %v683 = vpop.permute.xlu0 %682
        %684 = vrot.lane.b32.xlu0 %v543, 111
        %v685 = vpop.permute.xlu0 %684
        %vm686 = vcmp.lt.s32.totalorder %v550, 111
        %v687 = vsel %vm686, %v683, %v685
        %v688 = vsel %vm686, %v685, %v683
        %v689 = vlaneseq
        %v690 = vshrl.u32 %v689, 7
        %v691 = vsub.s32 0, %v690
        %v692 = vrot.slane %v506, %v691
        %v693 = vlaneseq
        %v694 = vshrl.u32 %v693, 7
        %v695 = vsub.s32 0, %v694
        %v696 = vrot.slane %v507, %v695
        %v697 = vmul.f32 %v687, %v692
        %v698 = vmul.f32 %v688, %v696
        %v699 = vpack.c.bf16 %v697, %v697
        %v700 = vpack.c.bf16 %v698, %v698
        %v703 = vrot.slane %v583, 6
        %v704 = vrot.slane %v584, 6
        %v707 = vrot.slane %v602, 4
        %v708 = vrot.slane %v603, 4
        %v711 = vrot.slane %v621, 2
        %v712 = vrot.slane %v622, 2
        %v715 = vrot.slane %v642, 6
        %v716 = vrot.slane %v643, 6
        %v719 = vrot.slane %v661, 4
        %v720 = vrot.slane %v662, 4
        %v723 = vrot.slane %v680, 2
        %v724 = vrot.slane %v681, 2
        %vm725 = vcmask 1041408
        %v728 = vsel %vm725, %v564, %v703
        %v731 = vsel %vm725, %v565, %v704
        %vm732 = vcmask 1043456
        %v734 = vsel %vm732, %v728, %v707
        %v736 = vsel %vm732, %v731, %v708
        %vm737 = vcmask 1045504
        %v739 = vsel %vm737, %v734, %v711
        %v742 = vsel %vm737, %v736, %v712
        %v746 = vsel %vm725, %v623, %v715
        %v749 = vsel %vm725, %v624, %v716
        %v751 = vsel %vm732, %v746, %v719
        %v753 = vsel %vm732, %v749, %v720
        %v755 = vsel %vm737, %v751, %v723
        %v758 = vsel %vm737, %v753, %v724
        %v760 = vld [vmem:[%s2] sm:$0xf]
        %v761 = vld [vmem:[%s2 + $0x4] sm:$0xf]
        %v762 = vld [vmem:[%s2 + $0x8] sm:$0xf]
        %v763 = vld [vmem:[%s2 + $0xc] sm:$0xf]
        %v764 = vld [vmem:[%s2 + $0x10] sm:$0xf]
        %v765 = vld [vmem:[%s2 + $0x14] sm:$0xf]
        %v766 = vld [vmem:[%s2 + $0x18] sm:$0xf]
        %v767 = vld [vmem:[%s2 + $0x1c] sm:$0xf]
        %v776 = vunpack.c.l.b16 %v760
        %v777 = vunpack.c.l.b16 %v761
        %v778 = vunpack.c.l.b16 %v762
        %v779 = vunpack.c.l.b16 %v763
        %v780 = vunpack.c.l.b16 %v764
        %v781 = vunpack.c.l.b16 %v765
        %v782 = vunpack.c.l.b16 %v766
        %v783 = vunpack.c.l.b16 %v767
        %v784 = vpack.c.b16 %v777, %v776
        %v785 = vpack.c.b16 %v779, %v778
        %v786 = vpack.c.b16 %v781, %v780
        %v787 = vpack.c.b16 %v783, %v782
        %vm788 = vcmask 293888
        %v790 = vsel %vm788, %v784, 0
        %v793 = vsel %vm788, %v785, 0
        %v796 = vsel %vm788, %v786, 0
        %v799 = vsel %vm788, %v787, 0
        %v802 = vsel %vm725, %v699, 0
        %v805 = vsel %vm725, %v700, 0
        %807 = vmatprep.subr.bf16.mxu0 %v742
        %808 = vmatpush1.bf16.msra.mxu0 %v739
        %809 = vmatprep.subr.bf16.mxu0 %v758
        %810 = vmatpush1.bf16.msra.mxu0 %v755
        %811 = vmatprep.subr.bf16.mxu0 %v805
        %812 = vmatpush1.bf16.msra.mxu0 %v802
        %813 = vmatprep.subr.bf16.mxu0 0
        %814 = vmatpush1.bf16.msra.mxu0 0
        %815 = vmatprep.subr.bf16.mxu0 0
        %816 = vmatpush1.bf16.msra.mxu0 0
        %817 = vmatprep.subr.bf16.mxu0 0
        %818 = vmatpush1.bf16.msra.mxu0 0
        %819 = vmatprep.subr.bf16.mxu0 0
        %820 = vmatpush1.bf16.msra.mxu0 0
        %821 = vmatprep.subr.bf16.mxu0 0
        %822 = vmatpush1.bf16.msra.mxu0 0
        %823 = vmatprep.subr.bf16.mxu0 0
        %824 = vmatpush1.bf16.msra.mxu0 0
        %825 = vmatprep.subr.bf16.mxu0 0
        %826 = vmatpush1.bf16.msra.mxu0 0
        %827 = vmatprep.subr.bf16.mxu0 0
        %828 = vmatpush1.bf16.msra.mxu0 0
        %829 = vmatprep.subr.bf16.mxu0 0
        %830 = vmatpush1.bf16.msra.mxu0 0
        %831 = vmatprep.subr.bf16.mxu0 0
        %832 = vmatpush1.bf16.msra.mxu0 0
        %833 = vmatprep.subr.bf16.mxu0 0
        %834 = vmatpush1.bf16.msra.mxu0 0
        %835 = vmatprep.subr.bf16.mxu0 0
        %836 = vmatpush1.bf16.msra.mxu0 0
        %837 = vmatprep.subr.bf16.mxu0 0
        %838 = vmatpush1.bf16.msra.mxu0 0
        %839 = vmatprep.mubr.bf16.mxu0 0
        %840 = vmatmul.mubr.bf16.gmra.mrb[0].mxu0 %v790
        %v841 = vpop.f32.mrb[0].mxu0
        %v842 = vadd.f32 0.0, %v841
        %v843 = vpop.f32.mrb[0].mxu0
        %v844 = vadd.f32 0.0, %v843
        %v845 = vpop.f32.mrb[0].mxu0
        %v846 = vadd.f32 0.0, %v845
        %v847 = vpop.f32.mrb[0].mxu0
        %v848 = vadd.f32 0.0, %v847
        %849 = vmatprep.mubr.bf16.mxu0 0
        %850 = vmatmul.mubr.bf16.gmra.mrb[0].mxu0 %v793
        %v851 = vpop.f32.mrb[0].mxu0
        %v852 = vadd.f32 0.0, %v851
        %v853 = vpop.f32.mrb[0].mxu0
        %v854 = vadd.f32 0.0, %v853
        %v855 = vpop.f32.mrb[0].mxu0
        %v856 = vadd.f32 0.0, %v855
        %v857 = vpop.f32.mrb[0].mxu0
        %v858 = vadd.f32 0.0, %v857
        %859 = vmatprep.mubr.bf16.mxu0 0
        %860 = vmatmul.mubr.bf16.gmra.mrb[0].mxu0 %v796
        %v861 = vpop.f32.mrb[0].mxu0
        %v862 = vadd.f32 0.0, %v861
        %v863 = vpop.f32.mrb[0].mxu0
        %v864 = vadd.f32 0.0, %v863
        %v865 = vpop.f32.mrb[0].mxu0
        %v866 = vadd.f32 0.0, %v865
        %v867 = vpop.f32.mrb[0].mxu0
        %v868 = vadd.f32 0.0, %v867
        %869 = vmatprep.mubr.bf16.mxu0 0
        %870 = vmatmul.mubr.bf16.gmra.mrb[0].mxu0 %v799
        %v871 = vpop.f32.mrb[0].mxu0
        %v872 = vadd.f32 0.0, %v871
        %v873 = vpop.f32.mrb[0].mxu0
        %v874 = vadd.f32 0.0, %v873
        %v875 = vpop.f32.mrb[0].mxu0
        %v876 = vadd.f32 0.0, %v875
        %v877 = vpop.f32.mrb[0].mxu0
        %v878 = vadd.f32 0.0, %v877
        %879 = vdwg.mxu0
        %880 = vrot.lane.b32.xlu0 %v534, 17
        %v881 = vpop.permute.xlu0 %880
        %882 = vrot.lane.b32.xlu0 %v536, 17
        %v883 = vpop.permute.xlu0 %882
        %884 = vrot.lane.b32.xlu0 %v538, 17
        %v885 = vpop.permute.xlu0 %884
        %886 = vrot.lane.b32.xlu0 %v540, 17
        %v887 = vpop.permute.xlu0 %886
        %888 = vrot.lane.b32.xlu0 %v535, 17
        %v889 = vpop.permute.xlu0 %888
        %890 = vrot.lane.b32.xlu0 %v537, 17
        %v891 = vpop.permute.xlu0 %890
        %892 = vrot.lane.b32.xlu0 %v539, 17
        %v893 = vpop.permute.xlu0 %892
        %894 = vrot.lane.b32.xlu0 %v541, 17
        %v895 = vpop.permute.xlu0 %894
        %v896 = vsel %vm551, %v881, %v889
        %v897 = vsel %vm551, %v883, %v891
        %v898 = vsel %vm551, %v885, %v893
        %v899 = vsel %vm551, %v887, %v895
        %v900 = vsel %vm551, %v889, %v881
        %v901 = vsel %vm551, %v891, %v883
        %v902 = vsel %vm551, %v893, %v885
        %v903 = vsel %vm551, %v895, %v887
        %v904 = vmul.f32 %v900, %v557
        %v905 = vmul.f32 %v896, %v561
        %v906 = vmul.f32 %v901, %v557
        %v907 = vmul.f32 %v897, %v561
        %v908 = vmul.f32 %v902, %v557
        %v909 = vmul.f32 %v898, %v561
        %v910 = vmul.f32 %v903, %v557
        %v911 = vmul.f32 %v899, %v561
        %v912 = vpack.c.bf16 %v906, %v904
        %v913 = vpack.c.bf16 %v907, %v905
        %v914 = vpack.c.bf16 %v910, %v908
        %v915 = vpack.c.bf16 %v911, %v909
        %916 = vrot.lane.b32.xlu0 %v534, 16
        %v917 = vpop.permute.xlu0 %916
        %918 = vrot.lane.b32.xlu0 %v536, 16
        %v919 = vpop.permute.xlu0 %918
        %920 = vrot.lane.b32.xlu0 %v538, 16
        %v921 = vpop.permute.xlu0 %920
        %922 = vrot.lane.b32.xlu0 %v540, 16
        %v923 = vpop.permute.xlu0 %922
        %924 = vrot.lane.b32.xlu0 %v535, 16
        %v925 = vpop.permute.xlu0 %924
        %926 = vrot.lane.b32.xlu0 %v537, 16
        %v927 = vpop.permute.xlu0 %926
        %928 = vrot.lane.b32.xlu0 %v539, 16
        %v929 = vpop.permute.xlu0 %928
        %930 = vrot.lane.b32.xlu0 %v541, 16
        %v931 = vpop.permute.xlu0 %930
        %v932 = vsel %vm570, %v917, %v925
        %v933 = vsel %vm570, %v919, %v927
        %v934 = vsel %vm570, %v921, %v929
        %v935 = vsel %vm570, %v923, %v931
        %v936 = vsel %vm570, %v925, %v917
        %v937 = vsel %vm570, %v927, %v919
        %v938 = vsel %vm570, %v929, %v921
        %v939 = vsel %vm570, %v931, %v923
        %v940 = vmul.f32 %v936, %v576
        %v941 = vmul.f32 %v932, %v580
        %v942 = vmul.f32 %v937, %v576
        %v943 = vmul.f32 %v933, %v580
        %v944 = vmul.f32 %v938, %v576
        %v945 = vmul.f32 %v934, %v580
        %v946 = vmul.f32 %v939, %v576
        %v947 = vmul.f32 %v935, %v580
        %v948 = vpack.c.bf16 %v942, %v940
        %v949 = vpack.c.bf16 %v943, %v941
        %v950 = vpack.c.bf16 %v946, %v944
        %v951 = vpack.c.bf16 %v947, %v945
        %952 = vrot.lane.b32.xlu0 %v534, 15
        %v953 = vpop.permute.xlu0 %952
        %954 = vrot.lane.b32.xlu0 %v536, 15
        %v955 = vpop.permute.xlu0 %954
        %956 = vrot.lane.b32.xlu0 %v538, 15
        %v957 = vpop.permute.xlu0 %956
        %958 = vrot.lane.b32.xlu0 %v540, 15
        %v959 = vpop.permute.xlu0 %958
        %960 = vrot.lane.b32.xlu0 %v535, 15
        %v961 = vpop.permute.xlu0 %960
        %962 = vrot.lane.b32.xlu0 %v537, 15
        %v963 = vpop.permute.xlu0 %962
        %964 = vrot.lane.b32.xlu0 %v539, 15
        %v965 = vpop.permute.xlu0 %964
        %966 = vrot.lane.b32.xlu0 %v541, 15
        %v967 = vpop.permute.xlu0 %966
        %v968 = vsel %vm589, %v953, %v961
        %v969 = vsel %vm589, %v955, %v963
        %v970 = vsel %vm589, %v957, %v965
        %v971 = vsel %vm589, %v959, %v967
        %v972 = vsel %vm589, %v961, %v953
        %v973 = vsel %vm589, %v963, %v955
        %v974 = vsel %vm589, %v965, %v957
        %v975 = vsel %vm589, %v967, %v959
        %v976 = vmul.f32 %v972, %v595
        %v977 = vmul.f32 %v968, %v599
        %v978 = vmul.f32 %v973, %v595
        %v979 = vmul.f32 %v969, %v599
        %v980 = vmul.f32 %v974, %v595
        %v981 = vmul.f32 %v970, %v599
        %v982 = vmul.f32 %v975, %v595
        %v983 = vmul.f32 %v971, %v599
        %v984 = vpack.c.bf16 %v978, %v976
        %v985 = vpack.c.bf16 %v979, %v977
        %v986 = vpack.c.bf16 %v982, %v980
        %v987 = vpack.c.bf16 %v983, %v981
        %988 = vrot.lane.b32.xlu0 %v534, 1
        %v989 = vpop.permute.xlu0 %988
        %990 = vrot.lane.b32.xlu0 %v536, 1
        %v991 = vpop.permute.xlu0 %990
        %992 = vrot.lane.b32.xlu0 %v538, 1
        %v993 = vpop.permute.xlu0 %992
        %994 = vrot.lane.b32.xlu0 %v540, 1
        %v995 = vpop.permute.xlu0 %994
        %996 = vrot.lane.b32.xlu0 %v535, 1
        %v997 = vpop.permute.xlu0 %996
        %998 = vrot.lane.b32.xlu0 %v537, 1
        %v999 = vpop.permute.xlu0 %998
        %1000 = vrot.lane.b32.xlu0 %v539, 1
        %v1001 = vpop.permute.xlu0 %1000
        %1002 = vrot.lane.b32.xlu0 %v541, 1
        %v1003 = vpop.permute.xlu0 %1002
        %v1004 = vsel %vm608, %v989, %v997
        %v1005 = vsel %vm608, %v991, %v999
        %v1006 = vsel %vm608, %v993, %v1001
        %v1007 = vsel %vm608, %v995, %v1003
        %v1008 = vsel %vm608, %v997, %v989
        %v1009 = vsel %vm608, %v999, %v991
        %v1010 = vsel %vm608, %v1001, %v993
        %v1011 = vsel %vm608, %v1003, %v995
        %v1012 = vmul.f32 %v1008, %v614
        %v1013 = vmul.f32 %v1004, %v618
        %v1014 = vmul.f32 %v1009, %v614
        %v1015 = vmul.f32 %v1005, %v618
        %v1016 = vmul.f32 %v1010, %v614
        %v1017 = vmul.f32 %v1006, %v618
        %v1018 = vmul.f32 %v1011, %v614
        %v1019 = vmul.f32 %v1007, %v618
        %v1020 = vpack.c.bf16 %v1014, %v1012
        %v1021 = vpack.c.bf16 %v1015, %v1013
        %v1022 = vpack.c.bf16 %v1018, %v1016
        %v1023 = vpack.c.bf16 %v1019, %v1017
        %v1024 = vpack.c.bf16 %v536, %v534
        %v1025 = vpack.c.bf16 %v537, %v535
        %v1026 = vpack.c.bf16 %v540, %v538
        %v1027 = vpack.c.bf16 %v541, %v539
        %1028 = vrot.lane.b32.xlu0 %v534, 127
        %v1029 = vpop.permute.xlu0 %1028
        %1030 = vrot.lane.b32.xlu0 %v536, 127
        %v1031 = vpop.permute.xlu0 %1030
        %1032 = vrot.lane.b32.xlu0 %v538, 127
        %v1033 = vpop.permute.xlu0 %1032
        %1034 = vrot.lane.b32.xlu0 %v540, 127
        %v1035 = vpop.permute.xlu0 %1034
        %1036 = vrot.lane.b32.xlu0 %v535, 127
        %v1037 = vpop.permute.xlu0 %1036
        %1038 = vrot.lane.b32.xlu0 %v537, 127
        %v1039 = vpop.permute.xlu0 %1038
        %1040 = vrot.lane.b32.xlu0 %v539, 127
        %v1041 = vpop.permute.xlu0 %1040
        %1042 = vrot.lane.b32.xlu0 %v541, 127
        %v1043 = vpop.permute.xlu0 %1042
        %v1044 = vsel %vm629, %v1029, %v1037
        %v1045 = vsel %vm629, %v1031, %v1039
        %v1046 = vsel %vm629, %v1033, %v1041
        %v1047 = vsel %vm629, %v1035, %v1043
        %v1048 = vsel %vm629, %v1037, %v1029
        %v1049 = vsel %vm629, %v1039, %v1031
        %v1050 = vsel %vm629, %v1041, %v1033
        %v1051 = vsel %vm629, %v1043, %v1035
        %v1052 = vmul.f32 %v1044, %v635
        %v1053 = vmul.f32 %v1048, %v639
        %v1054 = vmul.f32 %v1045, %v635
        %v1055 = vmul.f32 %v1049, %v639
        %v1056 = vmul.f32 %v1046, %v635
        %v1057 = vmul.f32 %v1050, %v639
        %v1058 = vmul.f32 %v1047, %v635
        %v1059 = vmul.f32 %v1051, %v639
        %v1060 = vpack.c.bf16 %v1054, %v1052
        %v1061 = vpack.c.bf16 %v1055, %v1053
        %v1062 = vpack.c.bf16 %v1058, %v1056
        %v1063 = vpack.c.bf16 %v1059, %v1057
        %1064 = vrot.lane.b32.xlu0 %v534, 113
        %v1065 = vpop.permute.xlu0 %1064
        %1066 = vrot.lane.b32.xlu0 %v536, 113
        %v1067 = vpop.permute.xlu0 %1066
        %1068 = vrot.lane.b32.xlu0 %v538, 113
        %v1069 = vpop.permute.xlu0 %1068
        %1070 = vrot.lane.b32.xlu0 %v540, 113
        %v1071 = vpop.permute.xlu0 %1070
        %1072 = vrot.lane.b32.xlu0 %v535, 113
        %v1073 = vpop.permute.xlu0 %1072
        %1074 = vrot.lane.b32.xlu0 %v537, 113
        %v1075 = vpop.permute.xlu0 %1074
        %1076 = vrot.lane.b32.xlu0 %v539, 113
        %v1077 = vpop.permute.xlu0 %1076
        %1078 = vrot.lane.b32.xlu0 %v541, 113
        %v1079 = vpop.permute.xlu0 %1078
        %v1080 = vsel %vm648, %v1065, %v1073
        %v1081 = vsel %vm648, %v1067, %v1075
        %v1082 = vsel %vm648, %v1069, %v1077
        %v1083 = vsel %vm648, %v1071, %v1079
        %v1084 = vsel %vm648, %v1073, %v1065
        %v1085 = vsel %vm648, %v1075, %v1067
        %v1086 = vsel %vm648, %v1077, %v1069
        %v1087 = vsel %vm648, %v1079, %v1071
        %v1088 = vmul.f32 %v1080, %v654
        %v1089 = vmul.f32 %v1084, %v658
        %v1090 = vmul.f32 %v1081, %v654
        %v1091 = vmul.f32 %v1085, %v658
        %v1092 = vmul.f32 %v1082, %v654
        %v1093 = vmul.f32 %v1086, %v658
        %v1094 = vmul.f32 %v1083, %v654
        %v1095 = vmul.f32 %v1087, %v658
        %v1096 = vpack.c.bf16 %v1090, %v1088
        %v1097 = vpack.c.bf16 %v1091, %v1089
        %v1098 = vpack.c.bf16 %v1094, %v1092
        %v1099 = vpack.c.bf16 %v1095, %v1093
        %1100 = vrot.lane.b32.xlu0 %v534, 112
        %v1101 = vpop.permute.xlu0 %1100
        %1102 = vrot.lane.b32.xlu0 %v536, 112
        %v1103 = vpop.permute.xlu0 %1102
        %1104 = vrot.lane.b32.xlu0 %v538, 112
        %v1105 = vpop.permute.xlu0 %1104
        %1106 = vrot.lane.b32.xlu0 %v540, 112
        %v1107 = vpop.permute.xlu0 %1106
        %1108 = vrot.lane.b32.xlu0 %v535, 112
        %v1109 = vpop.permute.xlu0 %1108
        %1110 = vrot.lane.b32.xlu0 %v537, 112
        %v1111 = vpop.permute.xlu0 %1110
        %1112 = vrot.lane.b32.xlu0 %v539, 112
        %v1113 = vpop.permute.xlu0 %1112
        %1114 = vrot.lane.b32.xlu0 %v541, 112
        %v1115 = vpop.permute.xlu0 %1114
        %v1116 = vsel %vm667, %v1101, %v1109
        %v1117 = vsel %vm667, %v1103, %v1111
        %v1118 = vsel %vm667, %v1105, %v1113
        %v1119 = vsel %vm667, %v1107, %v1115
        %v1120 = vsel %vm667, %v1109, %v1101
        %v1121 = vsel %vm667, %v1111, %v1103
        %v1122 = vsel %vm667, %v1113, %v1105
        %v1123 = vsel %vm667, %v1115, %v1107
        %v1124 = vmul.f32 %v1116, %v673
        %v1125 = vmul.f32 %v1120, %v677
        %v1126 = vmul.f32 %v1117, %v673
        %v1127 = vmul.f32 %v1121, %v677
        %v1128 = vmul.f32 %v1118, %v673
        %v1129 = vmul.f32 %v1122, %v677
        %v1130 = vmul.f32 %v1119, %v673
        %v1131 = vmul.f32 %v1123, %v677
        %v1132 = vpack.c.bf16 %v1126, %v1124
        %v1133 = vpack.c.bf16 %v1127, %v1125
        %v1134 = vpack.c.bf16 %v1130, %v1128
        %v1135 = vpack.c.bf16 %v1131, %v1129
        %1136 = vrot.lane.b32.xlu0 %v534, 111
        %v1137 = vpop.permute.xlu0 %1136
        %1138 = vrot.lane.b32.xlu0 %v536, 111
        %v1139 = vpop.permute.xlu0 %1138
        %1140 = vrot.lane.b32.xlu0 %v538, 111
        %v1141 = vpop.permute.xlu0 %1140
        %1142 = vrot.lane.b32.xlu0 %v540, 111
        %v1143 = vpop.permute.xlu0 %1142
        %1144 = vrot.lane.b32.xlu0 %v535, 111
        %v1145 = vpop.permute.xlu0 %1144
        %1146 = vrot.lane.b32.xlu0 %v537, 111
        %v1147 = vpop.permute.xlu0 %1146
        %1148 = vrot.lane.b32.xlu0 %v539, 111
        %v1149 = vpop.permute.xlu0 %1148
        %1150 = vrot.lane.b32.xlu0 %v541, 111
        %v1151 = vpop.permute.xlu0 %1150
        %v1152 = vsel %vm686, %v1137, %v1145
        %v1153 = vsel %vm686, %v1139, %v1147
        %v1154 = vsel %vm686, %v1141, %v1149
        %v1155 = vsel %vm686, %v1143, %v1151
        %v1156 = vsel %vm686, %v1145, %v1137
        %v1157 = vsel %vm686, %v1147, %v1139
        %v1158 = vsel %vm686, %v1149, %v1141
        %v1159 = vsel %vm686, %v1151, %v1143
        %v1160 = vmul.f32 %v1152, %v692
        %v1161 = vmul.f32 %v1156, %v696
        %v1162 = vmul.f32 %v1153, %v692
        %v1163 = vmul.f32 %v1157, %v696
        %v1164 = vmul.f32 %v1154, %v692
        %v1165 = vmul.f32 %v1158, %v696
        %v1166 = vmul.f32 %v1155, %v692
        %v1167 = vmul.f32 %v1159, %v696
        %v1168 = vpack.c.bf16 %v1162, %v1160
        %v1169 = vpack.c.bf16 %v1163, %v1161
        %v1170 = vpack.c.bf16 %v1166, %v1164
        %v1171 = vpack.c.bf16 %v1167, %v1165
        %v1172 = vld [vmem:[%s3] sm:$0xff]
        %v1173 = vld [vmem:[%s3 + $0x8] sm:$0xf]
        %v1174 = vld [vmem:[%s3 + $0xc] sm:$0xff]
        %v1175 = vld [vmem:[%s3 + $0x14] sm:$0xf]
        %v1176 = vld [vmem:[%s3 + $0x18] sm:$0xff]
        %v1177 = vld [vmem:[%s3 + $0x20] sm:$0xf]
        %v1178 = vld [vmem:[%s3 + $0x24] sm:$0xff]
        %v1179 = vld [vmem:[%s3 + $0x2c] sm:$0xf]
        %v1188 = vunpack.c.l.b16 %v1172
        %v1189 = vunpack.c.h.b16 %v1172
        %v1190 = vunpack.c.l.b16 %v1173
        %v1191 = vunpack.c.l.b16 %v1174
        %v1192 = vunpack.c.h.b16 %v1174
        %v1193 = vunpack.c.l.b16 %v1175
        %v1194 = vunpack.c.l.b16 %v1176
        %v1195 = vunpack.c.h.b16 %v1176
        %v1196 = vunpack.c.l.b16 %v1177
        %v1197 = vunpack.c.l.b16 %v1178
        %v1198 = vunpack.c.h.b16 %v1178
        %v1199 = vunpack.c.l.b16 %v1179
        %v1200 = vpack.c.b16 %v1191, %v1188
        %v1201 = vpack.c.b16 %v1192, %v1189
        %v1202 = vpack.c.b16 %v1193, %v1190
        %v1203 = vpack.c.b16 %v1197, %v1194
        %v1204 = vpack.c.b16 %v1198, %v1195
        %v1205 = vpack.c.b16 %v1199, %v1196
        %vm1210 = vcmask 261120
        %v1212 = vsel %vm1210, %v1202, 0
        %v1215 = vsel %vm1210, %v1205, 0
        %1217 = vmatprep.subr.bf16.mxu0 %v913
        %1218 = vmatpush1.bf16.msra.mxu0 %v912
        %1219 = vmatprep.subr.bf16.mxu0 %v915
        %1220 = vmatpush1.bf16.msra.mxu0 %v914
        %1221 = vmatprep.subr.bf16.mxu0 %v949
        %1222 = vmatpush1.bf16.msra.mxu0 %v948
        %1223 = vmatprep.subr.bf16.mxu0 %v951
        %1224 = vmatpush1.bf16.msra.mxu0 %v950
        %1225 = vmatprep.subr.bf16.mxu0 %v985
        %1226 = vmatpush1.bf16.msra.mxu0 %v984
        %1227 = vmatprep.subr.bf16.mxu0 %v987
        %1228 = vmatpush1.bf16.msra.mxu0 %v986
        %1229 = vmatprep.subr.bf16.mxu0 %v1021
        %1230 = vmatpush1.bf16.msra.mxu0 %v1020
        %1231 = vmatprep.subr.bf16.mxu0 %v1023
        %1232 = vmatpush1.bf16.msra.mxu0 %v1022
        %1233 = vmatprep.subr.bf16.mxu0 %v1025
        %1234 = vmatpush1.bf16.msra.mxu0 %v1024
        %1235 = vmatprep.subr.bf16.mxu0 %v1027
        %1236 = vmatpush1.bf16.msra.mxu0 %v1026
        %1237 = vmatprep.subr.bf16.mxu0 %v1061
        %1238 = vmatpush1.bf16.msra.mxu0 %v1060
        %1239 = vmatprep.subr.bf16.mxu0 %v1063
        %1240 = vmatpush1.bf16.msra.mxu0 %v1062
        %1241 = vmatprep.subr.bf16.mxu0 %v1097
        %1242 = vmatpush1.bf16.msra.mxu0 %v1096
        %1243 = vmatprep.subr.bf16.mxu0 %v1099
        %1244 = vmatpush1.bf16.msra.mxu0 %v1098
        %1245 = vmatprep.subr.bf16.mxu0 %v1133
        %1246 = vmatpush1.bf16.msra.mxu0 %v1132
        %1247 = vmatprep.subr.bf16.mxu0 %v1135
        %1248 = vmatpush1.bf16.msra.mxu0 %v1134
        %1249 = vmatprep.mubr.bf16.mxu0 %v1201
        %1250 = vmatmul.mubr.bf16.gmra.mrb[0].mxu0 %v1200
        %v1251 = vpop.f32.mrb[0].mxu0
        %v1252 = vadd.f32 0.0, %v1251
        %v1253 = vpop.f32.mrb[0].mxu0
        %v1254 = vadd.f32 0.0, %v1253
        %v1255 = vpop.f32.mrb[0].mxu0
        %v1256 = vadd.f32 0.0, %v1255
        %v1257 = vpop.f32.mrb[0].mxu0
        %v1258 = vadd.f32 0.0, %v1257
        %1259 = vmatprep.mubr.bf16.mxu0 %v1204
        %1260 = vmatmul.mubr.bf16.gmra.mrb[0].mxu0 %v1203
        %v1261 = vpop.f32.mrb[0].mxu0
        %v1262 = vadd.f32 0.0, %v1261
        %v1263 = vpop.f32.mrb[0].mxu0
        %v1264 = vadd.f32 0.0, %v1263
        %v1265 = vpop.f32.mrb[0].mxu0
        %v1266 = vadd.f32 0.0, %v1265
        %v1267 = vpop.f32.mrb[0].mxu0
        %v1268 = vadd.f32 0.0, %v1267
        %1269 = vdwg.mxu0
        %1270 = vmatprep.subr.bf16.mxu0 %v1169
        %1271 = vmatpush1.bf16.msra.mxu0 %v1168
        %1272 = vmatprep.subr.bf16.mxu0 %v1171
        %1273 = vmatpush1.bf16.msra.mxu0 %v1170
        %1274 = vmatprep.subr.bf16.mxu0 0
        %1275 = vmatpush1.bf16.msra.mxu0 0
        %1276 = vmatprep.subr.bf16.mxu0 0
        %1277 = vmatpush1.bf16.msra.mxu0 0
        %1278 = vmatprep.subr.bf16.mxu0 0
        %1279 = vmatpush1.bf16.msra.mxu0 0
        %1280 = vmatprep.subr.bf16.mxu0 0
        %1281 = vmatpush1.bf16.msra.mxu0 0
        %1282 = vmatprep.subr.bf16.mxu0 0
        %1283 = vmatpush1.bf16.msra.mxu0 0
        %1284 = vmatprep.subr.bf16.mxu0 0
        %1285 = vmatpush1.bf16.msra.mxu0 0
        %1286 = vmatprep.subr.bf16.mxu0 0
        %1287 = vmatpush1.bf16.msra.mxu0 0
        %1288 = vmatprep.subr.bf16.mxu0 0
        %1289 = vmatpush1.bf16.msra.mxu0 0
        %1290 = vmatprep.subr.bf16.mxu0 0
        %1291 = vmatpush1.bf16.msra.mxu0 0
        %1292 = vmatprep.subr.bf16.mxu0 0
        %1293 = vmatpush1.bf16.msra.mxu0 0
        %1294 = vmatprep.subr.bf16.mxu0 0
        %1295 = vmatpush1.bf16.msra.mxu0 0
        %1296 = vmatprep.subr.bf16.mxu0 0
        %1297 = vmatpush1.bf16.msra.mxu0 0
        %1298 = vmatprep.subr.bf16.mxu0 0
        %1299 = vmatpush1.bf16.msra.mxu0 0
        %1300 = vmatprep.subr.bf16.mxu0 0
        %1301 = vmatpush1.bf16.msra.mxu0 0
        %1302 = vmatprep.mubr.bf16.mxu0 0
        %1303 = vmatmul.mubr.bf16.gmra.mrb[0].mxu0 %v1212
        %v1304 = vpop.f32.mrb[0].mxu0
        %v1305 = vadd.f32 %v1252, %v1304
        %v1306 = vpop.f32.mrb[0].mxu0
        %v1307 = vadd.f32 %v1254, %v1306
        %v1308 = vpop.f32.mrb[0].mxu0
        %v1309 = vadd.f32 %v1256, %v1308
        %v1310 = vpop.f32.mrb[0].mxu0
        %v1311 = vadd.f32 %v1258, %v1310
        %1312 = vmatprep.mubr.bf16.mxu0 0
        %1313 = vmatmul.mubr.bf16.gmra.mrb[0].mxu0 %v1215
        %v1314 = vpop.f32.mrb[0].mxu0
        %v1315 = vadd.f32 %v1262, %v1314
        %v1316 = vpop.f32.mrb[0].mxu0
        %v1317 = vadd.f32 %v1264, %v1316
        %v1318 = vpop.f32.mrb[0].mxu0
        %v1319 = vadd.f32 %v1266, %v1318
        %v1320 = vpop.f32.mrb[0].mxu0
        %v1321 = vadd.f32 %v1268, %v1320
        %1322 = vdwg.mxu0
        %v1323 = vadd.f32 %v842, %v1305
        %v1324 = vadd.f32 %v844, %v1307
        %v1325 = vadd.f32 %v846, %v1309
        %v1326 = vadd.f32 %v848, %v1311
        %v1327 = vadd.f32 %v852, %v1315
        %v1328 = vadd.f32 %v854, %v1317
        %v1329 = vadd.f32 %v856, %v1319
        %v1330 = vadd.f32 %v858, %v1321
        %v1331 = vld [vmem:[%s4] sm:$0xff]
        %v1332 = vld [vmem:[%s4 + $0x8] sm:$0xff]
        %v1333 = vld [vmem:[%s4 + $0x10] sm:$0xff]
        %v1334 = vld [vmem:[%s4 + $0x18] sm:$0xff]
        %1336 = vset.pattern.permute.xlu0 0
        %1337 = vperm.xlu0 %1336, %v1331
        %v1338 = vpop.permute.xlu0 %1337
        %1341 = vset.pattern.permute.xlu0 0
        %1342 = vperm.xlu0 %1341, %v1332
        %v1343 = vpop.permute.xlu0 %1342
        %1346 = vset.pattern.permute.xlu0 0
        %1347 = vperm.xlu0 %1346, %v1333
        %v1348 = vpop.permute.xlu0 %1347
        %1351 = vset.pattern.permute.xlu0 0
        %1352 = vperm.xlu0 %1351, %v1334
        %v1353 = vpop.permute.xlu0 %1352
        %v1355 = vadd.f32 %v1323, %v1338
        %v1356 = vadd.f32 %v1324, %v1338
        %v1357 = vadd.f32 %v1325, %v1343
        %v1358 = vadd.f32 %v1326, %v1343
        %v1359 = vadd.f32 %v1327, %v1348
        %v1360 = vadd.f32 %v1328, %v1348
        %v1361 = vadd.f32 %v1329, %v1353
        %v1362 = vadd.f32 %v1330, %v1353
        %v1363 = vxor.u32 %v1355, 2147483648
        %v1364 = vxor.u32 %v1356, 2147483648
        %v1365 = vxor.u32 %v1357, 2147483648
        %v1366 = vxor.u32 %v1358, 2147483648
        %v1367 = vxor.u32 %v1359, 2147483648
        %v1368 = vxor.u32 %v1360, 2147483648
        %v1369 = vxor.u32 %v1361, 2147483648
        %v1370 = vxor.u32 %v1362, 2147483648
        %v1371 = vmul.f32 %v1363, 1.442695
        %v1372 = vpow.pop %v1371
        %v1373 = vmul.f32 %v1364, 1.442695
        %v1374 = vpow.pop %v1373
        %v1375 = vmul.f32 %v1365, 1.442695
        %v1376 = vpow.pop %v1375
        %v1377 = vmul.f32 %v1366, 1.442695
        %v1378 = vpow.pop %v1377
        %v1379 = vmul.f32 %v1367, 1.442695
        %v1380 = vpow.pop %v1379
        %v1381 = vmul.f32 %v1368, 1.442695
        %v1382 = vpow.pop %v1381
        %v1383 = vmul.f32 %v1369, 1.442695
        %v1384 = vpow.pop %v1383
        %v1385 = vmul.f32 %v1370, 1.442695
        %v1386 = vpow.pop %v1385
        %v1387 = vadd.f32 %v1372, 1.0
        %v1388 = vadd.f32 %v1374, 1.0
        %v1389 = vadd.f32 %v1376, 1.0
        %v1390 = vadd.f32 %v1378, 1.0
        %v1391 = vadd.f32 %v1380, 1.0
        %v1392 = vadd.f32 %v1382, 1.0
        %v1393 = vadd.f32 %v1384, 1.0
        %v1394 = vadd.f32 %v1386, 1.0
        %v1395 = vrcp.pop %v1387
        %v1396 = vmul.f32 1.0, %v1395
        %v1397 = vrcp.pop %v1388
        %v1398 = vmul.f32 1.0, %v1397
        %v1399 = vrcp.pop %v1389
        %v1400 = vmul.f32 1.0, %v1399
        %v1401 = vrcp.pop %v1390
        %v1402 = vmul.f32 1.0, %v1401
        %v1403 = vrcp.pop %v1391
        %v1404 = vmul.f32 1.0, %v1403
        %v1405 = vrcp.pop %v1392
        %v1406 = vmul.f32 1.0, %v1405
        %v1407 = vrcp.pop %v1393
        %v1408 = vmul.f32 1.0, %v1407
        %v1409 = vrcp.pop %v1394
        %v1410 = vmul.f32 1.0, %v1409
        %v1411 = vld [vmem:[%s5] sm:$0xff]
        %v1412 = vld [vmem:[%s5 + $0x8] sm:$0xff]
        %v1413 = vld [vmem:[%s5 + $0x10] sm:$0xff]
        %v1414 = vld [vmem:[%s5 + $0x18] sm:$0xff]
        %1416 = vset.pattern.permute.xlu0 0
        %1417 = vperm.xlu0 %1416, %v1411
        %v1418 = vpop.permute.xlu0 %1417
        %1421 = vset.pattern.permute.xlu0 0
        %1422 = vperm.xlu0 %1421, %v1412
        %v1423 = vpop.permute.xlu0 %1422
        %1426 = vset.pattern.permute.xlu0 0
        %1427 = vperm.xlu0 %1426, %v1413
        %v1428 = vpop.permute.xlu0 %1427
        %1431 = vset.pattern.permute.xlu0 0
        %1432 = vperm.xlu0 %1431, %v1414
        %v1433 = vpop.permute.xlu0 %1432
        %v1435 = vadd.f32 %v862, %v1418
        %v1436 = vadd.f32 %v864, %v1418
        %v1437 = vadd.f32 %v866, %v1423
        %v1438 = vadd.f32 %v868, %v1423
        %v1439 = vadd.f32 %v872, %v1428
        %v1440 = vadd.f32 %v874, %v1428
        %v1441 = vadd.f32 %v876, %v1433
        %v1442 = vadd.f32 %v878, %v1433
        %v1443 = vtanh.pop %v1435
        %v1444 = vtanh.pop %v1436
        %v1445 = vtanh.pop %v1437
        %v1446 = vtanh.pop %v1438
        %v1447 = vtanh.pop %v1439
        %v1448 = vtanh.pop %v1440
        %v1449 = vtanh.pop %v1441
        %v1450 = vtanh.pop %v1442
        %v1451 = vsub.f32 %v1443, %v534
        %v1452 = vsub.f32 %v1444, %v535
        %v1453 = vsub.f32 %v1445, %v536
        %v1454 = vsub.f32 %v1446, %v537
        %v1455 = vsub.f32 %v1447, %v538
        %v1456 = vsub.f32 %v1448, %v539
        %v1457 = vsub.f32 %v1449, %v540
        %v1458 = vsub.f32 %v1450, %v541
        %v1459 = vmul.f32 %v1396, %v1451
        %v1460 = vmul.f32 %v1398, %v1452
        %v1461 = vmul.f32 %v1400, %v1453
        %v1462 = vmul.f32 %v1402, %v1454
        %v1463 = vmul.f32 %v1404, %v1455
        %v1464 = vmul.f32 %v1406, %v1456
        %v1465 = vmul.f32 %v1408, %v1457
        %v1466 = vmul.f32 %v1410, %v1458
        %v1467 = vadd.f32 %v534, %v1459
        %v1468 = vadd.f32 %v535, %v1460
        %v1469 = vadd.f32 %v536, %v1461
        %v1470 = vadd.f32 %v537, %v1462
        %v1471 = vadd.f32 %v538, %v1463
        %v1472 = vadd.f32 %v539, %v1464
        %v1473 = vadd.f32 %v540, %v1465
        %v1474 = vadd.f32 %v541, %v1466
        %v1475 = vtanh.pop %v1467
        %v1476 = vtanh.pop %v1468
        %v1477 = vtanh.pop %v1469
        %v1478 = vtanh.pop %v1470
        %v1479 = vtanh.pop %v1471
        %v1480 = vtanh.pop %v1472
        %v1481 = vtanh.pop %v1473
        %v1482 = vtanh.pop %v1474
        %1483 = vst [vmem:[#allocation2] sm:$0xff] %v1475
        %1484 = vst [vmem:[#allocation2 + $0x8] sm:$0xff] %v1476
        %1485 = vst [vmem:[#allocation2 + $0x10] sm:$0xff] %v1477
        %1486 = vst [vmem:[#allocation2 + $0x18] sm:$0xff] %v1478
        %1487 = vst [vmem:[#allocation2 + $0x20] sm:$0xff] %v1479
        %1488 = vst [vmem:[#allocation2 + $0x28] sm:$0xff] %v1480
        %1489 = vst [vmem:[#allocation2 + $0x30] sm:$0xff] %v1481
        %1490 = vst [vmem:[#allocation2 + $0x38] sm:$0xff] %v1482
        %s1491 = scalar_lea.vmem [#allocation2], 64
        %v1492 = vld [vmem:[%s1491] sm:$0xff]
        %v1493 = vld [vmem:[%s1491 + $0x8] sm:$0xff]
        %v1494 = vld [vmem:[%s1491 + $0x10] sm:$0xff]
        %v1495 = vld [vmem:[%s1491 + $0x18] sm:$0xff]
        %v1496 = vld [vmem:[%s1491 + $0x20] sm:$0xff]
        %v1497 = vld [vmem:[%s1491 + $0x28] sm:$0xff]
        %v1498 = vld [vmem:[%s1491 + $0x30] sm:$0xff]
        %v1499 = vld [vmem:[%s1491 + $0x38] sm:$0xff]
        %1500 = vrot.lane.b32.xlu0 %v1475, 17
        %v1501 = vpop.permute.xlu0 %1500
        %1502 = vrot.lane.b32.xlu0 %v1477, 17
        %v1503 = vpop.permute.xlu0 %1502
        %1504 = vrot.lane.b32.xlu0 %v1479, 17
        %v1505 = vpop.permute.xlu0 %1504
        %1506 = vrot.lane.b32.xlu0 %v1481, 17
        %v1507 = vpop.permute.xlu0 %1506
        %1508 = vrot.lane.b32.xlu0 %v1476, 17
        %v1509 = vpop.permute.xlu0 %1508
        %1510 = vrot.lane.b32.xlu0 %v1478, 17
        %v1511 = vpop.permute.xlu0 %1510
        %1512 = vrot.lane.b32.xlu0 %v1480, 17
        %v1513 = vpop.permute.xlu0 %1512
        %1514 = vrot.lane.b32.xlu0 %v1482, 17
        %v1515 = vpop.permute.xlu0 %1514
        %v1516 = vsel %vm551, %v1501, %v1509
        %v1517 = vsel %vm551, %v1503, %v1511
        %v1518 = vsel %vm551, %v1505, %v1513
        %v1519 = vsel %vm551, %v1507, %v1515
        %v1520 = vsel %vm551, %v1509, %v1501
        %v1521 = vsel %vm551, %v1511, %v1503
        %v1522 = vsel %vm551, %v1513, %v1505
        %v1523 = vsel %vm551, %v1515, %v1507
        %v1524 = vmul.f32 %v1520, %v557
        %v1525 = vmul.f32 %v1516, %v561
        %v1526 = vmul.f32 %v1521, %v557
        %v1527 = vmul.f32 %v1517, %v561
        %v1528 = vmul.f32 %v1522, %v557
        %v1529 = vmul.f32 %v1518, %v561
        %v1530 = vmul.f32 %v1523, %v557
        %v1531 = vmul.f32 %v1519, %v561
        %v1532 = vpack.c.bf16 %v1526, %v1524
        %v1533 = vpack.c.bf16 %v1527, %v1525
        %v1534 = vpack.c.bf16 %v1530, %v1528
        %v1535 = vpack.c.bf16 %v1531, %v1529
        %1536 = vrot.lane.b32.xlu0 %v1475, 16
        %v1537 = vpop.permute.xlu0 %1536
        %1538 = vrot.lane.b32.xlu0 %v1477, 16
        %v1539 = vpop.permute.xlu0 %1538
        %1540 = vrot.lane.b32.xlu0 %v1479, 16
        %v1541 = vpop.permute.xlu0 %1540
        %1542 = vrot.lane.b32.xlu0 %v1481, 16
        %v1543 = vpop.permute.xlu0 %1542
        %1544 = vrot.lane.b32.xlu0 %v1476, 16
        %v1545 = vpop.permute.xlu0 %1544
        %1546 = vrot.lane.b32.xlu0 %v1478, 16
        %v1547 = vpop.permute.xlu0 %1546
        %1548 = vrot.lane.b32.xlu0 %v1480, 16
        %v1549 = vpop.permute.xlu0 %1548
        %1550 = vrot.lane.b32.xlu0 %v1482, 16
        %v1551 = vpop.permute.xlu0 %1550
        %v1552 = vsel %vm570, %v1537, %v1545
        %v1553 = vsel %vm570, %v1539, %v1547
        %v1554 = vsel %vm570, %v1541, %v1549
        %v1555 = vsel %vm570, %v1543, %v1551
        %v1556 = vsel %vm570, %v1545, %v1537
        %v1557 = vsel %vm570, %v1547, %v1539
        %v1558 = vsel %vm570, %v1549, %v1541
        %v1559 = vsel %vm570, %v1551, %v1543
        %v1560 = vmul.f32 %v1556, %v576
        %v1561 = vmul.f32 %v1552, %v580
        %v1562 = vmul.f32 %v1557, %v576
        %v1563 = vmul.f32 %v1553, %v580
        %v1564 = vmul.f32 %v1558, %v576
        %v1565 = vmul.f32 %v1554, %v580
        %v1566 = vmul.f32 %v1559, %v576
        %v1567 = vmul.f32 %v1555, %v580
        %v1568 = vpack.c.bf16 %v1562, %v1560
        %v1569 = vpack.c.bf16 %v1563, %v1561
        %v1570 = vpack.c.bf16 %v1566, %v1564
        %v1571 = vpack.c.bf16 %v1567, %v1565
        %1572 = vrot.lane.b32.xlu0 %v1475, 15
        %v1573 = vpop.permute.xlu0 %1572
        %1574 = vrot.lane.b32.xlu0 %v1477, 15
        %v1575 = vpop.permute.xlu0 %1574
        %1576 = vrot.lane.b32.xlu0 %v1479, 15
        %v1577 = vpop.permute.xlu0 %1576
        %1578 = vrot.lane.b32.xlu0 %v1481, 15
        %v1579 = vpop.permute.xlu0 %1578
        %1580 = vrot.lane.b32.xlu0 %v1476, 15
        %v1581 = vpop.permute.xlu0 %1580
        %1582 = vrot.lane.b32.xlu0 %v1478, 15
        %v1583 = vpop.permute.xlu0 %1582
        %1584 = vrot.lane.b32.xlu0 %v1480, 15
        %v1585 = vpop.permute.xlu0 %1584
        %1586 = vrot.lane.b32.xlu0 %v1482, 15
        %v1587 = vpop.permute.xlu0 %1586
        %v1588 = vsel %vm589, %v1573, %v1581
        %v1589 = vsel %vm589, %v1575, %v1583
        %v1590 = vsel %vm589, %v1577, %v1585
        %v1591 = vsel %vm589, %v1579, %v1587
        %v1592 = vsel %vm589, %v1581, %v1573
        %v1593 = vsel %vm589, %v1583, %v1575
        %v1594 = vsel %vm589, %v1585, %v1577
        %v1595 = vsel %vm589, %v1587, %v1579
        %v1596 = vmul.f32 %v1592, %v595
        %v1597 = vmul.f32 %v1588, %v599
        %v1598 = vmul.f32 %v1593, %v595
        %v1599 = vmul.f32 %v1589, %v599
        %v1600 = vmul.f32 %v1594, %v595
        %v1601 = vmul.f32 %v1590, %v599
        %v1602 = vmul.f32 %v1595, %v595
        %v1603 = vmul.f32 %v1591, %v599
        %v1604 = vpack.c.bf16 %v1598, %v1596
        %v1605 = vpack.c.bf16 %v1599, %v1597
        %v1606 = vpack.c.bf16 %v1602, %v1600
        %v1607 = vpack.c.bf16 %v1603, %v1601
        %1608 = vrot.lane.b32.xlu0 %v1475, 1
        %v1609 = vpop.permute.xlu0 %1608
        %1610 = vrot.lane.b32.xlu0 %v1477, 1
        %v1611 = vpop.permute.xlu0 %1610
        %1612 = vrot.lane.b32.xlu0 %v1479, 1
        %v1613 = vpop.permute.xlu0 %1612
        %1614 = vrot.lane.b32.xlu0 %v1481, 1
        %v1615 = vpop.permute.xlu0 %1614
        %1616 = vrot.lane.b32.xlu0 %v1476, 1
        %v1617 = vpop.permute.xlu0 %1616
        %1618 = vrot.lane.b32.xlu0 %v1478, 1
        %v1619 = vpop.permute.xlu0 %1618
        %1620 = vrot.lane.b32.xlu0 %v1480, 1
        %v1621 = vpop.permute.xlu0 %1620
        %1622 = vrot.lane.b32.xlu0 %v1482, 1
        %v1623 = vpop.permute.xlu0 %1622
        %v1624 = vsel %vm608, %v1609, %v1617
        %v1625 = vsel %vm608, %v1611, %v1619
        %v1626 = vsel %vm608, %v1613, %v1621
        %v1627 = vsel %vm608, %v1615, %v1623
        %v1628 = vsel %vm608, %v1617, %v1609
        %v1629 = vsel %vm608, %v1619, %v1611
        %v1630 = vsel %vm608, %v1621, %v1613
        %v1631 = vsel %vm608, %v1623, %v1615
        %v1632 = vmul.f32 %v1628, %v614
        %v1633 = vmul.f32 %v1624, %v618
        %v1634 = vmul.f32 %v1629, %v614
        %v1635 = vmul.f32 %v1625, %v618
        %v1636 = vmul.f32 %v1630, %v614
        %v1637 = vmul.f32 %v1626, %v618
        %v1638 = vmul.f32 %v1631, %v614
        %v1639 = vmul.f32 %v1627, %v618
        %v1640 = vpack.c.bf16 %v1634, %v1632
        %v1641 = vpack.c.bf16 %v1635, %v1633
        %v1642 = vpack.c.bf16 %v1638, %v1636
        %v1643 = vpack.c.bf16 %v1639, %v1637
        %v1644 = vpack.c.bf16 %v1477, %v1475
        %v1645 = vpack.c.bf16 %v1478, %v1476
        %v1646 = vpack.c.bf16 %v1481, %v1479
        %v1647 = vpack.c.bf16 %v1482, %v1480
        %1648 = vrot.lane.b32.xlu0 %v1475, 127
        %v1649 = vpop.permute.xlu0 %1648
        %1650 = vrot.lane.b32.xlu0 %v1477, 127
        %v1651 = vpop.permute.xlu0 %1650
        %1652 = vrot.lane.b32.xlu0 %v1479, 127
        %v1653 = vpop.permute.xlu0 %1652
        %1654 = vrot.lane.b32.xlu0 %v1481, 127
        %v1655 = vpop.permute.xlu0 %1654
        %1656 = vrot.lane.b32.xlu0 %v1476, 127
        %v1657 = vpop.permute.xlu0 %1656
        %1658 = vrot.lane.b32.xlu0 %v1478, 127
        %v1659 = vpop.permute.xlu0 %1658
        %1660 = vrot.lane.b32.xlu0 %v1480, 127
        %v1661 = vpop.permute.xlu0 %1660
        %1662 = vrot.lane.b32.xlu0 %v1482, 127
        %v1663 = vpop.permute.xlu0 %1662
        %v1664 = vsel %vm629, %v1649, %v1657
        %v1665 = vsel %vm629, %v1651, %v1659
        %v1666 = vsel %vm629, %v1653, %v1661
        %v1667 = vsel %vm629, %v1655, %v1663
        %v1668 = vsel %vm629, %v1657, %v1649
        %v1669 = vsel %vm629, %v1659, %v1651
        %v1670 = vsel %vm629, %v1661, %v1653
        %v1671 = vsel %vm629, %v1663, %v1655
        %v1672 = vmul.f32 %v1664, %v635
        %v1673 = vmul.f32 %v1668, %v639
        %v1674 = vmul.f32 %v1665, %v635
        %v1675 = vmul.f32 %v1669, %v639
        %v1676 = vmul.f32 %v1666, %v635
        %v1677 = vmul.f32 %v1670, %v639
        %v1678 = vmul.f32 %v1667, %v635
        %v1679 = vmul.f32 %v1671, %v639
        %v1680 = vpack.c.bf16 %v1674, %v1672
        %v1681 = vpack.c.bf16 %v1675, %v1673
        %v1682 = vpack.c.bf16 %v1678, %v1676
        %v1683 = vpack.c.bf16 %v1679, %v1677
        %1684 = vrot.lane.b32.xlu0 %v1475, 113
        %v1685 = vpop.permute.xlu0 %1684
        %1686 = vrot.lane.b32.xlu0 %v1477, 113
        %v1687 = vpop.permute.xlu0 %1686
        %1688 = vrot.lane.b32.xlu0 %v1479, 113
        %v1689 = vpop.permute.xlu0 %1688
        %1690 = vrot.lane.b32.xlu0 %v1481, 113
        %v1691 = vpop.permute.xlu0 %1690
        %1692 = vrot.lane.b32.xlu0 %v1476, 113
        %v1693 = vpop.permute.xlu0 %1692
        %1694 = vrot.lane.b32.xlu0 %v1478, 113
        %v1695 = vpop.permute.xlu0 %1694
        %1696 = vrot.lane.b32.xlu0 %v1480, 113
        %v1697 = vpop.permute.xlu0 %1696
        %1698 = vrot.lane.b32.xlu0 %v1482, 113
        %v1699 = vpop.permute.xlu0 %1698
        %v1700 = vsel %vm648, %v1685, %v1693
        %v1701 = vsel %vm648, %v1687, %v1695
        %v1702 = vsel %vm648, %v1689, %v1697
        %v1703 = vsel %vm648, %v1691, %v1699
        %v1704 = vsel %vm648, %v1693, %v1685
        %v1705 = vsel %vm648, %v1695, %v1687
        %v1706 = vsel %vm648, %v1697, %v1689
        %v1707 = vsel %vm648, %v1699, %v1691
        %v1708 = vmul.f32 %v1700, %v654
        %v1709 = vmul.f32 %v1704, %v658
        %v1710 = vmul.f32 %v1701, %v654
        %v1711 = vmul.f32 %v1705, %v658
        %v1712 = vmul.f32 %v1702, %v654
        %v1713 = vmul.f32 %v1706, %v658
        %v1714 = vmul.f32 %v1703, %v654
        %v1715 = vmul.f32 %v1707, %v658
        %v1716 = vpack.c.bf16 %v1710, %v1708
        %v1717 = vpack.c.bf16 %v1711, %v1709
        %v1718 = vpack.c.bf16 %v1714, %v1712
        %v1719 = vpack.c.bf16 %v1715, %v1713
        %1720 = vrot.lane.b32.xlu0 %v1475, 112
        %v1721 = vpop.permute.xlu0 %1720
        %1722 = vrot.lane.b32.xlu0 %v1477, 112
        %v1723 = vpop.permute.xlu0 %1722
        %1724 = vrot.lane.b32.xlu0 %v1479, 112
        %v1725 = vpop.permute.xlu0 %1724
        %1726 = vrot.lane.b32.xlu0 %v1481, 112
        %v1727 = vpop.permute.xlu0 %1726
        %1728 = vrot.lane.b32.xlu0 %v1476, 112
        %v1729 = vpop.permute.xlu0 %1728
        %1730 = vrot.lane.b32.xlu0 %v1478, 112
        %v1731 = vpop.permute.xlu0 %1730
        %1732 = vrot.lane.b32.xlu0 %v1480, 112
        %v1733 = vpop.permute.xlu0 %1732
        %1734 = vrot.lane.b32.xlu0 %v1482, 112
        %v1735 = vpop.permute.xlu0 %1734
        %v1736 = vsel %vm667, %v1721, %v1729
        %v1737 = vsel %vm667, %v1723, %v1731
        %v1738 = vsel %vm667, %v1725, %v1733
        %v1739 = vsel %vm667, %v1727, %v1735
        %v1740 = vsel %vm667, %v1729, %v1721
        %v1741 = vsel %vm667, %v1731, %v1723
        %v1742 = vsel %vm667, %v1733, %v1725
        %v1743 = vsel %vm667, %v1735, %v1727
        %v1744 = vmul.f32 %v1736, %v673
        %v1745 = vmul.f32 %v1740, %v677
        %v1746 = vmul.f32 %v1737, %v673
        %v1747 = vmul.f32 %v1741, %v677
        %v1748 = vmul.f32 %v1738, %v673
        %v1749 = vmul.f32 %v1742, %v677
        %v1750 = vmul.f32 %v1739, %v673
        %v1751 = vmul.f32 %v1743, %v677
        %v1752 = vpack.c.bf16 %v1746, %v1744
        %v1753 = vpack.c.bf16 %v1747, %v1745
        %v1754 = vpack.c.bf16 %v1750, %v1748
        %v1755 = vpack.c.bf16 %v1751, %v1749
        %1756 = vrot.lane.b32.xlu0 %v1475, 111
        %v1757 = vpop.permute.xlu0 %1756
        %1758 = vrot.lane.b32.xlu0 %v1477, 111
        %v1759 = vpop.permute.xlu0 %1758
        %1760 = vrot.lane.b32.xlu0 %v1479, 111
        %v1761 = vpop.permute.xlu0 %1760
        %1762 = vrot.lane.b32.xlu0 %v1481, 111
        %v1763 = vpop.permute.xlu0 %1762
        %1764 = vrot.lane.b32.xlu0 %v1476, 111
        %v1765 = vpop.permute.xlu0 %1764
        %1766 = vrot.lane.b32.xlu0 %v1478, 111
        %v1767 = vpop.permute.xlu0 %1766
        %1768 = vrot.lane.b32.xlu0 %v1480, 111
        %v1769 = vpop.permute.xlu0 %1768
        %1770 = vrot.lane.b32.xlu0 %v1482, 111
        %v1771 = vpop.permute.xlu0 %1770
        %v1772 = vsel %vm686, %v1757, %v1765
        %v1773 = vsel %vm686, %v1759, %v1767
        %v1774 = vsel %vm686, %v1761, %v1769
        %v1775 = vsel %vm686, %v1763, %v1771
        %v1776 = vsel %vm686, %v1765, %v1757
        %v1777 = vsel %vm686, %v1767, %v1759
        %v1778 = vsel %vm686, %v1769, %v1761
        %v1779 = vsel %vm686, %v1771, %v1763
        %v1780 = vmul.f32 %v1772, %v692
        %v1781 = vmul.f32 %v1776, %v696
        %v1782 = vmul.f32 %v1773, %v692
        %v1783 = vmul.f32 %v1777, %v696
        %v1784 = vmul.f32 %v1774, %v692
        %v1785 = vmul.f32 %v1778, %v696
        %v1786 = vmul.f32 %v1775, %v692
        %v1787 = vmul.f32 %v1779, %v696
        %v1788 = vpack.c.bf16 %v1782, %v1780
        %v1789 = vpack.c.bf16 %v1783, %v1781
        %v1790 = vpack.c.bf16 %v1786, %v1784
        %v1791 = vpack.c.bf16 %v1787, %v1785
        %v1792 = vld [vmem:[%s6] sm:$0xff]
        %v1793 = vld [vmem:[%s6 + $0x8] sm:$0xf]
        %v1794 = vld [vmem:[%s6 + $0xc] sm:$0xff]
        %v1795 = vld [vmem:[%s6 + $0x14] sm:$0xf]
        %v1796 = vld [vmem:[%s6 + $0x18] sm:$0xff]
        %v1797 = vld [vmem:[%s6 + $0x20] sm:$0xf]
        %v1798 = vld [vmem:[%s6 + $0x24] sm:$0xff]
        %v1799 = vld [vmem:[%s6 + $0x2c] sm:$0xf]
        %v1800 = vld [vmem:[%s6 + $0x30] sm:$0xff]
        %v1801 = vld [vmem:[%s6 + $0x38] sm:$0xf]
        %v1802 = vld [vmem:[%s6 + $0x3c] sm:$0xff]
        %v1803 = vld [vmem:[%s6 + $0x44] sm:$0xf]
        %v1804 = vld [vmem:[%s6 + $0x48] sm:$0xff]
        %v1805 = vld [vmem:[%s6 + $0x50] sm:$0xf]
        %v1806 = vld [vmem:[%s6 + $0x54] sm:$0xff]
        %v1807 = vld [vmem:[%s6 + $0x5c] sm:$0xf]
        %v1824 = vunpack.c.l.b16 %v1792
        %v1825 = vunpack.c.h.b16 %v1792
        %v1826 = vunpack.c.l.b16 %v1793
        %v1827 = vunpack.c.l.b16 %v1794
        %v1828 = vunpack.c.h.b16 %v1794
        %v1829 = vunpack.c.l.b16 %v1795
        %v1830 = vunpack.c.l.b16 %v1796
        %v1831 = vunpack.c.h.b16 %v1796
        %v1832 = vunpack.c.l.b16 %v1797
        %v1833 = vunpack.c.l.b16 %v1798
        %v1834 = vunpack.c.h.b16 %v1798
        %v1835 = vunpack.c.l.b16 %v1799
        %v1836 = vunpack.c.l.b16 %v1800
        %v1837 = vunpack.c.h.b16 %v1800
        %v1838 = vunpack.c.l.b16 %v1801
        %v1839 = vunpack.c.l.b16 %v1802
        %v1840 = vunpack.c.h.b16 %v1802
        %v1841 = vunpack.c.l.b16 %v1803
        %v1842 = vunpack.c.l.b16 %v1804
        %v1843 = vunpack.c.h.b16 %v1804
        %v1844 = vunpack.c.l.b16 %v1805
        %v1845 = vunpack.c.l.b16 %v1806
        %v1846 = vunpack.c.h.b16 %v1806
        %v1847 = vunpack.c.l.b16 %v1807
        %v1848 = vpack.c.b16 %v1827, %v1824
        %v1849 = vpack.c.b16 %v1828, %v1825
        %v1850 = vpack.c.b16 %v1829, %v1826
        %v1851 = vpack.c.b16 %v1833, %v1830
        %v1852 = vpack.c.b16 %v1834, %v1831
        %v1853 = vpack.c.b16 %v1835, %v1832
        %v1854 = vpack.c.b16 %v1839, %v1836
        %v1855 = vpack.c.b16 %v1840, %v1837
        %v1856 = vpack.c.b16 %v1841, %v1838
        %v1857 = vpack.c.b16 %v1845, %v1842
        %v1858 = vpack.c.b16 %v1846, %v1843
        %v1859 = vpack.c.b16 %v1847, %v1844
        %v1869 = vsel %vm1210, %v1850, 0
        %v1872 = vsel %vm1210, %v1853, 0
        %v1875 = vsel %vm1210, %v1856, 0
        %v1878 = vsel %vm1210, %v1859, 0
        %1880 = vmatprep.subr.bf16.mxu0 %v1533
        %1881 = vmatpush1.bf16.msra.mxu0 %v1532
        %1882 = vmatprep.subr.bf16.mxu0 %v1535
        %1883 = vmatpush1.bf16.msra.mxu0 %v1534
        %1884 = vmatprep.subr.bf16.mxu0 %v1569
        %1885 = vmatpush1.bf16.msra.mxu0 %v1568
        %1886 = vmatprep.subr.bf16.mxu0 %v1571
        %1887 = vmatpush1.bf16.msra.mxu0 %v1570
        %1888 = vmatprep.subr.bf16.mxu0 %v1605
        %1889 = vmatpush1.bf16.msra.mxu0 %v1604
        %1890 = vmatprep.subr.bf16.mxu0 %v1607
        %1891 = vmatpush1.bf16.msra.mxu0 %v1606
        %1892 = vmatprep.subr.bf16.mxu0 %v1641
        %1893 = vmatpush1.bf16.msra.mxu0 %v1640
        %1894 = vmatprep.subr.bf16.mxu0 %v1643
        %1895 = vmatpush1.bf16.msra.mxu0 %v1642
        %1896 = vmatprep.subr.bf16.mxu0 %v1645
        %1897 = vmatpush1.bf16.msra.mxu0 %v1644
        %1898 = vmatprep.subr.bf16.mxu0 %v1647
        %1899 = vmatpush1.bf16.msra.mxu0 %v1646
        %1900 = vmatprep.subr.bf16.mxu0 %v1681
        %1901 = vmatpush1.bf16.msra.mxu0 %v1680
        %1902 = vmatprep.subr.bf16.mxu0 %v1683
        %1903 = vmatpush1.bf16.msra.mxu0 %v1682
        %1904 = vmatprep.subr.bf16.mxu0 %v1717
        %1905 = vmatpush1.bf16.msra.mxu0 %v1716
        %1906 = vmatprep.subr.bf16.mxu0 %v1719
        %1907 = vmatpush1.bf16.msra.mxu0 %v1718
        %1908 = vmatprep.subr.bf16.mxu0 %v1753
        %1909 = vmatpush1.bf16.msra.mxu0 %v1752
        %1910 = vmatprep.subr.bf16.mxu0 %v1755
        %1911 = vmatpush1.bf16.msra.mxu0 %v1754
        %1912 = vmatprep.mubr.bf16.mxu0 %v1849
        %1913 = vmatmul.mubr.bf16.gmra.mrb[0].mxu0 %v1848
        %v1914 = vpop.f32.mrb[0].mxu0
        %v1915 = vadd.f32 0.0, %v1914
        %v1916 = vpop.f32.mrb[0].mxu0
        %v1917 = vadd.f32 0.0, %v1916
        %v1918 = vpop.f32.mrb[0].mxu0
        %v1919 = vadd.f32 0.0, %v1918
        %v1920 = vpop.f32.mrb[0].mxu0
        %v1921 = vadd.f32 0.0, %v1920
        %1922 = vmatprep.mubr.bf16.mxu0 %v1852
        %1923 = vmatmul.mubr.bf16.gmra.mrb[0].mxu0 %v1851
        %v1924 = vpop.f32.mrb[0].mxu0
        %v1925 = vadd.f32 0.0, %v1924
        %v1926 = vpop.f32.mrb[0].mxu0
        %v1927 = vadd.f32 0.0, %v1926
        %v1928 = vpop.f32.mrb[0].mxu0
        %v1929 = vadd.f32 0.0, %v1928
        %v1930 = vpop.f32.mrb[0].mxu0
        %v1931 = vadd.f32 0.0, %v1930
        %1932 = vmatprep.mubr.bf16.mxu0 %v1855
        %1933 = vmatmul.mubr.bf16.gmra.mrb[0].mxu0 %v1854
        %v1934 = vpop.f32.mrb[0].mxu0
        %v1935 = vadd.f32 0.0, %v1934
        %v1936 = vpop.f32.mrb[0].mxu0
        %v1937 = vadd.f32 0.0, %v1936
        %v1938 = vpop.f32.mrb[0].mxu0
        %v1939 = vadd.f32 0.0, %v1938
        %v1940 = vpop.f32.mrb[0].mxu0
        %v1941 = vadd.f32 0.0, %v1940
        %1942 = vmatprep.mubr.bf16.mxu0 %v1858
        %1943 = vmatmul.mubr.bf16.gmra.mrb[0].mxu0 %v1857
        %v1944 = vpop.f32.mrb[0].mxu0
        %v1945 = vadd.f32 0.0, %v1944
        %v1946 = vpop.f32.mrb[0].mxu0
        %v1947 = vadd.f32 0.0, %v1946
        %v1948 = vpop.f32.mrb[0].mxu0
        %v1949 = vadd.f32 0.0, %v1948
        %v1950 = vpop.f32.mrb[0].mxu0
        %v1951 = vadd.f32 0.0, %v1950
        %1952 = vdwg.mxu0
        %1953 = vmatprep.subr.bf16.mxu0 %v1789
        %1954 = vmatpush1.bf16.msra.mxu0 %v1788
        %1955 = vmatprep.subr.bf16.mxu0 %v1791
        %1956 = vmatpush1.bf16.msra.mxu0 %v1790
        %1957 = vmatprep.subr.bf16.mxu0 0
        %1958 = vmatpush1.bf16.msra.mxu0 0
        %1959 = vmatprep.subr.bf16.mxu0 0
        %1960 = vmatpush1.bf16.msra.mxu0 0
        %1961 = vmatprep.subr.bf16.mxu0 0
        %1962 = vmatpush1.bf16.msra.mxu0 0
        %1963 = vmatprep.subr.bf16.mxu0 0
        %1964 = vmatpush1.bf16.msra.mxu0 0
        %1965 = vmatprep.subr.bf16.mxu0 0
        %1966 = vmatpush1.bf16.msra.mxu0 0
        %1967 = vmatprep.subr.bf16.mxu0 0
        %1968 = vmatpush1.bf16.msra.mxu0 0
        %1969 = vmatprep.subr.bf16.mxu0 0
        %1970 = vmatpush1.bf16.msra.mxu0 0
        %1971 = vmatprep.subr.bf16.mxu0 0
        %1972 = vmatpush1.bf16.msra.mxu0 0
        %1973 = vmatprep.subr.bf16.mxu0 0
        %1974 = vmatpush1.bf16.msra.mxu0 0
        %1975 = vmatprep.subr.bf16.mxu0 0
        %1976 = vmatpush1.bf16.msra.mxu0 0
        %1977 = vmatprep.subr.bf16.mxu0 0
        %1978 = vmatpush1.bf16.msra.mxu0 0
        %1979 = vmatprep.subr.bf16.mxu0 0
        %1980 = vmatpush1.bf16.msra.mxu0 0
        %1981 = vmatprep.subr.bf16.mxu0 0
        %1982 = vmatpush1.bf16.msra.mxu0 0
        %1983 = vmatprep.subr.bf16.mxu0 0
        %1984 = vmatpush1.bf16.msra.mxu0 0
        %1985 = vmatprep.mubr.bf16.mxu0 0
        %1986 = vmatmul.mubr.bf16.gmra.mrb[0].mxu0 %v1869
        %v1987 = vpop.f32.mrb[0].mxu0
        %v1988 = vadd.f32 %v1915, %v1987
        %v1989 = vpop.f32.mrb[0].mxu0
        %v1990 = vadd.f32 %v1917, %v1989
        %v1991 = vpop.f32.mrb[0].mxu0
        %v1992 = vadd.f32 %v1919, %v1991
        %v1993 = vpop.f32.mrb[0].mxu0
        %v1994 = vadd.f32 %v1921, %v1993
        %1995 = vmatprep.mubr.bf16.mxu0 0
        %1996 = vmatmul.mubr.bf16.gmra.mrb[0].mxu0 %v1872
        %v1997 = vpop.f32.mrb[0].mxu0
        %v1998 = vadd.f32 %v1925, %v1997
        %v1999 = vpop.f32.mrb[0].mxu0
        %v2000 = vadd.f32 %v1927, %v1999
        %v2001 = vpop.f32.mrb[0].mxu0
        %v2002 = vadd.f32 %v1929, %v2001
        %v2003 = vpop.f32.mrb[0].mxu0
        %v2004 = vadd.f32 %v1931, %v2003
        %2005 = vmatprep.mubr.bf16.mxu0 0
        %2006 = vmatmul.mubr.bf16.gmra.mrb[0].mxu0 %v1875
        %v2007 = vpop.f32.mrb[0].mxu0
        %v2008 = vadd.f32 %v1935, %v2007
        %v2009 = vpop.f32.mrb[0].mxu0
        %v2010 = vadd.f32 %v1937, %v2009
        %v2011 = vpop.f32.mrb[0].mxu0
        %v2012 = vadd.f32 %v1939, %v2011
        %v2013 = vpop.f32.mrb[0].mxu0
        %v2014 = vadd.f32 %v1941, %v2013
        %2015 = vmatprep.mubr.bf16.mxu0 0
        %2016 = vmatmul.mubr.bf16.gmra.mrb[0].mxu0 %v1878
        %v2017 = vpop.f32.mrb[0].mxu0
        %v2018 = vadd.f32 %v1945, %v2017
        %v2019 = vpop.f32.mrb[0].mxu0
        %v2020 = vadd.f32 %v1947, %v2019
        %v2021 = vpop.f32.mrb[0].mxu0
        %v2022 = vadd.f32 %v1949, %v2021
        %v2023 = vpop.f32.mrb[0].mxu0
        %v2024 = vadd.f32 %v1951, %v2023
        %2025 = vdwg.mxu0
        %2026 = vrot.lane.b32.xlu0 %v1492, 17
        %v2027 = vpop.permute.xlu0 %2026
        %2028 = vrot.lane.b32.xlu0 %v1494, 17
        %v2029 = vpop.permute.xlu0 %2028
        %2030 = vrot.lane.b32.xlu0 %v1496, 17
        %v2031 = vpop.permute.xlu0 %2030
        %2032 = vrot.lane.b32.xlu0 %v1498, 17
        %v2033 = vpop.permute.xlu0 %2032
        %2034 = vrot.lane.b32.xlu0 %v1493, 17
        %v2035 = vpop.permute.xlu0 %2034
        %2036 = vrot.lane.b32.xlu0 %v1495, 17
        %v2037 = vpop.permute.xlu0 %2036
        %2038 = vrot.lane.b32.xlu0 %v1497, 17
        %v2039 = vpop.permute.xlu0 %2038
        %2040 = vrot.lane.b32.xlu0 %v1499, 17
        %v2041 = vpop.permute.xlu0 %2040
        %v2042 = vsel %vm551, %v2027, %v2035
        %v2043 = vsel %vm551, %v2029, %v2037
        %v2044 = vsel %vm551, %v2031, %v2039
        %v2045 = vsel %vm551, %v2033, %v2041
        %v2046 = vsel %vm551, %v2035, %v2027
        %v2047 = vsel %vm551, %v2037, %v2029
        %v2048 = vsel %vm551, %v2039, %v2031
        %v2049 = vsel %vm551, %v2041, %v2033
        %v2050 = vmul.f32 %v2046, %v557
        %v2051 = vmul.f32 %v2042, %v561
        %v2052 = vmul.f32 %v2047, %v557
        %v2053 = vmul.f32 %v2043, %v561
        %v2054 = vmul.f32 %v2048, %v557
        %v2055 = vmul.f32 %v2044, %v561
        %v2056 = vmul.f32 %v2049, %v557
        %v2057 = vmul.f32 %v2045, %v561
        %v2058 = vpack.c.bf16 %v2052, %v2050
        %v2059 = vpack.c.bf16 %v2053, %v2051
        %v2060 = vpack.c.bf16 %v2056, %v2054
        %v2061 = vpack.c.bf16 %v2057, %v2055
        %2062 = vrot.lane.b32.xlu0 %v1492, 16
        %v2063 = vpop.permute.xlu0 %2062
        %2064 = vrot.lane.b32.xlu0 %v1494, 16
        %v2065 = vpop.permute.xlu0 %2064
        %2066 = vrot.lane.b32.xlu0 %v1496, 16
        %v2067 = vpop.permute.xlu0 %2066
        %2068 = vrot.lane.b32.xlu0 %v1498, 16
        %v2069 = vpop.permute.xlu0 %2068
        %2070 = vrot.lane.b32.xlu0 %v1493, 16
        %v2071 = vpop.permute.xlu0 %2070
        %2072 = vrot.lane.b32.xlu0 %v1495, 16
        %v2073 = vpop.permute.xlu0 %2072
        %2074 = vrot.lane.b32.xlu0 %v1497, 16
        %v2075 = vpop.permute.xlu0 %2074
        %2076 = vrot.lane.b32.xlu0 %v1499, 16
        %v2077 = vpop.permute.xlu0 %2076
        %v2078 = vsel %vm570, %v2063, %v2071
        %v2079 = vsel %vm570, %v2065, %v2073
        %v2080 = vsel %vm570, %v2067, %v2075
        %v2081 = vsel %vm570, %v2069, %v2077
        %v2082 = vsel %vm570, %v2071, %v2063
        %v2083 = vsel %vm570, %v2073, %v2065
        %v2084 = vsel %vm570, %v2075, %v2067
        %v2085 = vsel %vm570, %v2077, %v2069
        %v2086 = vmul.f32 %v2082, %v576
        %v2087 = vmul.f32 %v2078, %v580
        %v2088 = vmul.f32 %v2083, %v576
        %v2089 = vmul.f32 %v2079, %v580
        %v2090 = vmul.f32 %v2084, %v576
        %v2091 = vmul.f32 %v2080, %v580
        %v2092 = vmul.f32 %v2085, %v576
        %v2093 = vmul.f32 %v2081, %v580
        %v2094 = vpack.c.bf16 %v2088, %v2086
        %v2095 = vpack.c.bf16 %v2089, %v2087
        %v2096 = vpack.c.bf16 %v2092, %v2090
        %v2097 = vpack.c.bf16 %v2093, %v2091
        %2098 = vrot.lane.b32.xlu0 %v1492, 15
        %v2099 = vpop.permute.xlu0 %2098
        %2100 = vrot.lane.b32.xlu0 %v1494, 15
        %v2101 = vpop.permute.xlu0 %2100
        %2102 = vrot.lane.b32.xlu0 %v1496, 15
        %v2103 = vpop.permute.xlu0 %2102
        %2104 = vrot.lane.b32.xlu0 %v1498, 15
        %v2105 = vpop.permute.xlu0 %2104
        %2106 = vrot.lane.b32.xlu0 %v1493, 15
        %v2107 = vpop.permute.xlu0 %2106
        %2108 = vrot.lane.b32.xlu0 %v1495, 15
        %v2109 = vpop.permute.xlu0 %2108
        %2110 = vrot.lane.b32.xlu0 %v1497, 15
        %v2111 = vpop.permute.xlu0 %2110
        %2112 = vrot.lane.b32.xlu0 %v1499, 15
        %v2113 = vpop.permute.xlu0 %2112
        %v2114 = vsel %vm589, %v2099, %v2107
        %v2115 = vsel %vm589, %v2101, %v2109
        %v2116 = vsel %vm589, %v2103, %v2111
        %v2117 = vsel %vm589, %v2105, %v2113
        %v2118 = vsel %vm589, %v2107, %v2099
        %v2119 = vsel %vm589, %v2109, %v2101
        %v2120 = vsel %vm589, %v2111, %v2103
        %v2121 = vsel %vm589, %v2113, %v2105
        %v2122 = vmul.f32 %v2118, %v595
        %v2123 = vmul.f32 %v2114, %v599
        %v2124 = vmul.f32 %v2119, %v595
        %v2125 = vmul.f32 %v2115, %v599
        %v2126 = vmul.f32 %v2120, %v595
        %v2127 = vmul.f32 %v2116, %v599
        %v2128 = vmul.f32 %v2121, %v595
        %v2129 = vmul.f32 %v2117, %v599
        %v2130 = vpack.c.bf16 %v2124, %v2122
        %v2131 = vpack.c.bf16 %v2125, %v2123
        %v2132 = vpack.c.bf16 %v2128, %v2126
        %v2133 = vpack.c.bf16 %v2129, %v2127
        %2134 = vrot.lane.b32.xlu0 %v1492, 1
        %v2135 = vpop.permute.xlu0 %2134
        %2136 = vrot.lane.b32.xlu0 %v1494, 1
        %v2137 = vpop.permute.xlu0 %2136
        %2138 = vrot.lane.b32.xlu0 %v1496, 1
        %v2139 = vpop.permute.xlu0 %2138
        %2140 = vrot.lane.b32.xlu0 %v1498, 1
        %v2141 = vpop.permute.xlu0 %2140
        %2142 = vrot.lane.b32.xlu0 %v1493, 1
        %v2143 = vpop.permute.xlu0 %2142
        %2144 = vrot.lane.b32.xlu0 %v1495, 1
        %v2145 = vpop.permute.xlu0 %2144
        %2146 = vrot.lane.b32.xlu0 %v1497, 1
        %v2147 = vpop.permute.xlu0 %2146
        %2148 = vrot.lane.b32.xlu0 %v1499, 1
        %v2149 = vpop.permute.xlu0 %2148
        %v2150 = vsel %vm608, %v2135, %v2143
        %v2151 = vsel %vm608, %v2137, %v2145
        %v2152 = vsel %vm608, %v2139, %v2147
        %v2153 = vsel %vm608, %v2141, %v2149
        %v2154 = vsel %vm608, %v2143, %v2135
        %v2155 = vsel %vm608, %v2145, %v2137
        %v2156 = vsel %vm608, %v2147, %v2139
        %v2157 = vsel %vm608, %v2149, %v2141
        %v2158 = vmul.f32 %v2154, %v614
        %v2159 = vmul.f32 %v2150, %v618
        %v2160 = vmul.f32 %v2155, %v614
        %v2161 = vmul.f32 %v2151, %v618
        %v2162 = vmul.f32 %v2156, %v614
        %v2163 = vmul.f32 %v2152, %v618
        %v2164 = vmul.f32 %v2157, %v614
        %v2165 = vmul.f32 %v2153, %v618
        %v2166 = vpack.c.bf16 %v2160, %v2158
        %v2167 = vpack.c.bf16 %v2161, %v2159
        %v2168 = vpack.c.bf16 %v2164, %v2162
        %v2169 = vpack.c.bf16 %v2165, %v2163
        %v2170 = vpack.c.bf16 %v1494, %v1492
        %v2171 = vpack.c.bf16 %v1495, %v1493
        %v2172 = vpack.c.bf16 %v1498, %v1496
        %v2173 = vpack.c.bf16 %v1499, %v1497
        %2174 = vrot.lane.b32.xlu0 %v1492, 127
        %v2175 = vpop.permute.xlu0 %2174
        %2176 = vrot.lane.b32.xlu0 %v1494, 127
        %v2177 = vpop.permute.xlu0 %2176
        %2178 = vrot.lane.b32.xlu0 %v1496, 127
        %v2179 = vpop.permute.xlu0 %2178
        %2180 = vrot.lane.b32.xlu0 %v1498, 127
        %v2181 = vpop.permute.xlu0 %2180
        %2182 = vrot.lane.b32.xlu0 %v1493, 127
        %v2183 = vpop.permute.xlu0 %2182
        %2184 = vrot.lane.b32.xlu0 %v1495, 127
        %v2185 = vpop.permute.xlu0 %2184
        %2186 = vrot.lane.b32.xlu0 %v1497, 127
        %v2187 = vpop.permute.xlu0 %2186
        %2188 = vrot.lane.b32.xlu0 %v1499, 127
        %v2189 = vpop.permute.xlu0 %2188
        %v2190 = vsel %vm629, %v2175, %v2183
        %v2191 = vsel %vm629, %v2177, %v2185
        %v2192 = vsel %vm629, %v2179, %v2187
        %v2193 = vsel %vm629, %v2181, %v2189
        %v2194 = vsel %vm629, %v2183, %v2175
        %v2195 = vsel %vm629, %v2185, %v2177
        %v2196 = vsel %vm629, %v2187, %v2179
        %v2197 = vsel %vm629, %v2189, %v2181
        %v2198 = vmul.f32 %v2190, %v635
        %v2199 = vmul.f32 %v2194, %v639
        %v2200 = vmul.f32 %v2191, %v635
        %v2201 = vmul.f32 %v2195, %v639
        %v2202 = vmul.f32 %v2192, %v635
        %v2203 = vmul.f32 %v2196, %v639
        %v2204 = vmul.f32 %v2193, %v635
        %v2205 = vmul.f32 %v2197, %v639
        %v2206 = vpack.c.bf16 %v2200, %v2198
        %v2207 = vpack.c.bf16 %v2201, %v2199
        %v2208 = vpack.c.bf16 %v2204, %v2202
        %v2209 = vpack.c.bf16 %v2205, %v2203
        %2210 = vrot.lane.b32.xlu0 %v1492, 113
        %v2211 = vpop.permute.xlu0 %2210
        %2212 = vrot.lane.b32.xlu0 %v1494, 113
        %v2213 = vpop.permute.xlu0 %2212
        %2214 = vrot.lane.b32.xlu0 %v1496, 113
        %v2215 = vpop.permute.xlu0 %2214
        %2216 = vrot.lane.b32.xlu0 %v1498, 113
        %v2217 = vpop.permute.xlu0 %2216
        %2218 = vrot.lane.b32.xlu0 %v1493, 113
        %v2219 = vpop.permute.xlu0 %2218
        %2220 = vrot.lane.b32.xlu0 %v1495, 113
        %v2221 = vpop.permute.xlu0 %2220
        %2222 = vrot.lane.b32.xlu0 %v1497, 113
        %v2223 = vpop.permute.xlu0 %2222
        %2224 = vrot.lane.b32.xlu0 %v1499, 113
        %v2225 = vpop.permute.xlu0 %2224
        %v2226 = vsel %vm648, %v2211, %v2219
        %v2227 = vsel %vm648, %v2213, %v2221
        %v2228 = vsel %vm648, %v2215, %v2223
        %v2229 = vsel %vm648, %v2217, %v2225
        %v2230 = vsel %vm648, %v2219, %v2211
        %v2231 = vsel %vm648, %v2221, %v2213
        %v2232 = vsel %vm648, %v2223, %v2215
        %v2233 = vsel %vm648, %v2225, %v2217
        %v2234 = vmul.f32 %v2226, %v654
        %v2235 = vmul.f32 %v2230, %v658
        %v2236 = vmul.f32 %v2227, %v654
        %v2237 = vmul.f32 %v2231, %v658
        %v2238 = vmul.f32 %v2228, %v654
        %v2239 = vmul.f32 %v2232, %v658
        %v2240 = vmul.f32 %v2229, %v654
        %v2241 = vmul.f32 %v2233, %v658
        %v2242 = vpack.c.bf16 %v2236, %v2234
        %v2243 = vpack.c.bf16 %v2237, %v2235
        %v2244 = vpack.c.bf16 %v2240, %v2238
        %v2245 = vpack.c.bf16 %v2241, %v2239
        %2246 = vrot.lane.b32.xlu0 %v1492, 112
        %v2247 = vpop.permute.xlu0 %2246
        %2248 = vrot.lane.b32.xlu0 %v1494, 112
        %v2249 = vpop.permute.xlu0 %2248
        %2250 = vrot.lane.b32.xlu0 %v1496, 112
        %v2251 = vpop.permute.xlu0 %2250
        %2252 = vrot.lane.b32.xlu0 %v1498, 112
        %v2253 = vpop.permute.xlu0 %2252
        %2254 = vrot.lane.b32.xlu0 %v1493, 112
        %v2255 = vpop.permute.xlu0 %2254
        %2256 = vrot.lane.b32.xlu0 %v1495, 112
        %v2257 = vpop.permute.xlu0 %2256
        %2258 = vrot.lane.b32.xlu0 %v1497, 112
        %v2259 = vpop.permute.xlu0 %2258
        %2260 = vrot.lane.b32.xlu0 %v1499, 112
        %v2261 = vpop.permute.xlu0 %2260
        %v2262 = vsel %vm667, %v2247, %v2255
        %v2263 = vsel %vm667, %v2249, %v2257
        %v2264 = vsel %vm667, %v2251, %v2259
        %v2265 = vsel %vm667, %v2253, %v2261
        %v2266 = vsel %vm667, %v2255, %v2247
        %v2267 = vsel %vm667, %v2257, %v2249
        %v2268 = vsel %vm667, %v2259, %v2251
        %v2269 = vsel %vm667, %v2261, %v2253
        %v2270 = vmul.f32 %v2262, %v673
        %v2271 = vmul.f32 %v2266, %v677
        %v2272 = vmul.f32 %v2263, %v673
        %v2273 = vmul.f32 %v2267, %v677
        %v2274 = vmul.f32 %v2264, %v673
        %v2275 = vmul.f32 %v2268, %v677
        %v2276 = vmul.f32 %v2265, %v673
        %v2277 = vmul.f32 %v2269, %v677
        %v2278 = vpack.c.bf16 %v2272, %v2270
        %v2279 = vpack.c.bf16 %v2273, %v2271
        %v2280 = vpack.c.bf16 %v2276, %v2274
        %v2281 = vpack.c.bf16 %v2277, %v2275
        %2282 = vrot.lane.b32.xlu0 %v1492, 111
        %v2283 = vpop.permute.xlu0 %2282
        %2284 = vrot.lane.b32.xlu0 %v1494, 111
        %v2285 = vpop.permute.xlu0 %2284
        %2286 = vrot.lane.b32.xlu0 %v1496, 111
        %v2287 = vpop.permute.xlu0 %2286
        %2288 = vrot.lane.b32.xlu0 %v1498, 111
        %v2289 = vpop.permute.xlu0 %2288
        %2290 = vrot.lane.b32.xlu0 %v1493, 111
        %v2291 = vpop.permute.xlu0 %2290
        %2292 = vrot.lane.b32.xlu0 %v1495, 111
        %v2293 = vpop.permute.xlu0 %2292
        %2294 = vrot.lane.b32.xlu0 %v1497, 111
        %v2295 = vpop.permute.xlu0 %2294
        %2296 = vrot.lane.b32.xlu0 %v1499, 111
        %v2297 = vpop.permute.xlu0 %2296
        %v2298 = vsel %vm686, %v2283, %v2291
        %v2299 = vsel %vm686, %v2285, %v2293
        %v2300 = vsel %vm686, %v2287, %v2295
        %v2301 = vsel %vm686, %v2289, %v2297
        %v2302 = vsel %vm686, %v2291, %v2283
        %v2303 = vsel %vm686, %v2293, %v2285
        %v2304 = vsel %vm686, %v2295, %v2287
        %v2305 = vsel %vm686, %v2297, %v2289
        %v2306 = vmul.f32 %v2298, %v692
        %v2307 = vmul.f32 %v2302, %v696
        %v2308 = vmul.f32 %v2299, %v692
        %v2309 = vmul.f32 %v2303, %v696
        %v2310 = vmul.f32 %v2300, %v692
        %v2311 = vmul.f32 %v2304, %v696
        %v2312 = vmul.f32 %v2301, %v692
        %v2313 = vmul.f32 %v2305, %v696
        %v2314 = vpack.c.bf16 %v2308, %v2306
        %v2315 = vpack.c.bf16 %v2309, %v2307
        %v2316 = vpack.c.bf16 %v2312, %v2310
        %v2317 = vpack.c.bf16 %v2313, %v2311
        %v2318 = vld [vmem:[%s7] sm:$0xff]
        %v2319 = vld [vmem:[%s7 + $0x8] sm:$0xf]
        %v2320 = vld [vmem:[%s7 + $0xc] sm:$0xff]
        %v2321 = vld [vmem:[%s7 + $0x14] sm:$0xf]
        %v2322 = vld [vmem:[%s7 + $0x18] sm:$0xff]
        %v2323 = vld [vmem:[%s7 + $0x20] sm:$0xf]
        %v2324 = vld [vmem:[%s7 + $0x24] sm:$0xff]
        %v2325 = vld [vmem:[%s7 + $0x2c] sm:$0xf]
        %v2334 = vunpack.c.l.b16 %v2318
        %v2335 = vunpack.c.h.b16 %v2318
        %v2336 = vunpack.c.l.b16 %v2319
        %v2337 = vunpack.c.l.b16 %v2320
        %v2338 = vunpack.c.h.b16 %v2320
        %v2339 = vunpack.c.l.b16 %v2321
        %v2340 = vunpack.c.l.b16 %v2322
        %v2341 = vunpack.c.h.b16 %v2322
        %v2342 = vunpack.c.l.b16 %v2323
        %v2343 = vunpack.c.l.b16 %v2324
        %v2344 = vunpack.c.h.b16 %v2324
        %v2345 = vunpack.c.l.b16 %v2325
        %v2346 = vpack.c.b16 %v2337, %v2334
        %v2347 = vpack.c.b16 %v2338, %v2335
        %v2348 = vpack.c.b16 %v2339, %v2336
        %v2349 = vpack.c.b16 %v2343, %v2340
        %v2350 = vpack.c.b16 %v2344, %v2341
        %v2351 = vpack.c.b16 %v2345, %v2342
        %v2357 = vsel %vm1210, %v2348, 0
        %v2360 = vsel %vm1210, %v2351, 0
        %2362 = vmatprep.subr.bf16.mxu0 %v2059
        %2363 = vmatpush1.bf16.msra.mxu0 %v2058
        %2364 = vmatprep.subr.bf16.mxu0 %v2061
        %2365 = vmatpush1.bf16.msra.mxu0 %v2060
        %2366 = vmatprep.subr.bf16.mxu0 %v2095
        %2367 = vmatpush1.bf16.msra.mxu0 %v2094
        %2368 = vmatprep.subr.bf16.mxu0 %v2097
        %2369 = vmatpush1.bf16.msra.mxu0 %v2096
        %2370 = vmatprep.subr.bf16.mxu0 %v2131
        %2371 = vmatpush1.bf16.msra.mxu0 %v2130
        %2372 = vmatprep.subr.bf16.mxu0 %v2133
        %2373 = vmatpush1.bf16.msra.mxu0 %v2132
        %2374 = vmatprep.subr.bf16.mxu0 %v2167
        %2375 = vmatpush1.bf16.msra.mxu0 %v2166
        %2376 = vmatprep.subr.bf16.mxu0 %v2169
        %2377 = vmatpush1.bf16.msra.mxu0 %v2168
        %2378 = vmatprep.subr.bf16.mxu0 %v2171
        %2379 = vmatpush1.bf16.msra.mxu0 %v2170
        %2380 = vmatprep.subr.bf16.mxu0 %v2173
        %2381 = vmatpush1.bf16.msra.mxu0 %v2172
        %2382 = vmatprep.subr.bf16.mxu0 %v2207
        %2383 = vmatpush1.bf16.msra.mxu0 %v2206
        %2384 = vmatprep.subr.bf16.mxu0 %v2209
        %2385 = vmatpush1.bf16.msra.mxu0 %v2208
        %2386 = vmatprep.subr.bf16.mxu0 %v2243
        %2387 = vmatpush1.bf16.msra.mxu0 %v2242
        %2388 = vmatprep.subr.bf16.mxu0 %v2245
        %2389 = vmatpush1.bf16.msra.mxu0 %v2244
        %2390 = vmatprep.subr.bf16.mxu0 %v2279
        %2391 = vmatpush1.bf16.msra.mxu0 %v2278
        %2392 = vmatprep.subr.bf16.mxu0 %v2281
        %2393 = vmatpush1.bf16.msra.mxu0 %v2280
        %2394 = vmatprep.mubr.bf16.mxu0 %v2347
        %2395 = vmatmul.mubr.bf16.gmra.mrb[0].mxu0 %v2346
        %v2396 = vpop.f32.mrb[0].mxu0
        %v2397 = vadd.f32 0.0, %v2396
        %v2398 = vpop.f32.mrb[0].mxu0
        %v2399 = vadd.f32 0.0, %v2398
        %v2400 = vpop.f32.mrb[0].mxu0
        %v2401 = vadd.f32 0.0, %v2400
        %v2402 = vpop.f32.mrb[0].mxu0
        %v2403 = vadd.f32 0.0, %v2402
        %2404 = vmatprep.mubr.bf16.mxu0 %v2350
        %2405 = vmatmul.mubr.bf16.gmra.mrb[0].mxu0 %v2349
        %v2406 = vpop.f32.mrb[0].mxu0
        %v2407 = vadd.f32 0.0, %v2406
        %v2408 = vpop.f32.mrb[0].mxu0
        %v2409 = vadd.f32 0.0, %v2408
        %v2410 = vpop.f32.mrb[0].mxu0
        %v2411 = vadd.f32 0.0, %v2410
        %v2412 = vpop.f32.mrb[0].mxu0
        %v2413 = vadd.f32 0.0, %v2412
        %2414 = vdwg.mxu0
        %2415 = vmatprep.subr.bf16.mxu0 %v2315
        %2416 = vmatpush1.bf16.msra.mxu0 %v2314
        %2417 = vmatprep.subr.bf16.mxu0 %v2317
        %2418 = vmatpush1.bf16.msra.mxu0 %v2316
        %2419 = vmatprep.subr.bf16.mxu0 0
        %2420 = vmatpush1.bf16.msra.mxu0 0
        %2421 = vmatprep.subr.bf16.mxu0 0
        %2422 = vmatpush1.bf16.msra.mxu0 0
        %2423 = vmatprep.subr.bf16.mxu0 0
        %2424 = vmatpush1.bf16.msra.mxu0 0
        %2425 = vmatprep.subr.bf16.mxu0 0
        %2426 = vmatpush1.bf16.msra.mxu0 0
        %2427 = vmatprep.subr.bf16.mxu0 0
        %2428 = vmatpush1.bf16.msra.mxu0 0
        %2429 = vmatprep.subr.bf16.mxu0 0
        %2430 = vmatpush1.bf16.msra.mxu0 0
        %2431 = vmatprep.subr.bf16.mxu0 0
        %2432 = vmatpush1.bf16.msra.mxu0 0
        %2433 = vmatprep.subr.bf16.mxu0 0
        %2434 = vmatpush1.bf16.msra.mxu0 0
        %2435 = vmatprep.subr.bf16.mxu0 0
        %2436 = vmatpush1.bf16.msra.mxu0 0
        %2437 = vmatprep.subr.bf16.mxu0 0
        %2438 = vmatpush1.bf16.msra.mxu0 0
        %2439 = vmatprep.subr.bf16.mxu0 0
        %2440 = vmatpush1.bf16.msra.mxu0 0
        %2441 = vmatprep.subr.bf16.mxu0 0
        %2442 = vmatpush1.bf16.msra.mxu0 0
        %2443 = vmatprep.subr.bf16.mxu0 0
        %2444 = vmatpush1.bf16.msra.mxu0 0
        %2445 = vmatprep.subr.bf16.mxu0 0
        %2446 = vmatpush1.bf16.msra.mxu0 0
        %2447 = vmatprep.mubr.bf16.mxu0 0
        %2448 = vmatmul.mubr.bf16.gmra.mrb[0].mxu0 %v2357
        %v2449 = vpop.f32.mrb[0].mxu0
        %v2450 = vadd.f32 %v2397, %v2449
        %v2451 = vpop.f32.mrb[0].mxu0
        %v2452 = vadd.f32 %v2399, %v2451
        %v2453 = vpop.f32.mrb[0].mxu0
        %v2454 = vadd.f32 %v2401, %v2453
        %v2455 = vpop.f32.mrb[0].mxu0
        %v2456 = vadd.f32 %v2403, %v2455
        %2457 = vmatprep.mubr.bf16.mxu0 0
        %2458 = vmatmul.mubr.bf16.gmra.mrb[0].mxu0 %v2360
        %v2459 = vpop.f32.mrb[0].mxu0
        %v2460 = vadd.f32 %v2407, %v2459
        %v2461 = vpop.f32.mrb[0].mxu0
        %v2462 = vadd.f32 %v2409, %v2461
        %v2463 = vpop.f32.mrb[0].mxu0
        %v2464 = vadd.f32 %v2411, %v2463
        %v2465 = vpop.f32.mrb[0].mxu0
        %v2466 = vadd.f32 %v2413, %v2465
        %2467 = vdwg.mxu0
        %v2468 = vadd.f32 %v1988, %v2450
        %v2469 = vadd.f32 %v1990, %v2452
        %v2470 = vadd.f32 %v1992, %v2454
        %v2471 = vadd.f32 %v1994, %v2456
        %v2472 = vadd.f32 %v1998, %v2460
        %v2473 = vadd.f32 %v2000, %v2462
        %v2474 = vadd.f32 %v2002, %v2464
        %v2475 = vadd.f32 %v2004, %v2466
        %v2476 = vld [vmem:[%s8] sm:$0xff]
        %v2477 = vld [vmem:[%s8 + $0x8] sm:$0xff]
        %v2478 = vld [vmem:[%s8 + $0x10] sm:$0xff]
        %v2479 = vld [vmem:[%s8 + $0x18] sm:$0xff]
        %2481 = vset.pattern.permute.xlu0 0
        %2482 = vperm.xlu0 %2481, %v2476
        %v2483 = vpop.permute.xlu0 %2482
        %2486 = vset.pattern.permute.xlu0 0
        %2487 = vperm.xlu0 %2486, %v2477
        %v2488 = vpop.permute.xlu0 %2487
        %2491 = vset.pattern.permute.xlu0 0
        %2492 = vperm.xlu0 %2491, %v2478
        %v2493 = vpop.permute.xlu0 %2492
        %2496 = vset.pattern.permute.xlu0 0
        %2497 = vperm.xlu0 %2496, %v2479
        %v2498 = vpop.permute.xlu0 %2497
        %v2500 = vadd.f32 %v2468, %v2483
        %v2501 = vadd.f32 %v2469, %v2483
        %v2502 = vadd.f32 %v2470, %v2488
        %v2503 = vadd.f32 %v2471, %v2488
        %v2504 = vadd.f32 %v2472, %v2493
        %v2505 = vadd.f32 %v2473, %v2493
        %v2506 = vadd.f32 %v2474, %v2498
        %v2507 = vadd.f32 %v2475, %v2498
        %v2508 = vxor.u32 %v2500, 2147483648
        %v2509 = vxor.u32 %v2501, 2147483648
        %v2510 = vxor.u32 %v2502, 2147483648
        %v2511 = vxor.u32 %v2503, 2147483648
        %v2512 = vxor.u32 %v2504, 2147483648
        %v2513 = vxor.u32 %v2505, 2147483648
        %v2514 = vxor.u32 %v2506, 2147483648
        %v2515 = vxor.u32 %v2507, 2147483648
        %v2516 = vmul.f32 %v2508, 1.442695
        %v2517 = vpow.pop %v2516
        %v2518 = vmul.f32 %v2509, 1.442695
        %v2519 = vpow.pop %v2518
        %v2520 = vmul.f32 %v2510, 1.442695
        %v2521 = vpow.pop %v2520
        %v2522 = vmul.f32 %v2511, 1.442695
        %v2523 = vpow.pop %v2522
        %v2524 = vmul.f32 %v2512, 1.442695
        %v2525 = vpow.pop %v2524
        %v2526 = vmul.f32 %v2513, 1.442695
        %v2527 = vpow.pop %v2526
        %v2528 = vmul.f32 %v2514, 1.442695
        %v2529 = vpow.pop %v2528
        %v2530 = vmul.f32 %v2515, 1.442695
        %v2531 = vpow.pop %v2530
        %v2532 = vadd.f32 %v2517, 1.0
        %v2533 = vadd.f32 %v2519, 1.0
        %v2534 = vadd.f32 %v2521, 1.0
        %v2535 = vadd.f32 %v2523, 1.0
        %v2536 = vadd.f32 %v2525, 1.0
        %v2537 = vadd.f32 %v2527, 1.0
        %v2538 = vadd.f32 %v2529, 1.0
        %v2539 = vadd.f32 %v2531, 1.0
        %v2540 = vrcp.pop %v2532
        %v2541 = vmul.f32 1.0, %v2540
        %v2542 = vrcp.pop %v2533
        %v2543 = vmul.f32 1.0, %v2542
        %v2544 = vrcp.pop %v2534
        %v2545 = vmul.f32 1.0, %v2544
        %v2546 = vrcp.pop %v2535
        %v2547 = vmul.f32 1.0, %v2546
        %v2548 = vrcp.pop %v2536
        %v2549 = vmul.f32 1.0, %v2548
        %v2550 = vrcp.pop %v2537
        %v2551 = vmul.f32 1.0, %v2550
        %v2552 = vrcp.pop %v2538
        %v2553 = vmul.f32 1.0, %v2552
        %v2554 = vrcp.pop %v2539
        %v2555 = vmul.f32 1.0, %v2554
        %v2556 = vld [vmem:[%s9] sm:$0xff]
        %v2557 = vld [vmem:[%s9 + $0x8] sm:$0xff]
        %v2558 = vld [vmem:[%s9 + $0x10] sm:$0xff]
        %v2559 = vld [vmem:[%s9 + $0x18] sm:$0xff]
        %2561 = vset.pattern.permute.xlu0 0
        %2562 = vperm.xlu0 %2561, %v2556
        %v2563 = vpop.permute.xlu0 %2562
        %2566 = vset.pattern.permute.xlu0 0
        %2567 = vperm.xlu0 %2566, %v2557
        %v2568 = vpop.permute.xlu0 %2567
        %2571 = vset.pattern.permute.xlu0 0
        %2572 = vperm.xlu0 %2571, %v2558
        %v2573 = vpop.permute.xlu0 %2572
        %2576 = vset.pattern.permute.xlu0 0
        %2577 = vperm.xlu0 %2576, %v2559
        %v2578 = vpop.permute.xlu0 %2577
        %v2580 = vadd.f32 %v2008, %v2563
        %v2581 = vadd.f32 %v2010, %v2563
        %v2582 = vadd.f32 %v2012, %v2568
        %v2583 = vadd.f32 %v2014, %v2568
        %v2584 = vadd.f32 %v2018, %v2573
        %v2585 = vadd.f32 %v2020, %v2573
        %v2586 = vadd.f32 %v2022, %v2578
        %v2587 = vadd.f32 %v2024, %v2578
        %v2588 = vtanh.pop %v2580
        %v2589 = vtanh.pop %v2581
        %v2590 = vtanh.pop %v2582
        %v2591 = vtanh.pop %v2583
        %v2592 = vtanh.pop %v2584
        %v2593 = vtanh.pop %v2585
        %v2594 = vtanh.pop %v2586
        %v2595 = vtanh.pop %v2587
        %v2596 = vsub.f32 %v2588, %v1492
        %v2597 = vsub.f32 %v2589, %v1493
        %v2598 = vsub.f32 %v2590, %v1494
        %v2599 = vsub.f32 %v2591, %v1495
        %v2600 = vsub.f32 %v2592, %v1496
        %v2601 = vsub.f32 %v2593, %v1497
        %v2602 = vsub.f32 %v2594, %v1498
        %v2603 = vsub.f32 %v2595, %v1499
        %v2604 = vmul.f32 %v2541, %v2596
        %v2605 = vmul.f32 %v2543, %v2597
        %v2606 = vmul.f32 %v2545, %v2598
        %v2607 = vmul.f32 %v2547, %v2599
        %v2608 = vmul.f32 %v2549, %v2600
        %v2609 = vmul.f32 %v2551, %v2601
        %v2610 = vmul.f32 %v2553, %v2602
        %v2611 = vmul.f32 %v2555, %v2603
        %v2612 = vadd.f32 %v1492, %v2604
        %v2613 = vadd.f32 %v1493, %v2605
        %v2614 = vadd.f32 %v1494, %v2606
        %v2615 = vadd.f32 %v1495, %v2607
        %v2616 = vadd.f32 %v1496, %v2608
        %v2617 = vadd.f32 %v1497, %v2609
        %v2618 = vadd.f32 %v1498, %v2610
        %v2619 = vadd.f32 %v1499, %v2611
        %v2620 = vtanh.pop %v2612
        %v2621 = vtanh.pop %v2613
        %v2622 = vtanh.pop %v2614
        %v2623 = vtanh.pop %v2615
        %v2624 = vtanh.pop %v2616
        %v2625 = vtanh.pop %v2617
        %v2626 = vtanh.pop %v2618
        %v2627 = vtanh.pop %v2619
        %2628 = vst [vmem:[%s1491] sm:$0xff] %v2620
        %2629 = vst [vmem:[%s1491 + $0x8] sm:$0xff] %v2621
        %2630 = vst [vmem:[%s1491 + $0x10] sm:$0xff] %v2622
        %2631 = vst [vmem:[%s1491 + $0x18] sm:$0xff] %v2623
        %2632 = vst [vmem:[%s1491 + $0x20] sm:$0xff] %v2624
        %2633 = vst [vmem:[%s1491 + $0x28] sm:$0xff] %v2625
        %2634 = vst [vmem:[%s1491 + $0x30] sm:$0xff] %v2626
        %2635 = vst [vmem:[%s1491 + $0x38] sm:$0xff] %v2627
        %p2636 = scmp.eq.s32.totalorder %s34, 7
        // Predicated region
        $region73: #{cultionet_forward.2} parent=67 // pred_check
          %p2637 = pneg %p2636
        $region74: #{cultionet_forward.2} parent=67 // pred_check_branch
          %2639 = sbr.rel (%p2637) target = $region76
        $region75: #{cultionet_forward.2} parent=67 // pred_region
          %v2640 = vld [vmem:[#allocation2] sm:$0xff]
          %v2641 = vld [vmem:[#allocation2 + $0x8] sm:$0xff]
          %v2642 = vld [vmem:[#allocation2 + $0x10] sm:$0xff]
          %v2643 = vld [vmem:[#allocation2 + $0x18] sm:$0xff]
          %v2644 = vld [vmem:[#allocation2 + $0x20] sm:$0xff]
          %v2645 = vld [vmem:[#allocation2 + $0x28] sm:$0xff]
          %v2646 = vld [vmem:[#allocation2 + $0x30] sm:$0xff]
          %v2647 = vld [vmem:[#allocation2 + $0x38] sm:$0xff]
          %v2648 = vld [vmem:[%s1491] sm:$0xff]
          %v2649 = vld [vmem:[%s1491 + $0x8] sm:$0xff]
          %v2650 = vld [vmem:[%s1491 + $0x10] sm:$0xff]
          %v2651 = vld [vmem:[%s1491 + $0x18] sm:$0xff]
          %v2652 = vld [vmem:[%s1491 + $0x20] sm:$0xff]
          %v2653 = vld [vmem:[%s1491 + $0x28] sm:$0xff]
          %v2654 = vld [vmem:[%s1491 + $0x30] sm:$0xff]
          %v2655 = vld [vmem:[%s1491 + $0x38] sm:$0xff]
          %2656 = vst [vmem:[%s497] sm:$0xff] %v2640
          %2657 = vst [vmem:[%s497 + $0x8] sm:$0xff] %v2641
          %2658 = vst [vmem:[%s497 + $0x10] sm:$0xff] %v2642
          %2659 = vst [vmem:[%s497 + $0x18] sm:$0xff] %v2643
          %2660 = vst [vmem:[%s497 + $0x20] sm:$0xff] %v2644
          %2661 = vst [vmem:[%s497 + $0x28] sm:$0xff] %v2645
          %2662 = vst [vmem:[%s497 + $0x30] sm:$0xff] %v2646
          %2663 = vst [vmem:[%s497 + $0x38] sm:$0xff] %v2647
          %2664 = vst [vmem:[%s497 + $0x40] sm:$0xff] %v2648
          %2665 = vst [vmem:[%s497 + $0x48] sm:$0xff] %v2649
          %2666 = vst [vmem:[%s497 + $0x50] sm:$0xff] %v2650
          %2667 = vst [vmem:[%s497 + $0x58] sm:$0xff] %v2651
          %2668 = vst [vmem:[%s497 + $0x60] sm:$0xff] %v2652
          %2669 = vst [vmem:[%s497 + $0x68] sm:$0xff] %v2653
          %2670 = vst [vmem:[%s497 + $0x70] sm:$0xff] %v2654
          %2671 = vst [vmem:[%s497 + $0x78] sm:$0xff] %v2655
          %v2672 = vpack.c.bf16 %v2642, %v2640
          %v2673 = vpack.c.bf16 %v2643, %v2641
          %v2674 = vpack.c.bf16 %v2646, %v2644
          %v2675 = vpack.c.bf16 %v2647, %v2645
          %v2676 = vpack.c.bf16 %v2650, %v2648
          %v2677 = vpack.c.bf16 %v2651, %v2649
          %v2678 = vpack.c.bf16 %v2654, %v2652
          %v2679 = vpack.c.bf16 %v2655, %v2653
          %v2680 = vld [vmem:[%s10] sm:$0x7]
          %v2681 = vld [vmem:[%s11] sm:$0x3f]
          %2683 = vset.pattern.permute.xlu0 0
          %2684 = vperm.xlu0 %2683, %v2681
          %v2685 = vpop.permute.xlu0 %2684
          %vm2687 = vcmask 523264
          %v2689 = vsel %vm2687, %v2680, 0
          %2691 = vmatprep.subr.bf16.mxu0 %v2673
          %2692 = vmatpush1.bf16.msra.mxu0 %v2672
          %2693 = vmatprep.subr.bf16.mxu0 %v2675
          %2694 = vmatpush1.bf16.msra.mxu0 %v2674
          %2695 = vmatprep.subr.bf16.mxu0 %v2677
          %2696 = vmatpush1.bf16.msra.mxu0 %v2676
          %2697 = vmatprep.subr.bf16.mxu0 %v2679
          %2698 = vmatpush1.bf16.msra.mxu0 %v2678
          %2699 = vmatprep.subr.bf16.mxu0 0
          %2700 = vmatpush1.bf16.msra.mxu0 0
          %2701 = vmatprep.subr.bf16.mxu0 0
          %2702 = vmatpush1.bf16.msra.mxu0 0
          %2703 = vmatprep.subr.bf16.mxu0 0
          %2704 = vmatpush1.bf16.msra.mxu0 0
          %2705 = vmatprep.subr.bf16.mxu0 0
          %2706 = vmatpush1.bf16.msra.mxu0 0
          %2707 = vmatprep.subr.bf16.mxu0 0
          %2708 = vmatpush1.bf16.msra.mxu0 0
          %2709 = vmatprep.subr.bf16.mxu0 0
          %2710 = vmatpush1.bf16.msra.mxu0 0
          %2711 = vmatprep.subr.bf16.mxu0 0
          %2712 = vmatpush1.bf16.msra.mxu0 0
          %2713 = vmatprep.subr.bf16.mxu0 0
          %2714 = vmatpush1.bf16.msra.mxu0 0
          %2715 = vmatprep.subr.bf16.mxu0 0
          %2716 = vmatpush1.bf16.msra.mxu0 0
          %2717 = vmatprep.subr.bf16.mxu0 0
          %2718 = vmatpush1.bf16.msra.mxu0 0
          %2719 = vmatprep.subr.bf16.mxu0 0
          %2720 = vmatpush1.bf16.msra.mxu0 0
          %2721 = vmatprep.subr.bf16.mxu0 0
          %2722 = vmatpush1.bf16.msra.mxu0 0
          %2723 = vmatprep.mubr.bf16.mxu0 0
          %2724 = vmatmul.mubr.bf16.gmra.mrb[0].mxu0 %v2689
          %v2725 = vpop.f32.mrb[0].mxu0
          %v2726 = vadd.f32 %v2685, %v2725
          %v2727 = vpop.f32.mrb[0].mxu0
          %v2728 = vadd.f32 %v2685, %v2727
          %v2729 = vpop.f32.mrb[0].mxu0
          %v2730 = vpop.f32.mrb[0].mxu0
          %2731 = vdwg.mxu0
          %vm2732 = vcmask 1042432
          %v2733 = vsel %vm2732, %v2726, -inf
          %v2734 = vrot.slane %v2733, 4
          %v2735 = vmax.f32 %v2733, %v2734
          %v2736 = vrot.slane %v2735, 2
          %v2737 = vmax.f32 %v2735, %v2736
          %v2738 = vrot.slane %v2737, 1
          %v2739 = vmax.f32 %v2737, %v2738
          %v2740 = vsel %vm2732, %v2728, -inf
          %v2741 = vrot.slane %v2740, 4
          %v2742 = vmax.f32 %v2740, %v2741
          %v2743 = vrot.slane %v2742, 2
          %v2744 = vmax.f32 %v2742, %v2743
          %v2745 = vrot.slane %v2744, 1
          %v2746 = vmax.f32 %v2744, %v2745
          %v2747 = vsub.f32 %v2726, %v2739
          %v2748 = vsub.f32 %v2728, %v2746
          %v2749 = vmul.f32 %v2747, 1.442695
          %v2750 = vpow.pop %v2749
          %v2751 = vmul.f32 %v2748, 1.442695
          %v2752 = vpow.pop %v2751
          %v2753 = vsel %vm2732, %v2750, 0.0
          %v2754 = vrot.slane %v2753, 4
          %v2755 = vadd.f32 %v2753, %v2754
          %v2756 = vrot.slane %v2755, 2
          %v2757 = vadd.f32 %v2755, %v2756
          %v2758 = vrot.slane %v2757, 1
          %v2759 = vadd.f32 %v2757, %v2758
          %v2760 = vsel %vm2732, %v2752, 0.0
          %v2761 = vrot.slane %v2760, 4
          %v2762 = vadd.f32 %v2760, %v2761
          %v2763 = vrot.slane %v2762, 2
          %v2764 = vadd.f32 %v2762, %v2763
          %v2765 = vrot.slane %v2764, 1
          %v2766 = vadd.f32 %v2764, %v2765
          %v2767 = vlog2.pop %v2759
          %v2768 = vmul.f32 %v2767, 0.6931472
          %v2769 = vlog2.pop %v2766
          %v2770 = vmul.f32 %v2769, 0.6931472
          %v2771 = vsub.f32 %v2747, %v2768
          %v2772 = vsub.f32 %v2748, %v2770
          %v2775 = vcombine.low %v2771, %v2772
          %2777 = vst [vmem:[%s480] sm:$0x77] %v2775
          %vm2778 = vcmask 1045507
          %v2779 = vsel %vm2778, %v2726, -inf
          %v2780 = vrot.slane %v2779, 4
          %v2781 = vmax.f32 %v2779, %v2780
          %v2782 = vrot.slane %v2781, 2
          %v2783 = vmax.f32 %v2781, %v2782
          %v2784 = vrot.slane %v2783, 1
          %v2785 = vmax.f32 %v2783, %v2784
          %v2786 = vsel %vm2778, %v2728, -inf
          %v2787 = vrot.slane %v2786, 4
          %v2788 = vmax.f32 %v2786, %v2787
          %v2789 = vrot.slane %v2788, 2
          %v2790 = vmax.f32 %v2788, %v2789
          %v2791 = vrot.slane %v2790, 1
          %v2792 = vmax.f32 %v2790, %v2791
          %v2793 = vsub.f32 %v2726, %v2785
          %v2794 = vsub.f32 %v2728, %v2792
          %v2795 = vmul.f32 %v2793, 1.442695
          %v2796 = vpow.pop %v2795
          %v2797 = vmul.f32 %v2794, 1.442695
          %v2798 = vpow.pop %v2797
          %v2801 = vrot.slane %v2796, 3
          %v2802 = vrot.slane %v2798, 3
          %v2805 = vsel %vm2732, %v2801, 0.0
          %v2806 = vrot.slane %v2805, 4
          %v2807 = vadd.f32 %v2805, %v2806
          %v2808 = vrot.slane %v2807, 2
          %v2809 = vadd.f32 %v2807, %v2808
          %v2810 = vrot.slane %v2809, 1
          %v2811 = vadd.f32 %v2809, %v2810
          %v2812 = vsel %vm2732, %v2802, 0.0
          %v2813 = vrot.slane %v2812, 4
          %v2814 = vadd.f32 %v2812, %v2813
          %v2815 = vrot.slane %v2814, 2
          %v2816 = vadd.f32 %v2814, %v2815
          %v2817 = vrot.slane %v2816, 1
          %v2818 = vadd.f32 %v2816, %v2817
          %v2819 = vlog2.pop %v2811
          %v2820 = vmul.f32 %v2819, 0.6931472
          %v2821 = vlog2.pop %v2818
          %v2822 = vmul.f32 %v2821, 0.6931472
          %v2823 = vsub.f32 %v2793, %v2820
          %v2824 = vsub.f32 %v2794, %v2822
          %v2827 = vcombine.low %v2823, %v2824
          %v2828 = vcombine.high %v2823, %v2824
          %vm2829 = vcmask 1040384
          %vm2830 = vcmask 1044484
          %vm2831 = vmor %vm2829, %vm2830
          %v2832 = vrot.slane %v2827, 7
          %v2833 = vrot.slane %v2832, 4
          %v2834 = vrot.slane %v2828, 7
          %v2835 = vsel %vm2831, %v2833, %v2834
          %2837 = vst [vmem:[%s502] sm:$0x77] %v2835
        $region76: #{cultionet_forward.2} parent=67 // pred_fallthru
          _
        %p2838 = scmp.lt.s32.totalorder %s33, 1
        %s2839 = scalar_select %p2838, %s33, 1
        %s2840 = smul.addr %s2839, 16
        %s2841 = smul.addr %s2840, 8
        %s2842 = scalar_lea.vmem %s12, %s2841
        %s2843 = sand.u32 %s332, 1
        %s2844 = scalar_lea.sflag [#allocation4], %s2843
        %s2845 = sand.u32 %s332, 1
        %s2846 = smul.addr %s2845, 8
        %s2847 = scalar_lea.vmem [#allocation3], %s2846
        %p2848 = scmp.lt.s32.totalorder %s33, 1
        %s2849 = scalar_select %p2848, %s33, 1
        %s2850 = smul.addr %s2849, 2
        %s2851 = smul.addr %s2850, 4
        %s2852 = scalar_lea.vmem %s14, %s2851
        // Predicated region
        $region77: #{cultionet_forward.2} parent=67 // pred_check
          %p2853 = pneg %p316
        $region78: #{cultionet_forward.2} parent=67 // pred_check_branch
          %2855 = sbr.rel (%p2853) target = $region80
        $region79: #{cultionet_forward.2} parent=67 // pred_region
          _
        $region80: #{cultionet_forward.2} parent=67 // pred_fallthru
          _
        // Predicated region
        $region81: #{cultionet_forward.2} parent=67 // pred_check
          %p2856 = pneg %p342
        $region82: #{cultionet_forward.2} parent=67 // pred_check_branch
          %2858 = sbr.rel (%p2856) target = $region84
        $region83: #{cultionet_forward.2} parent=67 // pred_region
          %s2860 = ssub.s32 128, 128
          %2861 = vsyncadd %s2844, %s2860
          %s2862 = smul.addr %s33, 2
          %s2863 = smul.addr %s2862, 64
          %s2864 = scalar_lea.hbm %s13, %s2863
          %s2866 = sshll.u32 %s2847, 4
          %s2867 = int_to_ptr.vmem [resolvable:$true] %s2866
          %2869 = dma.vmem_to_hbm [thread:$0]  %s2867, 128, %s2864, %s2844
        $region84: #{cultionet_forward.2} parent=67 // pred_fallthru
          _
        // Predicated region
        $region85: #{cultionet_forward.2} parent=67 // pred_check
          %p2870 = pneg %p368
        $region86: #{cultionet_forward.2} parent=67 // pred_check_branch
          %2872 = sbr.rel (%p2870) target = $region88
        $region87: #{cultionet_forward.2} parent=67 // pred_region
          _
        $region88: #{cultionet_forward.2} parent=67 // pred_fallthru
          _
      $region68: #{cultionet_forward.2} parent=5 // pred_fallthru
        _
      %p2873 = scmp.le.s32.totalorder 2, %s24
      // Predicated region
      $region89: #{cultionet_forward.2} parent=5 // pred_check
        %p2874 = pneg %p2873
      $region90: #{cultionet_forward.2} parent=5 // pred_check_branch
        %2876 = sbr.rel (%p2874) target = $region92
      $region91: #{cultionet_forward.2} parent=5 // pred_region
        %s2877 = ssub.s32 %s24, 2
        // Predicated region
        $region93: #{cultionet_forward.2} parent=91 // pred_check
          %p2878 = pneg %p322
        $region94: #{cultionet_forward.2} parent=91 // pred_check_branch
          %2880 = sbr.rel (%p2878) target = $region96
        $region95: #{cultionet_forward.2} parent=91 // pred_region
          %p2881 = scmp.lt.s32.totalorder %s35, 1
          %s2882 = scalar_select %p2881, %s35, 1
          %s2883 = smul.addr %s2882, 16
          %s2884 = smul.addr %s2883, 8
          %s2885 = scalar_lea.vmem %s12, %s2884
        $region96: #{cultionet_forward.2} parent=91 // pred_fallthru
          _
        // Predicated region
        $region97: #{cultionet_forward.2} parent=91 // pred_check
          %p2886 = pneg %p348
        $region98: #{cultionet_forward.2} parent=91 // pred_check_branch
          %2888 = sbr.rel (%p2886) target = $region100
        $region99: #{cultionet_forward.2} parent=91 // pred_region
          %s2889 = sand.u32 %s333, 1
          %s2890 = scalar_lea.sflag [#allocation4], %s2889
          %s2891 = sand.u32 %s333, 1
          %s2892 = smul.addr %s2891, 8
          %s2893 = scalar_lea.vmem [#allocation3], %s2892
          %2894 = dma.done %s2890, 128
        $region100: #{cultionet_forward.2} parent=91 // pred_fallthru
          _
        // Predicated region
        $region101: #{cultionet_forward.2} parent=91 // pred_check
          %p2895 = pneg %p374
        $region102: #{cultionet_forward.2} parent=91 // pred_check_branch
          %2897 = sbr.rel (%p2895) target = $region104
        $region103: #{cultionet_forward.2} parent=91 // pred_region
          %p2898 = scmp.lt.s32.totalorder %s35, 1
          %s2899 = scalar_select %p2898, %s35, 1
          %s2900 = smul.addr %s2899, 2
          %s2901 = smul.addr %s2900, 4
          %s2902 = scalar_lea.vmem %s14, %s2901
        $region104: #{cultionet_forward.2} parent=91 // pred_fallthru
          _
      $region92: #{cultionet_forward.2} parent=5 // pred_fallthru
        _
    $region6: #{cultionet_forward.2} parent=1 // loop_footer
      %s28 = sadd.s32 1, %s24
    $region7: #{cultionet_forward.2} parent=1 // loop_footer_branch
      %23 = sbr.rel target = $region3
    $region8: #{cultionet_forward.2} parent=1 // loop_exit
      _
    %2903 = vsyncpa [#allocation4], 1
    %s2904 = scalar_lea.sflag [#allocation4], 1
    %2905 = vsyncpa %s2904, 1

// kernel: cultionet_forward.3
$region0: #{cultionet_forward.3}
  #allocation0 [shape = 'u32[]', space=smem, size = 0x4, offset = 0x4, fixed_abs, tag = 'smem constant byte address 0x4 - core index']
  #allocation1 [shape = 'u32[144,128]{1,0:T(1,128)}', space=vmem, size = 0x12000, scoped, tag = 'internal scratch']
  %s0 = inlined_call_operand.vmem [shape: f32[2,64,256], index: 0, kind: input, shape index: {}]
  %s1 = inlined_call_operand.vmem [shape: f32[2,3,256], index: 1, kind: input, shape index: {}]
  %s2 = inlined_call_operand.vmem [shape: f32[9,256], index: 2, kind: input, shape index: {}]
  %s3 = inlined_call_operand.vmem [shape: f32[9,256], index: 3, kind: input, shape index: {}]
  %s4 = inlined_call_operand.vmem [shape: f32[2,256], index: 4, kind: input, shape index: {}]
  %s5 = inlined_call_operand.vmem [shape: bf16[16,576], index: 5, kind: input, shape index: {}]
  %s6 = inlined_call_operand.vmem [shape: f32[16,1], index: 6, kind: input, shape index: {}]
  %s7 = inlined_call_operand.vmem [shape: bf16[32,144], index: 7, kind: input, shape index: {}]
  %s8 = inlined_call_operand.vmem [shape: f32[32,1], index: 8, kind: input, shape index: {}]
  %s9 = inlined_call_operand.vmem [shape: bf16[16,432], index: 9, kind: input, shape index: {}]
  %s10 = inlined_call_operand.vmem [shape: f32[16,1], index: 10, kind: input, shape index: {}]
  %s11 = inlined_call_operand.vmem [shape: bf16[5,16], index: 11, kind: input, shape index: {}]
  %s12 = inlined_call_operand.vmem [shape: f32[5,1], index: 12, kind: input, shape index: {}]
  %s13 = inlined_call_operand.vmem [shape: bf16[32,64], index: 13, kind: input, shape index: {}]
  %s14 = inlined_call_operand.vmem [shape: bf16[32,5], index: 14, kind: input, shape index: {}]
  %s15 = inlined_call_operand.vmem [shape: f32[32,1], index: 15, kind: input, shape index: {}]
  %s16 = inlined_call_operand.vmem [shape: bf16[32,288], index: 16, kind: input, shape index: {}]
  %s17 = inlined_call_operand.vmem [shape: f32[32,1], index: 17, kind: input, shape index: {}]
  %s18 = inlined_call_operand.vmem [shape: bf16[32,288], index: 18, kind: input, shape index: {}]
  %s19 = inlined_call_operand.vmem [shape: f32[32,1], index: 19, kind: input, shape index: {}]
  %s20 = inlined_call_operand.vmem [shape: bf16[3,32], index: 20, kind: input, shape index: {}]
  %s21 = inlined_call_operand.vmem [shape: f32[3,1], index: 21, kind: input, shape index: {}]
  %s22 = inlined_call_operand.vmem [shape: f32[2,5,256], index: 22, kind: output, shape index: {0}]
  %s23 = inlined_call_operand.hbm [shape: f32[2,3,256], index: 23, kind: output, shape index: {1}]
  %24 = xla_tuple %s22, %s23
  %s25 = sld [smem:[#allocation0]]
  $region129: #{cultionet_forward.3} parent=0
    _
  %s27 = ssub.s32 1, %s25
  %s28 = scalar_select 0, %s27, %s25
  $region1: #{cultionet_forward.3} parent=0
    #allocation2 [shape = 'u8[8192]{0}', space=vmem, size = 0x2000, scoped, tag = 'output window, operand 1']
    #allocation3 [shape = 's32[2]{0}', space=sflag, size = 0x8, scoped, tag = 'scoped memory for cultionet_forward.3']
    %29 = vsyncpa [#allocation3], 0
    %s30 = scalar_lea.sflag [#allocation3], 1
    %31 = vsyncpa %s30, 0
    loop: start=0, step=1, limit=4
    $region2: #{cultionet_forward.3} parent=1 // loop_pre_header
      _
    $region3: #{cultionet_forward.3} parent=1 // loop_header
      %s33 = sphi 0, %s37
      %p34 = scmp.ge.s32.totalorder %s33, 4
      %s43 = sphi 0, %s45
      %s46 = sphi 0, %s43
      %s47 = sphi 0, %s46
      %s63 = sphi 0, %s47
      %s69 = sphi 0, %s71
      %s72 = sphi 0, %s69
      %s73 = sphi 0, %s72
      %s89 = sphi 0, %s73
      %s93 = sphi 0, %s93
      %s95 = sphi 0, %s93
      %s96 = sphi 0, %s95
      %s110 = sphi 0, %s96
      %s114 = sphi 0, %s114
      %s116 = sphi 0, %s114
      %s117 = sphi 0, %s116
      %s131 = sphi 0, %s117
      %s135 = sphi 0, %s135
      %s137 = sphi 0, %s135
      %s138 = sphi 0, %s137
      %s152 = sphi 0, %s138
      %s156 = sphi 0, %s156
      %s158 = sphi 0, %s156
      %s159 = sphi 0, %s158
      %s173 = sphi 0, %s159
      %s177 = sphi 0, %s177
      %s179 = sphi 0, %s177
      %s180 = sphi 0, %s179
      %s194 = sphi 0, %s180
      %s198 = sphi 0, %s198
      %s200 = sphi 0, %s198
      %s201 = sphi 0, %s200
      %s215 = sphi 0, %s201
      %s219 = sphi 0, %s219
      %s221 = sphi 0, %s219
      %s222 = sphi 0, %s221
      %s236 = sphi 0, %s222
      %s240 = sphi 0, %s240
      %s242 = sphi 0, %s240
      %s243 = sphi 0, %s242
      %s257 = sphi 0, %s243
      %s261 = sphi 0, %s261
      %s263 = sphi 0, %s261
      %s264 = sphi 0, %s263
      %s278 = sphi 0, %s264
      %s282 = sphi 0, %s282
      %s284 = sphi 0, %s282
      %s285 = sphi 0, %s284
      %s299 = sphi 0, %s285
      %s303 = sphi 0, %s303
      %s305 = sphi 0, %s303
      %s306 = sphi 0, %s305
      %s320 = sphi 0, %s306
      %s324 = sphi 0, %s324
      %s326 = sphi 0, %s324
      %s327 = sphi 0, %s326
      %s341 = sphi 0, %s327
      %s345 = sphi 0, %s345
      %s347 = sphi 0, %s345
      %s348 = sphi 0, %s347
      %s362 = sphi 0, %s348
      %s366 = sphi 0, %s366
      %s368 = sphi 0, %s366
      %s369 = sphi 0, %s368
      %s383 = sphi 0, %s369
      %s387 = sphi 0, %s387
      %s389 = sphi 0, %s387
      %s390 = sphi 0, %s389
      %s404 = sphi 0, %s390
      %s408 = sphi 0, %s408
      %s410 = sphi 0, %s408
      %s411 = sphi 0, %s410
      %s425 = sphi 0, %s411
      %s429 = sphi 0, %s429
      %s431 = sphi 0, %s429
      %s432 = sphi 0, %s431
      %s446 = sphi 0, %s432
      %s450 = sphi 0, %s450
      %s452 = sphi 0, %s450
      %s453 = sphi 0, %s452
      %s467 = sphi 0, %s453
      %s471 = sphi 0, %s471
      %s473 = sphi 0, %s471
      %s474 = sphi 0, %s473
      %s488 = sphi 0, %s474
      %s492 = sphi 0, %s492
      %s494 = sphi 0, %s492
      %s495 = sphi 0, %s494
      %s509 = sphi 0, %s495
      %s515 = sphi 0, %s517
      %s518 = sphi 0, %s515
      %s519 = sphi 0, %s518
      %s535 = sphi 0, %s519
      %s541 = sphi 0, %s543
      %s544 = sphi 0, %s541
      %s545 = sphi 0, %s544
      %s561 = sphi 0, %s545
    $region4: #{cultionet_forward.3} parent=1 // loop_header_branch
      %36 = sbr.rel (%p34) target = $region8
    $region5: #{cultionet_forward.3} parent=1 // loop_body
      %s38 = ssub.s32 %s33, 1
      %s39 = ssub.s32 %s33, 2
      %s40 = sadd.s32 %s33, 1
      %s41 = ssub.s32 %s33, %s40
      %p42 = scmp.eq.s32.totalorder %s41, 0
      %s44 = sadd.s32 %s43, 1
      %s45 = scalar_select %p42, %s43, %s44
      %p48 = pneg %p42
      %p49 = scmp.eq.s32.totalorder %s33, 1
      %p50 = por %p48, %p49
      %p51 = scmp.ne.s32.totalorder %s43, %s46
      %p52 = scmp.eq.s32.totalorder %s33, 0
      %p53 = por %p51, %p52
      %p54 = scmp.ne.s32.totalorder %s43, %s46
      %p55 = scmp.eq.s32.totalorder %s38, 1
      %p56 = por %p54, %p55
      %p57 = scmp.ne.s32.totalorder %s46, %s47
      %p58 = scmp.eq.s32.totalorder %s38, 0
      %p59 = por %p57, %p58
      %p60 = scmp.ne.s32.totalorder %s46, %s47
      %p61 = scmp.eq.s32.totalorder %s39, 1
      %p62 = por %p60, %p61
      %p64 = scmp.ne.s32.totalorder %s47, %s63
      %p65 = scmp.eq.s32.totalorder %s39, 0
      %p66 = por %p64, %p65
      %s67 = ssub.s32 %s33, %s40
      %p68 = scmp.eq.s32.totalorder %s67, 0
      %s70 = sadd.s32 %s69, 1
      %s71 = scalar_select %p68, %s69, %s70
      %p74 = pneg %p68
      %p75 = scmp.eq.s32.totalorder %s33, 1
      %p76 = por %p74, %p75
      %p77 = scmp.ne.s32.totalorder %s69, %s72
      %p78 = scmp.eq.s32.totalorder %s33, 0
      %p79 = por %p77, %p78
      %p80 = scmp.ne.s32.totalorder %s69, %s72
      %p81 = scmp.eq.s32.totalorder %s38, 1
      %p82 = por %p80, %p81
      %p83 = scmp.ne.s32.totalorder %s72, %s73
      %p84 = scmp.eq.s32.totalorder %s38, 0
      %p85 = por %p83, %p84
      %p86 = scmp.ne.s32.totalorder %s72, %s73
      %p87 = scmp.eq.s32.totalorder %s39, 1
      %p88 = por %p86, %p87
      %p90 = scmp.ne.s32.totalorder %s73, %s89
      %p91 = scmp.eq.s32.totalorder %s39, 0
      %p92 = por %p90, %p91
      %s94 = sadd.s32 %s93, 1
      %p97 = scmp.eq.s32.totalorder %s33, 1
      %p98 = scmp.ne.s32.totalorder %s93, %s95
      %p99 = scmp.eq.s32.totalorder %s33, 0
      %p100 = por %p98, %p99
      %p101 = scmp.ne.s32.totalorder %s93, %s95
      %p102 = scmp.eq.s32.totalorder %s38, 1
      %p103 = por %p101, %p102
      %p104 = scmp.ne.s32.totalorder %s95, %s96
      %p105 = scmp.eq.s32.totalorder %s38, 0
      %p106 = por %p104, %p105
      %p107 = scmp.ne.s32.totalorder %s95, %s96
      %p108 = scmp.eq.s32.totalorder %s39, 1
      %p109 = por %p107, %p108
      %p111 = scmp.ne.s32.totalorder %s96, %s110
      %p112 = scmp.eq.s32.totalorder %s39, 0
      %p113 = por %p111, %p112
      %s115 = sadd.s32 %s114, 1
      %p118 = scmp.eq.s32.totalorder %s33, 1
      %p119 = scmp.ne.s32.totalorder %s114, %s116
      %p120 = scmp.eq.s32.totalorder %s33, 0
      %p121 = por %p119, %p120
      %p122 = scmp.ne.s32.totalorder %s114, %s116
      %p123 = scmp.eq.s32.totalorder %s38, 1
      %p124 = por %p122, %p123
      %p125 = scmp.ne.s32.totalorder %s116, %s117
      %p126 = scmp.eq.s32.totalorder %s38, 0
      %p127 = por %p125, %p126
      %p128 = scmp.ne.s32.totalorder %s116, %s117
      %p129 = scmp.eq.s32.totalorder %s39, 1
      %p130 = por %p128, %p129
      %p132 = scmp.ne.s32.totalorder %s117, %s131
      %p133 = scmp.eq.s32.totalorder %s39, 0
      %p134 = por %p132, %p133
      %s136 = sadd.s32 %s135, 1
      %p139 = scmp.eq.s32.totalorder %s33, 1
      %p140 = scmp.ne.s32.totalorder %s135, %s137
      %p141 = scmp.eq.s32.totalorder %s33, 0
      %p142 = por %p140, %p141
      %p143 = scmp.ne.s32.totalorder %s135, %s137
      %p144 = scmp.eq.s32.totalorder %s38, 1
      %p145 = por %p143, %p144
      %p146 = scmp.ne.s32.totalorder %s137, %s138
      %p147 = scmp.eq.s32.totalorder %s38, 0
      %p148 = por %p146, %p147
      %p149 = scmp.ne.s32.totalorder %s137, %s138
      %p150 = scmp.eq.s32.totalorder %s39, 1
      %p151 = por %p149, %p150
      %p153 = scmp.ne.s32.totalorder %s138, %s152
      %p154 = scmp.eq.s32.totalorder %s39, 0
      %p155 = por %p153, %p154
      %s157 = sadd.s32 %s156, 1
      %p160 = scmp.eq.s32.totalorder %s33, 1
      %p161 = scmp.ne.s32.totalorder %s156, %s158
      %p162 = scmp.eq.s32.totalorder %s33, 0
      %p163 = por %p161, %p162
      %p164 = scmp.ne.s32.totalorder %s156, %s158
      %p165 = scmp.eq.s32.totalorder %s38, 1
      %p166 = por %p164, %p165
      %p167 = scmp.ne.s32.totalorder %s158, %s159
      %p168 = scmp.eq.s32.totalorder %s38, 0
      %p169 = por %p167, %p168
      %p170 = scmp.ne.s32.totalorder %s158, %s159
      %p171 = scmp.eq.s32.totalorder %s39, 1
      %p172 = por %p170, %p171
      %p174 = scmp.ne.s32.totalorder %s159, %s173
      %p175 = scmp.eq.s32.totalorder %s39, 0
      %p176 = por %p174, %p175
      %s178 = sadd.s32 %s177, 1
      %p181 = scmp.eq.s32.totalorder %s33, 1
      %p182 = scmp.ne.s32.totalorder %s177, %s179
      %p183 = scmp.eq.s32.totalorder %s33, 0
      %p184 = por %p182, %p183
      %p185 = scmp.ne.s32.totalorder %s177, %s179
      %p186 = scmp.eq.s32.totalorder %s38, 1
      %p187 = por %p185, %p186
      %p188 = scmp.ne.s32.totalorder %s179, %s180
      %p189 = scmp.eq.s32.totalorder %s38, 0
      %p190 = por %p188, %p189
      %p191 = scmp.ne.s32.totalorder %s179, %s180
      %p192 = scmp.eq.s32.totalorder %s39, 1
      %p193 = por %p191, %p192
      %p195 = scmp.ne.s32.totalorder %s180, %s194
      %p196 = scmp.eq.s32.totalorder %s39, 0
      %p197 = por %p195, %p196
      %s199 = sadd.s32 %s198, 1
      %p202 = scmp.eq.s32.totalorder %s33, 1
      %p203 = scmp.ne.s32.totalorder %s198, %s200
      %p204 = scmp.eq.s32.totalorder %s33, 0
      %p205 = por %p203, %p204
      %p206 = scmp.ne.s32.totalorder %s198, %s200
      %p207 = scmp.eq.s32.totalorder %s38, 1
      %p208 = por %p206, %p207
      %p209 = scmp.ne.s32.totalorder %s200, %s201
      %p210 = scmp.eq.s32.totalorder %s38, 0
      %p211 = por %p209, %p210
      %p212 = scmp.ne.s32.totalorder %s200, %s201
      %p213 = scmp.eq.s32.totalorder %s39, 1
      %p214 = por %p212, %p213
      %p216 = scmp.ne.s32.totalorder %s201, %s215
      %p217 = scmp.eq.s32.totalorder %s39, 0
      %p218 = por %p216, %p217
      %s220 = sadd.s32 %s219, 1
      %p223 = scmp.eq.s32.totalorder %s33, 1
      %p224 = scmp.ne.s32.totalorder %s219, %s221
      %p225 = scmp.eq.s32.totalorder %s33, 0
      %p226 = por %p224, %p225
      %p227 = scmp.ne.s32.totalorder %s219, %s221
      %p228 = scmp.eq.s32.totalorder %s38, 1
      %p229 = por %p227, %p228
      %p230 = scmp.ne.s32.totalorder %s221, %s222
      %p231 = scmp.eq.s32.totalorder %s38, 0
      %p232 = por %p230, %p231
      %p233 = scmp.ne.s32.totalorder %s221, %s222
      %p234 = scmp.eq.s32.totalorder %s39, 1
      %p235 = por %p233, %p234
      %p237 = scmp.ne.s32.totalorder %s222, %s236
      %p238 = scmp.eq.s32.totalorder %s39, 0
      %p239 = por %p237, %p238
      %s241 = sadd.s32 %s240, 1
      %p244 = scmp.eq.s32.totalorder %s33, 1
      %p245 = scmp.ne.s32.totalorder %s240, %s242
      %p246 = scmp.eq.s32.totalorder %s33, 0
      %p247 = por %p245, %p246
      %p248 = scmp.ne.s32.totalorder %s240, %s242
      %p249 = scmp.eq.s32.totalorder %s38, 1
      %p250 = por %p248, %p249
      %p251 = scmp.ne.s32.totalorder %s242, %s243
      %p252 = scmp.eq.s32.totalorder %s38, 0
      %p253 = por %p251, %p252
      %p254 = scmp.ne.s32.totalorder %s242, %s243
      %p255 = scmp.eq.s32.totalorder %s39, 1
      %p256 = por %p254, %p255
      %p258 = scmp.ne.s32.totalorder %s243, %s257
      %p259 = scmp.eq.s32.totalorder %s39, 0
      %p260 = por %p258, %p259
      %s262 = sadd.s32 %s261, 1
      %p265 = scmp.eq.s32.totalorder %s33, 1
      %p266 = scmp.ne.s32.totalorder %s261, %s263
      %p267 = scmp.eq.s32.totalorder %s33, 0
      %p268 = por %p266, %p267
      %p269 = scmp.ne.s32.totalorder %s261, %s263
      %p270 = scmp.eq.s32.totalorder %s38, 1
      %p271 = por %p269, %p270
      %p272 = scmp.ne.s32.totalorder %s263, %s264
      %p273 = scmp.eq.s32.totalorder %s38, 0
      %p274 = por %p272, %p273
      %p275 = scmp.ne.s32.totalorder %s263, %s264
      %p276 = scmp.eq.s32.totalorder %s39, 1
      %p277 = por %p275, %p276
      %p279 = scmp.ne.s32.totalorder %s264, %s278
      %p280 = scmp.eq.s32.totalorder %s39, 0
      %p281 = por %p279, %p280
      %s283 = sadd.s32 %s282, 1
      %p286 = scmp.eq.s32.totalorder %s33, 1
      %p287 = scmp.ne.s32.totalorder %s282, %s284
      %p288 = scmp.eq.s32.totalorder %s33, 0
      %p289 = por %p287, %p288
      %p290 = scmp.ne.s32.totalorder %s282, %s284
      %p291 = scmp.eq.s32.totalorder %s38, 1
      %p292 = por %p290, %p291
      %p293 = scmp.ne.s32.totalorder %s284, %s285
      %p294 = scmp.eq.s32.totalorder %s38, 0
      %p295 = por %p293, %p294
      %p296 = scmp.ne.s32.totalorder %s284, %s285
      %p297 = scmp.eq.s32.totalorder %s39, 1
      %p298 = por %p296, %p297
      %p300 = scmp.ne.s32.totalorder %s285, %s299
      %p301 = scmp.eq.s32.totalorder %s39, 0
      %p302 = por %p300, %p301
      %s304 = sadd.s32 %s303, 1
      %p307 = scmp.eq.s32.totalorder %s33, 1
      %p308 = scmp.ne.s32.totalorder %s303, %s305
      %p309 = scmp.eq.s32.totalorder %s33, 0
      %p310 = por %p308, %p309
      %p311 = scmp.ne.s32.totalorder %s303, %s305
      %p312 = scmp.eq.s32.totalorder %s38, 1
      %p313 = por %p311, %p312
      %p314 = scmp.ne.s32.totalorder %s305, %s306
      %p315 = scmp.eq.s32.totalorder %s38, 0
      %p316 = por %p314, %p315
      %p317 = scmp.ne.s32.totalorder %s305, %s306
      %p318 = scmp.eq.s32.totalorder %s39, 1
      %p319 = por %p317, %p318
      %p321 = scmp.ne.s32.totalorder %s306, %s320
      %p322 = scmp.eq.s32.totalorder %s39, 0
      %p323 = por %p321, %p322
      %s325 = sadd.s32 %s324, 1
      %p328 = scmp.eq.s32.totalorder %s33, 1
      %p329 = scmp.ne.s32.totalorder %s324, %s326
      %p330 = scmp.eq.s32.totalorder %s33, 0
      %p331 = por %p329, %p330
      %p332 = scmp.ne.s32.totalorder %s324, %s326
      %p333 = scmp.eq.s32.totalorder %s38, 1
      %p334 = por %p332, %p333
      %p335 = scmp.ne.s32.totalorder %s326, %s327
      %p336 = scmp.eq.s32.totalorder %s38, 0
      %p337 = por %p335, %p336
      %p338 = scmp.ne.s32.totalorder %s326, %s327
      %p339 = scmp.eq.s32.totalorder %s39, 1
      %p340 = por %p338, %p339
      %p342 = scmp.ne.s32.totalorder %s327, %s341
      %p343 = scmp.eq.s32.totalorder %s39, 0
      %p344 = por %p342, %p343
      %s346 = sadd.s32 %s345, 1
      %p349 = scmp.eq.s32.totalorder %s33, 1
      %p350 = scmp.ne.s32.totalorder %s345, %s347
      %p351 = scmp.eq.s32.totalorder %s33, 0
      %p352 = por %p350, %p351
      %p353 = scmp.ne.s32.totalorder %s345, %s347
      %p354 = scmp.eq.s32.totalorder %s38, 1
      %p355 = por %p353, %p354
      %p356 = scmp.ne.s32.totalorder %s347, %s348
      %p357 = scmp.eq.s32.totalorder %s38, 0
      %p358 = por %p356, %p357
      %p359 = scmp.ne.s32.totalorder %s347, %s348
      %p360 = scmp.eq.s32.totalorder %s39, 1
      %p361 = por %p359, %p360
      %p363 = scmp.ne.s32.totalorder %s348, %s362
      %p364 = scmp.eq.s32.totalorder %s39, 0
      %p365 = por %p363, %p364
      %s367 = sadd.s32 %s366, 1
      %p370 = scmp.eq.s32.totalorder %s33, 1
      %p371 = scmp.ne.s32.totalorder %s366, %s368
      %p372 = scmp.eq.s32.totalorder %s33, 0
      %p373 = por %p371, %p372
      %p374 = scmp.ne.s32.totalorder %s366, %s368
      %p375 = scmp.eq.s32.totalorder %s38, 1
      %p376 = por %p374, %p375
      %p377 = scmp.ne.s32.totalorder %s368, %s369
      %p378 = scmp.eq.s32.totalorder %s38, 0
      %p379 = por %p377, %p378
      %p380 = scmp.ne.s32.totalorder %s368, %s369
      %p381 = scmp.eq.s32.totalorder %s39, 1
      %p382 = por %p380, %p381
      %p384 = scmp.ne.s32.totalorder %s369, %s383
      %p385 = scmp.eq.s32.totalorder %s39, 0
      %p386 = por %p384, %p385
      %s388 = sadd.s32 %s387, 1
      %p391 = scmp.eq.s32.totalorder %s33, 1
      %p392 = scmp.ne.s32.totalorder %s387, %s389
      %p393 = scmp.eq.s32.totalorder %s33, 0
      %p394 = por %p392, %p393
      %p395 = scmp.ne.s32.totalorder %s387, %s389
      %p396 = scmp.eq.s32.totalorder %s38, 1
      %p397 = por %p395, %p396
      %p398 = scmp.ne.s32.totalorder %s389, %s390
      %p399 = scmp.eq.s32.totalorder %s38, 0
      %p400 = por %p398, %p399
      %p401 = scmp.ne.s32.totalorder %s389, %s390
      %p402 = scmp.eq.s32.totalorder %s39, 1
      %p403 = por %p401, %p402
      %p405 = scmp.ne.s32.totalorder %s390, %s404
      %p406 = scmp.eq.s32.totalorder %s39, 0
      %p407 = por %p405, %p406
      %s409 = sadd.s32 %s408, 1
      %p412 = scmp.eq.s32.totalorder %s33, 1
      %p413 = scmp.ne.s32.totalorder %s408, %s410
      %p414 = scmp.eq.s32.totalorder %s33, 0
      %p415 = por %p413, %p414
      %p416 = scmp.ne.s32.totalorder %s408, %s410
      %p417 = scmp.eq.s32.totalorder %s38, 1
      %p418 = por %p416, %p417
      %p419 = scmp.ne.s32.totalorder %s410, %s411
      %p420 = scmp.eq.s32.totalorder %s38, 0
      %p421 = por %p419, %p420
      %p422 = scmp.ne.s32.totalorder %s410, %s411
      %p423 = scmp.eq.s32.totalorder %s39, 1
      %p424 = por %p422, %p423
      %p426 = scmp.ne.s32.totalorder %s411, %s425
      %p427 = scmp.eq.s32.totalorder %s39, 0
      %p428 = por %p426, %p427
      %s430 = sadd.s32 %s429, 1
      %p433 = scmp.eq.s32.totalorder %s33, 1
      %p434 = scmp.ne.s32.totalorder %s429, %s431
      %p435 = scmp.eq.s32.totalorder %s33, 0
      %p436 = por %p434, %p435
      %p437 = scmp.ne.s32.totalorder %s429, %s431
      %p438 = scmp.eq.s32.totalorder %s38, 1
      %p439 = por %p437, %p438
      %p440 = scmp.ne.s32.totalorder %s431, %s432
      %p441 = scmp.eq.s32.totalorder %s38, 0
      %p442 = por %p440, %p441
      %p443 = scmp.ne.s32.totalorder %s431, %s432
      %p444 = scmp.eq.s32.totalorder %s39, 1
      %p445 = por %p443, %p444
      %p447 = scmp.ne.s32.totalorder %s432, %s446
      %p448 = scmp.eq.s32.totalorder %s39, 0
      %p449 = por %p447, %p448
      %s451 = sadd.s32 %s450, 1
      %p454 = scmp.eq.s32.totalorder %s33, 1
      %p455 = scmp.ne.s32.totalorder %s450, %s452
      %p456 = scmp.eq.s32.totalorder %s33, 0
      %p457 = por %p455, %p456
      %p458 = scmp.ne.s32.totalorder %s450, %s452
      %p459 = scmp.eq.s32.totalorder %s38, 1
      %p460 = por %p458, %p459
      %p461 = scmp.ne.s32.totalorder %s452, %s453
      %p462 = scmp.eq.s32.totalorder %s38, 0
      %p463 = por %p461, %p462
      %p464 = scmp.ne.s32.totalorder %s452, %s453
      %p465 = scmp.eq.s32.totalorder %s39, 1
      %p466 = por %p464, %p465
      %p468 = scmp.ne.s32.totalorder %s453, %s467
      %p469 = scmp.eq.s32.totalorder %s39, 0
      %p470 = por %p468, %p469
      %s472 = sadd.s32 %s471, 1
      %p475 = scmp.eq.s32.totalorder %s33, 1
      %p476 = scmp.ne.s32.totalorder %s471, %s473
      %p477 = scmp.eq.s32.totalorder %s33, 0
      %p478 = por %p476, %p477
      %p479 = scmp.ne.s32.totalorder %s471, %s473
      %p480 = scmp.eq.s32.totalorder %s38, 1
      %p481 = por %p479, %p480
      %p482 = scmp.ne.s32.totalorder %s473, %s474
      %p483 = scmp.eq.s32.totalorder %s38, 0
      %p484 = por %p482, %p483
      %p485 = scmp.ne.s32.totalorder %s473, %s474
      %p486 = scmp.eq.s32.totalorder %s39, 1
      %p487 = por %p485, %p486
      %p489 = scmp.ne.s32.totalorder %s474, %s488
      %p490 = scmp.eq.s32.totalorder %s39, 0
      %p491 = por %p489, %p490
      %s493 = sadd.s32 %s492, 1
      %p496 = scmp.eq.s32.totalorder %s33, 1
      %p497 = scmp.ne.s32.totalorder %s492, %s494
      %p498 = scmp.eq.s32.totalorder %s33, 0
      %p499 = por %p497, %p498
      %p500 = scmp.ne.s32.totalorder %s492, %s494
      %p501 = scmp.eq.s32.totalorder %s38, 1
      %p502 = por %p500, %p501
      %p503 = scmp.ne.s32.totalorder %s494, %s495
      %p504 = scmp.eq.s32.totalorder %s38, 0
      %p505 = por %p503, %p504
      %p506 = scmp.ne.s32.totalorder %s494, %s495
      %p507 = scmp.eq.s32.totalorder %s39, 1
      %p508 = por %p506, %p507
      %p510 = scmp.ne.s32.totalorder %s495, %s509
      %p511 = scmp.eq.s32.totalorder %s39, 0
      %p512 = por %p510, %p511
      %s513 = ssub.s32 %s33, %s40
      %p514 = scmp.eq.s32.totalorder %s513, 0
      %s516 = sadd.s32 %s515, 1
      %s517 = scalar_select %p514, %s515, %s516
      %p520 = pneg %p514
      %p521 = scmp.eq.s32.totalorder %s33, 1
      %p522 = por %p520, %p521
      %p523 = scmp.ne.s32.totalorder %s515, %s518
      %p524 = scmp.eq.s32.totalorder %s33, 0
      %p525 = por %p523, %p524
      %p526 = scmp.ne.s32.totalorder %s515, %s518
      %p527 = scmp.eq.s32.totalorder %s38, 1
      %p528 = por %p526, %p527
      %p529 = scmp.ne.s32.totalorder %s518, %s519
      %p530 = scmp.eq.s32.totalorder %s38, 0
      %p531 = por %p529, %p530
      %p532 = scmp.ne.s32.totalorder %s518, %s519
      %p533 = scmp.eq.s32.totalorder %s39, 1
      %p534 = por %p532, %p533
      %p536 = scmp.ne.s32.totalorder %s519, %s535
      %p537 = scmp.eq.s32.totalorder %s39, 0
      %p538 = por %p536, %p537
      %s539 = ssub.s32 %s33, %s40
      %p540 = scmp.eq.s32.totalorder %s539, 0
      %s542 = sadd.s32 %s541, 1
      %s543 = scalar_select %p540, %s541, %s542
      %p546 = pneg %p540
      %p547 = scmp.eq.s32.totalorder %s33, 1
      %p548 = por %p546, %p547
      %p549 = scmp.ne.s32.totalorder %s541, %s544
      %p550 = scmp.eq.s32.totalorder %s33, 0
      %p551 = por %p549, %p550
      %p552 = scmp.ne.s32.totalorder %s541, %s544
      %p553 = scmp.eq.s32.totalorder %s38, 1
      %p554 = por %p552, %p553
      %p555 = scmp.ne.s32.totalorder %s544, %s545
      %p556 = scmp.eq.s32.totalorder %s38, 0
      %p557 = por %p555, %p556
      %p558 = scmp.ne.s32.totalorder %s544, %s545
      %p559 = scmp.eq.s32.totalorder %s39, 1
      %p560 = por %p558, %p559
      %p562 = scmp.ne.s32.totalorder %s545, %s561
      %p563 = scmp.eq.s32.totalorder %s39, 0
      %p564 = por %p562, %p563
      %p565 = scmp.le.s32.totalorder 1, %s33
      %p566 = scmp.lt.s32.totalorder %s33, 3
      %p567 = pnand %p565, %p566
      %p568 = pneg %p567
      // Predicated region
      $region9: #{cultionet_forward.3} parent=5 // pred_check
        _
      $region10: #{cultionet_forward.3} parent=5 // pred_check_branch
        %570 = sbr.rel (%p567) target = $region12
      $region11: #{cultionet_forward.3} parent=5 // pred_region
        %s571 = ssub.s32 %s33, 1
        // Predicated region
        $region13: #{cultionet_forward.3} parent=11 // pred_check
          %p572 = pneg %p106
        $region14: #{cultionet_forward.3} parent=11 // pred_check_branch
          %574 = sbr.rel (%p572) target = $region16
        $region15: #{cultionet_forward.3} parent=11 // pred_region
          _
        $region16: #{cultionet_forward.3} parent=11 // pred_fallthru
          _
        // Predicated region
        $region17: #{cultionet_forward.3} parent=11 // pred_check
          %p575 = pneg %p127
        $region18: #{cultionet_forward.3} parent=11 // pred_check_branch
          %577 = sbr.rel (%p575) target = $region20
        $region19: #{cultionet_forward.3} parent=11 // pred_region
          _
        $region20: #{cultionet_forward.3} parent=11 // pred_fallthru
          _
        // Predicated region
        $region21: #{cultionet_forward.3} parent=11 // pred_check
          %p578 = pneg %p148
        $region22: #{cultionet_forward.3} parent=11 // pred_check_branch
          %580 = sbr.rel (%p578) target = $region24
        $region23: #{cultionet_forward.3} parent=11 // pred_region
          _
        $region24: #{cultionet_forward.3} parent=11 // pred_fallthru
          _
        // Predicated region
        $region25: #{cultionet_forward.3} parent=11 // pred_check
          %p581 = pneg %p169
        $region26: #{cultionet_forward.3} parent=11 // pred_check_branch
          %583 = sbr.rel (%p581) target = $region28
        $region27: #{cultionet_forward.3} parent=11 // pred_region
          _
        $region28: #{cultionet_forward.3} parent=11 // pred_fallthru
          _
        // Predicated region
        $region29: #{cultionet_forward.3} parent=11 // pred_check
          %p584 = pneg %p190
        $region30: #{cultionet_forward.3} parent=11 // pred_check_branch
          %586 = sbr.rel (%p584) target = $region32
        $region31: #{cultionet_forward.3} parent=11 // pred_region
          _
        $region32: #{cultionet_forward.3} parent=11 // pred_fallthru
          _
        // Predicated region
        $region33: #{cultionet_forward.3} parent=11 // pred_check
          %p587 = pneg %p211
        $region34: #{cultionet_forward.3} parent=11 // pred_check_branch
          %589 = sbr.rel (%p587) target = $region36
        $region35: #{cultionet_forward.3} parent=11 // pred_region
          _
        $region36: #{cultionet_forward.3} parent=11 // pred_fallthru
          _
        // Predicated region
        $region37: #{cultionet_forward.3} parent=11 // pred_check
          %p590 = pneg %p232
        $region38: #{cultionet_forward.3} parent=11 // pred_check_branch
          %592 = sbr.rel (%p590) target = $region40
        $region39: #{cultionet_forward.3} parent=11 // pred_region
          _
        $region40: #{cultionet_forward.3} parent=11 // pred_fallthru
          _
        // Predicated region
        $region41: #{cultionet_forward.3} parent=11 // pred_check
          %p593 = pneg %p253
        $region42: #{cultionet_forward.3} parent=11 // pred_check_branch
          %595 = sbr.rel (%p593) target = $region44
        $region43: #{cultionet_forward.3} parent=11 // pred_region
          _
        $region44: #{cultionet_forward.3} parent=11 // pred_fallthru
          _
        // Predicated region
        $region45: #{cultionet_forward.3} parent=11 // pred_check
          %p596 = pneg %p274
        $region46: #{cultionet_forward.3} parent=11 // pred_check_branch
          %598 = sbr.rel (%p596) target = $region48
        $region47: #{cultionet_forward.3} parent=11 // pred_region
          _
        $region48: #{cultionet_forward.3} parent=11 // pred_fallthru
          _
        // Predicated region
        $region49: #{cultionet_forward.3} parent=11 // pred_check
          %p599 = pneg %p295
        $region50: #{cultionet_forward.3} parent=11 // pred_check_branch
          %601 = sbr.rel (%p599) target = $region52
        $region51: #{cultionet_forward.3} parent=11 // pred_region
          _
        $region52: #{cultionet_forward.3} parent=11 // pred_fallthru
          _
        // Predicated region
        $region53: #{cultionet_forward.3} parent=11 // pred_check
          %p602 = pneg %p316
        $region54: #{cultionet_forward.3} parent=11 // pred_check_branch
          %604 = sbr.rel (%p602) target = $region56
        $region55: #{cultionet_forward.3} parent=11 // pred_region
          _
        $region56: #{cultionet_forward.3} parent=11 // pred_fallthru
          _
        // Predicated region
        $region57: #{cultionet_forward.3} parent=11 // pred_check
          %p605 = pneg %p337
        $region58: #{cultionet_forward.3} parent=11 // pred_check_branch
          %607 = sbr.rel (%p605) target = $region60
        $region59: #{cultionet_forward.3} parent=11 // pred_region
          _
        $region60: #{cultionet_forward.3} parent=11 // pred_fallthru
          _
        // Predicated region
        $region61: #{cultionet_forward.3} parent=11 // pred_check
          %p608 = pneg %p358
        $region62: #{cultionet_forward.3} parent=11 // pred_check_branch
          %610 = sbr.rel (%p608) target = $region64
        $region63: #{cultionet_forward.3} parent=11 // pred_region
          _
        $region64: #{cultionet_forward.3} parent=11 // pred_fallthru
          _
        // Predicated region
        $region65: #{cultionet_forward.3} parent=11 // pred_check
          %p611 = pneg %p379
        $region66: #{cultionet_forward.3} parent=11 // pred_check_branch
          %613 = sbr.rel (%p611) target = $region68
        $region67: #{cultionet_forward.3} parent=11 // pred_region
          _
        $region68: #{cultionet_forward.3} parent=11 // pred_fallthru
          _
        // Predicated region
        $region69: #{cultionet_forward.3} parent=11 // pred_check
          %p614 = pneg %p400
        $region70: #{cultionet_forward.3} parent=11 // pred_check_branch
          %616 = sbr.rel (%p614) target = $region72
        $region71: #{cultionet_forward.3} parent=11 // pred_region
          _
        $region72: #{cultionet_forward.3} parent=11 // pred_fallthru
          _
        // Predicated region
        $region73: #{cultionet_forward.3} parent=11 // pred_check
          %p617 = pneg %p421
        $region74: #{cultionet_forward.3} parent=11 // pred_check_branch
          %619 = sbr.rel (%p617) target = $region76
        $region75: #{cultionet_forward.3} parent=11 // pred_region
          _
        $region76: #{cultionet_forward.3} parent=11 // pred_fallthru
          _
        // Predicated region
        $region77: #{cultionet_forward.3} parent=11 // pred_check
          %p620 = pneg %p442
        $region78: #{cultionet_forward.3} parent=11 // pred_check_branch
          %622 = sbr.rel (%p620) target = $region80
        $region79: #{cultionet_forward.3} parent=11 // pred_region
          _
        $region80: #{cultionet_forward.3} parent=11 // pred_fallthru
          _
        // Predicated region
        $region81: #{cultionet_forward.3} parent=11 // pred_check
          %p623 = pneg %p463
        $region82: #{cultionet_forward.3} parent=11 // pred_check_branch
          %625 = sbr.rel (%p623) target = $region84
        $region83: #{cultionet_forward.3} parent=11 // pred_region
          _
        $region84: #{cultionet_forward.3} parent=11 // pred_fallthru
          _
        // Predicated region
        $region85: #{cultionet_forward.3} parent=11 // pred_check
          %p626 = pneg %p484
        $region86: #{cultionet_forward.3} parent=11 // pred_check_branch
          %628 = sbr.rel (%p626) target = $region88
        $region87: #{cultionet_forward.3} parent=11 // pred_region
          _
        $region88: #{cultionet_forward.3} parent=11 // pred_fallthru
          _
        // Predicated region
        $region89: #{cultionet_forward.3} parent=11 // pred_check
          %p629 = pneg %p505
        $region90: #{cultionet_forward.3} parent=11 // pred_check_branch
          %631 = sbr.rel (%p629) target = $region92
        $region91: #{cultionet_forward.3} parent=11 // pred_region
          _
        $region92: #{cultionet_forward.3} parent=11 // pred_fallthru
          _
      $region12: #{cultionet_forward.3} parent=5 // pred_fallthru
        _
      %p632 = scmp.lt.s32.totalorder %s33, 2
      // Predicated region
      $region93: #{cultionet_forward.3} parent=5 // pred_check
        %p633 = pneg %p632
      $region94: #{cultionet_forward.3} parent=5 // pred_check_branch
        %635 = sbr.rel (%p633) target = $region96
      $region95: #{cultionet_forward.3} parent=5 // pred_region
        // Predicated region
        $region97: #{cultionet_forward.3} parent=95 // pred_check
          %p636 = pneg %p53
        $region98: #{cultionet_forward.3} parent=95 // pred_check_branch
          %638 = sbr.rel (%p636) target = $region100
        $region99: #{cultionet_forward.3} parent=95 // pred_region
          %p639 = scmp.lt.s32.totalorder %s33, 1
          %s640 = scalar_select %p639, %s33, 1
          %s641 = smul.addr %s640, 16
          %s642 = smul.addr %s641, 8
          %s643 = scalar_lea.vmem %s0, %s642
        $region100: #{cultionet_forward.3} parent=95 // pred_fallthru
          _
        // Predicated region
        $region101: #{cultionet_forward.3} parent=95 // pred_check
          %p644 = pneg %p79
        $region102: #{cultionet_forward.3} parent=95 // pred_check_branch
          %646 = sbr.rel (%p644) target = $region104
        $region103: #{cultionet_forward.3} parent=95 // pred_region
          %p647 = scmp.lt.s32.totalorder %s33, 1
          %s648 = scalar_select %p647, %s33, 1
          %s649 = smul.addr %s648, 2
          %s650 = smul.addr %s649, 4
          %s651 = scalar_lea.vmem %s1, %s650
        $region104: #{cultionet_forward.3} parent=95 // pred_fallthru
          _
      $region96: #{cultionet_forward.3} parent=5 // pred_fallthru
        _
      %p652 = scmp.le.s32.totalorder 1, %s33
      %p653 = scmp.lt.s32.totalorder %s33, 3
      %p654 = pnand %p652, %p653
      %p655 = pneg %p654
      // Predicated region
      $region105: #{cultionet_forward.3} parent=5 // pred_check
        _
      $region106: #{cultionet_forward.3} parent=5 // pred_check_branch
        %657 = sbr.rel (%p654) target = $region108
      $region107: #{cultionet_forward.3} parent=5 // pred_region
        %s658 = ssub.s32 %s33, 1
        %p659 = scmp.lt.s32.totalorder %s38, 1
        %s660 = scalar_select %p659, %s38, 1
        %s661 = smul.addr %s660, 16
        %s662 = smul.addr %s661, 8
        %s663 = scalar_lea.vmem %s0, %s662
        %p664 = pneg %p59
        %p665 = pneg %p56
        %p666 = scmp.lt.s32.totalorder %s38, 1
        %s667 = scalar_select %p666, %s38, 1
        %s668 = smul.addr %s667, 2
        %s669 = smul.addr %s668, 4
        %s670 = scalar_lea.vmem %s1, %s669
        %p671 = pneg %p85
        %p672 = pneg %p82
        %p673 = pneg %p106
        %p674 = pneg %p103
        %p675 = pneg %p127
        %p676 = pneg %p124
        %p677 = pneg %p148
        %p678 = pneg %p145
        %p679 = pneg %p169
        %p680 = pneg %p166
        %p681 = pneg %p190
        %p682 = pneg %p187
        %p683 = pneg %p211
        %p684 = pneg %p208
        %p685 = pneg %p232
        %p686 = pneg %p229
        %p687 = pneg %p253
        %p688 = pneg %p250
        %p689 = pneg %p274
        %p690 = pneg %p271
        %p691 = pneg %p295
        %p692 = pneg %p292
        %p693 = pneg %p316
        %p694 = pneg %p313
        %p695 = pneg %p337
        %p696 = pneg %p334
        %p697 = pneg %p358
        %p698 = pneg %p355
        %p699 = pneg %p379
        %p700 = pneg %p376
        %p701 = pneg %p400
        %p702 = pneg %p397
        %p703 = pneg %p421
        %p704 = pneg %p418
        %p705 = pneg %p442
        %p706 = pneg %p439
        %p707 = pneg %p463
        %p708 = pneg %p460
        %p709 = pneg %p484
        %p710 = pneg %p481
        %p711 = pneg %p505
        %p712 = pneg %p502
        %p713 = pneg %p531
        %p714 = pneg %p528
        %p715 = scmp.lt.s32.totalorder %s38, 1
        %s716 = scalar_select %p715, %s38, 1
        %s717 = smul.addr %s716, 2
        %s718 = smul.addr %s717, 8
        %s719 = scalar_lea.vmem %s22, %s718
        %p720 = pneg %p557
        %p721 = pneg %p554
        %s722 = sand.u32 %s544, 1
        %s723 = scalar_lea.sflag [#allocation3], %s722
        %s724 = sand.u32 %s544, 1
        %s725 = smul.addr %s724, 8
        %s726 = scalar_lea.vmem [#allocation2], %s725
        %p727 = scmp.lt.s32.totalorder %s38, 1
        %s728 = scalar_select %p727, %s38, 1
        %s729 = smul.addr %s728, 16
        %s730 = smul.addr %s729, 8
        %s731 = scalar_lea.vmem %s0, %s730
        %p732 = scmp.lt.s32.totalorder %s38, 1
        %s733 = scalar_select %p732, %s38, 1
        %s734 = smul.addr %s733, 2
        %s735 = smul.addr %s734, 4
        %s736 = scalar_lea.vmem %s1, %s735
        %p737 = scmp.lt.s32.totalorder %s38, 1
        %s738 = scalar_select %p737, %s38, 1
        %s739 = smul.addr %s738, 2
        %s740 = smul.addr %s739, 8
        %s741 = scalar_lea.vmem %s22, %s740
        %v743 = vld [vmem:[%s2] sm:$0xff]
        %v744 = vld [vmem:[%s2 + $0x8] sm:$0xff]
        %v745 = vld [vmem:[%s2 + $0x10] sm:$0x1]
        %v746 = vld [vmem:[%s2 + $0x18] sm:$0x1]
        %v747 = vld [vmem:[%s3] sm:$0xff]
        %v748 = vld [vmem:[%s3 + $0x8] sm:$0xff]
        %v749 = vld [vmem:[%s3 + $0x10] sm:$0x1]
        %v750 = vld [vmem:[%s3 + $0x18] sm:$0x1]
        %v751 = vld [vmem:[%s731] sm:$0xff]
        %v752 = vld [vmem:[%s731 + $0x8] sm:$0xff]
        %v753 = vld [vmem:[%s731 + $0x10] sm:$0xff]
        %v754 = vld [vmem:[%s731 + $0x18] sm:$0xff]
        %v755 = vld [vmem:[%s731 + $0x20] sm:$0xff]
        %v756 = vld [vmem:[%s731 + $0x28] sm:$0xff]
        %v757 = vld [vmem:[%s731 + $0x30] sm:$0xff]
        %v758 = vld [vmem:[%s731 + $0x38] sm:$0xff]
        %v759 = vld [vmem:[%s731 + $0x40] sm:$0xff]
        %v760 = vld [vmem:[%s731 + $0x48] sm:$0xff]
        %v761 = vld [vmem:[%s731 + $0x50] sm:$0xff]
        %v762 = vld [vmem:[%s731 + $0x58] sm:$0xff]
        %v763 = vld [vmem:[%s731 + $0x60] sm:$0xff]
        %v764 = vld [vmem:[%s731 + $0x68] sm:$0xff]
        %v765 = vld [vmem:[%s731 + $0x70] sm:$0xff]
        %v766 = vld [vmem:[%s731 + $0x78] sm:$0xff]
        %767 = vrot.lane.b32.xlu0 %v751, 17
        %v768 = vpop.permute.xlu0 %767
        %769 = vrot.lane.b32.xlu0 %v753, 17
        %v770 = vpop.permute.xlu0 %769
        %771 = vrot.lane.b32.xlu0 %v755, 17
        %v772 = vpop.permute.xlu0 %771
        %773 = vrot.lane.b32.xlu0 %v757, 17
        %v774 = vpop.permute.xlu0 %773
        %775 = vrot.lane.b32.xlu0 %v759, 17
        %v776 = vpop.permute.xlu0 %775
        %777 = vrot.lane.b32.xlu0 %v761, 17
        %v778 = vpop.permute.xlu0 %777
        %779 = vrot.lane.b32.xlu0 %v763, 17
        %v780 = vpop.permute.xlu0 %779
        %781 = vrot.lane.b32.xlu0 %v765, 17
        %v782 = vpop.permute.xlu0 %781
        %783 = vrot.lane.b32.xlu0 %v752, 17
        %v784 = vpop.permute.xlu0 %783
        %785 = vrot.lane.b32.xlu0 %v754, 17
        %v786 = vpop.permute.xlu0 %785
        %787 = vrot.lane.b32.xlu0 %v756, 17
        %v788 = vpop.permute.xlu0 %787
        %789 = vrot.lane.b32.xlu0 %v758, 17
        %v790 = vpop.permute.xlu0 %789
        %791 = vrot.lane.b32.xlu0 %v760, 17
        %v792 = vpop.permute.xlu0 %791
        %793 = vrot.lane.b32.xlu0 %v762, 17
        %v794 = vpop.permute.xlu0 %793
        %795 = vrot.lane.b32.xlu0 %v764, 17
        %v796 = vpop.permute.xlu0 %795
        %797 = vrot.lane.b32.xlu0 %v766, 17
        %v798 = vpop.permute.xlu0 %797
        %v799 = vlaneseq
        %v800 = vand.u32 %v799, 127
        %vm801 = vcmp.lt.s32.totalorder %v800, 17
        %v802 = vsel %vm801, %v768, %v784
        %v803 = vsel %vm801, %v770, %v786
        %v804 = vsel %vm801, %v772, %v788
        %v805 = vsel %vm801, %v774, %v790
        %v806 = vsel %vm801, %v776, %v792
        %v807 = vsel %vm801, %v778, %v794
        %v808 = vsel %vm801, %v780, %v796
        %v809 = vsel %vm801, %v782, %v798
        %v810 = vsel %vm801, %v784, %v768
        %v811 = vsel %vm801, %v786, %v770
        %v812 = vsel %vm801, %v788, %v772
        %v813 = vsel %vm801, %v790, %v774
        %v814 = vsel %vm801, %v792, %v776
        %v815 = vsel %vm801, %v794, %v778
        %v816 = vsel %vm801, %v796, %v780
        %v817 = vsel %vm801, %v798, %v782
        %v818 = vlaneseq
        %v819 = vshrl.u32 %v818, 7
        %v820 = vsub.s32 0, %v819
        %v821 = vrot.slane %v743, %v820
        %v822 = vlaneseq
        %v823 = vshrl.u32 %v822, 7
        %v824 = vsub.s32 0, %v823
        %v825 = vrot.slane %v744, %v824
        %v826 = vmul.f32 %v810, %v821
        %v827 = vmul.f32 %v802, %v825
        %v828 = vmul.f32 %v811, %v821
        %v829 = vmul.f32 %v803, %v825
        %v830 = vmul.f32 %v812, %v821
        %v831 = vmul.f32 %v804, %v825
        %v832 = vmul.f32 %v813, %v821
        %v833 = vmul.f32 %v805, %v825
        %v834 = vmul.f32 %v814, %v821
        %v835 = vmul.f32 %v806, %v825
        %v836 = vmul.f32 %v815, %v821
        %v837 = vmul.f32 %v807, %v825
        %v838 = vmul.f32 %v816, %v821
        %v839 = vmul.f32 %v808, %v825
        %v840 = vmul.f32 %v817, %v821
        %v841 = vmul.f32 %v809, %v825
        %v842 = vpack.c.bf16 %v828, %v826
        %v843 = vpack.c.bf16 %v829, %v827
        %v844 = vpack.c.bf16 %v832, %v830
        %v845 = vpack.c.bf16 %v833, %v831
        %v846 = vpack.c.bf16 %v836, %v834
        %v847 = vpack.c.bf16 %v837, %v835
        %v848 = vpack.c.bf16 %v840, %v838
        %v849 = vpack.c.bf16 %v841, %v839
        %850 = vrot.lane.b32.xlu0 %v751, 16
        %v851 = vpop.permute.xlu0 %850
        %852 = vrot.lane.b32.xlu0 %v753, 16
        %v853 = vpop.permute.xlu0 %852
        %854 = vrot.lane.b32.xlu0 %v755, 16
        %v855 = vpop.permute.xlu0 %854
        %856 = vrot.lane.b32.xlu0 %v757, 16
        %v857 = vpop.permute.xlu0 %856
        %858 = vrot.lane.b32.xlu0 %v759, 16
        %v859 = vpop.permute.xlu0 %858
        %860 = vrot.lane.b32.xlu0 %v761, 16
        %v861 = vpop.permute.xlu0 %860
        %862 = vrot.lane.b32.xlu0 %v763, 16
        %v863 = vpop.permute.xlu0 %862
        %864 = vrot.lane.b32.xlu0 %v765, 16
        %v865 = vpop.permute.xlu0 %864
        %866 = vrot.lane.b32.xlu0 %v752, 16
        %v867 = vpop.permute.xlu0 %866
        %868 = vrot.lane.b32.xlu0 %v754, 16
        %v869 = vpop.permute.xlu0 %868
        %870 = vrot.lane.b32.xlu0 %v756, 16
        %v871 = vpop.permute.xlu0 %870
        %872 = vrot.lane.b32.xlu0 %v758, 16
        %v873 = vpop.permute.xlu0 %872
        %874 = vrot.lane.b32.xlu0 %v760, 16
        %v875 = vpop.permute.xlu0 %874
        %876 = vrot.lane.b32.xlu0 %v762, 16
        %v877 = vpop.permute.xlu0 %876
        %878 = vrot.lane.b32.xlu0 %v764, 16
        %v879 = vpop.permute.xlu0 %878
        %880 = vrot.lane.b32.xlu0 %v766, 16
        %v881 = vpop.permute.xlu0 %880
        %vm882 = vcmp.lt.s32.totalorder %v800, 16
        %v883 = vsel %vm882, %v851, %v867
        %v884 = vsel %vm882, %v853, %v869
        %v885 = vsel %vm882, %v855, %v871
        %v886 = vsel %vm882, %v857, %v873
        %v887 = vsel %vm882, %v859, %v875
        %v888 = vsel %vm882, %v861, %v877
        %v889 = vsel %vm882, %v863, %v879
        %v890 = vsel %vm882, %v865, %v881
        %v891 = vsel %vm882, %v867, %v851
        %v892 = vsel %vm882, %v869, %v853
        %v893 = vsel %vm882, %v871, %v855
        %v894 = vsel %vm882, %v873, %v857
        %v895 = vsel %vm882, %v875, %v859
        %v896 = vsel %vm882, %v877, %v861
        %v897 = vsel %vm882, %v879, %v863
        %v898 = vsel %vm882, %v881, %v865
        %v899 = vlaneseq
        %v900 = vshrl.u32 %v899, 7
        %v901 = vsub.s32 1, %v900
        %v902 = vrot.slane %v743, %v901
        %v903 = vlaneseq
        %v904 = vshrl.u32 %v903, 7
        %v905 = vsub.s32 1, %v904
        %v906 = vrot.slane %v744, %v905
        %v907 = vmul.f32 %v891, %v902
        %v908 = vmul.f32 %v883, %v906
        %v909 = vmul.f32 %v892, %v902
        %v910 = vmul.f32 %v884, %v906
        %v911 = vmul.f32 %v893, %v902
        %v912 = vmul.f32 %v885, %v906
        %v913 = vmul.f32 %v894, %v902
        %v914 = vmul.f32 %v886, %v906
        %v915 = vmul.f32 %v895, %v902
        %v916 = vmul.f32 %v887, %v906
        %v917 = vmul.f32 %v896, %v902
        %v918 = vmul.f32 %v888, %v906
        %v919 = vmul.f32 %v897, %v902
        %v920 = vmul.f32 %v889, %v906
        %v921 = vmul.f32 %v898, %v902
        %v922 = vmul.f32 %v890, %v906
        %v923 = vpack.c.bf16 %v909, %v907
        %v924 = vpack.c.bf16 %v910, %v908
        %v925 = vpack.c.bf16 %v913, %v911
        %v926 = vpack.c.bf16 %v914, %v912
        %v927 = vpack.c.bf16 %v917, %v915
        %v928 = vpack.c.bf16 %v918, %v916
        %v929 = vpack.c.bf16 %v921, %v919
        %v930 = vpack.c.bf16 %v922, %v920
        %931 = vrot.lane.b32.xlu0 %v751, 15
        %v932 = vpop.permute.xlu0 %931
        %933 = vrot.lane.b32.xlu0 %v753, 15
        %v934 = vpop.permute.xlu0 %933
        %935 = vrot.lane.b32.xlu0 %v755, 15
        %v936 = vpop.permute.xlu0 %935
        %937 = vrot.lane.b32.xlu0 %v757, 15
        %v938 = vpop.permute.xlu0 %937
        %939 = vrot.lane.b32.xlu0 %v759, 15
        %v940 = vpop.permute.xlu0 %939
        %941 = vrot.lane.b32.xlu0 %v761, 15
        %v942 = vpop.permute.xlu0 %941
        %943 = vrot.lane.b32.xlu0 %v763, 15
        %v944 = vpop.permute.xlu0 %943
        %945 = vrot.lane.b32.xlu0 %v765, 15
        %v946 = vpop.permute.xlu0 %945
        %947 = vrot.lane.b32.xlu0 %v752, 15
        %v948 = vpop.permute.xlu0 %947
        %949 = vrot.lane.b32.xlu0 %v754, 15
        %v950 = vpop.permute.xlu0 %949
        %951 = vrot.lane.b32.xlu0 %v756, 15
        %v952 = vpop.permute.xlu0 %951
        %953 = vrot.lane.b32.xlu0 %v758, 15
        %v954 = vpop.permute.xlu0 %953
        %955 = vrot.lane.b32.xlu0 %v760, 15
        %v956 = vpop.permute.xlu0 %955
        %957 = vrot.lane.b32.xlu0 %v762, 15
        %v958 = vpop.permute.xlu0 %957
        %959 = vrot.lane.b32.xlu0 %v764, 15
        %v960 = vpop.permute.xlu0 %959
        %961 = vrot.lane.b32.xlu0 %v766, 15
        %v962 = vpop.permute.xlu0 %961
        %vm963 = vcmp.lt.s32.totalorder %v800, 15
        %v964 = vsel %vm963, %v932, %v948
        %v965 = vsel %vm963, %v934, %v950
        %v966 = vsel %vm963, %v936, %v952
        %v967 = vsel %vm963, %v938, %v954
        %v968 = vsel %vm963, %v940, %v956
        %v969 = vsel %vm963, %v942, %v958
        %v970 = vsel %vm963, %v944, %v960
        %v971 = vsel %vm963, %v946, %v962
        %v972 = vsel %vm963, %v948, %v932
        %v973 = vsel %vm963, %v950, %v934
        %v974 = vsel %vm963, %v952, %v936
        %v975 = vsel %vm963, %v954, %v938
        %v976 = vsel %vm963, %v956, %v940
        %v977 = vsel %vm963, %v958, %v942
        %v978 = vsel %vm963, %v960, %v944
        %v979 = vsel %vm963, %v962, %v946
        %v980 = vlaneseq
        %v981 = vshrl.u32 %v980, 7
        %v982 = vsub.s32 2, %v981
        %v983 = vrot.slane %v743, %v982
        %v984 = vlaneseq
        %v985 = vshrl.u32 %v984, 7
        %v986 = vsub.s32 2, %v985
        %v987 = vrot.slane %v744, %v986
        %v988 = vmul.f32 %v972, %v983
        %v989 = vmul.f32 %v964, %v987
        %v990 = vmul.f32 %v973, %v983
        %v991 = vmul.f32 %v965, %v987
        %v992 = vmul.f32 %v974, %v983
        %v993 = vmul.f32 %v966, %v987
        %v994 = vmul.f32 %v975, %v983
        %v995 = vmul.f32 %v967, %v987
        %v996 = vmul.f32 %v976, %v983
        %v997 = vmul.f32 %v968, %v987
        %v998 = vmul.f32 %v977, %v983
        %v999 = vmul.f32 %v969, %v987
        %v1000 = vmul.f32 %v978, %v983
        %v1001 = vmul.f32 %v970, %v987
        %v1002 = vmul.f32 %v979, %v983
        %v1003 = vmul.f32 %v971, %v987
        %v1004 = vpack.c.bf16 %v990, %v988
        %v1005 = vpack.c.bf16 %v991, %v989
        %v1006 = vpack.c.bf16 %v994, %v992
        %v1007 = vpack.c.bf16 %v995, %v993
        %v1008 = vpack.c.bf16 %v998, %v996
        %v1009 = vpack.c.bf16 %v999, %v997
        %v1010 = vpack.c.bf16 %v1002, %v1000
        %v1011 = vpack.c.bf16 %v1003, %v1001
        %1012 = vrot.lane.b32.xlu0 %v751, 1
        %v1013 = vpop.permute.xlu0 %1012
        %1014 = vrot.lane.b32.xlu0 %v753, 1
        %v1015 = vpop.permute.xlu0 %1014
        %1016 = vrot.lane.b32.xlu0 %v755, 1
        %v1017 = vpop.permute.xlu0 %1016
        %1018 = vrot.lane.b32.xlu0 %v757, 1
        %v1019 = vpop.permute.xlu0 %1018
        %1020 = vrot.lane.b32.xlu0 %v759, 1
        %v1021 = vpop.permute.xlu0 %1020
        %1022 = vrot.lane.b32.xlu0 %v761, 1
        %v1023 = vpop.permute.xlu0 %1022
        %1024 = vrot.lane.b32.xlu0 %v763, 1
        %v1025 = vpop.permute.xlu0 %1024
        %1026 = vrot.lane.b32.xlu0 %v765, 1
        %v1027 = vpop.permute.xlu0 %1026
        %1028 = vrot.lane.b32.xlu0 %v752, 1
        %v1029 = vpop.permute.xlu0 %1028
        %1030 = vrot.lane.b32.xlu0 %v754, 1
        %v1031 = vpop.permute.xlu0 %1030
        %1032 = vrot.lane.b32.xlu0 %v756, 1
        %v1033 = vpop.permute.xlu0 %1032
        %1034 = vrot.lane.b32.xlu0 %v758, 1
        %v1035 = vpop.permute.xlu0 %1034
        %1036 = vrot.lane.b32.xlu0 %v760, 1
        %v1037 = vpop.permute.xlu0 %1036
        %1038 = vrot.lane.b32.xlu0 %v762, 1
        %v1039 = vpop.permute.xlu0 %1038
        %1040 = vrot.lane.b32.xlu0 %v764, 1
        %v1041 = vpop.permute.xlu0 %1040
        %1042 = vrot.lane.b32.xlu0 %v766, 1
        %v1043 = vpop.permute.xlu0 %1042
        %vm1044 = vcmp.lt.s32.totalorder %v800, 1
        %v1045 = vsel %vm1044, %v1013, %v1029
        %v1046 = vsel %vm1044, %v1015, %v1031
        %v1047 = vsel %vm1044, %v1017, %v1033
        %v1048 = vsel %vm1044, %v1019, %v1035
        %v1049 = vsel %vm1044, %v1021, %v1037
        %v1050 = vsel %vm1044, %v1023, %v1039
        %v1051 = vsel %vm1044, %v1025, %v1041
        %v1052 = vsel %vm1044, %v1027, %v1043
        %v1053 = vsel %vm1044, %v1029, %v1013
        %v1054 = vsel %vm1044, %v1031, %v1015
        %v1055 = vsel %vm1044, %v1033, %v1017
        %v1056 = vsel %vm1044, %v1035, %v1019
        %v1057 = vsel %vm1044, %v1037, %v1021
        %v1058 = vsel %vm1044, %v1039, %v1023
        %v1059 = vsel %vm1044, %v1041, %v1025
        %v1060 = vsel %vm1044, %v1043, %v1027
        %v1061 = vlaneseq
        %v1062 = vshrl.u32 %v1061, 7
        %v1063 = vsub.s32 3, %v1062
        %v1064 = vrot.slane %v743, %v1063
        %v1065 = vlaneseq
        %v1066 = vshrl.u32 %v1065, 7
        %v1067 = vsub.s32 3, %v1066
        %v1068 = vrot.slane %v744, %v1067
        %v1069 = vmul.f32 %v1053, %v1064
        %v1070 = vmul.f32 %v1045, %v1068
        %v1071 = vmul.f32 %v1054, %v1064
        %v1072 = vmul.f32 %v1046, %v1068
        %v1073 = vmul.f32 %v1055, %v1064
        %v1074 = vmul.f32 %v1047, %v1068
        %v1075 = vmul.f32 %v1056, %v1064
        %v1076 = vmul.f32 %v1048, %v1068
        %v1077 = vmul.f32 %v1057, %v1064
        %v1078 = vmul.f32 %v1049, %v1068
        %v1079 = vmul.f32 %v1058, %v1064
        %v1080 = vmul.f32 %v1050, %v1068
        %v1081 = vmul.f32 %v1059, %v1064
        %v1082 = vmul.f32 %v1051, %v1068
        %v1083 = vmul.f32 %v1060, %v1064
        %v1084 = vmul.f32 %v1052, %v1068
        %v1085 = vpack.c.bf16 %v1071, %v1069
        %v1086 = vpack.c.bf16 %v1072, %v1070
        %v1087 = vpack.c.bf16 %v1075, %v1073
        %v1088 = vpack.c.bf16 %v1076, %v1074
        %v1089 = vpack.c.bf16 %v1079, %v1077
        %v1090 = vpack.c.bf16 %v1080, %v1078
        %v1091 = vpack.c.bf16 %v1083, %v1081
        %v1092 = vpack.c.bf16 %v1084, %v1082
        %v1093 = vpack.c.bf16 %v753, %v751
        %v1094 = vpack.c.bf16 %v754, %v752
        %v1095 = vpack.c.bf16 %v757, %v755
        %v1096 = vpack.c.bf16 %v758, %v756
        %v1097 = vpack.c.bf16 %v761, %v759
        %v1098 = vpack.c.bf16 %v762, %v760
        %v1099 = vpack.c.bf16 %v765, %v763
        %v1100 = vpack.c.bf16 %v766, %v764
        %1101 = vrot.lane.b32.xlu0 %v751, 127
        %v1102 = vpop.permute.xlu0 %1101
        %1103 = vrot.lane.b32.xlu0 %v753, 127
        %v1104 = vpop.permute.xlu0 %1103
        %1105 = vrot.lane.b32.xlu0 %v755, 127
        %v1106 = vpop.permute.xlu0 %1105
        %1107 = vrot.lane.b32.xlu0 %v757, 127
        %v1108 = vpop.permute.xlu0 %1107
        %1109 = vrot.lane.b32.xlu0 %v759, 127
        %v1110 = vpop.permute.xlu0 %1109
        %1111 = vrot.lane.b32.xlu0 %v761, 127
        %v1112 = vpop.permute.xlu0 %1111
        %1113 = vrot.lane.b32.xlu0 %v763, 127
        %v1114 = vpop.permute.xlu0 %1113
        %1115 = vrot.lane.b32.xlu0 %v765, 127
        %v1116 = vpop.permute.xlu0 %1115
        %1117 = vrot.lane.b32.xlu0 %v752, 127
        %v1118 = vpop.permute.xlu0 %1117
        %1119 = vrot.lane.b32.xlu0 %v754, 127
        %v1120 = vpop.permute.xlu0 %1119
        %1121 = vrot.lane.b32.xlu0 %v756, 127
        %v1122 = vpop.permute.xlu0 %1121
        %1123 = vrot.lane.b32.xlu0 %v758, 127
        %v1124 = vpop.permute.xlu0 %1123
        %1125 = vrot.lane.b32.xlu0 %v760, 127
        %v1126 = vpop.permute.xlu0 %1125
        %1127 = vrot.lane.b32.xlu0 %v762, 127
        %v1128 = vpop.permute.xlu0 %1127
        %1129 = vrot.lane.b32.xlu0 %v764, 127
        %v1130 = vpop.permute.xlu0 %1129
        %1131 = vrot.lane.b32.xlu0 %v766, 127
        %v1132 = vpop.permute.xlu0 %1131
        %vm1133 = vcmp.lt.s32.totalorder %v800, 127
        %v1134 = vsel %vm1133, %v1102, %v1118
        %v1135 = vsel %vm1133, %v1104, %v1120
        %v1136 = vsel %vm1133, %v1106, %v1122
        %v1137 = vsel %vm1133, %v1108, %v1124
        %v1138 = vsel %vm1133, %v1110, %v1126
        %v1139 = vsel %vm1133, %v1112, %v1128
        %v1140 = vsel %vm1133, %v1114, %v1130
        %v1141 = vsel %vm1133, %v1116, %v1132
        %v1142 = vsel %vm1133, %v1118, %v1102
        %v1143 = vsel %vm1133, %v1120, %v1104
        %v1144 = vsel %vm1133, %v1122, %v1106
        %v1145 = vsel %vm1133, %v1124, %v1108
        %v1146 = vsel %vm1133, %v1126, %v1110
        %v1147 = vsel %vm1133, %v1128, %v1112
        %v1148 = vsel %vm1133, %v1130, %v1114
        %v1149 = vsel %vm1133, %v1132, %v1116
        %v1150 = vlaneseq
        %v1151 = vshrl.u32 %v1150, 7
        %v1152 = vsub.s32 5, %v1151
        %v1153 = vrot.slane %v743, %v1152
        %v1154 = vlaneseq
        %v1155 = vshrl.u32 %v1154, 7
        %v1156 = vsub.s32 5, %v1155
        %v1157 = vrot.slane %v744, %v1156
        %v1158 = vmul.f32 %v1134, %v1153
        %v1159 = vmul.f32 %v1142, %v1157
        %v1160 = vmul.f32 %v1135, %v1153
        %v1161 = vmul.f32 %v1143, %v1157
        %v1162 = vmul.f32 %v1136, %v1153
        %v1163 = vmul.f32 %v1144, %v1157
        %v1164 = vmul.f32 %v1137, %v1153
        %v1165 = vmul.f32 %v1145, %v1157
        %v1166 = vmul.f32 %v1138, %v1153
        %v1167 = vmul.f32 %v1146, %v1157
        %v1168 = vmul.f32 %v1139, %v1153
        %v1169 = vmul.f32 %v1147, %v1157
        %v1170 = vmul.f32 %v1140, %v1153
        %v1171 = vmul.f32 %v1148, %v1157
        %v1172 = vmul.f32 %v1141, %v1153
        %v1173 = vmul.f32 %v1149, %v1157
        %v1174 = vpack.c.bf16 %v1160, %v1158
        %v1175 = vpack.c.bf16 %v1161, %v1159
        %v1176 = vpack.c.bf16 %v1164, %v1162
        %v1177 = vpack.c.bf16 %v1165, %v1163
        %v1178 = vpack.c.bf16 %v1168, %v1166
        %v1179 = vpack.c.bf16 %v1169, %v1167
        %v1180 = vpack.c.bf16 %v1172, %v1170
        %v1181 = vpack.c.bf16 %v1173, %v1171
        %1182 = vrot.lane.b32.xlu0 %v751, 113
        %v1183 = vpop.permute.xlu0 %1182
        %1184 = vrot.lane.b32.xlu0 %v753, 113
        %v1185 = vpop.permute.xlu0 %1184
        %1186 = vrot.lane.b32.xlu0 %v755, 113
        %v1187 = vpop.permute.xlu0 %1186
        %1188 = vrot.lane.b32.xlu0 %v757, 113
        %v1189 = vpop.permute.xlu0 %1188
        %1190 = vrot.lane.b32.xlu0 %v759, 113
        %v1191 = vpop.permute.xlu0 %1190
        %1192 = vrot.lane.b32.xlu0 %v761, 113
        %v1193 = vpop.permute.xlu0 %1192
        %1194 = vrot.lane.b32.xlu0 %v763, 113
        %v1195 = vpop.permute.xlu0 %1194
        %1196 = vrot.lane.b32.xlu0 %v765, 113
        %v1197 = vpop.permute.xlu0 %1196
        %1198 = vrot.lane.b32.xlu0 %v752, 113
        %v1199 = vpop.permute.xlu0 %1198
        %1200 = vrot.lane.b32.xlu0 %v754, 113
        %v1201 = vpop.permute.xlu0 %1200
        %1202 = vrot.lane.b32.xlu0 %v756, 113
        %v1203 = vpop.permute.xlu0 %1202
        %1204 = vrot.lane.b32.xlu0 %v758, 113
        %v1205 = vpop.permute.xlu0 %1204
        %1206 = vrot.lane.b32.xlu0 %v760, 113
        %v1207 = vpop.permute.xlu0 %1206
        %1208 = vrot.lane.b32.xlu0 %v762, 113
        %v1209 = vpop.permute.xlu0 %1208
        %1210 = vrot.lane.b32.xlu0 %v764, 113
        %v1211 = vpop.permute.xlu0 %1210
        %1212 = vrot.lane.b32.xlu0 %v766, 113
        %v1213 = vpop.permute.xlu0 %1212
        %vm1214 = vcmp.lt.s32.totalorder %v800, 113
        %v1215 = vsel %vm1214, %v1183, %v1199
        %v1216 = vsel %vm1214, %v1185, %v1201
        %v1217 = vsel %vm1214, %v1187, %v1203
        %v1218 = vsel %vm1214, %v1189, %v1205
        %v1219 = vsel %vm1214, %v1191, %v1207
        %v1220 = vsel %vm1214, %v1193, %v1209
        %v1221 = vsel %vm1214, %v1195, %v1211
        %v1222 = vsel %vm1214, %v1197, %v1213
        %v1223 = vsel %vm1214, %v1199, %v1183
        %v1224 = vsel %vm1214, %v1201, %v1185
        %v1225 = vsel %vm1214, %v1203, %v1187
        %v1226 = vsel %vm1214, %v1205, %v1189
        %v1227 = vsel %vm1214, %v1207, %v1191
        %v1228 = vsel %vm1214, %v1209, %v1193
        %v1229 = vsel %vm1214, %v1211, %v1195
        %v1230 = vsel %vm1214, %v1213, %v1197
        %v1231 = vlaneseq
        %v1232 = vshrl.u32 %v1231, 7
        %v1233 = vsub.s32 6, %v1232
        %v1234 = vrot.slane %v743, %v1233
        %v1235 = vlaneseq
        %v1236 = vshrl.u32 %v1235, 7
        %v1237 = vsub.s32 6, %v1236
        %v1238 = vrot.slane %v744, %v1237
        %v1239 = vmul.f32 %v1215, %v1234
        %v1240 = vmul.f32 %v1223, %v1238
        %v1241 = vmul.f32 %v1216, %v1234
        %v1242 = vmul.f32 %v1224, %v1238
        %v1243 = vmul.f32 %v1217, %v1234
        %v1244 = vmul.f32 %v1225, %v1238
        %v1245 = vmul.f32 %v1218, %v1234
        %v1246 = vmul.f32 %v1226, %v1238
        %v1247 = vmul.f32 %v1219, %v1234
        %v1248 = vmul.f32 %v1227, %v1238
        %v1249 = vmul.f32 %v1220, %v1234
        %v1250 = vmul.f32 %v1228, %v1238
        %v1251 = vmul.f32 %v1221, %v1234
        %v1252 = vmul.f32 %v1229, %v1238
        %v1253 = vmul.f32 %v1222, %v1234
        %v1254 = vmul.f32 %v1230, %v1238
        %v1255 = vpack.c.bf16 %v1241, %v1239
        %v1256 = vpack.c.bf16 %v1242, %v1240
        %v1257 = vpack.c.bf16 %v1245, %v1243
        %v1258 = vpack.c.bf16 %v1246, %v1244
        %v1259 = vpack.c.bf16 %v1249, %v1247
        %v1260 = vpack.c.bf16 %v1250, %v1248
        %v1261 = vpack.c.bf16 %v1253, %v1251
        %v1262 = vpack.c.bf16 %v1254, %v1252
        %1263 = vrot.lane.b32.xlu0 %v751, 112
        %v1264 = vpop.permute.xlu0 %1263
        %1265 = vrot.lane.b32.xlu0 %v753, 112
        %v1266 = vpop.permute.xlu0 %1265
        %1267 = vrot.lane.b32.xlu0 %v755, 112
        %v1268 = vpop.permute.xlu0 %1267
        %1269 = vrot.lane.b32.xlu0 %v757, 112
        %v1270 = vpop.permute.xlu0 %1269
        %1271 = vrot.lane.b32.xlu0 %v759, 112
        %v1272 = vpop.permute.xlu0 %1271
        %1273 = vrot.lane.b32.xlu0 %v761, 112
        %v1274 = vpop.permute.xlu0 %1273
        %1275 = vrot.lane.b32.xlu0 %v763, 112
        %v1276 = vpop.permute.xlu0 %1275
        %1277 = vrot.lane.b32.xlu0 %v765, 112
        %v1278 = vpop.permute.xlu0 %1277
        %1279 = vrot.lane.b32.xlu0 %v752, 112
        %v1280 = vpop.permute.xlu0 %1279
        %1281 = vrot.lane.b32.xlu0 %v754, 112
        %v1282 = vpop.permute.xlu0 %1281
        %1283 = vrot.lane.b32.xlu0 %v756, 112
        %v1284 = vpop.permute.xlu0 %1283
        %1285 = vrot.lane.b32.xlu0 %v758, 112
        %v1286 = vpop.permute.xlu0 %1285
        %1287 = vrot.lane.b32.xlu0 %v760, 112
        %v1288 = vpop.permute.xlu0 %1287
        %1289 = vrot.lane.b32.xlu0 %v762, 112
        %v1290 = vpop.permute.xlu0 %1289
        %1291 = vrot.lane.b32.xlu0 %v764, 112
        %v1292 = vpop.permute.xlu0 %1291
        %1293 = vrot.lane.b32.xlu0 %v766, 112
        %v1294 = vpop.permute.xlu0 %1293
        %vm1295 = vcmp.lt.s32.totalorder %v800, 112
        %v1296 = vsel %vm1295, %v1264, %v1280
        %v1297 = vsel %vm1295, %v1266, %v1282
        %v1298 = vsel %vm1295, %v1268, %v1284
        %v1299 = vsel %vm1295, %v1270, %v1286
        %v1300 = vsel %vm1295, %v1272, %v1288
        %v1301 = vsel %vm1295, %v1274, %v1290
        %v1302 = vsel %vm1295, %v1276, %v1292
        %v1303 = vsel %vm1295, %v1278, %v1294
        %v1304 = vsel %vm1295, %v1280, %v1264
        %v1305 = vsel %vm1295, %v1282, %v1266
        %v1306 = vsel %vm1295, %v1284, %v1268
        %v1307 = vsel %vm1295, %v1286, %v1270
        %v1308 = vsel %vm1295, %v1288, %v1272
        %v1309 = vsel %vm1295, %v1290, %v1274
        %v1310 = vsel %vm1295, %v1292, %v1276
        %v1311 = vsel %vm1295, %v1294, %v1278
        %v1312 = vlaneseq
        %v1313 = vshrl.u32 %v1312, 7
        %v1314 = vsub.s32 7, %v1313
        %v1315 = vrot.slane %v743, %v1314
        %v1316 = vlaneseq
        %v1317 = vshrl.u32 %v1316, 7
        %v1318 = vsub.s32 7, %v1317
        %v1319 = vrot.slane %v744, %v1318
        %v1320 = vmul.f32 %v1296, %v1315
        %v1321 = vmul.f32 %v1304, %v1319
        %v1322 = vmul.f32 %v1297, %v1315
        %v1323 = vmul.f32 %v1305, %v1319
        %v1324 = vmul.f32 %v1298, %v1315
        %v1325 = vmul.f32 %v1306, %v1319
        %v1326 = vmul.f32 %v1299, %v1315
        %v1327 = vmul.f32 %v1307, %v1319
        %v1328 = vmul.f32 %v1300, %v1315
        %v1329 = vmul.f32 %v1308, %v1319
        %v1330 = vmul.f32 %v1301, %v1315
        %v1331 = vmul.f32 %v1309, %v1319
        %v1332 = vmul.f32 %v1302, %v1315
        %v1333 = vmul.f32 %v1310, %v1319
        %v1334 = vmul.f32 %v1303, %v1315
        %v1335 = vmul.f32 %v1311, %v1319
        %v1336 = vpack.c.bf16 %v1322, %v1320
        %v1337 = vpack.c.bf16 %v1323, %v1321
        %v1338 = vpack.c.bf16 %v1326, %v1324
        %v1339 = vpack.c.bf16 %v1327, %v1325
        %v1340 = vpack.c.bf16 %v1330, %v1328
        %v1341 = vpack.c.bf16 %v1331, %v1329
        %v1342 = vpack.c.bf16 %v1334, %v1332
        %v1343 = vpack.c.bf16 %v1335, %v1333
        %1344 = vrot.lane.b32.xlu0 %v751, 111
        %v1345 = vpop.permute.xlu0 %1344
        %1346 = vrot.lane.b32.xlu0 %v753, 111
        %v1347 = vpop.permute.xlu0 %1346
        %1348 = vrot.lane.b32.xlu0 %v755, 111
        %v1349 = vpop.permute.xlu0 %1348
        %1350 = vrot.lane.b32.xlu0 %v757, 111
        %v1351 = vpop.permute.xlu0 %1350
        %1352 = vrot.lane.b32.xlu0 %v759, 111
        %v1353 = vpop.permute.xlu0 %1352
        %1354 = vrot.lane.b32.xlu0 %v761, 111
        %v1355 = vpop.permute.xlu0 %1354
        %1356 = vrot.lane.b32.xlu0 %v763, 111
        %v1357 = vpop.permute.xlu0 %1356
        %1358 = vrot.lane.b32.xlu0 %v765, 111
        %v1359 = vpop.permute.xlu0 %1358
        %1360 = vrot.lane.b32.xlu0 %v752, 111
        %v1361 = vpop.permute.xlu0 %1360
        %1362 = vrot.lane.b32.xlu0 %v754, 111
        %v1363 = vpop.permute.xlu0 %1362
        %1364 = vrot.lane.b32.xlu0 %v756, 111
        %v1365 = vpop.permute.xlu0 %1364
        %1366 = vrot.lane.b32.xlu0 %v758, 111
        %v1367 = vpop.permute.xlu0 %1366
        %1368 = vrot.lane.b32.xlu0 %v760, 111
        %v1369 = vpop.permute.xlu0 %1368
        %1370 = vrot.lane.b32.xlu0 %v762, 111
        %v1371 = vpop.permute.xlu0 %1370
        %1372 = vrot.lane.b32.xlu0 %v764, 111
        %v1373 = vpop.permute.xlu0 %1372
        %1374 = vrot.lane.b32.xlu0 %v766, 111
        %v1375 = vpop.permute.xlu0 %1374
        %vm1376 = vcmp.lt.s32.totalorder %v800, 111
        %v1377 = vsel %vm1376, %v1345, %v1361
        %v1378 = vsel %vm1376, %v1347, %v1363
        %v1379 = vsel %vm1376, %v1349, %v1365
        %v1380 = vsel %vm1376, %v1351, %v1367
        %v1381 = vsel %vm1376, %v1353, %v1369
        %v1382 = vsel %vm1376, %v1355, %v1371
        %v1383 = vsel %vm1376, %v1357, %v1373
        %v1384 = vsel %vm1376, %v1359, %v1375
        %v1385 = vsel %vm1376, %v1361, %v1345
        %v1386 = vsel %vm1376, %v1363, %v1347
        %v1387 = vsel %vm1376, %v1365, %v1349
        %v1388 = vsel %vm1376, %v1367, %v1351
        %v1389 = vsel %vm1376, %v1369, %v1353
        %v1390 = vsel %vm1376, %v1371, %v1355
        %v1391 = vsel %vm1376, %v1373, %v1357
        %v1392 = vsel %vm1376, %v1375, %v1359
        %v1393 = vlaneseq
        %v1394 = vshrl.u32 %v1393, 7
        %v1395 = vsub.s32 0, %v1394
        %v1396 = vrot.slane %v745, %v1395
        %v1397 = vlaneseq
        %v1398 = vshrl.u32 %v1397, 7
        %v1399 = vsub.s32 0, %v1398
        %v1400 = vrot.slane %v746, %v1399
        %v1401 = vmul.f32 %v1377, %v1396
        %v1402 = vmul.f32 %v1385, %v1400
        %v1403 = vmul.f32 %v1378, %v1396
        %v1404 = vmul.f32 %v1386, %v1400
        %v1405 = vmul.f32 %v1379, %v1396
        %v1406 = vmul.f32 %v1387, %v1400
        %v1407 = vmul.f32 %v1380, %v1396
        %v1408 = vmul.f32 %v1388, %v1400
        %v1409 = vmul.f32 %v1381, %v1396
        %v1410 = vmul.f32 %v1389, %v1400
        %v1411 = vmul.f32 %v1382, %v1396
        %v1412 = vmul.f32 %v1390, %v1400
        %v1413 = vmul.f32 %v1383, %v1396
        %v1414 = vmul.f32 %v1391, %v1400
        %v1415 = vmul.f32 %v1384, %v1396
        %v1416 = vmul.f32 %v1392, %v1400
        %v1417 = vpack.c.bf16 %v1403, %v1401
        %v1418 = vpack.c.bf16 %v1404, %v1402
        %v1419 = vpack.c.bf16 %v1407, %v1405
        %v1420 = vpack.c.bf16 %v1408, %v1406
        %v1421 = vpack.c.bf16 %v1411, %v1409
        %v1422 = vpack.c.bf16 %v1412, %v1410
        %v1423 = vpack.c.bf16 %v1415, %v1413
        %v1424 = vpack.c.bf16 %v1416, %v1414
        %v1425 = vld [vmem:[%s5] sm:$0xff]
        %v1426 = vld [vmem:[%s5 + $0x8] sm:$0xff]
        %v1427 = vld [vmem:[%s5 + $0x10] sm:$0xf]
        %v1428 = vld [vmem:[%s5 + $0x14] sm:$0xff]
        %v1429 = vld [vmem:[%s5 + $0x1c] sm:$0xff]
        %v1430 = vld [vmem:[%s5 + $0x24] sm:$0xf]
        %v1431 = vld [vmem:[%s6] sm:$0xff]
        %v1432 = vld [vmem:[%s6 + $0x8] sm:$0xff]
        %1434 = vset.pattern.permute.xlu0 0
        %1435 = vperm.xlu0 %1434, %v1431
        %v1436 = vpop.permute.xlu0 %1435
        %1439 = vset.pattern.permute.xlu0 0
        %1440 = vperm.xlu0 %1439, %v1432
        %v1441 = vpop.permute.xlu0 %1440
        %v1449 = vunpack.c.l.b16 %v1425
        %v1450 = vunpack.c.h.b16 %v1425
        %v1451 = vunpack.c.l.b16 %v1426
        %v1452 = vunpack.c.h.b16 %v1426
        %v1453 = vunpack.c.l.b16 %v1427
        %v1454 = vunpack.c.l.b16 %v1428
        %v1455 = vunpack.c.h.b16 %v1428
        %v1456 = vunpack.c.l.b16 %v1429
        %v1457 = vunpack.c.h.b16 %v1429
        %v1458 = vunpack.c.l.b16 %v1430
        %v1459 = vpack.c.b16 %v1454, %v1449
        %v1460 = vpack.c.b16 %v1455, %v1450
        %v1461 = vpack.c.b16 %v1456, %v1451
        %v1462 = vpack.c.b16 %v1457, %v1452
        %v1463 = vpack.c.b16 %v1458, %v1453
        %vm1468 = vcmask 523264
        %v1470 = vsel %vm1468, %v1463, 0
        %1472 = vmatprep.subr.bf16.mxu0 %v843
        %1473 = vmatpush1.bf16.msra.mxu0 %v842
        %1474 = vmatprep.subr.bf16.mxu0 %v845
        %1475 = vmatpush1.bf16.msra.mxu0 %v844
        %1476 = vmatprep.subr.bf16.mxu0 %v847
        %1477 = vmatpush1.bf16.msra.mxu0 %v846
        %1478 = vmatprep.subr.bf16.mxu0 %v849
        %1479 = vmatpush1.bf16.msra.mxu0 %v848
        %1480 = vmatprep.subr.bf16.mxu0 %v924
        %1481 = vmatpush1.bf16.msra.mxu0 %v923
        %1482 = vmatprep.subr.bf16.mxu0 %v926
        %1483 = vmatpush1.bf16.msra.mxu0 %v925
        %1484 = vmatprep.subr.bf16.mxu0 %v928
        %1485 = vmatpush1.bf16.msra.mxu0 %v927
        %1486 = vmatprep.subr.bf16.mxu0 %v930
        %1487 = vmatpush1.bf16.msra.mxu0 %v929
        %1488 = vmatprep.subr.bf16.mxu0 %v1005
        %1489 = vmatpush1.bf16.msra.mxu0 %v1004
        %1490 = vmatprep.subr.bf16.mxu0 %v1007
        %1491 = vmatpush1.bf16.msra.mxu0 %v1006
        %1492 = vmatprep.subr.bf16.mxu0 %v1009
        %1493 = vmatpush1.bf16.msra.mxu0 %v1008
        %1494 = vmatprep.subr.bf16.mxu0 %v1011
        %1495 = vmatpush1.bf16.msra.mxu0 %v1010
        %1496 = vmatprep.subr.bf16.mxu0 %v1086
        %1497 = vmatpush1.bf16.msra.mxu0 %v1085
        %1498 = vmatprep.subr.bf16.mxu0 %v1088
        %1499 = vmatpush1.bf16.msra.mxu0 %v1087
        %1500 = vmatprep.subr.bf16.mxu0 %v1090
        %1501 = vmatpush1.bf16.msra.mxu0 %v1089
        %1502 = vmatprep.subr.bf16.mxu0 %v1092
        %1503 = vmatpush1.bf16.msra.mxu0 %v1091
        %1504 = vmatprep.mubr.bf16.mxu0 %v1460
        %1505 = vmatmul.mubr.bf16.gmra.mrb[0].mxu0 %v1459
        %v1506 = vpop.f32.mrb[0].mxu0
        %v1507 = vadd.f32 %v1436, %v1506
        %v1508 = vpop.f32.mrb[0].mxu0
        %v1509 = vadd.f32 %v1436, %v1508
        %v1510 = vpop.f32.mrb[0].mxu0
        %v1511 = vadd.f32 %v1441, %v1510
        %v1512 = vpop.f32.mrb[0].mxu0
        %v1513 = vadd.f32 %v1441, %v1512
        %1514 = vdwg.mxu0
        %1515 = vmatprep.subr.bf16.mxu0 %v1094
        %1516 = vmatpush1.bf16.msra.mxu0 %v1093
        %1517 = vmatprep.subr.bf16.mxu0 %v1096
        %1518 = vmatpush1.bf16.msra.mxu0 %v1095
        %1519 = vmatprep.subr.bf16.mxu0 %v1098
        %1520 = vmatpush1.bf16.msra.mxu0 %v1097
        %1521 = vmatprep.subr.bf16.mxu0 %v1100
        %1522 = vmatpush1.bf16.msra.mxu0 %v1099
        %1523 = vmatprep.subr.bf16.mxu0 %v1175
        %1524 = vmatpush1.bf16.msra.mxu0 %v1174
        %1525 = vmatprep.subr.bf16.mxu0 %v1177
        %1526 = vmatpush1.bf16.msra.mxu0 %v1176
        %1527 = vmatprep.subr.bf16.mxu0 %v1179
        %1528 = vmatpush1.bf16.msra.mxu0 %v1178
        %1529 = vmatprep.subr.bf16.mxu0 %v1181
        %1530 = vmatpush1.bf16.msra.mxu0 %v1180
        %1531 = vmatprep.subr.bf16.mxu0 %v1256
        %1532 = vmatpush1.bf16.msra.mxu0 %v1255
        %1533 = vmatprep.subr.bf16.mxu0 %v1258
        %1534 = vmatpush1.bf16.msra.mxu0 %v1257
        %1535 = vmatprep.subr.bf16.mxu0 %v1260
        %1536 = vmatpush1.bf16.msra.mxu0 %v1259
        %1537 = vmatprep.subr.bf16.mxu0 %v1262
        %1538 = vmatpush1.bf16.msra.mxu0 %v1261
        %1539 = vmatprep.subr.bf16.mxu0 %v1337
        %1540 = vmatpush1.bf16.msra.mxu0 %v1336
        %1541 = vmatprep.subr.bf16.mxu0 %v1339
        %1542 = vmatpush1.bf16.msra.mxu0 %v1338
        %1543 = vmatprep.subr.bf16.mxu0 %v1341
        %1544 = vmatpush1.bf16.msra.mxu0 %v1340
        %1545 = vmatprep.subr.bf16.mxu0 %v1343
        %1546 = vmatpush1.bf16.msra.mxu0 %v1342
        %1547 = vmatprep.mubr.bf16.mxu0 %v1462
        %1548 = vmatmul.mubr.bf16.gmra.mrb[0].mxu0 %v1461
        %v1549 = vpop.f32.mrb[0].mxu0
        %v1550 = vadd.f32 %v1507, %v1549
        %v1551 = vpop.f32.mrb[0].mxu0
        %v1552 = vadd.f32 %v1509, %v1551
        %v1553 = vpop.f32.mrb[0].mxu0
        %v1554 = vadd.f32 %v1511, %v1553
        %v1555 = vpop.f32.mrb[0].mxu0
        %v1556 = vadd.f32 %v1513, %v1555
        %1557 = vdwg.mxu0
        %1558 = vmatprep.subr.bf16.mxu0 %v1418
        %1559 = vmatpush1.bf16.msra.mxu0 %v1417
        %1560 = vmatprep.subr.bf16.mxu0 %v1420
        %1561 = vmatpush1.bf16.msra.mxu0 %v1419
        %1562 = vmatprep.subr.bf16.mxu0 %v1422
        %1563 = vmatpush1.bf16.msra.mxu0 %v1421
        %1564 = vmatprep.subr.bf16.mxu0 %v1424
        %1565 = vmatpush1.bf16.msra.mxu0 %v1423
        %1566 = vmatprep.subr.bf16.mxu0 0
        %1567 = vmatpush1.bf16.msra.mxu0 0
        %1568 = vmatprep.subr.bf16.mxu0 0
        %1569 = vmatpush1.bf16.msra.mxu0 0
        %1570 = vmatprep.subr.bf16.mxu0 0
        %1571 = vmatpush1.bf16.msra.mxu0 0
        %1572 = vmatprep.subr.bf16.mxu0 0
        %1573 = vmatpush1.bf16.msra.mxu0 0
        %1574 = vmatprep.subr.bf16.mxu0 0
        %1575 = vmatpush1.bf16.msra.mxu0 0
        %1576 = vmatprep.subr.bf16.mxu0 0
        %1577 = vmatpush1.bf16.msra.mxu0 0
        %1578 = vmatprep.subr.bf16.mxu0 0
        %1579 = vmatpush1.bf16.msra.mxu0 0
        %1580 = vmatprep.subr.bf16.mxu0 0
        %1581 = vmatpush1.bf16.msra.mxu0 0
        %1582 = vmatprep.subr.bf16.mxu0 0
        %1583 = vmatpush1.bf16.msra.mxu0 0
        %1584 = vmatprep.subr.bf16.mxu0 0
        %1585 = vmatpush1.bf16.msra.mxu0 0
        %1586 = vmatprep.subr.bf16.mxu0 0
        %1587 = vmatpush1.bf16.msra.mxu0 0
        %1588 = vmatprep.subr.bf16.mxu0 0
        %1589 = vmatpush1.bf16.msra.mxu0 0
        %1590 = vmatprep.mubr.bf16.mxu0 0
        %1591 = vmatmul.mubr.bf16.gmra.mrb[0].mxu0 %v1470
        %v1592 = vpop.f32.mrb[0].mxu0
        %v1593 = vadd.f32 %v1550, %v1592
        %v1594 = vpop.f32.mrb[0].mxu0
        %v1595 = vadd.f32 %v1552, %v1594
        %v1596 = vpop.f32.mrb[0].mxu0
        %v1597 = vadd.f32 %v1554, %v1596
        %v1598 = vpop.f32.mrb[0].mxu0
        %v1599 = vadd.f32 %v1556, %v1598
        %1600 = vdwg.mxu0
        %v1601 = vmax.f32 %v1593, 0.0
        %v1602 = vmax.f32 %v1595, 0.0
        %v1603 = vmax.f32 %v1597, 0.0
        %v1604 = vmax.f32 %v1599, 0.0
        %1605 = vrot.lane.b32.xlu0 %v1601, 127
        %v1606 = vpop.permute.xlu0 %1605
        %1607 = vrot.lane.b32.xlu0 %v1603, 127
        %v1608 = vpop.permute.xlu0 %1607
        %1609 = vrot.lane.b32.xlu0 %v1602, 127
        %v1610 = vpop.permute.xlu0 %1609
        %1611 = vrot.lane.b32.xlu0 %v1604, 127
        %v1612 = vpop.permute.xlu0 %1611
        %v1613 = vsel %vm1133, %v1606, %v1610
        %v1614 = vsel %vm1133, %v1608, %v1612
        %v1615 = vsel %vm1133, %v1610, %v1606
        %v1616 = vsel %vm1133, %v1612, %v1608
        %v1617 = vmax.f32 %v1601, %v1613
        %v1618 = vmax.f32 %v1602, %v1615
        %v1619 = vmax.f32 %v1603, %v1614
        %v1620 = vmax.f32 %v1604, %v1616
        %1621 = vrot.lane.b32.xlu0 %v1617, 112
        %v1622 = vpop.permute.xlu0 %1621
        %1623 = vrot.lane.b32.xlu0 %v1619, 112
        %v1624 = vpop.permute.xlu0 %1623
        %1625 = vrot.lane.b32.xlu0 %v1618, 112
        %v1626 = vpop.permute.xlu0 %1625
        %1627 = vrot.lane.b32.xlu0 %v1620, 112
        %v1628 = vpop.permute.xlu0 %1627
        %v1629 = vsel %vm1295, %v1622, %v1626
        %v1630 = vsel %vm1295, %v1624, %v1628
        %v1631 = vsel %vm1295, %v1626, %v1622
        %v1632 = vsel %vm1295, %v1628, %v1624
        %v1633 = vmax.f32 %v1617, %v1629
        %v1634 = vmax.f32 %v1618, %v1631
        %v1635 = vmax.f32 %v1619, %v1630
        %v1636 = vmax.f32 %v1620, %v1632
        %1637 = vrot.lane.b32.xlu0 %v1633, 34
        %v1638 = vpop.permute.xlu0 %1637
        %1639 = vrot.lane.b32.xlu0 %v1635, 34
        %v1640 = vpop.permute.xlu0 %1639
        %1641 = vrot.lane.b32.xlu0 %v1634, 34
        %v1642 = vpop.permute.xlu0 %1641
        %1643 = vrot.lane.b32.xlu0 %v1636, 34
        %v1644 = vpop.permute.xlu0 %1643
        %vm1645 = vcmp.lt.s32.totalorder %v800, 34
        %v1646 = vsel %vm1645, %v1638, %v1642
        %v1647 = vsel %vm1645, %v1640, %v1644
        %v1648 = vsel %vm1645, %v1642, %v1638
        %v1649 = vsel %vm1645, %v1644, %v1640
        %v1650 = vlaneseq
        %v1651 = vshrl.u32 %v1650, 7
        %v1652 = vsub.s32 0, %v1651
        %v1653 = vrot.slane %v747, %v1652
        %v1654 = vlaneseq
        %v1655 = vshrl.u32 %v1654, 7
        %v1656 = vsub.s32 0, %v1655
        %v1657 = vrot.slane %v748, %v1656
        %v1658 = vmul.f32 %v1648, %v1653
        %v1659 = vmul.f32 %v1646, %v1657
        %v1660 = vmul.f32 %v1649, %v1653
        %v1661 = vmul.f32 %v1647, %v1657
        %v1662 = vpack.c.bf16 %v1660, %v1658
        %v1663 = vpack.c.bf16 %v1661, %v1659
        %1664 = vrot.lane.b32.xlu0 %v1633, 32
        %v1665 = vpop.permute.xlu0 %1664
        %1666 = vrot.lane.b32.xlu0 %v1635, 32
        %v1667 = vpop.permute.xlu0 %1666
        %1668 = vrot.lane.b32.xlu0 %v1634, 32
        %v1669 = vpop.permute.xlu0 %1668
        %1670 = vrot.lane.b32.xlu0 %v1636, 32
        %v1671 = vpop.permute.xlu0 %1670
        %vm1672 = vcmp.lt.s32.totalorder %v800, 32
        %v1673 = vsel %vm1672, %v1665, %v1669
        %v1674 = vsel %vm1672, %v1667, %v1671
        %v1675 = vsel %vm1672, %v1669, %v1665
        %v1676 = vsel %vm1672, %v1671, %v1667
        %v1677 = vlaneseq
        %v1678 = vshrl.u32 %v1677, 7
        %v1679 = vsub.s32 1, %v1678
        %v1680 = vrot.slane %v747, %v1679
        %v1681 = vlaneseq
        %v1682 = vshrl.u32 %v1681, 7
        %v1683 = vsub.s32 1, %v1682
        %v1684 = vrot.slane %v748, %v1683
        %v1685 = vmul.f32 %v1675, %v1680
        %v1686 = vmul.f32 %v1673, %v1684
        %v1687 = vmul.f32 %v1676, %v1680
        %v1688 = vmul.f32 %v1674, %v1684
        %v1689 = vpack.c.bf16 %v1687, %v1685
        %v1690 = vpack.c.bf16 %v1688, %v1686
        %1691 = vrot.lane.b32.xlu0 %v1633, 30
        %v1692 = vpop.permute.xlu0 %1691
        %1693 = vrot.lane.b32.xlu0 %v1635, 30
        %v1694 = vpop.permute.xlu0 %1693
        %1695 = vrot.lane.b32.xlu0 %v1634, 30
        %v1696 = vpop.permute.xlu0 %1695
        %1697 = vrot.lane.b32.xlu0 %v1636, 30
        %v1698 = vpop.permute.xlu0 %1697
        %vm1699 = vcmp.lt.s32.totalorder %v800, 30
        %v1700 = vsel %vm1699, %v1692, %v1696
        %v1701 = vsel %vm1699, %v1694, %v1698
        %v1702 = vsel %vm1699, %v1696, %v1692
        %v1703 = vsel %vm1699, %v1698, %v1694
        %v1704 = vlaneseq
        %v1705 = vshrl.u32 %v1704, 7
        %v1706 = vsub.s32 2, %v1705
        %v1707 = vrot.slane %v747, %v1706
        %v1708 = vlaneseq
        %v1709 = vshrl.u32 %v1708, 7
        %v1710 = vsub.s32 2, %v1709
        %v1711 = vrot.slane %v748, %v1710
        %v1712 = vmul.f32 %v1702, %v1707
        %v1713 = vmul.f32 %v1700, %v1711
        %v1714 = vmul.f32 %v1703, %v1707
        %v1715 = vmul.f32 %v1701, %v1711
        %v1716 = vpack.c.bf16 %v1714, %v1712
        %v1717 = vpack.c.bf16 %v1715, %v1713
        %1718 = vrot.lane.b32.xlu0 %v1633, 2
        %v1719 = vpop.permute.xlu0 %1718
        %1720 = vrot.lane.b32.xlu0 %v1635, 2
        %v1721 = vpop.permute.xlu0 %1720
        %1722 = vrot.lane.b32.xlu0 %v1634, 2
        %v1723 = vpop.permute.xlu0 %1722
        %1724 = vrot.lane.b32.xlu0 %v1636, 2
        %v1725 = vpop.permute.xlu0 %1724
        %vm1726 = vcmp.lt.s32.totalorder %v800, 2
        %v1727 = vsel %vm1726, %v1719, %v1723
        %v1728 = vsel %vm1726, %v1721, %v1725
        %v1729 = vsel %vm1726, %v1723, %v1719
        %v1730 = vsel %vm1726, %v1725, %v1721
        %v1731 = vlaneseq
        %v1732 = vshrl.u32 %v1731, 7
        %v1733 = vsub.s32 3, %v1732
        %v1734 = vrot.slane %v747, %v1733
        %v1735 = vlaneseq
        %v1736 = vshrl.u32 %v1735, 7
        %v1737 = vsub.s32 3, %v1736
        %v1738 = vrot.slane %v748, %v1737
        %v1739 = vmul.f32 %v1729, %v1734
        %v1740 = vmul.f32 %v1727, %v1738
        %v1741 = vmul.f32 %v1730, %v1734
        %v1742 = vmul.f32 %v1728, %v1738
        %v1743 = vpack.c.bf16 %v1741, %v1739
        %v1744 = vpack.c.bf16 %v1742, %v1740
        %v1745 = vpack.c.bf16 %v1635, %v1633
        %v1746 = vpack.c.bf16 %v1636, %v1634
        %1747 = vrot.lane.b32.xlu0 %v1633, 126
        %v1748 = vpop.permute.xlu0 %1747
        %1749 = vrot.lane.b32.xlu0 %v1635, 126
        %v1750 = vpop.permute.xlu0 %1749
        %1751 = vrot.lane.b32.xlu0 %v1634, 126
        %v1752 = vpop.permute.xlu0 %1751
        %1753 = vrot.lane.b32.xlu0 %v1636, 126
        %v1754 = vpop.permute.xlu0 %1753
        %vm1755 = vcmp.lt.s32.totalorder %v800, 126
        %v1756 = vsel %vm1755, %v1748, %v1752
        %v1757 = vsel %vm1755, %v1750, %v1754
        %v1758 = vsel %vm1755, %v1752, %v1748
        %v1759 = vsel %vm1755, %v1754, %v1750
        %v1760 = vlaneseq
        %v1761 = vshrl.u32 %v1760, 7
        %v1762 = vsub.s32 5, %v1761
        %v1763 = vrot.slane %v747, %v1762
        %v1764 = vlaneseq
        %v1765 = vshrl.u32 %v1764, 7
        %v1766 = vsub.s32 5, %v1765
        %v1767 = vrot.slane %v748, %v1766
        %v1768 = vmul.f32 %v1756, %v1763
        %v1769 = vmul.f32 %v1758, %v1767
        %v1770 = vmul.f32 %v1757, %v1763
        %v1771 = vmul.f32 %v1759, %v1767
        %v1772 = vpack.c.bf16 %v1770, %v1768
        %v1773 = vpack.c.bf16 %v1771, %v1769
        %1774 = vrot.lane.b32.xlu0 %v1633, 98
        %v1775 = vpop.permute.xlu0 %1774
        %1776 = vrot.lane.b32.xlu0 %v1635, 98
        %v1777 = vpop.permute.xlu0 %1776
        %1778 = vrot.lane.b32.xlu0 %v1634, 98
        %v1779 = vpop.permute.xlu0 %1778
        %1780 = vrot.lane.b32.xlu0 %v1636, 98
        %v1781 = vpop.permute.xlu0 %1780
        %vm1782 = vcmp.lt.s32.totalorder %v800, 98
        %v1783 = vsel %vm1782, %v1775, %v1779
        %v1784 = vsel %vm1782, %v1777, %v1781
        %v1785 = vsel %vm1782, %v1779, %v1775
        %v1786 = vsel %vm1782, %v1781, %v1777
        %v1787 = vlaneseq
        %v1788 = vshrl.u32 %v1787, 7
        %v1789 = vsub.s32 6, %v1788
        %v1790 = vrot.slane %v747, %v1789
        %v1791 = vlaneseq
        %v1792 = vshrl.u32 %v1791, 7
        %v1793 = vsub.s32 6, %v1792
        %v1794 = vrot.slane %v748, %v1793
        %v1795 = vmul.f32 %v1783, %v1790
        %v1796 = vmul.f32 %v1785, %v1794
        %v1797 = vmul.f32 %v1784, %v1790
        %v1798 = vmul.f32 %v1786, %v1794
        %v1799 = vpack.c.bf16 %v1797, %v1795
        %v1800 = vpack.c.bf16 %v1798, %v1796
        %1801 = vrot.lane.b32.xlu0 %v1633, 96
        %v1802 = vpop.permute.xlu0 %1801
        %1803 = vrot.lane.b32.xlu0 %v1635, 96
        %v1804 = vpop.permute.xlu0 %1803
        %1805 = vrot.lane.b32.xlu0 %v1634, 96
        %v1806 = vpop.permute.xlu0 %1805
        %1807 = vrot.lane.b32.xlu0 %v1636, 96
        %v1808 = vpop.permute.xlu0 %1807
        %vm1809 = vcmp.lt.s32.totalorder %v800, 96
        %v1810 = vsel %vm1809, %v1802, %v1806
        %v1811 = vsel %vm1809, %v1804, %v1808
        %v1812 = vsel %vm1809, %v1806, %v1802
        %v1813 = vsel %vm1809, %v1808, %v1804
        %v1814 = vlaneseq
        %v1815 = vshrl.u32 %v1814, 7
        %v1816 = vsub.s32 7, %v1815
        %v1817 = vrot.slane %v747, %v1816
        %v1818 = vlaneseq
        %v1819 = vshrl.u32 %v1818, 7
        %v1820 = vsub.s32 7, %v1819
        %v1821 = vrot.slane %v748, %v1820
        %v1822 = vmul.f32 %v1810, %v1817
        %v1823 = vmul.f32 %v1812, %v1821
        %v1824 = vmul.f32 %v1811, %v1817
        %v1825 = vmul.f32 %v1813, %v1821
        %v1826 = vpack.c.bf16 %v1824, %v1822
        %v1827 = vpack.c.bf16 %v1825, %v1823
        %1828 = vrot.lane.b32.xlu0 %v1633, 94
        %v1829 = vpop.permute.xlu0 %1828
        %1830 = vrot.lane.b32.xlu0 %v1635, 94
        %v1831 = vpop.permute.xlu0 %1830
        %1832 = vrot.lane.b32.xlu0 %v1634, 94
        %v1833 = vpop.permute.xlu0 %1832
        %1834 = vrot.lane.b32.xlu0 %v1636, 94
        %v1835 = vpop.permute.xlu0 %1834
        %vm1836 = vcmp.lt.s32.totalorder %v800, 94
        %v1837 = vsel %vm1836, %v1829, %v1833
        %v1838 = vsel %vm1836, %v1831, %v1835
        %v1839 = vsel %vm1836, %v1833, %v1829
        %v1840 = vsel %vm1836, %v1835, %v1831
        %v1841 = vlaneseq
        %v1842 = vshrl.u32 %v1841, 7
        %v1843 = vsub.s32 0, %v1842
        %v1844 = vrot.slane %v749, %v1843
        %v1845 = vlaneseq
        %v1846 = vshrl.u32 %v1845, 7
        %v1847 = vsub.s32 0, %v1846
        %v1848 = vrot.slane %v750, %v1847
        %v1849 = vmul.f32 %v1837, %v1844
        %v1850 = vmul.f32 %v1839, %v1848
        %v1851 = vmul.f32 %v1838, %v1844
        %v1852 = vmul.f32 %v1840, %v1848
        %v1853 = vpack.c.bf16 %v1851, %v1849
        %v1854 = vpack.c.bf16 %v1852, %v1850
        %v1855 = vld [vmem:[%s7] sm:$0xff]
        %v1856 = vld [vmem:[%s7 + $0x8] sm:$0xff]
        %v1857 = vld [vmem:[%s7 + $0x10] sm:$0xff]
        %v1858 = vld [vmem:[%s7 + $0x18] sm:$0xff]
        %v1859 = vld [vmem:[%s8] sm:$0xff]
        %v1860 = vld [vmem:[%s8 + $0x8] sm:$0xff]
        %v1861 = vld [vmem:[%s8 + $0x10] sm:$0xff]
        %v1862 = vld [vmem:[%s8 + $0x18] sm:$0xff]
        %1864 = vset.pattern.permute.xlu0 0
        %1865 = vperm.xlu0 %1864, %v1859
        %v1866 = vpop.permute.xlu0 %1865
        %1869 = vset.pattern.permute.xlu0 0
        %1870 = vperm.xlu0 %1869, %v1860
        %v1871 = vpop.permute.xlu0 %1870
        %1874 = vset.pattern.permute.xlu0 0
        %1875 = vperm.xlu0 %1874, %v1861
        %v1876 = vpop.permute.xlu0 %1875
        %1879 = vset.pattern.permute.xlu0 0
        %1880 = vperm.xlu0 %1879, %v1862
        %v1881 = vpop.permute.xlu0 %1880
        %v1887 = vunpack.c.l.b16 %v1855
        %v1888 = vunpack.c.h.b16 %v1855
        %v1889 = vunpack.c.l.b16 %v1856
        %v1890 = vunpack.c.h.b16 %v1856
        %v1891 = vunpack.c.l.b16 %v1857
        %v1892 = vunpack.c.h.b16 %v1857
        %v1893 = vunpack.c.l.b16 %v1858
        %v1894 = vunpack.c.h.b16 %v1858
        %v1895 = vpack.c.b16 %v1889, %v1887
        %v1896 = vpack.c.b16 %v1890, %v1888
        %v1897 = vpack.c.b16 %v1893, %v1891
        %v1898 = vpack.c.b16 %v1894, %v1892
        %vm1901 = vcmask 130048
        %v1903 = vsel %vm1901, %v1896, 0
        %v1906 = vsel %vm1901, %v1898, 0
        %1908 = vmatprep.subr.bf16.mxu0 %v1663
        %1909 = vmatpush1.bf16.msra.mxu0 %v1662
        %1910 = vmatprep.subr.bf16.mxu0 %v1690
        %1911 = vmatpush1.bf16.msra.mxu0 %v1689
        %1912 = vmatprep.subr.bf16.mxu0 %v1717
        %1913 = vmatpush1.bf16.msra.mxu0 %v1716
        %1914 = vmatprep.subr.bf16.mxu0 %v1744
        %1915 = vmatpush1.bf16.msra.mxu0 %v1743
        %1916 = vmatprep.subr.bf16.mxu0 %v1746
        %1917 = vmatpush1.bf16.msra.mxu0 %v1745
        %1918 = vmatprep.subr.bf16.mxu0 %v1773
        %1919 = vmatpush1.bf16.msra.mxu0 %v1772
        %1920 = vmatprep.subr.bf16.mxu0 %v1800
        %1921 = vmatpush1.bf16.msra.mxu0 %v1799
        %1922 = vmatprep.subr.bf16.mxu0 %v1827
        %1923 = vmatpush1.bf16.msra.mxu0 %v1826
        %1924 = vmatprep.subr.bf16.mxu0 %v1854
        %1925 = vmatpush1.bf16.msra.mxu0 %v1853
        %1926 = vmatprep.subr.bf16.mxu0 0
        %1927 = vmatpush1.bf16.msra.mxu0 0
        %1928 = vmatprep.subr.bf16.mxu0 0
        %1929 = vmatpush1.bf16.msra.mxu0 0
        %1930 = vmatprep.subr.bf16.mxu0 0
        %1931 = vmatpush1.bf16.msra.mxu0 0
        %1932 = vmatprep.subr.bf16.mxu0 0
        %1933 = vmatpush1.bf16.msra.mxu0 0
        %1934 = vmatprep.subr.bf16.mxu0 0
        %1935 = vmatpush1.bf16.msra.mxu0 0
        %1936 = vmatprep.subr.bf16.mxu0 0
        %1937 = vmatpush1.bf16.msra.mxu0 0
        %1938 = vmatprep.subr.bf16.mxu0 0
        %1939 = vmatpush1.bf16.msra.mxu0 0
        %1940 = vmatprep.mubr.bf16.mxu0 %v1903
        %1941 = vmatmul.mubr.bf16.gmra.mrb[0].mxu0 %v1895
        %v1942 = vpop.f32.mrb[0].mxu0
        %v1943 = vadd.f32 %v1866, %v1942
        %v1944 = vpop.f32.mrb[0].mxu0
        %v1945 = vadd.f32 %v1866, %v1944
        %v1946 = vpop.f32.mrb[0].mxu0
        %v1947 = vadd.f32 %v1871, %v1946
        %v1948 = vpop.f32.mrb[0].mxu0
        %v1949 = vadd.f32 %v1871, %v1948
        %1950 = vmatprep.mubr.bf16.mxu0 %v1906
        %1951 = vmatmul.mubr.bf16.gmra.mrb[0].mxu0 %v1897
        %v1952 = vpop.f32.mrb[0].mxu0
        %v1953 = vadd.f32 %v1876, %v1952
        %v1954 = vpop.f32.mrb[0].mxu0
        %v1955 = vadd.f32 %v1876, %v1954
        %v1956 = vpop.f32.mrb[0].mxu0
        %v1957 = vadd.f32 %v1881, %v1956
        %v1958 = vpop.f32.mrb[0].mxu0
        %v1959 = vadd.f32 %v1881, %v1958
        %1960 = vdwg.mxu0
        %v1961 = vmax.f32 %v1943, 0.0
        %v1962 = vmax.f32 %v1945, 0.0
        %v1963 = vmax.f32 %v1947, 0.0
        %v1964 = vmax.f32 %v1949, 0.0
        %v1965 = vmax.f32 %v1953, 0.0
        %v1966 = vmax.f32 %v1955, 0.0
        %v1967 = vmax.f32 %v1957, 0.0
        %v1968 = vmax.f32 %v1959, 0.0
        %v1969 = vld [vmem:[%s4] sm:$0xf]
        %vm1970 = vcmp.gt.f32.partialorder %v1969, 0.5
        %1971 = vrot.lane.b32.xlu0 %v1961, 1
        %v1972 = vpop.permute.xlu0 %1971
        %1973 = vrot.lane.b32.xlu0 %v1963, 1
        %v1974 = vpop.permute.xlu0 %1973
        %1975 = vrot.lane.b32.xlu0 %v1965, 1
        %v1976 = vpop.permute.xlu0 %1975
        %1977 = vrot.lane.b32.xlu0 %v1967, 1
        %v1978 = vpop.permute.xlu0 %1977
        %1979 = vrot.lane.b32.xlu0 %v1962, 1
        %v1980 = vpop.permute.xlu0 %1979
        %1981 = vrot.lane.b32.xlu0 %v1964, 1
        %v1982 = vpop.permute.xlu0 %1981
        %1983 = vrot.lane.b32.xlu0 %v1966, 1
        %v1984 = vpop.permute.xlu0 %1983
        %1985 = vrot.lane.b32.xlu0 %v1968, 1
        %v1986 = vpop.permute.xlu0 %1985
        %v1987 = vsel %vm1044, %v1972, %v1980
        %v1988 = vsel %vm1044, %v1974, %v1982
        %v1989 = vsel %vm1044, %v1976, %v1984
        %v1990 = vsel %vm1044, %v1978, %v1986
        %v1991 = vsel %vm1044, %v1980, %v1972
        %v1992 = vsel %vm1044, %v1982, %v1974
        %v1993 = vsel %vm1044, %v1984, %v1976
        %v1994 = vsel %vm1044, %v1986, %v1978
        %v1995 = vsel %vm1970, 1, 0
        %v1996 = vlaneseq
        %v1997 = vshrl.u32 %v1996, 7
        %v1998 = vsub.s32 0, %v1997
        %v1999 = vrot.slane %v1995, %v1998
        %v2000 = vlaneseq
        %v2001 = vshrl.u32 %v2000, 7
        %v2002 = vsub.s32 2, %v2001
        %v2003 = vrot.slane %v1995, %v2002
        %v2004 = vlaneseq
        %v2005 = vshrl.u32 %v2004, 7
        %v2006 = vsub.s32 0, %v2005
        %v2007 = vrot.slane %v1999, %v2006
        %v2008 = vlaneseq
        %v2009 = vshrl.u32 %v2008, 7
        %v2010 = vsub.s32 0, %v2009
        %v2011 = vrot.slane %v2003, %v2010
        %vm2012 = vcmp.eq.s32.totalorder %v2007, 1
        %vm2013 = vcmp.eq.s32.totalorder %v2011, 1
        %v2014 = vsel %vm2012, %v1991, %v1961
        %v2015 = vsel %vm2013, %v1987, %v1962
        %v2016 = vsel %vm2012, %v1992, %v1963
        %v2017 = vsel %vm2013, %v1988, %v1964
        %v2018 = vsel %vm2012, %v1993, %v1965
        %v2019 = vsel %vm2013, %v1989, %v1966
        %v2020 = vsel %vm2012, %v1994, %v1967
        %v2021 = vsel %vm2013, %v1990, %v1968
        %2022 = vrot.lane.b32.xlu0 %v2014, 16
        %v2023 = vpop.permute.xlu0 %2022
        %2024 = vrot.lane.b32.xlu0 %v2016, 16
        %v2025 = vpop.permute.xlu0 %2024
        %2026 = vrot.lane.b32.xlu0 %v2018, 16
        %v2027 = vpop.permute.xlu0 %2026
        %2028 = vrot.lane.b32.xlu0 %v2020, 16
        %v2029 = vpop.permute.xlu0 %2028
        %2030 = vrot.lane.b32.xlu0 %v2015, 16
        %v2031 = vpop.permute.xlu0 %2030
        %2032 = vrot.lane.b32.xlu0 %v2017, 16
        %v2033 = vpop.permute.xlu0 %2032
        %2034 = vrot.lane.b32.xlu0 %v2019, 16
        %v2035 = vpop.permute.xlu0 %2034
        %2036 = vrot.lane.b32.xlu0 %v2021, 16
        %v2037 = vpop.permute.xlu0 %2036
        %v2038 = vsel %vm882, %v2023, %v2031
        %v2039 = vsel %vm882, %v2025, %v2033
        %v2040 = vsel %vm882, %v2027, %v2035
        %v2041 = vsel %vm882, %v2029, %v2037
        %v2042 = vsel %vm882, %v2031, %v2023
        %v2043 = vsel %vm882, %v2033, %v2025
        %v2044 = vsel %vm882, %v2035, %v2027
        %v2045 = vsel %vm882, %v2037, %v2029
        %v2046 = vlaneseq
        %v2047 = vshrl.u32 %v2046, 7
        %v2048 = vsub.s32 1, %v2047
        %v2049 = vrot.slane %v1995, %v2048
        %v2050 = vlaneseq
        %v2051 = vshrl.u32 %v2050, 7
        %v2052 = vsub.s32 3, %v2051
        %v2053 = vrot.slane %v1995, %v2052
        %v2054 = vlaneseq
        %v2055 = vshrl.u32 %v2054, 7
        %v2056 = vsub.s32 1, %v2055
        %v2057 = vrot.slane %v2049, %v2056
        %v2058 = vlaneseq
        %v2059 = vshrl.u32 %v2058, 7
        %v2060 = vsub.s32 1, %v2059
        %v2061 = vrot.slane %v2053, %v2060
        %vm2062 = vcmp.eq.s32.totalorder %v2057, 1
        %vm2063 = vcmp.eq.s32.totalorder %v2061, 1
        %v2064 = vsel %vm2062, %v2042, %v2014
        %v2065 = vsel %vm2063, %v2038, %v2015
        %v2066 = vsel %vm2062, %v2043, %v2016
        %v2067 = vsel %vm2063, %v2039, %v2017
        %v2068 = vsel %vm2062, %v2044, %v2018
        %v2069 = vsel %vm2063, %v2040, %v2019
        %v2070 = vsel %vm2062, %v2045, %v2020
        %v2071 = vsel %vm2063, %v2041, %v2021
        %2072 = vrot.lane.b32.xlu0 %v1601, 17
        %v2073 = vpop.permute.xlu0 %2072
        %2074 = vrot.lane.b32.xlu0 %v1603, 17
        %v2075 = vpop.permute.xlu0 %2074
        %2076 = vrot.lane.b32.xlu0 %v2064, 17
        %v2077 = vpop.permute.xlu0 %2076
        %2078 = vrot.lane.b32.xlu0 %v2066, 17
        %v2079 = vpop.permute.xlu0 %2078
        %2080 = vrot.lane.b32.xlu0 %v2068, 17
        %v2081 = vpop.permute.xlu0 %2080
        %2082 = vrot.lane.b32.xlu0 %v2070, 17
        %v2083 = vpop.permute.xlu0 %2082
        %2084 = vrot.lane.b32.xlu0 %v1602, 17
        %v2085 = vpop.permute.xlu0 %2084
        %2086 = vrot.lane.b32.xlu0 %v1604, 17
        %v2087 = vpop.permute.xlu0 %2086
        %2088 = vrot.lane.b32.xlu0 %v2065, 17
        %v2089 = vpop.permute.xlu0 %2088
        %2090 = vrot.lane.b32.xlu0 %v2067, 17
        %v2091 = vpop.permute.xlu0 %2090
        %2092 = vrot.lane.b32.xlu0 %v2069, 17
        %v2093 = vpop.permute.xlu0 %2092
        %2094 = vrot.lane.b32.xlu0 %v2071, 17
        %v2095 = vpop.permute.xlu0 %2094
        %v2096 = vsel %vm801, %v2073, %v2085
        %v2097 = vsel %vm801, %v2075, %v2087
        %v2098 = vsel %vm801, %v2077, %v2089
        %v2099 = vsel %vm801, %v2079, %v2091
        %v2100 = vsel %vm801, %v2081, %v2093
        %v2101 = vsel %vm801, %v2083, %v2095
        %v2102 = vsel %vm801, %v2085, %v2073
        %v2103 = vsel %vm801, %v2087, %v2075
        %v2104 = vsel %vm801, %v2089, %v2077
        %v2105 = vsel %vm801, %v2091, %v2079
        %v2106 = vsel %vm801, %v2093, %v2081
        %v2107 = vsel %vm801, %v2095, %v2083
        %v2108 = vmul.f32 %v2102, %v821
        %v2109 = vmul.f32 %v2096, %v825
        %v2110 = vmul.f32 %v2103, %v821
        %v2111 = vmul.f32 %v2097, %v825
        %v2112 = vmul.f32 %v2104, %v821
        %v2113 = vmul.f32 %v2098, %v825
        %v2114 = vmul.f32 %v2105, %v821
        %v2115 = vmul.f32 %v2099, %v825
        %v2116 = vmul.f32 %v2106, %v821
        %v2117 = vmul.f32 %v2100, %v825
        %v2118 = vmul.f32 %v2107, %v821
        %v2119 = vmul.f32 %v2101, %v825
        %v2120 = vpack.c.bf16 %v2110, %v2108
        %v2121 = vpack.c.bf16 %v2111, %v2109
        %v2122 = vpack.c.bf16 %v2114, %v2112
        %v2123 = vpack.c.bf16 %v2115, %v2113
        %v2124 = vpack.c.bf16 %v2118, %v2116
        %v2125 = vpack.c.bf16 %v2119, %v2117
        %2126 = vrot.lane.b32.xlu0 %v1601, 16
        %v2127 = vpop.permute.xlu0 %2126
        %2128 = vrot.lane.b32.xlu0 %v1603, 16
        %v2129 = vpop.permute.xlu0 %2128
        %2130 = vrot.lane.b32.xlu0 %v2064, 16
        %v2131 = vpop.permute.xlu0 %2130
        %2132 = vrot.lane.b32.xlu0 %v2066, 16
        %v2133 = vpop.permute.xlu0 %2132
        %2134 = vrot.lane.b32.xlu0 %v2068, 16
        %v2135 = vpop.permute.xlu0 %2134
        %2136 = vrot.lane.b32.xlu0 %v2070, 16
        %v2137 = vpop.permute.xlu0 %2136
        %2138 = vrot.lane.b32.xlu0 %v1602, 16
        %v2139 = vpop.permute.xlu0 %2138
        %2140 = vrot.lane.b32.xlu0 %v1604, 16
        %v2141 = vpop.permute.xlu0 %2140
        %2142 = vrot.lane.b32.xlu0 %v2065, 16
        %v2143 = vpop.permute.xlu0 %2142
        %2144 = vrot.lane.b32.xlu0 %v2067, 16
        %v2145 = vpop.permute.xlu0 %2144
        %2146 = vrot.lane.b32.xlu0 %v2069, 16
        %v2147 = vpop.permute.xlu0 %2146
        %2148 = vrot.lane.b32.xlu0 %v2071, 16
        %v2149 = vpop.permute.xlu0 %2148
        %v2150 = vsel %vm882, %v2127, %v2139
        %v2151 = vsel %vm882, %v2129, %v2141
        %v2152 = vsel %vm882, %v2131, %v2143
        %v2153 = vsel %vm882, %v2133, %v2145
        %v2154 = vsel %vm882, %v2135, %v2147
        %v2155 = vsel %vm882, %v2137, %v2149
        %v2156 = vsel %vm882, %v2139, %v2127
        %v2157 = vsel %vm882, %v2141, %v2129
        %v2158 = vsel %vm882, %v2143, %v2131
        %v2159 = vsel %vm882, %v2145, %v2133
        %v2160 = vsel %vm882, %v2147, %v2135
        %v2161 = vsel %vm882, %v2149, %v2137
        %v2162 = vmul.f32 %v2156, %v902
        %v2163 = vmul.f32 %v2150, %v906
        %v2164 = vmul.f32 %v2157, %v902
        %v2165 = vmul.f32 %v2151, %v906
        %v2166 = vmul.f32 %v2158, %v902
        %v2167 = vmul.f32 %v2152, %v906
        %v2168 = vmul.f32 %v2159, %v902
        %v2169 = vmul.f32 %v2153, %v906
        %v2170 = vmul.f32 %v2160, %v902
        %v2171 = vmul.f32 %v2154, %v906
        %v2172 = vmul.f32 %v2161, %v902
        %v2173 = vmul.f32 %v2155, %v906
        %v2174 = vpack.c.bf16 %v2164, %v2162
        %v2175 = vpack.c.bf16 %v2165, %v2163
        %v2176 = vpack.c.bf16 %v2168, %v2166
        %v2177 = vpack.c.bf16 %v2169, %v2167
        %v2178 = vpack.c.bf16 %v2172, %v2170
        %v2179 = vpack.c.bf16 %v2173, %v2171
        %2180 = vrot.lane.b32.xlu0 %v1601, 15
        %v2181 = vpop.permute.xlu0 %2180
        %2182 = vrot.lane.b32.xlu0 %v1603, 15
        %v2183 = vpop.permute.xlu0 %2182
        %2184 = vrot.lane.b32.xlu0 %v2064, 15
        %v2185 = vpop.permute.xlu0 %2184
        %2186 = vrot.lane.b32.xlu0 %v2066, 15
        %v2187 = vpop.permute.xlu0 %2186
        %2188 = vrot.lane.b32.xlu0 %v2068, 15
        %v2189 = vpop.permute.xlu0 %2188
        %2190 = vrot.lane.b32.xlu0 %v2070, 15
        %v2191 = vpop.permute.xlu0 %2190
        %2192 = vrot.lane.b32.xlu0 %v1602, 15
        %v2193 = vpop.permute.xlu0 %2192
        %2194 = vrot.lane.b32.xlu0 %v1604, 15
        %v2195 = vpop.permute.xlu0 %2194
        %2196 = vrot.lane.b32.xlu0 %v2065, 15
        %v2197 = vpop.permute.xlu0 %2196
        %2198 = vrot.lane.b32.xlu0 %v2067, 15
        %v2199 = vpop.permute.xlu0 %2198
        %2200 = vrot.lane.b32.xlu0 %v2069, 15
        %v2201 = vpop.permute.xlu0 %2200
        %2202 = vrot.lane.b32.xlu0 %v2071, 15
        %v2203 = vpop.permute.xlu0 %2202
        %v2204 = vsel %vm963, %v2181, %v2193
        %v2205 = vsel %vm963, %v2183, %v2195
        %v2206 = vsel %vm963, %v2185, %v2197
        %v2207 = vsel %vm963, %v2187, %v2199
        %v2208 = vsel %vm963, %v2189, %v2201
        %v2209 = vsel %vm963, %v2191, %v2203
        %v2210 = vsel %vm963, %v2193, %v2181
        %v2211 = vsel %vm963, %v2195, %v2183
        %v2212 = vsel %vm963, %v2197, %v2185
        %v2213 = vsel %vm963, %v2199, %v2187
        %v2214 = vsel %vm963, %v2201, %v2189
        %v2215 = vsel %vm963, %v2203, %v2191
        %v2216 = vmul.f32 %v2210, %v983
        %v2217 = vmul.f32 %v2204, %v987
        %v2218 = vmul.f32 %v2211, %v983
        %v2219 = vmul.f32 %v2205, %v987
        %v2220 = vmul.f32 %v2212, %v983
        %v2221 = vmul.f32 %v2206, %v987
        %v2222 = vmul.f32 %v2213, %v983
        %v2223 = vmul.f32 %v2207, %v987
        %v2224 = vmul.f32 %v2214, %v983
        %v2225 = vmul.f32 %v2208, %v987
        %v2226 = vmul.f32 %v2215, %v983
        %v2227 = vmul.f32 %v2209, %v987
        %v2228 = vpack.c.bf16 %v2218, %v2216
        %v2229 = vpack.c.bf16 %v2219, %v2217
        %v2230 = vpack.c.bf16 %v2222, %v2220
        %v2231 = vpack.c.bf16 %v2223, %v2221
        %v2232 = vpack.c.bf16 %v2226, %v2224
        %v2233 = vpack.c.bf16 %v2227, %v2225
        %2234 = vrot.lane.b32.xlu0 %v1601, 1
        %v2235 = vpop.permute.xlu0 %2234
        %2236 = vrot.lane.b32.xlu0 %v1603, 1
        %v2237 = vpop.permute.xlu0 %2236
        %2238 = vrot.lane.b32.xlu0 %v2064, 1
        %v2239 = vpop.permute.xlu0 %2238
        %2240 = vrot.lane.b32.xlu0 %v2066, 1
        %v2241 = vpop.permute.xlu0 %2240
        %2242 = vrot.lane.b32.xlu0 %v2068, 1
        %v2243 = vpop.permute.xlu0 %2242
        %2244 = vrot.lane.b32.xlu0 %v2070, 1
        %v2245 = vpop.permute.xlu0 %2244
        %2246 = vrot.lane.b32.xlu0 %v1602, 1
        %v2247 = vpop.permute.xlu0 %2246
        %2248 = vrot.lane.b32.xlu0 %v1604, 1
        %v2249 = vpop.permute.xlu0 %2248
        %2250 = vrot.lane.b32.xlu0 %v2065, 1
        %v2251 = vpop.permute.xlu0 %2250
        %2252 = vrot.lane.b32.xlu0 %v2067, 1
        %v2253 = vpop.permute.xlu0 %2252
        %2254 = vrot.lane.b32.xlu0 %v2069, 1
        %v2255 = vpop.permute.xlu0 %2254
        %2256 = vrot.lane.b32.xlu0 %v2071, 1
        %v2257 = vpop.permute.xlu0 %2256
        %v2258 = vsel %vm1044, %v2235, %v2247
        %v2259 = vsel %vm1044, %v2237, %v2249
        %v2260 = vsel %vm1044, %v2239, %v2251
        %v2261 = vsel %vm1044, %v2241, %v2253
        %v2262 = vsel %vm1044, %v2243, %v2255
        %v2263 = vsel %vm1044, %v2245, %v2257
        %v2264 = vsel %vm1044, %v2247, %v2235
        %v2265 = vsel %vm1044, %v2249, %v2237
        %v2266 = vsel %vm1044, %v2251, %v2239
        %v2267 = vsel %vm1044, %v2253, %v2241
        %v2268 = vsel %vm1044, %v2255, %v2243
        %v2269 = vsel %vm1044, %v2257, %v2245
        %v2270 = vmul.f32 %v2264, %v1064
        %v2271 = vmul.f32 %v2258, %v1068
        %v2272 = vmul.f32 %v2265, %v1064
        %v2273 = vmul.f32 %v2259, %v1068
        %v2274 = vmul.f32 %v2266, %v1064
        %v2275 = vmul.f32 %v2260, %v1068
        %v2276 = vmul.f32 %v2267, %v1064
        %v2277 = vmul.f32 %v2261, %v1068
        %v2278 = vmul.f32 %v2268, %v1064
        %v2279 = vmul.f32 %v2262, %v1068
        %v2280 = vmul.f32 %v2269, %v1064
        %v2281 = vmul.f32 %v2263, %v1068
        %v2282 = vpack.c.bf16 %v2272, %v2270
        %v2283 = vpack.c.bf16 %v2273, %v2271
        %v2284 = vpack.c.bf16 %v2276, %v2274
        %v2285 = vpack.c.bf16 %v2277, %v2275
        %v2286 = vpack.c.bf16 %v2280, %v2278
        %v2287 = vpack.c.bf16 %v2281, %v2279
        %v2288 = vpack.c.bf16 %v1603, %v1601
        %v2289 = vpack.c.bf16 %v1604, %v1602
        %v2290 = vpack.c.bf16 %v2066, %v2064
        %v2291 = vpack.c.bf16 %v2067, %v2065
        %v2292 = vpack.c.bf16 %v2070, %v2068
        %v2293 = vpack.c.bf16 %v2071, %v2069
        %2294 = vrot.lane.b32.xlu0 %v2064, 127
        %v2295 = vpop.permute.xlu0 %2294
        %2296 = vrot.lane.b32.xlu0 %v2066, 127
        %v2297 = vpop.permute.xlu0 %2296
        %2298 = vrot.lane.b32.xlu0 %v2068, 127
        %v2299 = vpop.permute.xlu0 %2298
        %2300 = vrot.lane.b32.xlu0 %v2070, 127
        %v2301 = vpop.permute.xlu0 %2300
        %2302 = vrot.lane.b32.xlu0 %v2065, 127
        %v2303 = vpop.permute.xlu0 %2302
        %2304 = vrot.lane.b32.xlu0 %v2067, 127
        %v2305 = vpop.permute.xlu0 %2304
        %2306 = vrot.lane.b32.xlu0 %v2069, 127
        %v2307 = vpop.permute.xlu0 %2306
        %2308 = vrot.lane.b32.xlu0 %v2071, 127
        %v2309 = vpop.permute.xlu0 %2308
        %v2310 = vsel %vm1133, %v2295, %v2303
        %v2311 = vsel %vm1133, %v2297, %v2305
        %v2312 = vsel %vm1133, %v2299, %v2307
        %v2313 = vsel %vm1133, %v2301, %v2309
        %v2314 = vsel %vm1133, %v2303, %v2295
        %v2315 = vsel %vm1133, %v2305, %v2297
        %v2316 = vsel %vm1133, %v2307, %v2299
        %v2317 = vsel %vm1133, %v2309, %v2301
        %v2318 = vmul.f32 %v1613, %v1153
        %v2319 = vmul.f32 %v1615, %v1157
        %v2320 = vmul.f32 %v1614, %v1153
        %v2321 = vmul.f32 %v1616, %v1157
        %v2322 = vmul.f32 %v2310, %v1153
        %v2323 = vmul.f32 %v2314, %v1157
        %v2324 = vmul.f32 %v2311, %v1153
        %v2325 = vmul.f32 %v2315, %v1157
        %v2326 = vmul.f32 %v2312, %v1153
        %v2327 = vmul.f32 %v2316, %v1157
        %v2328 = vmul.f32 %v2313, %v1153
        %v2329 = vmul.f32 %v2317, %v1157
        %v2330 = vpack.c.bf16 %v2320, %v2318
        %v2331 = vpack.c.bf16 %v2321, %v2319
        %v2332 = vpack.c.bf16 %v2324, %v2322
        %v2333 = vpack.c.bf16 %v2325, %v2323
        %v2334 = vpack.c.bf16 %v2328, %v2326
        %v2335 = vpack.c.bf16 %v2329, %v2327
        %2336 = vrot.lane.b32.xlu0 %v1601, 113
        %v2337 = vpop.permute.xlu0 %2336
        %2338 = vrot.lane.b32.xlu0 %v1603, 113
        %v2339 = vpop.permute.xlu0 %2338
        %2340 = vrot.lane.b32.xlu0 %v2064, 113
        %v2341 = vpop.permute.xlu0 %2340
        %2342 = vrot.lane.b32.xlu0 %v2066, 113
        %v2343 = vpop.permute.xlu0 %2342
        %2344 = vrot.lane.b32.xlu0 %v2068, 113
        %v2345 = vpop.permute.xlu0 %2344
        %2346 = vrot.lane.b32.xlu0 %v2070, 113
        %v2347 = vpop.permute.xlu0 %2346
        %2348 = vrot.lane.b32.xlu0 %v1602, 113
        %v2349 = vpop.permute.xlu0 %2348
        %2350 = vrot.lane.b32.xlu0 %v1604, 113
        %v2351 = vpop.permute.xlu0 %2350
        %2352 = vrot.lane.b32.xlu0 %v2065, 113
        %v2353 = vpop.permute.xlu0 %2352
        %2354 = vrot.lane.b32.xlu0 %v2067, 113
        %v2355 = vpop.permute.xlu0 %2354
        %2356 = vrot.lane.b32.xlu0 %v2069, 113
        %v2357 = vpop.permute.xlu0 %2356
        %2358 = vrot.lane.b32.xlu0 %v2071, 113
        %v2359 = vpop.permute.xlu0 %2358
        %v2360 = vsel %vm1214, %v2337, %v2349
        %v2361 = vsel %vm1214, %v2339, %v2351
        %v2362 = vsel %vm1214, %v2341, %v2353
        %v2363 = vsel %vm1214, %v2343, %v2355
        %v2364 = vsel %vm1214, %v2345, %v2357
        %v2365 = vsel %vm1214, %v2347, %v2359
        %v2366 = vsel %vm1214, %v2349, %v2337
        %v2367 = vsel %vm1214, %v2351, %v2339
        %v2368 = vsel %vm1214, %v2353, %v2341
        %v2369 = vsel %vm1214, %v2355, %v2343
        %v2370 = vsel %vm1214, %v2357, %v2345
        %v2371 = vsel %vm1214, %v2359, %v2347
        %v2372 = vmul.f32 %v2360, %v1234
        %v2373 = vmul.f32 %v2366, %v1238
        %v2374 = vmul.f32 %v2361, %v1234
        %v2375 = vmul.f32 %v2367, %v1238
        %v2376 = vmul.f32 %v2362, %v1234
        %v2377 = vmul.f32 %v2368, %v1238
        %v2378 = vmul.f32 %v2363, %v1234
        %v2379 = vmul.f32 %v2369, %v1238
        %v2380 = vmul.f32 %v2364, %v1234
        %v2381 = vmul.f32 %v2370, %v1238
        %v2382 = vmul.f32 %v2365, %v1234
        %v2383 = vmul.f32 %v2371, %v1238
        %v2384 = vpack.c.bf16 %v2374, %v2372
        %v2385 = vpack.c.bf16 %v2375, %v2373
        %v2386 = vpack.c.bf16 %v2378, %v2376
        %v2387 = vpack.c.bf16 %v2379, %v2377
        %v2388 = vpack.c.bf16 %v2382, %v2380
        %v2389 = vpack.c.bf16 %v2383, %v2381
        %2390 = vrot.lane.b32.xlu0 %v1601, 112
        %v2391 = vpop.permute.xlu0 %2390
        %2392 = vrot.lane.b32.xlu0 %v1603, 112
        %v2393 = vpop.permute.xlu0 %2392
        %2394 = vrot.lane.b32.xlu0 %v2064, 112
        %v2395 = vpop.permute.xlu0 %2394
        %2396 = vrot.lane.b32.xlu0 %v2066, 112
        %v2397 = vpop.permute.xlu0 %2396
        %2398 = vrot.lane.b32.xlu0 %v2068, 112
        %v2399 = vpop.permute.xlu0 %2398
        %2400 = vrot.lane.b32.xlu0 %v2070, 112
        %v2401 = vpop.permute.xlu0 %2400
        %2402 = vrot.lane.b32.xlu0 %v1602, 112
        %v2403 = vpop.permute.xlu0 %2402
        %2404 = vrot.lane.b32.xlu0 %v1604, 112
        %v2405 = vpop.permute.xlu0 %2404
        %2406 = vrot.lane.b32.xlu0 %v2065, 112
        %v2407 = vpop.permute.xlu0 %2406
        %2408 = vrot.lane.b32.xlu0 %v2067, 112
        %v2409 = vpop.permute.xlu0 %2408
        %2410 = vrot.lane.b32.xlu0 %v2069, 112
        %v2411 = vpop.permute.xlu0 %2410
        %2412 = vrot.lane.b32.xlu0 %v2071, 112
        %v2413 = vpop.permute.xlu0 %2412
        %v2414 = vsel %vm1295, %v2391, %v2403
        %v2415 = vsel %vm1295, %v2393, %v2405
        %v2416 = vsel %vm1295, %v2395, %v2407
        %v2417 = vsel %vm1295, %v2397, %v2409
        %v2418 = vsel %vm1295, %v2399, %v2411
        %v2419 = vsel %vm1295, %v2401, %v2413
        %v2420 = vsel %vm1295, %v2403, %v2391
        %v2421 = vsel %vm1295, %v2405, %v2393
        %v2422 = vsel %vm1295, %v2407, %v2395
        %v2423 = vsel %vm1295, %v2409, %v2397
        %v2424 = vsel %vm1295, %v2411, %v2399
        %v2425 = vsel %vm1295, %v2413, %v2401
        %v2426 = vmul.f32 %v2414, %v1315
        %v2427 = vmul.f32 %v2420, %v1319
        %v2428 = vmul.f32 %v2415, %v1315
        %v2429 = vmul.f32 %v2421, %v1319
        %v2430 = vmul.f32 %v2416, %v1315
        %v2431 = vmul.f32 %v2422, %v1319
        %v2432 = vmul.f32 %v2417, %v1315
        %v2433 = vmul.f32 %v2423, %v1319
        %v2434 = vmul.f32 %v2418, %v1315
        %v2435 = vmul.f32 %v2424, %v1319
        %v2436 = vmul.f32 %v2419, %v1315
        %v2437 = vmul.f32 %v2425, %v1319
        %v2438 = vpack.c.bf16 %v2428, %v2426
        %v2439 = vpack.c.bf16 %v2429, %v2427
        %v2440 = vpack.c.bf16 %v2432, %v2430
        %v2441 = vpack.c.bf16 %v2433, %v2431
        %v2442 = vpack.c.bf16 %v2436, %v2434
        %v2443 = vpack.c.bf16 %v2437, %v2435
        %2444 = vrot.lane.b32.xlu0 %v1601, 111
        %v2445 = vpop.permute.xlu0 %2444
        %2446 = vrot.lane.b32.xlu0 %v1603, 111
        %v2447 = vpop.permute.xlu0 %2446
        %2448 = vrot.lane.b32.xlu0 %v2064, 111
        %v2449 = vpop.permute.xlu0 %2448
        %2450 = vrot.lane.b32.xlu0 %v2066, 111
        %v2451 = vpop.permute.xlu0 %2450
        %2452 = vrot.lane.b32.xlu0 %v2068, 111
        %v2453 = vpop.permute.xlu0 %2452
        %2454 = vrot.lane.b32.xlu0 %v2070, 111
        %v2455 = vpop.permute.xlu0 %2454
        %2456 = vrot.lane.b32.xlu0 %v1602, 111
        %v2457 = vpop.permute.xlu0 %2456
        %2458 = vrot.lane.b32.xlu0 %v1604, 111
        %v2459 = vpop.permute.xlu0 %2458
        %2460 = vrot.lane.b32.xlu0 %v2065, 111
        %v2461 = vpop.permute.xlu0 %2460
        %2462 = vrot.lane.b32.xlu0 %v2067, 111
        %v2463 = vpop.permute.xlu0 %2462
        %2464 = vrot.lane.b32.xlu0 %v2069, 111
        %v2465 = vpop.permute.xlu0 %2464
        %2466 = vrot.lane.b32.xlu0 %v2071, 111
        %v2467 = vpop.permute.xlu0 %2466
        %v2468 = vsel %vm1376, %v2445, %v2457
        %v2469 = vsel %vm1376, %v2447, %v2459
        %v2470 = vsel %vm1376, %v2449, %v2461
        %v2471 = vsel %vm1376, %v2451, %v2463
        %v2472 = vsel %vm1376, %v2453, %v2465
        %v2473 = vsel %vm1376, %v2455, %v2467
        %v2474 = vsel %vm1376, %v2457, %v2445
        %v2475 = vsel %vm1376, %v2459, %v2447
        %v2476 = vsel %vm1376, %v2461, %v2449
        %v2477 = vsel %vm1376, %v2463, %v2451
        %v2478 = vsel %vm1376, %v2465, %v2453
        %v2479 = vsel %vm1376, %v2467, %v2455
        %v2480 = vmul.f32 %v2468, %v1396
        %v2481 = vmul.f32 %v2474, %v1400
        %v2482 = vmul.f32 %v2469, %v1396
        %v2483 = vmul.f32 %v2475, %v1400
        %v2484 = vmul.f32 %v2470, %v1396
        %v2485 = vmul.f32 %v2476, %v1400
        %v2486 = vmul.f32 %v2471, %v1396
        %v2487 = vmul.f32 %v2477, %v1400
        %v2488 = vmul.f32 %v2472, %v1396
        %v2489 = vmul.f32 %v2478, %v1400
        %v2490 = vmul.f32 %v2473, %v1396
        %v2491 = vmul.f32 %v2479, %v1400
        %v2492 = vpack.c.bf16 %v2482, %v2480
        %v2493 = vpack.c.bf16 %v2483, %v2481
        %v2494 = vpack.c.bf16 %v2486, %v2484
        %v2495 = vpack.c.bf16 %v2487, %v2485
        %v2496 = vpack.c.bf16 %v2490, %v2488
        %v2497 = vpack.c.bf16 %v2491, %v2489
        %v2498 = vld [vmem:[%s9] sm:$0xff]
        %v2499 = vld [vmem:[%s9 + $0x8] sm:$0xff]
        %v2500 = vld [vmem:[%s9 + $0x10] sm:$0xff]
        %v2501 = vld [vmem:[%s9 + $0x18] sm:$0xff]
        %v2502 = vld [vmem:[%s10] sm:$0xff]
        %v2503 = vld [vmem:[%s10 + $0x8] sm:$0xff]
        %2505 = vset.pattern.permute.xlu0 0
        %2506 = vperm.xlu0 %2505, %v2502
        %v2507 = vpop.permute.xlu0 %2506
        %2510 = vset.pattern.permute.xlu0 0
        %2511 = vperm.xlu0 %2510, %v2503
        %v2512 = vpop.permute.xlu0 %2511
        %v2518 = vunpack.c.l.b16 %v2498
        %v2519 = vunpack.c.h.b16 %v2498
        %v2520 = vunpack.c.l.b16 %v2499
        %v2521 = vunpack.c.h.b16 %v2499
        %v2522 = vunpack.c.l.b16 %v2500
        %v2523 = vunpack.c.h.b16 %v2500
        %v2524 = vunpack.c.l.b16 %v2501
        %v2525 = vunpack.c.h.b16 %v2501
        %v2526 = vpack.c.b16 %v2522, %v2518
        %v2527 = vpack.c.b16 %v2523, %v2519
        %v2528 = vpack.c.b16 %v2524, %v2520
        %v2529 = vpack.c.b16 %v2525, %v2521
        %vm2533 = vcmask 392192
        %v2535 = vsel %vm2533, %v2529, 0
        %2537 = vmatprep.subr.bf16.mxu0 %v2121
        %2538 = vmatpush1.bf16.msra.mxu0 %v2120
        %2539 = vmatprep.subr.bf16.mxu0 %v2123
        %2540 = vmatpush1.bf16.msra.mxu0 %v2122
        %2541 = vmatprep.subr.bf16.mxu0 %v2125
        %2542 = vmatpush1.bf16.msra.mxu0 %v2124
        %2543 = vmatprep.subr.bf16.mxu0 %v2175
        %2544 = vmatpush1.bf16.msra.mxu0 %v2174
        %2545 = vmatprep.subr.bf16.mxu0 %v2177
        %2546 = vmatpush1.bf16.msra.mxu0 %v2176
        %2547 = vmatprep.subr.bf16.mxu0 %v2179
        %2548 = vmatpush1.bf16.msra.mxu0 %v2178
        %2549 = vmatprep.subr.bf16.mxu0 %v2229
        %2550 = vmatpush1.bf16.msra.mxu0 %v2228
        %2551 = vmatprep.subr.bf16.mxu0 %v2231
        %2552 = vmatpush1.bf16.msra.mxu0 %v2230
        %2553 = vmatprep.subr.bf16.mxu0 %v2233
        %2554 = vmatpush1.bf16.msra.mxu0 %v2232
        %2555 = vmatprep.subr.bf16.mxu0 %v2283
        %2556 = vmatpush1.bf16.msra.mxu0 %v2282
        %2557 = vmatprep.subr.bf16.mxu0 %v2285
        %2558 = vmatpush1.bf16.msra.mxu0 %v2284
        %2559 = vmatprep.subr.bf16.mxu0 %v2287
        %2560 = vmatpush1.bf16.msra.mxu0 %v2286
        %2561 = vmatprep.subr.bf16.mxu0 %v2289
        %2562 = vmatpush1.bf16.msra.mxu0 %v2288
        %2563 = vmatprep.subr.bf16.mxu0 %v2291
        %2564 = vmatpush1.bf16.msra.mxu0 %v2290
        %2565 = vmatprep.subr.bf16.mxu0 %v2293
        %2566 = vmatpush1.bf16.msra.mxu0 %v2292
        %2567 = vmatprep.subr.bf16.mxu0 %v2331
        %2568 = vmatpush1.bf16.msra.mxu0 %v2330
        %2569 = vmatprep.mubr.bf16.mxu0 %v2527
        %2570 = vmatmul.mubr.bf16.gmra.mrb[0].mxu0 %v2526
        %v2571 = vpop.f32.mrb[0].mxu0
        %v2572 = vadd.f32 %v2507, %v2571
        %v2573 = vpop.f32.mrb[0].mxu0
        %v2574 = vadd.f32 %v2507, %v2573
        %v2575 = vpop.f32.mrb[0].mxu0
        %v2576 = vadd.f32 %v2512, %v2575
        %v2577 = vpop.f32.mrb[0].mxu0
        %v2578 = vadd.f32 %v2512, %v2577
        %2579 = vdwg.mxu0
        %2580 = vmatprep.subr.bf16.mxu0 %v2333
        %2581 = vmatpush1.bf16.msra.mxu0 %v2332
        %2582 = vmatprep.subr.bf16.mxu0 %v2335
        %2583 = vmatpush1.bf16.msra.mxu0 %v2334
        %2584 = vmatprep.subr.bf16.mxu0 %v2385
        %2585 = vmatpush1.bf16.msra.mxu0 %v2384
        %2586 = vmatprep.subr.bf16.mxu0 %v2387
        %2587 = vmatpush1.bf16.msra.mxu0 %v2386
        %2588 = vmatprep.subr.bf16.mxu0 %v2389
        %2589 = vmatpush1.bf16.msra.mxu0 %v2388
        %2590 = vmatprep.subr.bf16.mxu0 %v2439
        %2591 = vmatpush1.bf16.msra.mxu0 %v2438
        %2592 = vmatprep.subr.bf16.mxu0 %v2441
        %2593 = vmatpush1.bf16.msra.mxu0 %v2440
        %2594 = vmatprep.subr.bf16.mxu0 %v2443
        %2595 = vmatpush1.bf16.msra.mxu0 %v2442
        %2596 = vmatprep.subr.bf16.mxu0 %v2493
        %2597 = vmatpush1.bf16.msra.mxu0 %v2492
        %2598 = vmatprep.subr.bf16.mxu0 %v2495
        %2599 = vmatpush1.bf16.msra.mxu0 %v2494
        %2600 = vmatprep.subr.bf16.mxu0 %v2497
        %2601 = vmatpush1.bf16.msra.mxu0 %v2496
        %2602 = vmatprep.subr.bf16.mxu0 0
        %2603 = vmatpush1.bf16.msra.mxu0 0
        %2604 = vmatprep.subr.bf16.mxu0 0
        %2605 = vmatpush1.bf16.msra.mxu0 0
        %2606 = vmatprep.subr.bf16.mxu0 0
        %2607 = vmatpush1.bf16.msra.mxu0 0
        %2608 = vmatprep.subr.bf16.mxu0 0
        %2609 = vmatpush1.bf16.msra.mxu0 0
        %2610 = vmatprep.subr.bf16.mxu0 0
        %2611 = vmatpush1.bf16.msra.mxu0 0
        %2612 = vmatprep.mubr.bf16.mxu0 %v2535
        %2613 = vmatmul.mubr.bf16.gmra.mrb[0].mxu0 %v2528
        %v2614 = vpop.f32.mrb[0].mxu0
        %v2615 = vadd.f32 %v2572, %v2614
        %v2616 = vpop.f32.mrb[0].mxu0
        %v2617 = vadd.f32 %v2574, %v2616
        %v2618 = vpop.f32.mrb[0].mxu0
        %v2619 = vadd.f32 %v2576, %v2618
        %v2620 = vpop.f32.mrb[0].mxu0
        %v2621 = vadd.f32 %v2578, %v2620
        %2622 = vdwg.mxu0
        %v2623 = vmax.f32 %v2615, 0.0
        %v2624 = vmax.f32 %v2617, 0.0
        %v2625 = vmax.f32 %v2619, 0.0
        %v2626 = vmax.f32 %v2621, 0.0
        %v2627 = vpack.c.bf16 %v2625, %v2623
        %v2628 = vpack.c.bf16 %v2626, %v2624
        %v2629 = vld [vmem:[%s11] sm:$0x7]
        %v2630 = vld [vmem:[%s12] sm:$0x1f]
        %2632 = vset.pattern.permute.xlu0 0
        %2633 = vperm.xlu0 %2632, %v2630
        %v2634 = vpop.permute.xlu0 %2633
        %v2637 = vsel %vm1901, %v2629, 0
        %2639 = vmatprep.subr.bf16.mxu0 %v2628
        %2640 = vmatpush1.bf16.msra.mxu0 %v2627
        %2641 = vmatprep.subr.bf16.mxu0 0
        %2642 = vmatpush1.bf16.msra.mxu0 0
        %2643 = vmatprep.subr.bf16.mxu0 0
        %2644 = vmatpush1.bf16.msra.mxu0 0
        %2645 = vmatprep.subr.bf16.mxu0 0
        %2646 = vmatpush1.bf16.msra.mxu0 0
        %2647 = vmatprep.subr.bf16.mxu0 0
        %2648 = vmatpush1.bf16.msra.mxu0 0
        %2649 = vmatprep.subr.bf16.mxu0 0
        %2650 = vmatpush1.bf16.msra.mxu0 0
        %2651 = vmatprep.subr.bf16.mxu0 0
        %2652 = vmatpush1.bf16.msra.mxu0 0
        %2653 = vmatprep.subr.bf16.mxu0 0
        %2654 = vmatpush1.bf16.msra.mxu0 0
        %2655 = vmatprep.subr.bf16.mxu0 0
        %2656 = vmatpush1.bf16.msra.mxu0 0
        %2657 = vmatprep.subr.bf16.mxu0 0
        %2658 = vmatpush1.bf16.msra.mxu0 0
        %2659 = vmatprep.subr.bf16.mxu0 0
        %2660 = vmatpush1.bf16.msra.mxu0 0
        %2661 = vmatprep.subr.bf16.mxu0 0
        %2662 = vmatpush1.bf16.msra.mxu0 0
        %2663 = vmatprep.subr.bf16.mxu0 0
        %2664 = vmatpush1.bf16.msra.mxu0 0
        %2665 = vmatprep.subr.bf16.mxu0 0
        %2666 = vmatpush1.bf16.msra.mxu0 0
        %2667 = vmatprep.subr.bf16.mxu0 0
        %2668 = vmatpush1.bf16.msra.mxu0 0
        %2669 = vmatprep.subr.bf16.mxu0 0
        %2670 = vmatpush1.bf16.msra.mxu0 0
        %2671 = vmatprep.mubr.bf16.mxu0 0
        %2672 = vmatmul.mubr.bf16.gmra.mrb[0].mxu0 %v2637
        %v2673 = vpop.f32.mrb[0].mxu0
        %v2674 = vadd.f32 %v2634, %v2673
        %v2675 = vpop.f32.mrb[0].mxu0
        %v2676 = vadd.f32 %v2634, %v2675
        %v2677 = vpop.f32.mrb[0].mxu0
        %v2678 = vpop.f32.mrb[0].mxu0
        %2679 = vdwg.mxu0
        %2680 = vst [vmem:[%s741] sm:$0x1f] %v2674
        %2681 = vst [vmem:[%s741 + $0x8] sm:$0x1f] %v2676
        %v2682 = vld [vmem:[%s13] sm:$0xf]
        %v2683 = vld [vmem:[%s13 + $0x4] sm:$0xf]
        %v2684 = vld [vmem:[%s13 + $0x8] sm:$0xf]
        %v2685 = vld [vmem:[%s13 + $0xc] sm:$0xf]
        %v2686 = vpack.c.bf16 %v2674, %v2674
        %v2687 = vpack.c.bf16 %v2676, %v2676
        %v2688 = vld [vmem:[%s14] sm:$0xf]
        %v2689 = vld [vmem:[%s14 + $0x4] sm:$0xf]
        %v2690 = vld [vmem:[%s14 + $0x8] sm:$0xf]
        %v2691 = vld [vmem:[%s14 + $0xc] sm:$0xf]
        %v2696 = vunpack.c.l.b16 %v2688
        %v2697 = vunpack.c.l.b16 %v2689
        %v2698 = vunpack.c.l.b16 %v2690
        %v2699 = vunpack.c.l.b16 %v2691
        %v2700 = vpack.c.b16 %v2697, %v2696
        %v2701 = vpack.c.b16 %v2699, %v2698
        %vm2702 = vcmask 39936
        %v2704 = vsel %vm2702, %v2700, 0
        %v2707 = vsel %vm2702, %v2701, 0
        %vm2709 = vcmask 1041408
        %vm2710 = vcmask 1042432
        %v2711 = vsel %vm2709, 4294967295, 65535
        %v2712 = vsel %vm2710, %v2711, 0
        %v2714 = vand.u32 %v2686, %v2712
        %v2717 = vand.u32 %v2687, %v2712
        %2719 = vmatprep.subr.bf16.mxu0 %v2717
        %2720 = vmatpush1.bf16.msra.mxu0 %v2714
        %2721 = vmatprep.subr.bf16.mxu0 0
        %2722 = vmatpush1.bf16.msra.mxu0 0
        %2723 = vmatprep.subr.bf16.mxu0 0
        %2724 = vmatpush1.bf16.msra.mxu0 0
        %2725 = vmatprep.subr.bf16.mxu0 0
        %2726 = vmatpush1.bf16.msra.mxu0 0
        %2727 = vmatprep.subr.bf16.mxu0 0
        %2728 = vmatpush1.bf16.msra.mxu0 0
        %2729 = vmatprep.subr.bf16.mxu0 0
        %2730 = vmatpush1.bf16.msra.mxu0 0
        %2731 = vmatprep.subr.bf16.mxu0 0
        %2732 = vmatpush1.bf16.msra.mxu0 0
        %2733 = vmatprep.subr.bf16.mxu0 0
        %2734 = vmatpush1.bf16.msra.mxu0 0
        %2735 = vmatprep.subr.bf16.mxu0 0
        %2736 = vmatpush1.bf16.msra.mxu0 0
        %2737 = vmatprep.subr.bf16.mxu0 0
        %2738 = vmatpush1.bf16.msra.mxu0 0
        %2739 = vmatprep.subr.bf16.mxu0 0
        %2740 = vmatpush1.bf16.msra.mxu0 0
        %2741 = vmatprep.subr.bf16.mxu0 0
        %2742 = vmatpush1.bf16.msra.mxu0 0
        %2743 = vmatprep.subr.bf16.mxu0 0
        %2744 = vmatpush1.bf16.msra.mxu0 0
        %2745 = vmatprep.subr.bf16.mxu0 0
        %2746 = vmatpush1.bf16.msra.mxu0 0
        %2747 = vmatprep.subr.bf16.mxu0 0
        %2748 = vmatpush1.bf16.msra.mxu0 0
        %2749 = vmatprep.subr.bf16.mxu0 0
        %2750 = vmatpush1.bf16.msra.mxu0 0
        %2751 = vmatprep.mubr.bf16.mxu0 0
        %2752 = vmatmul.mubr.bf16.gmra.mrb[0].mxu0 %v2704
        %v2753 = vpop.f32.mrb[0].mxu0
        %v2754 = vadd.f32 0.0, %v2753
        %v2755 = vpop.f32.mrb[0].mxu0
        %v2756 = vadd.f32 0.0, %v2755
        %v2757 = vpop.f32.mrb[0].mxu0
        %v2758 = vadd.f32 0.0, %v2757
        %v2759 = vpop.f32.mrb[0].mxu0
        %v2760 = vadd.f32 0.0, %v2759
        %2761 = vmatprep.mubr.bf16.mxu0 0
        %2762 = vmatmul.mubr.bf16.gmra.mrb[0].mxu0 %v2707
        %v2763 = vpop.f32.mrb[0].mxu0
        %v2764 = vadd.f32 0.0, %v2763
        %v2765 = vpop.f32.mrb[0].mxu0
        %v2766 = vadd.f32 0.0, %v2765
        %v2767 = vpop.f32.mrb[0].mxu0
        %v2768 = vadd.f32 0.0, %v2767
        %v2769 = vpop.f32.mrb[0].mxu0
        %v2770 = vadd.f32 0.0, %v2769
        %2771 = vdwg.mxu0
        %v2776 = vunpack.c.l.b16 %v2682
        %v2777 = vunpack.c.l.b16 %v2683
        %v2778 = vunpack.c.l.b16 %v2684
        %v2779 = vunpack.c.l.b16 %v2685
        %v2780 = vpack.c.b16 %v2777, %v2776
        %v2781 = vpack.c.b16 %v2779, %v2778
        %v2783 = vsel %vm1468, %v2780, 0
        %v2786 = vsel %vm1468, %v2781, 0
        %2788 = vmatprep.subr.bf16.mxu0 %v1094
        %2789 = vmatpush1.bf16.msra.mxu0 %v1093
        %2790 = vmatprep.subr.bf16.mxu0 %v1096
        %2791 = vmatpush1.bf16.msra.mxu0 %v1095
        %2792 = vmatprep.subr.bf16.mxu0 %v1098
        %2793 = vmatpush1.bf16.msra.mxu0 %v1097
        %2794 = vmatprep.subr.bf16.mxu0 %v1100
        %2795 = vmatpush1.bf16.msra.mxu0 %v1099
        %2796 = vmatprep.subr.bf16.mxu0 0
        %2797 = vmatpush1.bf16.msra.mxu0 0
        %2798 = vmatprep.subr.bf16.mxu0 0
        %2799 = vmatpush1.bf16.msra.mxu0 0
        %2800 = vmatprep.subr.bf16.mxu0 0
        %2801 = vmatpush1.bf16.msra.mxu0 0
        %2802 = vmatprep.subr.bf16.mxu0 0
        %2803 = vmatpush1.bf16.msra.mxu0 0
        %2804 = vmatprep.subr.bf16.mxu0 0
        %2805 = vmatpush1.bf16.msra.mxu0 0
        %2806 = vmatprep.subr.bf16.mxu0 0
        %2807 = vmatpush1.bf16.msra.mxu0 0
        %2808 = vmatprep.subr.bf16.mxu0 0
        %2809 = vmatpush1.bf16.msra.mxu0 0
        %2810 = vmatprep.subr.bf16.mxu0 0
        %2811 = vmatpush1.bf16.msra.mxu0 0
        %2812 = vmatprep.subr.bf16.mxu0 0
        %2813 = vmatpush1.bf16.msra.mxu0 0
        %2814 = vmatprep.subr.bf16.mxu0 0
        %2815 = vmatpush1.bf16.msra.mxu0 0
        %2816 = vmatprep.subr.bf16.mxu0 0
        %2817 = vmatpush1.bf16.msra.mxu0 0
        %2818 = vmatprep.subr.bf16.mxu0 0
        %2819 = vmatpush1.bf16.msra.mxu0 0
        %2820 = vmatprep.mubr.bf16.mxu0 0
        %2821 = vmatmul.mubr.bf16.gmra.mrb[0].mxu0 %v2783
        %v2822 = vpop.f32.mrb[0].mxu0
        %v2823 = vadd.f32 %v2754, %v2822
        %v2824 = vpop.f32.mrb[0].mxu0
        %v2825 = vadd.f32 %v2756, %v2824
        %v2826 = vpop.f32.mrb[0].mxu0
        %v2827 = vadd.f32 %v2758, %v2826
        %v2828 = vpop.f32.mrb[0].mxu0
        %v2829 = vadd.f32 %v2760, %v2828
        %2830 = vmatprep.mubr.bf16.mxu0 0
        %2831 = vmatmul.mubr.bf16.gmra.mrb[0].mxu0 %v2786
        %v2832 = vpop.f32.mrb[0].mxu0
        %v2833 = vadd.f32 %v2764, %v2832
        %v2834 = vpop.f32.mrb[0].mxu0
        %v2835 = vadd.f32 %v2766, %v2834
        %v2836 = vpop.f32.mrb[0].mxu0
        %v2837 = vadd.f32 %v2768, %v2836
        %v2838 = vpop.f32.mrb[0].mxu0
        %v2839 = vadd.f32 %v2770, %v2838
        %2840 = vdwg.mxu0
        %v2841 = vld [vmem:[%s15] sm:$0xff]
        %v2842 = vld [vmem:[%s15 + $0x8] sm:$0xff]
        %v2843 = vld [vmem:[%s15 + $0x10] sm:$0xff]
        %v2844 = vld [vmem:[%s15 + $0x18] sm:$0xff]
        %2846 = vset.pattern.permute.xlu0 0
        %2847 = vperm.xlu0 %2846, %v2841
        %v2848 = vpop.permute.xlu0 %2847
        %2851 = vset.pattern.permute.xlu0 0
        %2852 = vperm.xlu0 %2851, %v2842
        %v2853 = vpop.permute.xlu0 %2852
        %2856 = vset.pattern.permute.xlu0 0
        %2857 = vperm.xlu0 %2856, %v2843
        %v2858 = vpop.permute.xlu0 %2857
        %2861 = vset.pattern.permute.xlu0 0
        %2862 = vperm.xlu0 %2861, %v2844
        %v2863 = vpop.permute.xlu0 %2862
        %v2865 = vadd.f32 %v2823, %v2848
        %v2866 = vadd.f32 %v2825, %v2848
        %v2867 = vadd.f32 %v2827, %v2853
        %v2868 = vadd.f32 %v2829, %v2853
        %v2869 = vadd.f32 %v2833, %v2858
        %v2870 = vadd.f32 %v2835, %v2858
        %v2871 = vadd.f32 %v2837, %v2863
        %v2872 = vadd.f32 %v2839, %v2863
        %v2873 = vmax.f32 %v2865, 0.0
        %v2874 = vmax.f32 %v2866, 0.0
        %v2875 = vmax.f32 %v2867, 0.0
        %v2876 = vmax.f32 %v2868, 0.0
        %v2877 = vmax.f32 %v2869, 0.0
        %v2878 = vmax.f32 %v2870, 0.0
        %v2879 = vmax.f32 %v2871, 0.0
        %v2880 = vmax.f32 %v2872, 0.0
        %2881 = vrot.lane.b32.xlu0 %v2873, 17
        %v2882 = vpop.permute.xlu0 %2881
        %2883 = vrot.lane.b32.xlu0 %v2875, 17
        %v2884 = vpop.permute.xlu0 %2883
        %2885 = vrot.lane.b32.xlu0 %v2877, 17
        %v2886 = vpop.permute.xlu0 %2885
        %2887 = vrot.lane.b32.xlu0 %v2879, 17
        %v2888 = vpop.permute.xlu0 %2887
        %2889 = vrot.lane.b32.xlu0 %v2874, 17
        %v2890 = vpop.permute.xlu0 %2889
        %2891 = vrot.lane.b32.xlu0 %v2876, 17
        %v2892 = vpop.permute.xlu0 %2891
        %2893 = vrot.lane.b32.xlu0 %v2878, 17
        %v2894 = vpop.permute.xlu0 %2893
        %2895 = vrot.lane.b32.xlu0 %v2880, 17
        %v2896 = vpop.permute.xlu0 %2895
        %v2897 = vsel %vm801, %v2882, %v2890
        %v2898 = vsel %vm801, %v2884, %v2892
        %v2899 = vsel %vm801, %v2886, %v2894
        %v2900 = vsel %vm801, %v2888, %v2896
        %v2901 = vsel %vm801, %v2890, %v2882
        %v2902 = vsel %vm801, %v2892, %v2884
        %v2903 = vsel %vm801, %v2894, %v2886
        %v2904 = vsel %vm801, %v2896, %v2888
        %v2905 = vmul.f32 %v2901, %v821
        %v2906 = vmul.f32 %v2897, %v825
        %v2907 = vmul.f32 %v2902, %v821
        %v2908 = vmul.f32 %v2898, %v825
        %v2909 = vmul.f32 %v2903, %v821
        %v2910 = vmul.f32 %v2899, %v825
        %v2911 = vmul.f32 %v2904, %v821
        %v2912 = vmul.f32 %v2900, %v825
        %v2913 = vpack.c.bf16 %v2907, %v2905
        %v2914 = vpack.c.bf16 %v2908, %v2906
        %v2915 = vpack.c.bf16 %v2911, %v2909
        %v2916 = vpack.c.bf16 %v2912, %v2910
        %2917 = vrot.lane.b32.xlu0 %v2873, 16
        %v2918 = vpop.permute.xlu0 %2917
        %2919 = vrot.lane.b32.xlu0 %v2875, 16
        %v2920 = vpop.permute.xlu0 %2919
        %2921 = vrot.lane.b32.xlu0 %v2877, 16
        %v2922 = vpop.permute.xlu0 %2921
        %2923 = vrot.lane.b32.xlu0 %v2879, 16
        %v2924 = vpop.permute.xlu0 %2923
        %2925 = vrot.lane.b32.xlu0 %v2874, 16
        %v2926 = vpop.permute.xlu0 %2925
        %2927 = vrot.lane.b32.xlu0 %v2876, 16
        %v2928 = vpop.permute.xlu0 %2927
        %2929 = vrot.lane.b32.xlu0 %v2878, 16
        %v2930 = vpop.permute.xlu0 %2929
        %2931 = vrot.lane.b32.xlu0 %v2880, 16
        %v2932 = vpop.permute.xlu0 %2931
        %v2933 = vsel %vm882, %v2918, %v2926
        %v2934 = vsel %vm882, %v2920, %v2928
        %v2935 = vsel %vm882, %v2922, %v2930
        %v2936 = vsel %vm882, %v2924, %v2932
        %v2937 = vsel %vm882, %v2926, %v2918
        %v2938 = vsel %vm882, %v2928, %v2920
        %v2939 = vsel %vm882, %v2930, %v2922
        %v2940 = vsel %vm882, %v2932, %v2924
        %v2941 = vmul.f32 %v2937, %v902
        %v2942 = vmul.f32 %v2933, %v906
        %v2943 = vmul.f32 %v2938, %v902
        %v2944 = vmul.f32 %v2934, %v906
        %v2945 = vmul.f32 %v2939, %v902
        %v2946 = vmul.f32 %v2935, %v906
        %v2947 = vmul.f32 %v2940, %v902
        %v2948 = vmul.f32 %v2936, %v906
        %v2949 = vpack.c.bf16 %v2943, %v2941
        %v2950 = vpack.c.bf16 %v2944, %v2942
        %v2951 = vpack.c.bf16 %v2947, %v2945
        %v2952 = vpack.c.bf16 %v2948, %v2946
        %2953 = vrot.lane.b32.xlu0 %v2873, 15
        %v2954 = vpop.permute.xlu0 %2953
        %2955 = vrot.lane.b32.xlu0 %v2875, 15
        %v2956 = vpop.permute.xlu0 %2955
        %2957 = vrot.lane.b32.xlu0 %v2877, 15
        %v2958 = vpop.permute.xlu0 %2957
        %2959 = vrot.lane.b32.xlu0 %v2879, 15
        %v2960 = vpop.permute.xlu0 %2959
        %2961 = vrot.lane.b32.xlu0 %v2874, 15
        %v2962 = vpop.permute.xlu0 %2961
        %2963 = vrot.lane.b32.xlu0 %v2876, 15
        %v2964 = vpop.permute.xlu0 %2963
        %2965 = vrot.lane.b32.xlu0 %v2878, 15
        %v2966 = vpop.permute.xlu0 %2965
        %2967 = vrot.lane.b32.xlu0 %v2880, 15
        %v2968 = vpop.permute.xlu0 %2967
        %v2969 = vsel %vm963, %v2954, %v2962
        %v2970 = vsel %vm963, %v2956, %v2964
        %v2971 = vsel %vm963, %v2958, %v2966
        %v2972 = vsel %vm963, %v2960, %v2968
        %v2973 = vsel %vm963, %v2962, %v2954
        %v2974 = vsel %vm963, %v2964, %v2956
        %v2975 = vsel %vm963, %v2966, %v2958
        %v2976 = vsel %vm963, %v2968, %v2960
        %v2977 = vmul.f32 %v2973, %v983
        %v2978 = vmul.f32 %v2969, %v987
        %v2979 = vmul.f32 %v2974, %v983
        %v2980 = vmul.f32 %v2970, %v987
        %v2981 = vmul.f32 %v2975, %v983
        %v2982 = vmul.f32 %v2971, %v987
        %v2983 = vmul.f32 %v2976, %v983
        %v2984 = vmul.f32 %v2972, %v987
        %v2985 = vpack.c.bf16 %v2979, %v2977
        %v2986 = vpack.c.bf16 %v2980, %v2978
        %v2987 = vpack.c.bf16 %v2983, %v2981
        %v2988 = vpack.c.bf16 %v2984, %v2982
        %2989 = vrot.lane.b32.xlu0 %v2873, 1
        %v2990 = vpop.permute.xlu0 %2989
        %2991 = vrot.lane.b32.xlu0 %v2875, 1
        %v2992 = vpop.permute.xlu0 %2991
        %2993 = vrot.lane.b32.xlu0 %v2877, 1
        %v2994 = vpop.permute.xlu0 %2993
        %2995 = vrot.lane.b32.xlu0 %v2879, 1
        %v2996 = vpop.permute.xlu0 %2995
        %2997 = vrot.lane.b32.xlu0 %v2874, 1
        %v2998 = vpop.permute.xlu0 %2997
        %2999 = vrot.lane.b32.xlu0 %v2876, 1
        %v3000 = vpop.permute.xlu0 %2999
        %3001 = vrot.lane.b32.xlu0 %v2878, 1
        %v3002 = vpop.permute.xlu0 %3001
        %3003 = vrot.lane.b32.xlu0 %v2880, 1
        %v3004 = vpop.permute.xlu0 %3003
        %v3005 = vsel %vm1044, %v2990, %v2998
        %v3006 = vsel %vm1044, %v2992, %v3000
        %v3007 = vsel %vm1044, %v2994, %v3002
        %v3008 = vsel %vm1044, %v2996, %v3004
        %v3009 = vsel %vm1044, %v2998, %v2990
        %v3010 = vsel %vm1044, %v3000, %v2992
        %v3011 = vsel %vm1044, %v3002, %v2994
        %v3012 = vsel %vm1044, %v3004, %v2996
        %v3013 = vmul.f32 %v3009, %v1064
        %v3014 = vmul.f32 %v3005, %v1068
        %v3015 = vmul.f32 %v3010, %v1064
        %v3016 = vmul.f32 %v3006, %v1068
        %v3017 = vmul.f32 %v3011, %v1064
        %v3018 = vmul.f32 %v3007, %v1068
        %v3019 = vmul.f32 %v3012, %v1064
        %v3020 = vmul.f32 %v3008, %v1068
        %v3021 = vpack.c.bf16 %v3015, %v3013
        %v3022 = vpack.c.bf16 %v3016, %v3014
        %v3023 = vpack.c.bf16 %v3019, %v3017
        %v3024 = vpack.c.bf16 %v3020, %v3018
        %v3025 = vpack.c.bf16 %v2875, %v2873
        %v3026 = vpack.c.bf16 %v2876, %v2874
        %v3027 = vpack.c.bf16 %v2879, %v2877
        %v3028 = vpack.c.bf16 %v2880, %v2878
        %3029 = vrot.lane.b32.xlu0 %v2873, 127
        %v3030 = vpop.permute.xlu0 %3029
        %3031 = vrot.lane.b32.xlu0 %v2875, 127
        %v3032 = vpop.permute.xlu0 %3031
        %3033 = vrot.lane.b32.xlu0 %v2877, 127
        %v3034 = vpop.permute.xlu0 %3033
        %3035 = vrot.lane.b32.xlu0 %v2879, 127
        %v3036 = vpop.permute.xlu0 %3035
        %3037 = vrot.lane.b32.xlu0 %v2874, 127
        %v3038 = vpop.permute.xlu0 %3037
        %3039 = vrot.lane.b32.xlu0 %v2876, 127
        %v3040 = vpop.permute.xlu0 %3039
        %3041 = vrot.lane.b32.xlu0 %v2878, 127
        %v3042 = vpop.permute.xlu0 %3041
        %3043 = vrot.lane.b32.xlu0 %v2880, 127
        %v3044 = vpop.permute.xlu0 %3043
        %v3045 = vsel %vm1133, %v3030, %v3038
        %v3046 = vsel %vm1133, %v3032, %v3040
        %v3047 = vsel %vm1133, %v3034, %v3042
        %v3048 = vsel %vm1133, %v3036, %v3044
        %v3049 = vsel %vm1133, %v3038, %v3030
        %v3050 = vsel %vm1133, %v3040, %v3032
        %v3051 = vsel %vm1133, %v3042, %v3034
        %v3052 = vsel %vm1133, %v3044, %v3036
        %v3053 = vmul.f32 %v3045, %v1153
        %v3054 = vmul.f32 %v3049, %v1157
        %v3055 = vmul.f32 %v3046, %v1153
        %v3056 = vmul.f32 %v3050, %v1157
        %v3057 = vmul.f32 %v3047, %v1153
        %v3058 = vmul.f32 %v3051, %v1157
        %v3059 = vmul.f32 %v3048, %v1153
        %v3060 = vmul.f32 %v3052, %v1157
        %v3061 = vpack.c.bf16 %v3055, %v3053
        %v3062 = vpack.c.bf16 %v3056, %v3054
        %v3063 = vpack.c.bf16 %v3059, %v3057
        %v3064 = vpack.c.bf16 %v3060, %v3058
        %3065 = vrot.lane.b32.xlu0 %v2873, 113
        %v3066 = vpop.permute.xlu0 %3065
        %3067 = vrot.lane.b32.xlu0 %v2875, 113
        %v3068 = vpop.permute.xlu0 %3067
        %3069 = vrot.lane.b32.xlu0 %v2877, 113
        %v3070 = vpop.permute.xlu0 %3069
        %3071 = vrot.lane.b32.xlu0 %v2879, 113
        %v3072 = vpop.permute.xlu0 %3071
        %3073 = vrot.lane.b32.xlu0 %v2874, 113
        %v3074 = vpop.permute.xlu0 %3073
        %3075 = vrot.lane.b32.xlu0 %v2876, 113
        %v3076 = vpop.permute.xlu0 %3075
        %3077 = vrot.lane.b32.xlu0 %v2878, 113
        %v3078 = vpop.permute.xlu0 %3077
        %3079 = vrot.lane.b32.xlu0 %v2880, 113
        %v3080 = vpop.permute.xlu0 %3079
        %v3081 = vsel %vm1214, %v3066, %v3074
        %v3082 = vsel %vm1214, %v3068, %v3076
        %v3083 = vsel %vm1214, %v3070, %v3078
        %v3084 = vsel %vm1214, %v3072, %v3080
        %v3085 = vsel %vm1214, %v3074, %v3066
        %v3086 = vsel %vm1214, %v3076, %v3068
        %v3087 = vsel %vm1214, %v3078, %v3070
        %v3088 = vsel %vm1214, %v3080, %v3072
        %v3089 = vmul.f32 %v3081, %v1234
        %v3090 = vmul.f32 %v3085, %v1238
        %v3091 = vmul.f32 %v3082, %v1234
        %v3092 = vmul.f32 %v3086, %v1238
        %v3093 = vmul.f32 %v3083, %v1234
        %v3094 = vmul.f32 %v3087, %v1238
        %v3095 = vmul.f32 %v3084, %v1234
        %v3096 = vmul.f32 %v3088, %v1238
        %v3097 = vpack.c.bf16 %v3091, %v3089
        %v3098 = vpack.c.bf16 %v3092, %v3090
        %v3099 = vpack.c.bf16 %v3095, %v3093
        %v3100 = vpack.c.bf16 %v3096, %v3094
        %3101 = vrot.lane.b32.xlu0 %v2873, 112
        %v3102 = vpop.permute.xlu0 %3101
        %3103 = vrot.lane.b32.xlu0 %v2875, 112
        %v3104 = vpop.permute.xlu0 %3103
        %3105 = vrot.lane.b32.xlu0 %v2877, 112
        %v3106 = vpop.permute.xlu0 %3105
        %3107 = vrot.lane.b32.xlu0 %v2879, 112
        %v3108 = vpop.permute.xlu0 %3107
        %3109 = vrot.lane.b32.xlu0 %v2874, 112
        %v3110 = vpop.permute.xlu0 %3109
        %3111 = vrot.lane.b32.xlu0 %v2876, 112
        %v3112 = vpop.permute.xlu0 %3111
        %3113 = vrot.lane.b32.xlu0 %v2878, 112
        %v3114 = vpop.permute.xlu0 %3113
        %3115 = vrot.lane.b32.xlu0 %v2880, 112
        %v3116 = vpop.permute.xlu0 %3115
        %v3117 = vsel %vm1295, %v3102, %v3110
        %v3118 = vsel %vm1295, %v3104, %v3112
        %v3119 = vsel %vm1295, %v3106, %v3114
        %v3120 = vsel %vm1295, %v3108, %v3116
        %v3121 = vsel %vm1295, %v3110, %v3102
        %v3122 = vsel %vm1295, %v3112, %v3104
        %v3123 = vsel %vm1295, %v3114, %v3106
        %v3124 = vsel %vm1295, %v3116, %v3108
        %v3125 = vmul.f32 %v3117, %v1315
        %v3126 = vmul.f32 %v3121, %v1319
        %v3127 = vmul.f32 %v3118, %v1315
        %v3128 = vmul.f32 %v3122, %v1319
        %v3129 = vmul.f32 %v3119, %v1315
        %v3130 = vmul.f32 %v3123, %v1319
        %v3131 = vmul.f32 %v3120, %v1315
        %v3132 = vmul.f32 %v3124, %v1319
        %v3133 = vpack.c.bf16 %v3127, %v3125
        %v3134 = vpack.c.bf16 %v3128, %v3126
        %v3135 = vpack.c.bf16 %v3131, %v3129
        %v3136 = vpack.c.bf16 %v3132, %v3130
        %3137 = vrot.lane.b32.xlu0 %v2873, 111
        %v3138 = vpop.permute.xlu0 %3137
        %3139 = vrot.lane.b32.xlu0 %v2875, 111
        %v3140 = vpop.permute.xlu0 %3139
        %3141 = vrot.lane.b32.xlu0 %v2877, 111
        %v3142 = vpop.permute.xlu0 %3141
        %3143 = vrot.lane.b32.xlu0 %v2879, 111
        %v3144 = vpop.permute.xlu0 %3143
        %3145 = vrot.lane.b32.xlu0 %v2874, 111
        %v3146 = vpop.permute.xlu0 %3145
        %3147 = vrot.lane.b32.xlu0 %v2876, 111
        %v3148 = vpop.permute.xlu0 %3147
        %3149 = vrot.lane.b32.xlu0 %v2878, 111
        %v3150 = vpop.permute.xlu0 %3149
        %3151 = vrot.lane.b32.xlu0 %v2880, 111
        %v3152 = vpop.permute.xlu0 %3151
        %v3153 = vsel %vm1376, %v3138, %v3146
        %v3154 = vsel %vm1376, %v3140, %v3148
        %v3155 = vsel %vm1376, %v3142, %v3150
        %v3156 = vsel %vm1376, %v3144, %v3152
        %v3157 = vsel %vm1376, %v3146, %v3138
        %v3158 = vsel %vm1376, %v3148, %v3140
        %v3159 = vsel %vm1376, %v3150, %v3142
        %v3160 = vsel %vm1376, %v3152, %v3144
        %v3161 = vmul.f32 %v3153, %v1396
        %v3162 = vmul.f32 %v3157, %v1400
        %v3163 = vmul.f32 %v3154, %v1396
        %v3164 = vmul.f32 %v3158, %v1400
        %v3165 = vmul.f32 %v3155, %v1396
        %v3166 = vmul.f32 %v3159, %v1400
        %v3167 = vmul.f32 %v3156, %v1396
        %v3168 = vmul.f32 %v3160, %v1400
        %v3169 = vpack.c.bf16 %v3163, %v3161
        %v3170 = vpack.c.bf16 %v3164, %v3162
        %v3171 = vpack.c.bf16 %v3167, %v3165
        %v3172 = vpack.c.bf16 %v3168, %v3166
        %v3173 = vld [vmem:[%s16] sm:$0xff]
        %v3174 = vld [vmem:[%s16 + $0x8] sm:$0xf]
        %v3175 = vld [vmem:[%s16 + $0xc] sm:$0xff]
        %v3176 = vld [vmem:[%s16 + $0x14] sm:$0xf]
        %v3177 = vld [vmem:[%s16 + $0x18] sm:$0xff]
        %v3178 = vld [vmem:[%s16 + $0x20] sm:$0xf]
        %v3179 = vld [vmem:[%s16 + $0x24] sm:$0xff]
        %v3180 = vld [vmem:[%s16 + $0x2c] sm:$0xf]
        %v3181 = vld [vmem:[%s17] sm:$0xff]
        %v3182 = vld [vmem:[%s17 + $0x8] sm:$0xff]
        %v3183 = vld [vmem:[%s17 + $0x10] sm:$0xff]
        %v3184 = vld [vmem:[%s17 + $0x18] sm:$0xff]
        %3186 = vset.pattern.permute.xlu0 0
        %3187 = vperm.xlu0 %3186, %v3181
        %v3188 = vpop.permute.xlu0 %3187
        %3191 = vset.pattern.permute.xlu0 0
        %3192 = vperm.xlu0 %3191, %v3182
        %v3193 = vpop.permute.xlu0 %3192
        %3196 = vset.pattern.permute.xlu0 0
        %3197 = vperm.xlu0 %3196, %v3183
        %v3198 = vpop.permute.xlu0 %3197
        %3201 = vset.pattern.permute.xlu0 0
        %3202 = vperm.xlu0 %3201, %v3184
        %v3203 = vpop.permute.xlu0 %3202
        %v3213 = vunpack.c.l.b16 %v3173
        %v3214 = vunpack.c.h.b16 %v3173
        %v3215 = vunpack.c.l.b16 %v3174
        %v3216 = vunpack.c.l.b16 %v3175
        %v3217 = vunpack.c.h.b16 %v3175
        %v3218 = vunpack.c.l.b16 %v3176
        %v3219 = vunpack.c.l.b16 %v3177
        %v3220 = vunpack.c.h.b16 %v3177
        %v3221 = vunpack.c.l.b16 %v3178
        %v3222 = vunpack.c.l.b16 %v3179
        %v3223 = vunpack.c.h.b16 %v3179
        %v3224 = vunpack.c.l.b16 %v3180
        %v3225 = vpack.c.b16 %v3216, %v3213
        %v3226 = vpack.c.b16 %v3217, %v3214
        %v3227 = vpack.c.b16 %v3218, %v3215
        %v3228 = vpack.c.b16 %v3222, %v3219
        %v3229 = vpack.c.b16 %v3223, %v3220
        %v3230 = vpack.c.b16 %v3224, %v3221
        %vm3235 = vcmask 261120
        %v3237 = vsel %vm3235, %v3227, 0
        %v3240 = vsel %vm3235, %v3230, 0
        %3242 = vmatprep.subr.bf16.mxu0 %v2914
        %3243 = vmatpush1.bf16.msra.mxu0 %v2913
        %3244 = vmatprep.subr.bf16.mxu0 %v2916
        %3245 = vmatpush1.bf16.msra.mxu0 %v2915
        %3246 = vmatprep.subr.bf16.mxu0 %v2950
        %3247 = vmatpush1.bf16.msra.mxu0 %v2949
        %3248 = vmatprep.subr.bf16.mxu0 %v2952
        %3249 = vmatpush1.bf16.msra.mxu0 %v2951
        %3250 = vmatprep.subr.bf16.mxu0 %v2986
        %3251 = vmatpush1.bf16.msra.mxu0 %v2985
        %3252 = vmatprep.subr.bf16.mxu0 %v2988
        %3253 = vmatpush1.bf16.msra.mxu0 %v2987
        %3254 = vmatprep.subr.bf16.mxu0 %v3022
        %3255 = vmatpush1.bf16.msra.mxu0 %v3021
        %3256 = vmatprep.subr.bf16.mxu0 %v3024
        %3257 = vmatpush1.bf16.msra.mxu0 %v3023
        %3258 = vmatprep.subr.bf16.mxu0 %v3026
        %3259 = vmatpush1.bf16.msra.mxu0 %v3025
        %3260 = vmatprep.subr.bf16.mxu0 %v3028
        %3261 = vmatpush1.bf16.msra.mxu0 %v3027
        %3262 = vmatprep.subr.bf16.mxu0 %v3062
        %3263 = vmatpush1.bf16.msra.mxu0 %v3061
        %3264 = vmatprep.subr.bf16.mxu0 %v3064
        %3265 = vmatpush1.bf16.msra.mxu0 %v3063
        %3266 = vmatprep.subr.bf16.mxu0 %v3098
        %3267 = vmatpush1.bf16.msra.mxu0 %v3097
        %3268 = vmatprep.subr.bf16.mxu0 %v3100
        %3269 = vmatpush1.bf16.msra.mxu0 %v3099
        %3270 = vmatprep.subr.bf16.mxu0 %v3134
        %3271 = vmatpush1.bf16.msra.mxu0 %v3133
        %3272 = vmatprep.subr.bf16.mxu0 %v3136
        %3273 = vmatpush1.bf16.msra.mxu0 %v3135
        %3274 = vmatprep.mubr.bf16.mxu0 %v3226
        %3275 = vmatmul.mubr.bf16.gmra.mrb[0].mxu0 %v3225
        %v3276 = vpop.f32.mrb[0].mxu0
        %v3277 = vadd.f32 %v3188, %v3276
        %v3278 = vpop.f32.mrb[0].mxu0
        %v3279 = vadd.f32 %v3188, %v3278
        %v3280 = vpop.f32.mrb[0].mxu0
        %v3281 = vadd.f32 %v3193, %v3280
        %v3282 = vpop.f32.mrb[0].mxu0
        %v3283 = vadd.f32 %v3193, %v3282
        %3284 = vmatprep.mubr.bf16.mxu0 %v3229
        %3285 = vmatmul.mubr.bf16.gmra.mrb[0].mxu0 %v3228
        %v3286 = vpop.f32.mrb[0].mxu0
        %v3287 = vadd.f32 %v3198, %v3286
        %v3288 = vpop.f32.mrb[0].mxu0
        %v3289 = vadd.f32 %v3198, %v3288
        %v3290 = vpop.f32.mrb[0].mxu0
        %v3291 = vadd.f32 %v3203, %v3290
        %v3292 = vpop.f32.mrb[0].mxu0
        %v3293 = vadd.f32 %v3203, %v3292
        %3294 = vdwg.mxu0
        %3295 = vmatprep.subr.bf16.mxu0 %v3170
        %3296 = vmatpush1.bf16.msra.mxu0 %v3169
        %3297 = vmatprep.subr.bf16.mxu0 %v3172
        %3298 = vmatpush1.bf16.msra.mxu0 %v3171
        %3299 = vmatprep.subr.bf16.mxu0 0
        %3300 = vmatpush1.bf16.msra.mxu0 0
        %3301 = vmatprep.subr.bf16.mxu0 0
        %3302 = vmatpush1.bf16.msra.mxu0 0
        %3303 = vmatprep.subr.bf16.mxu0 0
        %3304 = vmatpush1.bf16.msra.mxu0 0
        %3305 = vmatprep.subr.bf16.mxu0 0
        %3306 = vmatpush1.bf16.msra.mxu0 0
        %3307 = vmatprep.subr.bf16.mxu0 0
        %3308 = vmatpush1.bf16.msra.mxu0 0
        %3309 = vmatprep.subr.bf16.mxu0 0
        %3310 = vmatpush1.bf16.msra.mxu0 0
        %3311 = vmatprep.subr.bf16.mxu0 0
        %3312 = vmatpush1.bf16.msra.mxu0 0
        %3313 = vmatprep.subr.bf16.mxu0 0
        %3314 = vmatpush1.bf16.msra.mxu0 0
        %3315 = vmatprep.subr.bf16.mxu0 0
        %3316 = vmatpush1.bf16.msra.mxu0 0
        %3317 = vmatprep.subr.bf16.mxu0 0
        %3318 = vmatpush1.bf16.msra.mxu0 0
        %3319 = vmatprep.subr.bf16.mxu0 0
        %3320 = vmatpush1.bf16.msra.mxu0 0
        %3321 = vmatprep.subr.bf16.mxu0 0
        %3322 = vmatpush1.bf16.msra.mxu0 0
        %3323 = vmatprep.subr.bf16.mxu0 0
        %3324 = vmatpush1.bf16.msra.mxu0 0
        %3325 = vmatprep.subr.bf16.mxu0 0
        %3326 = vmatpush1.bf16.msra.mxu0 0
        %3327 = vmatprep.mubr.bf16.mxu0 0
        %3328 = vmatmul.mubr.bf16.gmra.mrb[0].mxu0 %v3237
        %v3329 = vpop.f32.mrb[0].mxu0
        %v3330 = vadd.f32 %v3277, %v3329
        %v3331 = vpop.f32.mrb[0].mxu0
        %v3332 = vadd.f32 %v3279, %v3331
        %v3333 = vpop.f32.mrb[0].mxu0
        %v3334 = vadd.f32 %v3281, %v3333
        %v3335 = vpop.f32.mrb[0].mxu0
        %v3336 = vadd.f32 %v3283, %v3335
        %3337 = vmatprep.mubr.bf16.mxu0 0
        %3338 = vmatmul.mubr.bf16.gmra.mrb[0].mxu0 %v3240
        %v3339 = vpop.f32.mrb[0].mxu0
        %v3340 = vadd.f32 %v3287, %v3339
        %v3341 = vpop.f32.mrb[0].mxu0
        %v3342 = vadd.f32 %v3289, %v3341
        %v3343 = vpop.f32.mrb[0].mxu0
        %v3344 = vadd.f32 %v3291, %v3343
        %v3345 = vpop.f32.mrb[0].mxu0
        %v3346 = vadd.f32 %v3293, %v3345
        %3347 = vdwg.mxu0
        %v3348 = vmax.f32 %v3330, 0.0
        %v3349 = vmax.f32 %v3332, 0.0
        %v3350 = vmax.f32 %v3334, 0.0
        %v3351 = vmax.f32 %v3336, 0.0
        %v3352 = vmax.f32 %v3340, 0.0
        %v3353 = vmax.f32 %v3342, 0.0
        %v3354 = vmax.f32 %v3344, 0.0
        %v3355 = vmax.f32 %v3346, 0.0
        %3356 = vrot.lane.b32.xlu0 %v3348, 17
        %v3357 = vpop.permute.xlu0 %3356
        %3358 = vrot.lane.b32.xlu0 %v3350, 17
        %v3359 = vpop.permute.xlu0 %3358
        %3360 = vrot.lane.b32.xlu0 %v3352, 17
        %v3361 = vpop.permute.xlu0 %3360
        %3362 = vrot.lane.b32.xlu0 %v3354, 17
        %v3363 = vpop.permute.xlu0 %3362
        %3364 = vrot.lane.b32.xlu0 %v3349, 17
        %v3365 = vpop.permute.xlu0 %3364
        %3366 = vrot.lane.b32.xlu0 %v3351, 17
        %v3367 = vpop.permute.xlu0 %3366
        %3368 = vrot.lane.b32.xlu0 %v3353, 17
        %v3369 = vpop.permute.xlu0 %3368
        %3370 = vrot.lane.b32.xlu0 %v3355, 17
        %v3371 = vpop.permute.xlu0 %3370
        %v3372 = vsel %vm801, %v3357, %v3365
        %v3373 = vsel %vm801, %v3359, %v3367
        %v3374 = vsel %vm801, %v3361, %v3369
        %v3375 = vsel %vm801, %v3363, %v3371
        %v3376 = vsel %vm801, %v3365, %v3357
        %v3377 = vsel %vm801, %v3367, %v3359
        %v3378 = vsel %vm801, %v3369, %v3361
        %v3379 = vsel %vm801, %v3371, %v3363
        %v3380 = vmul.f32 %v3376, %v821
        %v3381 = vmul.f32 %v3372, %v825
        %v3382 = vmul.f32 %v3377, %v821
        %v3383 = vmul.f32 %v3373, %v825
        %v3384 = vmul.f32 %v3378, %v821
        %v3385 = vmul.f32 %v3374, %v825
        %v3386 = vmul.f32 %v3379, %v821
        %v3387 = vmul.f32 %v3375, %v825
        %v3388 = vpack.c.bf16 %v3382, %v3380
        %v3389 = vpack.c.bf16 %v3383, %v3381
        %v3390 = vpack.c.bf16 %v3386, %v3384
        %v3391 = vpack.c.bf16 %v3387, %v3385
        %3392 = vrot.lane.b32.xlu0 %v3348, 16
        %v3393 = vpop.permute.xlu0 %3392
        %3394 = vrot.lane.b32.xlu0 %v3350, 16
        %v3395 = vpop.permute.xlu0 %3394
        %3396 = vrot.lane.b32.xlu0 %v3352, 16
        %v3397 = vpop.permute.xlu0 %3396
        %3398 = vrot.lane.b32.xlu0 %v3354, 16
        %v3399 = vpop.permute.xlu0 %3398
        %3400 = vrot.lane.b32.xlu0 %v3349, 16
        %v3401 = vpop.permute.xlu0 %3400
        %3402 = vrot.lane.b32.xlu0 %v3351, 16
        %v3403 = vpop.permute.xlu0 %3402
        %3404 = vrot.lane.b32.xlu0 %v3353, 16
        %v3405 = vpop.permute.xlu0 %3404
        %3406 = vrot.lane.b32.xlu0 %v3355, 16
        %v3407 = vpop.permute.xlu0 %3406
        %v3408 = vsel %vm882, %v3393, %v3401
        %v3409 = vsel %vm882, %v3395, %v3403
        %v3410 = vsel %vm882, %v3397, %v3405
        %v3411 = vsel %vm882, %v3399, %v3407
        %v3412 = vsel %vm882, %v3401, %v3393
        %v3413 = vsel %vm882, %v3403, %v3395
        %v3414 = vsel %vm882, %v3405, %v3397
        %v3415 = vsel %vm882, %v3407, %v3399
        %v3416 = vmul.f32 %v3412, %v902
        %v3417 = vmul.f32 %v3408, %v906
        %v3418 = vmul.f32 %v3413, %v902
        %v3419 = vmul.f32 %v3409, %v906
        %v3420 = vmul.f32 %v3414, %v902
        %v3421 = vmul.f32 %v3410, %v906
        %v3422 = vmul.f32 %v3415, %v902
        %v3423 = vmul.f32 %v3411, %v906
        %v3424 = vpack.c.bf16 %v3418, %v3416
        %v3425 = vpack.c.bf16 %v3419, %v3417
        %v3426 = vpack.c.bf16 %v3422, %v3420
        %v3427 = vpack.c.bf16 %v3423, %v3421
        %3428 = vrot.lane.b32.xlu0 %v3348, 15
        %v3429 = vpop.permute.xlu0 %3428
        %3430 = vrot.lane.b32.xlu0 %v3350, 15
        %v3431 = vpop.permute.xlu0 %3430
        %3432 = vrot.lane.b32.xlu0 %v3352, 15
        %v3433 = vpop.permute.xlu0 %3432
        %3434 = vrot.lane.b32.xlu0 %v3354, 15
        %v3435 = vpop.permute.xlu0 %3434
        %3436 = vrot.lane.b32.xlu0 %v3349, 15
        %v3437 = vpop.permute.xlu0 %3436
        %3438 = vrot.lane.b32.xlu0 %v3351, 15
        %v3439 = vpop.permute.xlu0 %3438
        %3440 = vrot.lane.b32.xlu0 %v3353, 15
        %v3441 = vpop.permute.xlu0 %3440
        %3442 = vrot.lane.b32.xlu0 %v3355, 15
        %v3443 = vpop.permute.xlu0 %3442
        %v3444 = vsel %vm963, %v3429, %v3437
        %v3445 = vsel %vm963, %v3431, %v3439
        %v3446 = vsel %vm963, %v3433, %v3441
        %v3447 = vsel %vm963, %v3435, %v3443
        %v3448 = vsel %vm963, %v3437, %v3429
        %v3449 = vsel %vm963, %v3439, %v3431
        %v3450 = vsel %vm963, %v3441, %v3433
        %v3451 = vsel %vm963, %v3443, %v3435
        %v3452 = vmul.f32 %v3448, %v983
        %v3453 = vmul.f32 %v3444, %v987
        %v3454 = vmul.f32 %v3449, %v983
        %v3455 = vmul.f32 %v3445, %v987
        %v3456 = vmul.f32 %v3450, %v983
        %v3457 = vmul.f32 %v3446, %v987
        %v3458 = vmul.f32 %v3451, %v983
        %v3459 = vmul.f32 %v3447, %v987
        %v3460 = vpack.c.bf16 %v3454, %v3452
        %v3461 = vpack.c.bf16 %v3455, %v3453
        %v3462 = vpack.c.bf16 %v3458, %v3456
        %v3463 = vpack.c.bf16 %v3459, %v3457
        %3464 = vrot.lane.b32.xlu0 %v3348, 1
        %v3465 = vpop.permute.xlu0 %3464
        %3466 = vrot.lane.b32.xlu0 %v3350, 1
        %v3467 = vpop.permute.xlu0 %3466
        %3468 = vrot.lane.b32.xlu0 %v3352, 1
        %v3469 = vpop.permute.xlu0 %3468
        %3470 = vrot.lane.b32.xlu0 %v3354, 1
        %v3471 = vpop.permute.xlu0 %3470
        %3472 = vrot.lane.b32.xlu0 %v3349, 1
        %v3473 = vpop.permute.xlu0 %3472
        %3474 = vrot.lane.b32.xlu0 %v3351, 1
        %v3475 = vpop.permute.xlu0 %3474
        %3476 = vrot.lane.b32.xlu0 %v3353, 1
        %v3477 = vpop.permute.xlu0 %3476
        %3478 = vrot.lane.b32.xlu0 %v3355, 1
        %v3479 = vpop.permute.xlu0 %3478
        %v3480 = vsel %vm1044, %v3465, %v3473
        %v3481 = vsel %vm1044, %v3467, %v3475
        %v3482 = vsel %vm1044, %v3469, %v3477
        %v3483 = vsel %vm1044, %v3471, %v3479
        %v3484 = vsel %vm1044, %v3473, %v3465
        %v3485 = vsel %vm1044, %v3475, %v3467
        %v3486 = vsel %vm1044, %v3477, %v3469
        %v3487 = vsel %vm1044, %v3479, %v3471
        %v3488 = vmul.f32 %v3484, %v1064
        %v3489 = vmul.f32 %v3480, %v1068
        %v3490 = vmul.f32 %v3485, %v1064
        %v3491 = vmul.f32 %v3481, %v1068
        %v3492 = vmul.f32 %v3486, %v1064
        %v3493 = vmul.f32 %v3482, %v1068
        %v3494 = vmul.f32 %v3487, %v1064
        %v3495 = vmul.f32 %v3483, %v1068
        %v3496 = vpack.c.bf16 %v3490, %v3488
        %v3497 = vpack.c.bf16 %v3491, %v3489
        %v3498 = vpack.c.bf16 %v3494, %v3492
        %v3499 = vpack.c.bf16 %v3495, %v3493
        %v3500 = vpack.c.bf16 %v3350, %v3348
        %v3501 = vpack.c.bf16 %v3351, %v3349
        %v3502 = vpack.c.bf16 %v3354, %v3352
        %v3503 = vpack.c.bf16 %v3355, %v3353
        %3504 = vrot.lane.b32.xlu0 %v3348, 127
        %v3505 = vpop.permute.xlu0 %3504
        %3506 = vrot.lane.b32.xlu0 %v3350, 127
        %v3507 = vpop.permute.xlu0 %3506
        %3508 = vrot.lane.b32.xlu0 %v3352, 127
        %v3509 = vpop.permute.xlu0 %3508
        %3510 = vrot.lane.b32.xlu0 %v3354, 127
        %v3511 = vpop.permute.xlu0 %3510
        %3512 = vrot.lane.b32.xlu0 %v3349, 127
        %v3513 = vpop.permute.xlu0 %3512
        %3514 = vrot.lane.b32.xlu0 %v3351, 127
        %v3515 = vpop.permute.xlu0 %3514
        %3516 = vrot.lane.b32.xlu0 %v3353, 127
        %v3517 = vpop.permute.xlu0 %3516
        %3518 = vrot.lane.b32.xlu0 %v3355, 127
        %v3519 = vpop.permute.xlu0 %3518
        %v3520 = vsel %vm1133, %v3505, %v3513
        %v3521 = vsel %vm1133, %v3507, %v3515
        %v3522 = vsel %vm1133, %v3509, %v3517
        %v3523 = vsel %vm1133, %v3511, %v3519
        %v3524 = vsel %vm1133, %v3513, %v3505
        %v3525 = vsel %vm1133, %v3515, %v3507
        %v3526 = vsel %vm1133, %v3517, %v3509
        %v3527 = vsel %vm1133, %v3519, %v3511
        %v3528 = vmul.f32 %v3520, %v1153
        %v3529 = vmul.f32 %v3524, %v1157
        %v3530 = vmul.f32 %v3521, %v1153
        %v3531 = vmul.f32 %v3525, %v1157
        %v3532 = vmul.f32 %v3522, %v1153
        %v3533 = vmul.f32 %v3526, %v1157
        %v3534 = vmul.f32 %v3523, %v1153
        %v3535 = vmul.f32 %v3527, %v1157
        %v3536 = vpack.c.bf16 %v3530, %v3528
        %v3537 = vpack.c.bf16 %v3531, %v3529
        %v3538 = vpack.c.bf16 %v3534, %v3532
        %v3539 = vpack.c.bf16 %v3535, %v3533
        %3540 = vrot.lane.b32.xlu0 %v3348, 113
        %v3541 = vpop.permute.xlu0 %3540
        %3542 = vrot.lane.b32.xlu0 %v3350, 113
        %v3543 = vpop.permute.xlu0 %3542
        %3544 = vrot.lane.b32.xlu0 %v3352, 113
        %v3545 = vpop.permute.xlu0 %3544
        %3546 = vrot.lane.b32.xlu0 %v3354, 113
        %v3547 = vpop.permute.xlu0 %3546
        %3548 = vrot.lane.b32.xlu0 %v3349, 113
        %v3549 = vpop.permute.xlu0 %3548
        %3550 = vrot.lane.b32.xlu0 %v3351, 113
        %v3551 = vpop.permute.xlu0 %3550
        %3552 = vrot.lane.b32.xlu0 %v3353, 113
        %v3553 = vpop.permute.xlu0 %3552
        %3554 = vrot.lane.b32.xlu0 %v3355, 113
        %v3555 = vpop.permute.xlu0 %3554
        %v3556 = vsel %vm1214, %v3541, %v3549
        %v3557 = vsel %vm1214, %v3543, %v3551
        %v3558 = vsel %vm1214, %v3545, %v3553
        %v3559 = vsel %vm1214, %v3547, %v3555
        %v3560 = vsel %vm1214, %v3549, %v3541
        %v3561 = vsel %vm1214, %v3551, %v3543
        %v3562 = vsel %vm1214, %v3553, %v3545
        %v3563 = vsel %vm1214, %v3555, %v3547
        %v3564 = vmul.f32 %v3556, %v1234
        %v3565 = vmul.f32 %v3560, %v1238
        %v3566 = vmul.f32 %v3557, %v1234
        %v3567 = vmul.f32 %v3561, %v1238
        %v3568 = vmul.f32 %v3558, %v1234
        %v3569 = vmul.f32 %v3562, %v1238
        %v3570 = vmul.f32 %v3559, %v1234
        %v3571 = vmul.f32 %v3563, %v1238
        %v3572 = vpack.c.bf16 %v3566, %v3564
        %v3573 = vpack.c.bf16 %v3567, %v3565
        %v3574 = vpack.c.bf16 %v3570, %v3568
        %v3575 = vpack.c.bf16 %v3571, %v3569
        %3576 = vrot.lane.b32.xlu0 %v3348, 112
        %v3577 = vpop.permute.xlu0 %3576
        %3578 = vrot.lane.b32.xlu0 %v3350, 112
        %v3579 = vpop.permute.xlu0 %3578
        %3580 = vrot.lane.b32.xlu0 %v3352, 112
        %v3581 = vpop.permute.xlu0 %3580
        %3582 = vrot.lane.b32.xlu0 %v3354, 112
        %v3583 = vpop.permute.xlu0 %3582
        %3584 = vrot.lane.b32.xlu0 %v3349, 112
        %v3585 = vpop.permute.xlu0 %3584
        %3586 = vrot.lane.b32.xlu0 %v3351, 112
        %v3587 = vpop.permute.xlu0 %3586
        %3588 = vrot.lane.b32.xlu0 %v3353, 112
        %v3589 = vpop.permute.xlu0 %3588
        %3590 = vrot.lane.b32.xlu0 %v3355, 112
        %v3591 = vpop.permute.xlu0 %3590
        %v3592 = vsel %vm1295, %v3577, %v3585
        %v3593 = vsel %vm1295, %v3579, %v3587
        %v3594 = vsel %vm1295, %v3581, %v3589
        %v3595 = vsel %vm1295, %v3583, %v3591
        %v3596 = vsel %vm1295, %v3585, %v3577
        %v3597 = vsel %vm1295, %v3587, %v3579
        %v3598 = vsel %vm1295, %v3589, %v3581
        %v3599 = vsel %vm1295, %v3591, %v3583
        %v3600 = vmul.f32 %v3592, %v1315
        %v3601 = vmul.f32 %v3596, %v1319
        %v3602 = vmul.f32 %v3593, %v1315
        %v3603 = vmul.f32 %v3597, %v1319
        %v3604 = vmul.f32 %v3594, %v1315
        %v3605 = vmul.f32 %v3598, %v1319
        %v3606 = vmul.f32 %v3595, %v1315
        %v3607 = vmul.f32 %v3599, %v1319
        %v3608 = vpack.c.bf16 %v3602, %v3600
        %v3609 = vpack.c.bf16 %v3603, %v3601
        %v3610 = vpack.c.bf16 %v3606, %v3604
        %v3611 = vpack.c.bf16 %v3607, %v3605
        %3612 = vrot.lane.b32.xlu0 %v3348, 111
        %v3613 = vpop.permute.xlu0 %3612
        %3614 = vrot.lane.b32.xlu0 %v3350, 111
        %v3615 = vpop.permute.xlu0 %3614
        %3616 = vrot.lane.b32.xlu0 %v3352, 111
        %v3617 = vpop.permute.xlu0 %3616
        %3618 = vrot.lane.b32.xlu0 %v3354, 111
        %v3619 = vpop.permute.xlu0 %3618
        %3620 = vrot.lane.b32.xlu0 %v3349, 111
        %v3621 = vpop.permute.xlu0 %3620
        %3622 = vrot.lane.b32.xlu0 %v3351, 111
        %v3623 = vpop.permute.xlu0 %3622
        %3624 = vrot.lane.b32.xlu0 %v3353, 111
        %v3625 = vpop.permute.xlu0 %3624
        %3626 = vrot.lane.b32.xlu0 %v3355, 111
        %v3627 = vpop.permute.xlu0 %3626
        %v3628 = vsel %vm1376, %v3613, %v3621
        %v3629 = vsel %vm1376, %v3615, %v3623
        %v3630 = vsel %vm1376, %v3617, %v3625
        %v3631 = vsel %vm1376, %v3619, %v3627
        %v3632 = vsel %vm1376, %v3621, %v3613
        %v3633 = vsel %vm1376, %v3623, %v3615
        %v3634 = vsel %vm1376, %v3625, %v3617
        %v3635 = vsel %vm1376, %v3627, %v3619
        %v3636 = vmul.f32 %v3628, %v1396
        %v3637 = vmul.f32 %v3632, %v1400
        %v3638 = vmul.f32 %v3629, %v1396
        %v3639 = vmul.f32 %v3633, %v1400
        %v3640 = vmul.f32 %v3630, %v1396
        %v3641 = vmul.f32 %v3634, %v1400
        %v3642 = vmul.f32 %v3631, %v1396
        %v3643 = vmul.f32 %v3635, %v1400
        %v3644 = vpack.c.bf16 %v3638, %v3636
        %v3645 = vpack.c.bf16 %v3639, %v3637
        %v3646 = vpack.c.bf16 %v3642, %v3640
        %v3647 = vpack.c.bf16 %v3643, %v3641
        %v3648 = vld [vmem:[%s18] sm:$0xff]
        %v3649 = vld [vmem:[%s18 + $0x8] sm:$0xf]
        %v3650 = vld [vmem:[%s18 + $0xc] sm:$0xff]
        %v3651 = vld [vmem:[%s18 + $0x14] sm:$0xf]
        %v3652 = vld [vmem:[%s18 + $0x18] sm:$0xff]
        %v3653 = vld [vmem:[%s18 + $0x20] sm:$0xf]
        %v3654 = vld [vmem:[%s18 + $0x24] sm:$0xff]
        %v3655 = vld [vmem:[%s18 + $0x2c] sm:$0xf]
        %v3656 = vld [vmem:[%s19] sm:$0xff]
        %v3657 = vld [vmem:[%s19 + $0x8] sm:$0xff]
        %v3658 = vld [vmem:[%s19 + $0x10] sm:$0xff]
        %v3659 = vld [vmem:[%s19 + $0x18] sm:$0xff]
        %3661 = vset.pattern.permute.xlu0 0
        %3662 = vperm.xlu0 %3661, %v3656
        %v3663 = vpop.permute.xlu0 %3662
        %3666 = vset.pattern.permute.xlu0 0
        %3667 = vperm.xlu0 %3666, %v3657
        %v3668 = vpop.permute.xlu0 %3667
        %3671 = vset.pattern.permute.xlu0 0
        %3672 = vperm.xlu0 %3671, %v3658
        %v3673 = vpop.permute.xlu0 %3672
        %3676 = vset.pattern.permute.xlu0 0
        %3677 = vperm.xlu0 %3676, %v3659
        %v3678 = vpop.permute.xlu0 %3677
        %v3688 = vunpack.c.l.b16 %v3648
        %v3689 = vunpack.c.h.b16 %v3648
        %v3690 = vunpack.c.l.b16 %v3649
        %v3691 = vunpack.c.l.b16 %v3650
        %v3692 = vunpack.c.h.b16 %v3650
        %v3693 = vunpack.c.l.b16 %v3651
        %v3694 = vunpack.c.l.b16 %v3652
        %v3695 = vunpack.c.h.b16 %v3652
        %v3696 = vunpack.c.l.b16 %v3653
        %v3697 = vunpack.c.l.b16 %v3654
        %v3698 = vunpack.c.h.b16 %v3654
        %v3699 = vunpack.c.l.b16 %v3655
        %v3700 = vpack.c.b16 %v3691, %v3688
        %v3701 = vpack.c.b16 %v3692, %v3689
        %v3702 = vpack.c.b16 %v3693, %v3690
        %v3703 = vpack.c.b16 %v3697, %v3694
        %v3704 = vpack.c.b16 %v3698, %v3695
        %v3705 = vpack.c.b16 %v3699, %v3696
        %v3711 = vsel %vm3235, %v3702, 0
        %v3714 = vsel %vm3235, %v3705, 0
        %3716 = vmatprep.subr.bf16.mxu0 %v3389
        %3717 = vmatpush1.bf16.msra.mxu0 %v3388
        %3718 = vmatprep.subr.bf16.mxu0 %v3391
        %3719 = vmatpush1.bf16.msra.mxu0 %v3390
        %3720 = vmatprep.subr.bf16.mxu0 %v3425
        %3721 = vmatpush1.bf16.msra.mxu0 %v3424
        %3722 = vmatprep.subr.bf16.mxu0 %v3427
        %3723 = vmatpush1.bf16.msra.mxu0 %v3426
        %3724 = vmatprep.subr.bf16.mxu0 %v3461
        %3725 = vmatpush1.bf16.msra.mxu0 %v3460
        %3726 = vmatprep.subr.bf16.mxu0 %v3463
        %3727 = vmatpush1.bf16.msra.mxu0 %v3462
        %3728 = vmatprep.subr.bf16.mxu0 %v3497
        %3729 = vmatpush1.bf16.msra.mxu0 %v3496
        %3730 = vmatprep.subr.bf16.mxu0 %v3499
        %3731 = vmatpush1.bf16.msra.mxu0 %v3498
        %3732 = vmatprep.subr.bf16.mxu0 %v3501
        %3733 = vmatpush1.bf16.msra.mxu0 %v3500
        %3734 = vmatprep.subr.bf16.mxu0 %v3503
        %3735 = vmatpush1.bf16.msra.mxu0 %v3502
        %3736 = vmatprep.subr.bf16.mxu0 %v3537
        %3737 = vmatpush1.bf16.msra.mxu0 %v3536
        %3738 = vmatprep.subr.bf16.mxu0 %v3539
        %3739 = vmatpush1.bf16.msra.mxu0 %v3538
        %3740 = vmatprep.subr.bf16.mxu0 %v3573
        %3741 = vmatpush1.bf16.msra.mxu0 %v3572
        %3742 = vmatprep.subr.bf16.mxu0 %v3575
        %3743 = vmatpush1.bf16.msra.mxu0 %v3574
        %3744 = vmatprep.subr.bf16.mxu0 %v3609
        %3745 = vmatpush1.bf16.msra.mxu0 %v3608
        %3746 = vmatprep.subr.bf16.mxu0 %v3611
        %3747 = vmatpush1.bf16.msra.mxu0 %v3610
        %3748 = vmatprep.mubr.bf16.mxu0 %v3701
        %3749 = vmatmul.mubr.bf16.gmra.mrb[0].mxu0 %v3700
        %v3750 = vpop.f32.mrb[0].mxu0
        %v3751 = vadd.f32 %v3663, %v3750
        %v3752 = vpop.f32.mrb[0].mxu0
        %v3753 = vadd.f32 %v3663, %v3752
        %v3754 = vpop.f32.mrb[0].mxu0
        %v3755 = vadd.f32 %v3668, %v3754
        %v3756 = vpop.f32.mrb[0].mxu0
        %v3757 = vadd.f32 %v3668, %v3756
        %3758 = vmatprep.mubr.bf16.mxu0 %v3704
        %3759 = vmatmul.mubr.bf16.gmra.mrb[0].mxu0 %v3703
        %v3760 = vpop.f32.mrb[0].mxu0
        %v3761 = vadd.f32 %v3673, %v3760
        %v3762 = vpop.f32.mrb[0].mxu0
        %v3763 = vadd.f32 %v3673, %v3762
        %v3764 = vpop.f32.mrb[0].mxu0
        %v3765 = vadd.f32 %v3678, %v3764
        %v3766 = vpop.f32.mrb[0].mxu0
        %v3767 = vadd.f32 %v3678, %v3766
        %3768 = vdwg.mxu0
        %3769 = vmatprep.subr.bf16.mxu0 %v3645
        %3770 = vmatpush1.bf16.msra.mxu0 %v3644
        %3771 = vmatprep.subr.bf16.mxu0 %v3647
        %3772 = vmatpush1.bf16.msra.mxu0 %v3646
        %3773 = vmatprep.subr.bf16.mxu0 0
        %3774 = vmatpush1.bf16.msra.mxu0 0
        %3775 = vmatprep.subr.bf16.mxu0 0
        %3776 = vmatpush1.bf16.msra.mxu0 0
        %3777 = vmatprep.subr.bf16.mxu0 0
        %3778 = vmatpush1.bf16.msra.mxu0 0
        %3779 = vmatprep.subr.bf16.mxu0 0
        %3780 = vmatpush1.bf16.msra.mxu0 0
        %3781 = vmatprep.subr.bf16.mxu0 0
        %3782 = vmatpush1.bf16.msra.mxu0 0
        %3783 = vmatprep.subr.bf16.mxu0 0
        %3784 = vmatpush1.bf16.msra.mxu0 0
        %3785 = vmatprep.subr.bf16.mxu0 0
        %3786 = vmatpush1.bf16.msra.mxu0 0
        %3787 = vmatprep.subr.bf16.mxu0 0
        %3788 = vmatpush1.bf16.msra.mxu0 0
        %3789 = vmatprep.subr.bf16.mxu0 0
        %3790 = vmatpush1.bf16.msra.mxu0 0
        %3791 = vmatprep.subr.bf16.mxu0 0
        %3792 = vmatpush1.bf16.msra.mxu0 0
        %3793 = vmatprep.subr.bf16.mxu0 0
        %3794 = vmatpush1.bf16.msra.mxu0 0
        %3795 = vmatprep.subr.bf16.mxu0 0
        %3796 = vmatpush1.bf16.msra.mxu0 0
        %3797 = vmatprep.subr.bf16.mxu0 0
        %3798 = vmatpush1.bf16.msra.mxu0 0
        %3799 = vmatprep.subr.bf16.mxu0 0
        %3800 = vmatpush1.bf16.msra.mxu0 0
        %3801 = vmatprep.mubr.bf16.mxu0 0
        %3802 = vmatmul.mubr.bf16.gmra.mrb[0].mxu0 %v3711
        %v3803 = vpop.f32.mrb[0].mxu0
        %v3804 = vadd.f32 %v3751, %v3803
        %v3805 = vpop.f32.mrb[0].mxu0
        %v3806 = vadd.f32 %v3753, %v3805
        %v3807 = vpop.f32.mrb[0].mxu0
        %v3808 = vadd.f32 %v3755, %v3807
        %v3809 = vpop.f32.mrb[0].mxu0
        %v3810 = vadd.f32 %v3757, %v3809
        %3811 = vmatprep.mubr.bf16.mxu0 0
        %3812 = vmatmul.mubr.bf16.gmra.mrb[0].mxu0 %v3714
        %v3813 = vpop.f32.mrb[0].mxu0
        %v3814 = vadd.f32 %v3761, %v3813
        %v3815 = vpop.f32.mrb[0].mxu0
        %v3816 = vadd.f32 %v3763, %v3815
        %v3817 = vpop.f32.mrb[0].mxu0
        %v3818 = vadd.f32 %v3765, %v3817
        %v3819 = vpop.f32.mrb[0].mxu0
        %v3820 = vadd.f32 %v3767, %v3819
        %3821 = vdwg.mxu0
        %v3822 = vadd.f32 %v3804, %v2873
        %v3823 = vadd.f32 %v3806, %v2874
        %v3824 = vadd.f32 %v3808, %v2875
        %v3825 = vadd.f32 %v3810, %v2876
        %v3826 = vadd.f32 %v3814, %v2877
        %v3827 = vadd.f32 %v3816, %v2878
        %v3828 = vadd.f32 %v3818, %v2879
        %v3829 = vadd.f32 %v3820, %v2880
        %v3830 = vmax.f32 %v3822, 0.0
        %v3831 = vmax.f32 %v3823, 0.0
        %v3832 = vmax.f32 %v3824, 0.0
        %v3833 = vmax.f32 %v3825, 0.0
        %v3834 = vmax.f32 %v3826, 0.0
        %v3835 = vmax.f32 %v3827, 0.0
        %v3836 = vmax.f32 %v3828, 0.0
        %v3837 = vmax.f32 %v3829, 0.0
        %v3838 = vpack.c.bf16 %v3832, %v3830
        %v3839 = vpack.c.bf16 %v3833, %v3831
        %v3840 = vpack.c.bf16 %v3836, %v3834
        %v3841 = vpack.c.bf16 %v3837, %v3835
        %v3842 = vld [vmem:[%s20] sm:$0x3]
        %v3843 = vld [vmem:[%s21] sm:$0x7]
        %3845 = vset.pattern.permute.xlu0 0
        %3846 = vperm.xlu0 %3845, %v3843
        %v3847 = vpop.permute.xlu0 %3846
        %v3850 = vsel %vm3235, %v3842, 0
        %3852 = vmatprep.subr.bf16.mxu0 %v3839
        %3853 = vmatpush1.bf16.msra.mxu0 %v3838
        %3854 = vmatprep.subr.bf16.mxu0 %v3841
        %3855 = vmatpush1.bf16.msra.mxu0 %v3840
        %3856 = vmatprep.subr.bf16.mxu0 0
        %3857 = vmatpush1.bf16.msra.mxu0 0
        %3858 = vmatprep.subr.bf16.mxu0 0
        %3859 = vmatpush1.bf16.msra.mxu0 0
        %3860 = vmatprep.subr.bf16.mxu0 0
        %3861 = vmatpush1.bf16.msra.mxu0 0
        %3862 = vmatprep.subr.bf16.mxu0 0
        %3863 = vmatpush1.bf16.msra.mxu0 0
        %3864 = vmatprep.subr.bf16.mxu0 0
        %3865 = vmatpush1.bf16.msra.mxu0 0
        %3866 = vmatprep.subr.bf16.mxu0 0
        %3867 = vmatpush1.bf16.msra.mxu0 0
        %3868 = vmatprep.subr.bf16.mxu0 0
        %3869 = vmatpush1.bf16.msra.mxu0 0
        %3870 = vmatprep.subr.bf16.mxu0 0
        %3871 = vmatpush1.bf16.msra.mxu0 0
        %3872 = vmatprep.subr.bf16.mxu0 0
        %3873 = vmatpush1.bf16.msra.mxu0 0
        %3874 = vmatprep.subr.bf16.mxu0 0
        %3875 = vmatpush1.bf16.msra.mxu0 0
        %3876 = vmatprep.subr.bf16.mxu0 0
        %3877 = vmatpush1.bf16.msra.mxu0 0
        %3878 = vmatprep.subr.bf16.mxu0 0
        %3879 = vmatpush1.bf16.msra.mxu0 0
        %3880 = vmatprep.subr.bf16.mxu0 0
        %3881 = vmatpush1.bf16.msra.mxu0 0
        %3882 = vmatprep.subr.bf16.mxu0 0
        %3883 = vmatpush1.bf16.msra.mxu0 0
        %3884 = vmatprep.mubr.bf16.mxu0 0
        %3885 = vmatmul.mubr.bf16.gmra.mrb[0].mxu0 %v3850
        %v3886 = vpop.f32.mrb[0].mxu0
        %v3887 = vadd.f32 %v3847, %v3886
        %v3888 = vpop.f32.mrb[0].mxu0
        %v3889 = vadd.f32 %v3847, %v3888
        %v3890 = vpop.f32.mrb[0].mxu0
        %v3891 = vpop.f32.mrb[0].mxu0
        %3892 = vdwg.mxu0
        %v3893 = vld [vmem:[%s736] sm:$0x77]
        %v3895 = vcombine.high %v3893, %v3893
        %v3897 = vadd.f32 %v3887, %v3893
        %v3898 = vadd.f32 %v3889, %v3895
        %v3901 = vcombine.low %v3897, %v3898
        %3903 = vst [vmem:[%s726] sm:$0x77] %v3901
        %p3904 = scmp.lt.s32.totalorder %s38, 1
        %s3905 = scalar_select %p3904, %s38, 1
        %s3906 = smul.addr %s3905, 2
        %s3907 = smul.addr %s3906, 8
        %s3908 = scalar_lea.vmem %s22, %s3907
        %s3909 = sand.u32 %s544, 1
        %s3910 = scalar_lea.sflag [#allocation3], %s3909
        %s3911 = sand.u32 %s544, 1
        %s3912 = smul.addr %s3911, 8
        %s3913 = scalar_lea.vmem [#allocation2], %s3912
        // Predicated region
        $region109: #{cultionet_forward.3} parent=107 // pred_check
          %p3914 = pneg %p528
        $region110: #{cultionet_forward.3} parent=107 // pred_check_branch
          %3916 = sbr.rel (%p3914) target = $region112
        $region111: #{cultionet_forward.3} parent=107 // pred_region
          _
        $region112: #{cultionet_forward.3} parent=107 // pred_fallthru
          _
        // Predicated region
        $region113: #{cultionet_forward.3} parent=107 // pred_check
          %p3917 = pneg %p554
        $region114: #{cultionet_forward.3} parent=107 // pred_check_branch
          %3919 = sbr.rel (%p3917) target = $region116
        $region115: #{cultionet_forward.3} parent=107 // pred_region
          %s3921 = ssub.s32 128, 128
          %3922 = vsyncadd %s3910, %s3921
          %s3923 = smul.addr %s38, 2
          %s3924 = smul.addr %s3923, 64
          %s3925 = scalar_lea.hbm %s23, %s3924
          %s3927 = sshll.u32 %s3913, 4
          %s3928 = int_to_ptr.vmem [resolvable:$true] %s3927
          %3930 = dma.vmem_to_hbm [thread:$0]  %s3928, 128, %s3925, %s3910
        $region116: #{cultionet_forward.3} parent=107 // pred_fallthru
          _
      $region108: #{cultionet_forward.3} parent=5 // pred_fallthru
        _
      %p3931 = scmp.le.s32.totalorder 2, %s33
      // Predicated region
      $region117: #{cultionet_forward.3} parent=5 // pred_check
        %p3932 = pneg %p3931
      $region118: #{cultionet_forward.3} parent=5 // pred_check_branch
        %3934 = sbr.rel (%p3932) target = $region120
      $region119: #{cultionet_forward.3} parent=5 // pred_region
        %s3935 = ssub.s32 %s33, 2
        // Predicated region
        $region121: #{cultionet_forward.3} parent=119 // pred_check
          %p3936 = pneg %p534
        $region122: #{cultionet_forward.3} parent=119 // pred_check_branch
          %3938 = sbr.rel (%p3936) target = $region124
        $region123: #{cultionet_forward.3} parent=119 // pred_region
          %p3939 = scmp.lt.s32.totalorder %s39, 1
          %s3940 = scalar_select %p3939, %s39, 1
          %s3941 = smul.addr %s3940, 2
          %s3942 = smul.addr %s3941, 8
          %s3943 = scalar_lea.vmem %s22, %s3942
        $region124: #{cultionet_forward.3} parent=119 // pred_fallthru
          _
        // Predicated region
        $region125: #{cultionet_forward.3} parent=119 // pred_check
          %p3944 = pneg %p560
        $region126: #{cultionet_forward.3} parent=119 // pred_check_branch
          %3946 = sbr.rel (%p3944) target = $region128
        $region127: #{cultionet_forward.3} parent=119 // pred_region
          %s3947 = sand.u32 %s545, 1
          %s3948 = scalar_lea.sflag [#allocation3], %s3947
          %s3949 = sand.u32 %s545, 1
          %s3950 = smul.addr %s3949, 8
          %s3951 = scalar_lea.vmem [#allocation2], %s3950
          %3952 = dma.done %s3948, 128
        $region128: #{cultionet_forward.3} parent=119 // pred_fallthru
          _
      $region120: #{cultionet_forward.3} parent=5 // pred_fallthru
        _
    $region6: #{cultionet_forward.3} parent=1 // loop_footer
      %s37 = sadd.s32 1, %s33
    $region7: #{cultionet_forward.3} parent=1 // loop_footer_branch
      %32 = sbr.rel target = $region3
    $region8: #{cultionet_forward.3} parent=1 // loop_exit
      _
    %3953 = vsyncpa [#allocation3], 1
    %s3954 = scalar_lea.sflag [#allocation3], 1
    %3955 = vsyncpa %s3954, 1

</llo_original>
